<compile_context>
chip_gen: v5e
topology: v5e:2x2
jax: 0.10.0
libtpu: 0.0.40
codegen_flags: <defaults>
</compile_context>

<pallas_src>
import math
import numpy as np
import jax
import jax.numpy as jnp
from jax.experimental import pallas as pl
from jax.experimental.pallas import tpu as pltpu


# ---------------------------------------------------------------------------
# Tiling / compiler-parameter helpers
# ---------------------------------------------------------------------------

_TILE_T = 512      # lane-dense time tile (multiple of 128) for long sequences
_SMALL_T = 1024    # below this, one full-length block per batch element


def _compiler_params(block_bytes):
    # Explicit scoped-VMEM budget derived from the actual block sizes (double
    # buffering + in-kernel temporaries), clamped to stay within v7x's 64 MiB.
    limit = int(2.5 * block_bytes) + (8 << 20)
    limit = max(32 << 20, min(limit, 64 << 20))
    return pltpu.CompilerParams(
        dimension_semantics=("parallel", "parallel"),   # batch x time tiles
        vmem_limit_bytes=limit,
    )


# ---------------------------------------------------------------------------
# Conv1d kernel: time-tiled, taps stacked into one MXU matmul, fused epilogues
# ---------------------------------------------------------------------------

def conv1d_pallas(x, w, b, *, dilation=1, pad_left=0, pad_right=0,
                  residual=None, final_tanh=False):
    """Conv1d (stride 1, any dilation).

    x: (B, C_in, T), w: (C_out, C_in, K), b: (C_out,).
    Optionally fuses `+ residual` (shape (B, C_out, T_out)) and tanh into the
    kernel epilogue (removes standalone HBM elementwise passes).
    """
    B, C_in, T = x.shape
    C_out, _, K = w.shape
    halo = dilation * (K - 1)
    T_out = T + pad_left + pad_right - halo
    assert T_out >= 1

    # taps stacked into the contraction dim: (C_out, K*C_in) x (K*C_in, TT)
    w_stk = jnp.transpose(w, (0, 2, 1)).reshape(C_out, K * C_in)
    b2 = b.reshape(C_out, 1)

    tiled = T_out > _SMALL_T
    if tiled:
        TT = _TILE_T
        assert halo <= TT
        nT = (T_out + TT - 1) // TT
        Lpad = (nT + 1) * TT               # extra tile so index_map (j+1) is in range
    else:
        TT, nT = T_out, 1
        Lpad = T + pad_left + pad_right    # == TT + halo
    xp = jnp.pad(x, ((0, 0), (0, 0), (pad_left, Lpad - T - pad_left)))

    has_res = residual is not None
    res = residual
    if has_res and nT * TT != T_out:
        res = jnp.pad(res, ((0, 0), (0, 0), (0, nT * TT - T_out)))

    def kernel(*refs):
        i = 0
        xc = refs[i]; i += 1
        xn = None
        if tiled:
            xn = refs[i]; i += 1
        w_ref = refs[i]; i += 1
        b_ref = refs[i]; i += 1
        r_ref = None
        if has_res:
            r_ref = refs[i]; i += 1
        o_ref = refs[i]

        if tiled and halo > 0:
            xw = jnp.concatenate([xc[...], xn[:, :halo]], axis=-1)  # (C_in, TT+halo)
        else:
            xw = xc[...]
        if K > 1:
            xs = jnp.concatenate(
                [xw[:, k * dilation:k * dilation + TT] for k in range(K)], axis=0)
        else:
            xs = xw[:, :TT]
        acc = jnp.dot(w_ref[...], xs, preferred_element_type=jnp.float32)
        acc = acc + b_ref[...]
        if has_res:
            acc = acc + r_ref[...].astype(jnp.float32)
        if final_tanh:
            acc = jnp.tanh(acc)
        o_ref[...] = acc.astype(o_ref.dtype)

    if tiled:
        in_specs = [
            pl.BlockSpec((None, C_in, TT), lambda bi, j: (bi, 0, j)),
            pl.BlockSpec((None, C_in, TT), lambda bi, j: (bi, 0, j + 1)),  # halo tile
        ]
        inputs = [xp, xp]
    else:
        in_specs = [pl.BlockSpec((None, C_in, Lpad), lambda bi, j: (bi, 0, 0))]
        inputs = [xp]
    in_specs += [
        pl.BlockSpec((C_out, K * C_in), lambda bi, j: (0, 0)),
        pl.BlockSpec((C_out, 1), lambda bi, j: (0, 0)),
    ]
    inputs += [w_stk, b2]
    if has_res:
        in_specs.append(pl.BlockSpec((None, C_out, TT), lambda bi, j: (bi, 0, j)))
        inputs.append(res)

    xblk = (2 if tiled else 1) * C_in * (TT + halo)
    block_bytes = 4 * (xblk + C_out * K * C_in + C_out * (TT + 1)
                       + (C_out * TT if has_res else 0)
                       + K * C_in * TT + C_out * TT)        # + in-kernel temporaries

    out = pl.pallas_call(
        kernel,
        out_shape=jax.ShapeDtypeStruct((B, C_out, nT * TT), x.dtype),
        grid=(B, nT),
        in_specs=in_specs,
        out_specs=pl.BlockSpec((None, C_out, TT), lambda bi, j: (bi, 0, j)),
        compiler_params=_compiler_params(block_bytes),
    )(*inputs)
    if nT * TT != T_out:
        out = out[:, :, :T_out]
    return out


# ---------------------------------------------------------------------------
# ConvTranspose1d via polyphase decomposition (reuses conv1d_pallas)
# ---------------------------------------------------------------------------

def conv_transpose1d_pallas(x, w, b, *, stride, padding):
    """ConvTranspose1d.  w: (C_in, C_out, K) (PyTorch layout).

    Polyphase: output positions n with (n+p) % s == r only see kernel taps
    w[.., s*d + r], so the transposed conv equals `stride` small dense convs on the
    un-stuffed input followed by an interleave.  No zero-stuffed HBM intermediate,
    ~1/stride of the MXU work."""
    B, C_in, T = x.shape
    _, C_out, K = w.shape
    s, p = stride, padding
    Lout = (T - 1) * s + K - 2 * p

    use_polyphase = (K - 2 * p == s)       # => Lout == T*s, equal-length phases
    if use_polyphase:
        for rho in range(s):
            r = (rho + p) % s
            d_r = (K - r + s - 1) // s
            off = (rho + p) // s
            if d_r - 1 - off < 0:
                use_polyphase = False

    if not use_polyphase:
        # Fallback: zero-stuff + correlation with the flipped kernel (general case).
        xz = jnp.zeros((B, C_in, (T - 1) * s + 1), x.dtype)
        xz = xz.at[:, :, ::s].set(x)
        w_eq = jnp.flip(jnp.transpose(w, (1, 0, 2)), axis=2)
        return conv1d_pallas(xz, w_eq, b, dilation=1,
                             pad_left=K - 1 - p, pad_right=K - 1 - p)

    phases = []
    for rho in range(s):                   # output congruence class (n % s == rho)
        r = (rho + p) % s
        off = (rho + p) // s
        taps = w[:, :, r::s]               # (C_in, C_out, D_r), ascending d
        d_r = taps.shape[-1]
        w_conv = jnp.transpose(jnp.flip(taps, axis=-1), (1, 0, 2))  # (C_out, C_in, D_r)
        z = conv1d_pallas(x, w_conv, b, dilation=1,
                          pad_left=d_r - 1 - off, pad_right=off)    # (B, C_out, T)
        phases.append(z)
    out = jnp.stack(phases, axis=-1).reshape(B, C_out, T * s)
    return out


# ---------------------------------------------------------------------------
# Fused anti-aliased SnakeBeta activation (Activation1d with ratio-2 kaiser-sinc)
# ---------------------------------------------------------------------------

def kaiser_sinc_filter1d(cutoff, half_width, kernel_size):
    even = kernel_size % 2 == 0
    half_size = kernel_size // 2
    delta_f = 4 * half_width
    A = 2.285 * (half_size - 1) * math.pi * delta_f + 7.95
    if A > 50.0:
        beta = 0.1102 * (A - 8.7)
    elif A >= 21.0:
        beta = 0.5842 * (A - 21) ** 0.4 + 0.07886 * (A - 21.0)
    else:
        beta = 0.0
    window = np.kaiser(kernel_size, beta)
    if even:
        time = np.arange(-half_size, half_size) + 0.5
    else:
        time = np.arange(kernel_size) - half_size
    if cutoff == 0:
        return np.zeros(kernel_size)
    filt = 2 * cutoff * window * np.sinc(2 * cutoff * time)
    filt = filt / filt.sum()
    return filt


_AA_KS = 12
_AA_FILT = kaiser_sinc_filter1d(0.25, 0.3, _AA_KS)          # ratio 2
# Polyphase coefficients (derived from the torch UpSample1d/DownSample1d arithmetic):
#   up  : y[2t] = 2*sum_j xq[t+j]  *f[11-2j],  y[2t+1] = 2*sum_j xq[t+1+j]*f[10-2j]
#         with xq = replicate-pad(x, 3, 3)
#   down: out[t] = sum_j f[2j+1]*se_ext[t+j] + f[2j]*so_ext[t+j]
#         where se/so are the snaked even/odd phases of y (edge-replicated).
_UP_E = [float(2.0 * _AA_FILT[11 - 2 * j]) for j in range(6)]
_UP_O = [float(2.0 * _AA_FILT[10 - 2 * j]) for j in range(6)]
_DN_SE = [float(_AA_FILT[2 * j + 1]) for j in range(6)]
_DN_SO = [float(_AA_FILT[2 * j]) for j in range(6)]


def aa_snakebeta_pallas(x, log_alpha, log_beta):
    """Activation1d(SnakeBeta): 2x upsample -> snake -> lowpass -> 2x decimate,
    fused into a single Pallas kernel (polyphase, 2x-rate signal never hits HBM)."""
    B, C, L = x.shape
    a_flat = jnp.exp(log_alpha).astype(jnp.float32)
    ib_flat = (1.0 / (jnp.exp(log_beta) + 1e-9)).astype(jnp.float32)
    alpha = a_flat.reshape(C, 1)
    inv_beta = ib_flat.reshape(C, 1)

    xq = jnp.pad(x, ((0, 0), (0, 0), (3, 3)), mode="edge")          # (B, C, L+6)

    # Global edge values s[0], s[2L-1] of the snaked upsampled signal (needed by the
    # lowpass stage's replicate padding).  Tiny; computed in plain JAX.
    fe = jnp.asarray(_UP_E, jnp.float32)
    fo = jnp.asarray(_UP_O, jnp.float32)
    y_first = jnp.einsum("bcj,j->bc", xq[:, :, :6].astype(jnp.float32), fe)
    y_last = jnp.einsum("bcj,j->bc", xq[:, :, L:L + 6].astype(jnp.float32), fo)
    edge_l = (y_first + ib_flat[None, :] * jnp.sin(y_first * a_flat[None, :]) ** 2
              ).reshape(B, C, 1)
    edge_r = (y_last + ib_flat[None, :] * jnp.sin(y_last * a_flat[None, :]) ** 2
              ).reshape(B, C, 1)

    tiled = L > _SMALL_T
    if tiled:
        TT = _TILE_T
        nT = (L + TT - 1) // TT
        Lpad = (nT + 1) * TT
    else:
        TT, nT = L, 1
        Lpad = L + 10
    # xbig[p] == xq[p-2]; zeros beyond only feed masked-out (edge-replaced) positions
    xbig = jnp.pad(xq, ((0, 0), (0, 0), (2, Lpad - (L + 8))))

    NB = TT + 5                        # phase-buffer length per tile

    def kernel(*refs):
        if tiled:
            xc, xn, a_ref, ib_ref, el_ref, er_ref, o_ref = refs
            xw = jnp.concatenate([xc[...], xn[:, :10]], axis=-1)     # (C, TT+10)
        else:
            xc, a_ref, ib_ref, el_ref, er_ref, o_ref = refs
            xw = xc[...]
        xw = xw.astype(jnp.float32)

        ye = jnp.zeros((C, NB), jnp.float32)
        yo = jnp.zeros((C, NB), jnp.float32)
        for q in range(6):                       # polyphase 2x upsample FIR
            seg = xw[:, q:q + NB]
            ye = ye + _UP_E[q] * seg
            yo = yo + _UP_O[q] * seg

        a = a_ref[...]
        ib = ib_ref[...]
        se = ye + ib * jnp.square(jnp.sin(ye * a))       # SnakeBeta
        so = yo + ib * jnp.square(jnp.sin(yo * a))

        # replicate padding of the lowpass stage at the global signal edges
        t0 = pl.program_id(1) * TT
        v = t0 + jax.lax.broadcasted_iota(jnp.int32, (C, NB), 1)
        el = el_ref[...]
        er = er_ref[...]
        se = jnp.where(v < 2, el, jnp.where(v >= L + 2, er, se))
        so = jnp.where(v < 3, el, jnp.where(v >= L + 3, er, so))

        acc = jnp.zeros((C, TT), jnp.float32)
        for q in range(6):                       # polyphase lowpass + 2x decimation
            acc = acc + _DN_SE[q] * se[:, q:q + TT] + _DN_SO[q] * so[:, q:q + TT]
        o_ref[...] = acc.astype(o_ref.dtype)

    if tiled:
        in_specs = [
            pl.BlockSpec((None, C, TT), lambda bi, j: (bi, 0, j)),
            pl.BlockSpec((None, C, TT), lambda bi, j: (bi, 0, j + 1)),
        ]
        inputs = [xbig, xbig]
        xblk = 2 * C * TT
    else:
        in_specs = [pl.BlockSpec((None, C, Lpad), lambda bi, j: (bi, 0, 0))]
        inputs = [xbig]
        xblk = C * Lpad
    in_specs += [
        pl.BlockSpec((C, 1), lambda bi, j: (0, 0)),
        pl.BlockSpec((C, 1), lambda bi, j: (0, 0)),
        pl.BlockSpec((None, C, 1), lambda bi, j: (bi, 0, 0)),
        pl.BlockSpec((None, C, 1), lambda bi, j: (bi, 0, 0)),
    ]
    inputs += [alpha, inv_beta, edge_l, edge_r]

    block_bytes = 4 * (xblk + C * TT + 4 * C + 6 * C * NB + C * TT)

    out = pl.pallas_call(
        kernel,
        out_shape=jax.ShapeDtypeStruct((B, C, nT * TT), x.dtype),
        grid=(B, nT),
        in_specs=in_specs,
        out_specs=pl.BlockSpec((None, C, TT), lambda bi, j: (bi, 0, j)),
        compiler_params=_compiler_params(block_bytes),
    )(*inputs)
    if nT * TT != L:
        out = out[:, :, :L]
    return out


# ---------------------------------------------------------------------------
# Model: AMPBlock1 + BigVGAN forward
# ---------------------------------------------------------------------------

def amp_block1(x, rb, kernel_size, dilations):
    for i, d in enumerate(dilations):
        w1, b1 = rb["convs1"][i]
        w2, b2 = rb["convs2"][i]
        la1, lb1 = rb["acts"][2 * i]
        la2, lb2 = rb["acts"][2 * i + 1]
        p1 = (kernel_size * d - d) // 2
        p2 = (kernel_size - 1) // 2
        xt = aa_snakebeta_pallas(x, la1, lb1)
        xt = conv1d_pallas(xt, w1, b1, dilation=d, pad_left=p1, pad_right=p1)
        xt = aa_snakebeta_pallas(xt, la2, lb2)
        # residual add fused into the conv epilogue
        x = conv1d_pallas(xt, w2, b2, dilation=1, pad_left=p2, pad_right=p2,
                          residual=x)
    return x


def build_forward(h):
    # TODO(synk): AMPBlock2 (resblock='2') and plain Snake activation follow the same
    # activation+conv(+fused residual) pattern; only AMPBlock1/SnakeBeta is wired here.
    assert h.get("resblock", "1") == "1"
    assert h.get("activation", "snakebeta") == "snakebeta"
    num_kernels = len(h["resblock_kernel_sizes"])

    def forward(params, x):
        x = x.astype(jnp.float32)
        x = conv1d_pallas(x, params["conv_pre_w"], params["conv_pre_b"],
                          pad_left=3, pad_right=3)
        for i, (u, k) in enumerate(zip(h["upsample_rates"],
                                       h["upsample_kernel_sizes"])):
            wt, bt = params["ups"][i]
            x = conv_transpose1d_pallas(x, wt, bt, stride=u, padding=(k - u) // 2)
            xs = None
            for j in range(num_kernels):
                rb = params["resblocks"][i * num_kernels + j]
                y = amp_block1(x, rb, h["resblock_kernel_sizes"][j],
                               h["resblock_dilation_sizes"][j])
                xs = y if xs is None else xs + y
            # TODO(synk): averaging over num_kernels left as a plain XLA op; could be
            # folded into the last conv epilogue of each resblock branch.
            x = xs / num_kernels
        x = aa_snakebeta_pallas(x, *params["act_post"])
        if h.get("use_tanh_at_final", True):
            x = conv1d_pallas(x, params["conv_post_w"], params["conv_post_b"],
                              pad_left=3, pad_right=3, final_tanh=True)
        else:
            x = conv1d_pallas(x, params["conv_post_w"], params["conv_post_b"],
                              pad_left=3, pad_right=3)
            x = jnp.clip(x, -1.0, 1.0)
        return x

    return forward


# ---------------------------------------------------------------------------
# Deterministic synthetic parameters (shapes match the module __init__)
# ---------------------------------------------------------------------------

def init_params(key, h, weight_scale=0.1):
    IN = h.get("model_in_dim", 128)
    UIC = h["upsample_initial_channel"]
    keys = iter(jax.random.split(key, 1024))

    def nrm(shape, std=weight_scale):
        return std * jax.random.normal(next(keys), shape, dtype=jnp.float32)

    params = {}
    params["conv_pre_w"] = nrm((UIC, IN, 7))
    params["conv_pre_b"] = nrm((UIC,))
    params["ups"] = []
    params["resblocks"] = []
    ch = UIC
    for i, (u, k) in enumerate(zip(h["upsample_rates"], h["upsample_kernel_sizes"])):
        c_in = UIC // (2 ** i)
        c_out = UIC // (2 ** (i + 1))
        params["ups"].append((nrm((c_in, c_out, k)), nrm((c_out,))))   # (C_in,C_out,K)
        ch = c_out
        for rk, rd in zip(h["resblock_kernel_sizes"], h["resblock_dilation_sizes"]):
            convs1, convs2, acts = [], [], []
            for _ in rd:
                convs1.append((nrm((ch, ch, rk)), nrm((ch,))))
                convs2.append((nrm((ch, ch, rk)), nrm((ch,))))
            for _ in range(2 * len(rd)):
                # non-zero SnakeBeta log-params so the nonlinearity is exercised
                acts.append((0.3 * jax.random.normal(next(keys), (ch,), jnp.float32),
                             0.3 * jax.random.normal(next(keys), (ch,), jnp.float32)))
            params["resblocks"].append(
                {"convs1": convs1, "convs2": convs2, "acts": acts})
    params["act_post"] = (0.3 * jax.random.normal(next(keys), (ch,), jnp.float32),
                          0.3 * jax.random.normal(next(keys), (ch,), jnp.float32))
    params["conv_post_w"] = nrm((1, ch, 7))
    params["conv_post_b"] = (nrm((1,)) if h.get("use_bias_at_final", True)
                             else jnp.zeros((1,), jnp.float32))
    return params


# ---------------------------------------------------------------------------
# Pure-JAX reference (op-by-op mirror of the PyTorch module) for validation
# ---------------------------------------------------------------------------

def _ref_conv1d(x, w, b, dilation, pad_left, pad_right):
    B, C_in, T = x.shape
    C_out, _, K = w.shape
    xp = jnp.pad(x, ((0, 0), (0, 0), (pad_left, pad_right)))
    T_out = T + pad_left + pad_right - dilation * (K - 1)
    out = jnp.zeros((B, C_out, T_out), jnp.float32)
    for k in range(K):
        out = out + jnp.einsum("oc,bct->bot", w[:, :, k],
                               xp[:, :, k * dilation:k * dilation + T_out])
    return out + b.reshape(1, C_out, 1)


def _ref_conv_transpose1d(x, w, b, stride, padding):
    B, C_in, T = x.shape
    _, C_out, K = w.shape
    Lout = (T - 1) * stride + K - 2 * padding
    out = jnp.zeros((B, C_out, Lout), jnp.float32)
    for k in range(K):
        contrib = jnp.einsum("co,bct->bot", w[:, :, k], x)
        i0 = max(0, -((k - padding) // stride))
        i1 = min(T - 1, (Lout - 1 + padding - k) // stride)
        if i1 < i0:
            continue
        n0 = stride * i0 + k - padding
        out = out.at[:, :, n0:n0 + stride * (i1 - i0) + 1:stride].add(
            contrib[:, :, i0:i1 + 1])
    return out + b.reshape(1, C_out, 1)


def _ref_snake(x, log_a, log_b):
    a = jnp.exp(log_a).reshape(1, -1, 1)
    bb = jnp.exp(log_b).reshape(1, -1, 1)
    s = jnp.sin(x * a)
    return x + (1.0 / (bb + 1e-9)) * s * s


def _ref_aa_act(x, log_a, log_b):
    fv = [float(v) for v in _AA_FILT]
    B, C, L = x.shape
    # UpSample1d(ratio=2, ks=12): replicate pad 5, transposed conv stride 2, crop 15
    xp = jnp.pad(x, ((0, 0), (0, 0), (5, 5)), mode="edge")
    Lp = L + 10
    z = jnp.zeros((B, C, 2 * Lp + 10), jnp.float32)
    for k in range(12):
        z = z.at[:, :, k:k + 2 * Lp - 1:2].add(fv[k] * xp)
    y = 2.0 * z[:, :, 15:15 + 2 * L]
    y = _ref_snake(y, log_a, log_b)
    # DownSample1d(ratio=2, ks=12): replicate pad (5,6), conv stride 2
    yp = jnp.pad(y, ((0, 0), (0, 0), (5, 6)), mode="edge")
    out = jnp.zeros((B, C, L), jnp.float32)
    for k in range(12):
        out = out + fv[k] * yp[:, :, k:k + 2 * L - 1:2]
    return out


def _ref_ampblock1(x, rb, kernel_size, dilations):
    for i, d in enumerate(dilations):
        w1, b1 = rb["convs1"][i]
        w2, b2 = rb["convs2"][i]
        la1, lb1 = rb["acts"][2 * i]
        la2, lb2 = rb["acts"][2 * i + 1]
        p1 = (kernel_size * d - d) // 2
        p2 = (kernel_size - 1) // 2
        xt = _ref_aa_act(x, la1, lb1)
        xt = _ref_conv1d(xt, w1, b1, d, p1, p1)
        xt = _ref_aa_act(xt, la2, lb2)
        xt = _ref_conv1d(xt, w2, b2, 1, p2, p2)
        x = xt + x
    return x


def build_reference(h):
    num_kernels = len(h["resblock_kernel_sizes"])

    def forward(params, x):
        x = x.astype(jnp.float32)
        x = _ref_conv1d(x, params["conv_pre_w"], params["conv_pre_b"], 1, 3, 3)
        for i, (u, k) in enumerate(zip(h["upsample_rates"],
                                       h["upsample_kernel_sizes"])):
            wt, bt = params["ups"][i]
            x = _ref_conv_transpose1d(x, wt, bt, u, (k - u) // 2)
            xs = None
            for j in range(num_kernels):
                rb = params["resblocks"][i * num_kernels + j]
                y = _ref_ampblock1(x, rb, h["resblock_kernel_sizes"][j],
                                   h["resblock_dilation_sizes"][j])
                xs = y if xs is None else xs + y
            x = xs / num_kernels
        x = _ref_aa_act(x, *params["act_post"])
        x = _ref_conv1d(x, params["conv_post_w"], params["conv_post_b"], 1, 3, 3)
        if h.get("use_tanh_at_final", True):
            return jnp.tanh(x)
        return jnp.clip(x, -1.0, 1.0)

    return forward


# ---------------------------------------------------------------------------
# Main
# ---------------------------------------------------------------------------

if __name__ == "__main__":
    h = dict(
        model_in_dim=32,
        upsample_initial_channel=64,
        upsample_rates=[2, 2],
        upsample_kernel_sizes=[4, 4],
        resblock="1",
        resblock_kernel_sizes=[3],
        resblock_dilation_sizes=[[1, 3]],
        activation="snakebeta",
        snake_logscale=True,
        use_bias_at_final=True,
        use_tanh_at_final=True,
    )

    key = jax.random.PRNGKey(0)
    pkey, xkey = jax.random.split(key)
    params = init_params(pkey, h)

    B, T = 2, 8
    x = jax.random.normal(xkey, (B, h["model_in_dim"], T), dtype=jnp.float32)

    forward = jax.jit(build_forward(h))
    out = forward(params, x)
    jax.block_until_ready(out)

    total_up = int(np.prod(h["upsample_rates"]))
    assert out.shape == (B, 1, T * total_up), out.shape

    # validate against the pure-JAX op-by-op mirror of the PyTorch module
    ref = jax.jit(build_reference(h))(params, x)
    jax.block_until_ready(ref)
    err = float(jnp.max(jnp.abs(out - ref)))
    assert err < 2e-3, f"max |pallas - reference| = {err}"

    print("KERNEL_OK")
</pallas_src>

<mosaic_0001>
module attributes {stable_mosaic.version = 11 : i64} {
  func.func @kernel(%arg0: i32, %arg1: i32, %arg2: memref<1x32x14xf32, #tpu.memory_space<vmem>>, %arg3: memref<64x224xf32, #tpu.memory_space<vmem>>, %arg4: memref<64x1xf32, #tpu.memory_space<vmem>>, %arg5: memref<1x64x8xf32, #tpu.memory_space<vmem>>) attributes {dimension_semantics = [#tpu.dimension_semantics<parallel>, #tpu.dimension_semantics<parallel>], iteration_bounds = array<i64: 2, 1>, scalar_prefetch = 0 : i64, scratch_operands = 0 : i64, tpu.core_type = #tpu.core_type<tc>, window_params = [{transform_indices = @transform_0, window_bounds = array<i64: 1, 32, 14>}, {pipeline_mode = #tpu.pipeline_mode<synchronous>, transform_indices = @transform_1, window_bounds = array<i64: 64, 224>}, {pipeline_mode = #tpu.pipeline_mode<synchronous>, transform_indices = @transform_2, window_bounds = array<i64: 64, 1>}, {transform_indices = @transform_3, window_bounds = array<i64: 1, 64, 8>}]} {
    %c0 = arith.constant 0 : index
    %c0_0 = arith.constant 0 : index
    %c0_1 = arith.constant 0 : index
    %0 = vector.load %arg2[%c0, %c0_0, %c0_1] : memref<1x32x14xf32, #tpu.memory_space<vmem>>, vector<1x32x14xf32>
    %1 = vector.shape_cast %0 : vector<1x32x14xf32> to vector<32x14xf32>
    %2 = vector.extract_strided_slice %1 {offsets = [0, 0], sizes = [32, 8], strides = [1, 1]} : vector<32x14xf32> to vector<32x8xf32>
    %3 = vector.extract_strided_slice %1 {offsets = [0, 1], sizes = [32, 8], strides = [1, 1]} : vector<32x14xf32> to vector<32x8xf32>
    %4 = vector.extract_strided_slice %1 {offsets = [0, 2], sizes = [32, 8], strides = [1, 1]} : vector<32x14xf32> to vector<32x8xf32>
    %5 = vector.extract_strided_slice %1 {offsets = [0, 3], sizes = [32, 8], strides = [1, 1]} : vector<32x14xf32> to vector<32x8xf32>
    %6 = vector.extract_strided_slice %1 {offsets = [0, 4], sizes = [32, 8], strides = [1, 1]} : vector<32x14xf32> to vector<32x8xf32>
    %7 = vector.extract_strided_slice %1 {offsets = [0, 5], sizes = [32, 8], strides = [1, 1]} : vector<32x14xf32> to vector<32x8xf32>
    %8 = vector.extract_strided_slice %1 {offsets = [0, 6], sizes = [32, 8], strides = [1, 1]} : vector<32x14xf32> to vector<32x8xf32>
    %9 = tpu.concatenate %2, %3, %4, %5, %6, %7, %8 in 0 : vector<32x8xf32>, vector<32x8xf32>, vector<32x8xf32>, vector<32x8xf32>, vector<32x8xf32>, vector<32x8xf32>, vector<32x8xf32> -> vector<224x8xf32>
    %c0_2 = arith.constant 0 : index
    %c0_3 = arith.constant 0 : index
    %10 = vector.load %arg3[%c0_2, %c0_3] : memref<64x224xf32, #tpu.memory_space<vmem>>, vector<64x224xf32>
    %cst = arith.constant dense<0.000000e+00> : vector<64x8xf32>
    %11 = tpu.matmul %10, %9, %cst {dimension_numbers = #tpu.dot_dimension_numbers<[1], [0], [0], [1], [0, 0, 1, 1], [], []>} : vector<64x224xf32>, vector<224x8xf32>, vector<64x8xf32> -> vector<64x8xf32>
    %c0_4 = arith.constant 0 : index
    %c0_5 = arith.constant 0 : index
    %12 = vector.load %arg4[%c0_4, %c0_5] : memref<64x1xf32, #tpu.memory_space<vmem>>, vector<64x1xf32>
    %13 = vector.broadcast %12 : vector<64x1xf32> to vector<64x8xf32>
    %14 = arith.addf %11, %13 : vector<64x8xf32>
    %c0_6 = arith.constant 0 : index
    %c0_7 = arith.constant 0 : index
    %c0_8 = arith.constant 0 : index
    %15 = vector.load %arg5[%c0_6, %c0_7, %c0_8] : memref<1x64x8xf32, #tpu.memory_space<vmem>>, vector<1x64x8xf32>
    %16 = vector.shape_cast %15 : vector<1x64x8xf32> to vector<64x8xf32>
    %17 = vector.shape_cast %14 : vector<64x8xf32> to vector<1x64x8xf32>
    tpu.vector_store %arg5[%c0_6, %c0_7, %c0_8], %17 {strides = array<i32>} : memref<1x64x8xf32, #tpu.memory_space<vmem>>, vector<1x64x8xf32>,
    return
  }
  func.func @transform_0(%arg0: i32, %arg1: i32) -> (i32, i32, i32) {
    %c0_i32 = arith.constant 0 : i32
    %c0_i32_0 = arith.constant 0 : i32
    %c0_i32_1 = arith.constant 0 : i32
    return %arg0, %c0_i32, %c0_i32_0 : i32, i32, i32
  }
  func.func @transform_1(%arg0: i32, %arg1: i32) -> (i32, i32) {
    %c0_i32 = arith.constant 0 : i32
    %c0_i32_0 = arith.constant 0 : i32
    %c0_i32_1 = arith.constant 0 : i32
    return %c0_i32, %c0_i32_0 : i32, i32
  }
  func.func @transform_2(%arg0: i32, %arg1: i32) -> (i32, i32) {
    %c0_i32 = arith.constant 0 : i32
    %c0_i32_0 = arith.constant 0 : i32
    %c0_i32_1 = arith.constant 0 : i32
    return %c0_i32, %c0_i32_0 : i32, i32
  }
  func.func @transform_3(%arg0: i32, %arg1: i32) -> (i32, i32, i32) {
    %c0_i32 = arith.constant 0 : i32
    %c0_i32_0 = arith.constant 0 : i32
    return %arg0, %c0_i32, %arg1 : i32, i32, i32
  }
}

module attributes {stable_mosaic.version = 11 : i64} {
  func.func @kernel(%arg0: i32, %arg1: i32, %arg2: memref<1x64x9xf32, #tpu.memory_space<vmem>>, %arg3: memref<32x128xf32, #tpu.memory_space<vmem>>, %arg4: memref<32x1xf32, #tpu.memory_space<vmem>>, %arg5: memref<1x32x8xf32, #tpu.memory_space<vmem>>) attributes {dimension_semantics = [#tpu.dimension_semantics<parallel>, #tpu.dimension_semantics<parallel>], iteration_bounds = array<i64: 2, 1>, scalar_prefetch = 0 : i64, scratch_operands = 0 : i64, tpu.core_type = #tpu.core_type<tc>, window_params = [{transform_indices = @transform_0, window_bounds = array<i64: 1, 64, 9>}, {pipeline_mode = #tpu.pipeline_mode<synchronous>, transform_indices = @transform_1, window_bounds = array<i64: 32, 128>}, {pipeline_mode = #tpu.pipeline_mode<synchronous>, transform_indices = @transform_2, window_bounds = array<i64: 32, 1>}, {transform_indices = @transform_3, window_bounds = array<i64: 1, 32, 8>}]} {
    %c0 = arith.constant 0 : index
    %c0_0 = arith.constant 0 : index
    %c0_1 = arith.constant 0 : index
    %0 = vector.load %arg2[%c0, %c0_0, %c0_1] : memref<1x64x9xf32, #tpu.memory_space<vmem>>, vector<1x64x9xf32>
    %1 = vector.shape_cast %0 : vector<1x64x9xf32> to vector<64x9xf32>
    %2 = vector.extract_strided_slice %1 {offsets = [0, 0], sizes = [64, 8], strides = [1, 1]} : vector<64x9xf32> to vector<64x8xf32>
    %3 = vector.extract_strided_slice %1 {offsets = [0, 1], sizes = [64, 8], strides = [1, 1]} : vector<64x9xf32> to vector<64x8xf32>
    %4 = tpu.concatenate %2, %3 in 0 : vector<64x8xf32>, vector<64x8xf32> -> vector<128x8xf32>
    %c0_2 = arith.constant 0 : index
    %c0_3 = arith.constant 0 : index
    %5 = vector.load %arg3[%c0_2, %c0_3] : memref<32x128xf32, #tpu.memory_space<vmem>>, vector<32x128xf32>
    %cst = arith.constant dense<0.000000e+00> : vector<32x8xf32>
    %6 = tpu.matmul %5, %4, %cst {dimension_numbers = #tpu.dot_dimension_numbers<[1], [0], [0], [1], [0, 0, 1, 1], [], []>} : vector<32x128xf32>, vector<128x8xf32>, vector<32x8xf32> -> vector<32x8xf32>
    %c0_4 = arith.constant 0 : index
    %c0_5 = arith.constant 0 : index
    %7 = vector.load %arg4[%c0_4, %c0_5] : memref<32x1xf32, #tpu.memory_space<vmem>>, vector<32x1xf32>
    %8 = vector.broadcast %7 : vector<32x1xf32> to vector<32x8xf32>
    %9 = arith.addf %6, %8 : vector<32x8xf32>
    %c0_6 = arith.constant 0 : index
    %c0_7 = arith.constant 0 : index
    %c0_8 = arith.constant 0 : index
    %10 = vector.load %arg5[%c0_6, %c0_7, %c0_8] : memref<1x32x8xf32, #tpu.memory_space<vmem>>, vector<1x32x8xf32>
    %11 = vector.shape_cast %10 : vector<1x32x8xf32> to vector<32x8xf32>
    %12 = vector.shape_cast %9 : vector<32x8xf32> to vector<1x32x8xf32>
    tpu.vector_store %arg5[%c0_6, %c0_7, %c0_8], %12 {strides = array<i32>} : memref<1x32x8xf32, #tpu.memory_space<vmem>>, vector<1x32x8xf32>,
    return
  }
  func.func @transform_0(%arg0: i32, %arg1: i32) -> (i32, i32, i32) {
    %c0_i32 = arith.constant 0 : i32
    %c0_i32_0 = arith.constant 0 : i32
    %c0_i32_1 = arith.constant 0 : i32
    return %arg0, %c0_i32, %c0_i32_0 : i32, i32, i32
  }
  func.func @transform_1(%arg0: i32, %arg1: i32) -> (i32, i32) {
    %c0_i32 = arith.constant 0 : i32
    %c0_i32_0 = arith.constant 0 : i32
    %c0_i32_1 = arith.constant 0 : i32
    return %c0_i32, %c0_i32_0 : i32, i32
  }
  func.func @transform_2(%arg0: i32, %arg1: i32) -> (i32, i32) {
    %c0_i32 = arith.constant 0 : i32
    %c0_i32_0 = arith.constant 0 : i32
    %c0_i32_1 = arith.constant 0 : i32
    return %c0_i32, %c0_i32_0 : i32, i32
  }
  func.func @transform_3(%arg0: i32, %arg1: i32) -> (i32, i32, i32) {
    %c0_i32 = arith.constant 0 : i32
    %c0_i32_0 = arith.constant 0 : i32
    return %arg0, %c0_i32, %arg1 : i32, i32, i32
  }
}

module attributes {stable_mosaic.version = 11 : i64} {
  func.func @kernel(%arg0: i32, %arg1: i32, %arg2: memref<1x32x18xf32, #tpu.memory_space<vmem>>, %arg3: memref<32x96xf32, #tpu.memory_space<vmem>>, %arg4: memref<32x1xf32, #tpu.memory_space<vmem>>, %arg5: memref<1x32x16xf32, #tpu.memory_space<vmem>>) attributes {dimension_semantics = [#tpu.dimension_semantics<parallel>, #tpu.dimension_semantics<parallel>], iteration_bounds = array<i64: 2, 1>, scalar_prefetch = 0 : i64, scratch_operands = 0 : i64, tpu.core_type = #tpu.core_type<tc>, window_params = [{transform_indices = @transform_0, window_bounds = array<i64: 1, 32, 18>}, {pipeline_mode = #tpu.pipeline_mode<synchronous>, transform_indices = @transform_1, window_bounds = array<i64: 32, 96>}, {pipeline_mode = #tpu.pipeline_mode<synchronous>, transform_indices = @transform_2, window_bounds = array<i64: 32, 1>}, {transform_indices = @transform_3, window_bounds = array<i64: 1, 32, 16>}]} {
    %c0 = arith.constant 0 : index
    %c0_0 = arith.constant 0 : index
    %c0_1 = arith.constant 0 : index
    %0 = vector.load %arg2[%c0, %c0_0, %c0_1] : memref<1x32x18xf32, #tpu.memory_space<vmem>>, vector<1x32x18xf32>
    %1 = vector.shape_cast %0 : vector<1x32x18xf32> to vector<32x18xf32>
    %2 = vector.extract_strided_slice %1 {offsets = [0, 0], sizes = [32, 16], strides = [1, 1]} : vector<32x18xf32> to vector<32x16xf32>
    %3 = vector.extract_strided_slice %1 {offsets = [0, 1], sizes = [32, 16], strides = [1, 1]} : vector<32x18xf32> to vector<32x16xf32>
    %4 = vector.extract_strided_slice %1 {offsets = [0, 2], sizes = [32, 16], strides = [1, 1]} : vector<32x18xf32> to vector<32x16xf32>
    %5 = tpu.concatenate %2, %3, %4 in 0 : vector<32x16xf32>, vector<32x16xf32>, vector<32x16xf32> -> vector<96x16xf32>
    %c0_2 = arith.constant 0 : index
    %c0_3 = arith.constant 0 : index
    %6 = vector.load %arg3[%c0_2, %c0_3] : memref<32x96xf32, #tpu.memory_space<vmem>>, vector<32x96xf32>
    %cst = arith.constant dense<0.000000e+00> : vector<32x16xf32>
    %7 = tpu.matmul %6, %5, %cst {dimension_numbers = #tpu.dot_dimension_numbers<[1], [0], [0], [1], [0, 0, 1, 1], [], []>} : vector<32x96xf32>, vector<96x16xf32>, vector<32x16xf32> -> vector<32x16xf32>
    %c0_4 = arith.constant 0 : index
    %c0_5 = arith.constant 0 : index
    %8 = vector.load %arg4[%c0_4, %c0_5] : memref<32x1xf32, #tpu.memory_space<vmem>>, vector<32x1xf32>
    %9 = vector.broadcast %8 : vector<32x1xf32> to vector<32x16xf32>
    %10 = arith.addf %7, %9 : vector<32x16xf32>
    %c0_6 = arith.constant 0 : index
    %c0_7 = arith.constant 0 : index
    %c0_8 = arith.constant 0 : index
    %11 = vector.load %arg5[%c0_6, %c0_7, %c0_8] : memref<1x32x16xf32, #tpu.memory_space<vmem>>, vector<1x32x16xf32>
    %12 = vector.shape_cast %11 : vector<1x32x16xf32> to vector<32x16xf32>
    %13 = vector.shape_cast %10 : vector<32x16xf32> to vector<1x32x16xf32>
    tpu.vector_store %arg5[%c0_6, %c0_7, %c0_8], %13 {strides = array<i32>} : memref<1x32x16xf32, #tpu.memory_space<vmem>>, vector<1x32x16xf32>,
    return
  }
  func.func @transform_0(%arg0: i32, %arg1: i32) -> (i32, i32, i32) {
    %c0_i32 = arith.constant 0 : i32
    %c0_i32_0 = arith.constant 0 : i32
    %c0_i32_1 = arith.constant 0 : i32
    return %arg0, %c0_i32, %c0_i32_0 : i32, i32, i32
  }
  func.func @transform_1(%arg0: i32, %arg1: i32) -> (i32, i32) {
    %c0_i32 = arith.constant 0 : i32
    %c0_i32_0 = arith.constant 0 : i32
    %c0_i32_1 = arith.constant 0 : i32
    return %c0_i32, %c0_i32_0 : i32, i32
  }
  func.func @transform_2(%arg0: i32, %arg1: i32) -> (i32, i32) {
    %c0_i32 = arith.constant 0 : i32
    %c0_i32_0 = arith.constant 0 : i32
    %c0_i32_1 = arith.constant 0 : i32
    return %c0_i32, %c0_i32_0 : i32, i32
  }
  func.func @transform_3(%arg0: i32, %arg1: i32) -> (i32, i32, i32) {
    %c0_i32 = arith.constant 0 : i32
    %c0_i32_0 = arith.constant 0 : i32
    return %arg0, %c0_i32, %arg1 : i32, i32, i32
  }
}

module attributes {stable_mosaic.version = 11 : i64} {
  func.func @kernel(%arg0: i32, %arg1: i32, %arg2: memref<1x32x26xf32, #tpu.memory_space<vmem>>, %arg3: memref<32x1xf32, #tpu.memory_space<vmem>>, %arg4: memref<32x1xf32, #tpu.memory_space<vmem>>, %arg5: memref<1x32x1xf32, #tpu.memory_space<vmem>>, %arg6: memref<1x32x1xf32, #tpu.memory_space<vmem>>, %arg7: memref<1x32x16xf32, #tpu.memory_space<vmem>>) attributes {dimension_semantics = [#tpu.dimension_semantics<parallel>, #tpu.dimension_semantics<parallel>], iteration_bounds = array<i64: 2, 1>, scalar_prefetch = 0 : i64, scratch_operands = 0 : i64, tpu.core_type = #tpu.core_type<tc>, window_params = [{transform_indices = @transform_0, window_bounds = array<i64: 1, 32, 26>}, {pipeline_mode = #tpu.pipeline_mode<synchronous>, transform_indices = @transform_1, window_bounds = array<i64: 32, 1>}, {pipeline_mode = #tpu.pipeline_mode<synchronous>, transform_indices = @transform_2, window_bounds = array<i64: 32, 1>}, {transform_indices = @transform_3, window_bounds = array<i64: 1, 32, 1>}, {transform_indices = @transform_4, window_bounds = array<i64: 1, 32, 1>}, {transform_indices = @transform_5, window_bounds = array<i64: 1, 32, 16>}]} {
    %c0 = arith.constant 0 : index
    %c0_0 = arith.constant 0 : index
    %c0_1 = arith.constant 0 : index
    %0 = vector.load %arg2[%c0, %c0_0, %c0_1] : memref<1x32x26xf32, #tpu.memory_space<vmem>>, vector<1x32x26xf32>
    %1 = vector.shape_cast %0 : vector<1x32x26xf32> to vector<32x26xf32>
    %cst = arith.constant 0.000000e+00 : f32
    %2 = vector.broadcast %cst : f32 to vector<32x21xf32>
    %cst_2 = arith.constant 0.000000e+00 : f32
    %3 = vector.broadcast %cst_2 : f32 to vector<32x21xf32>
    %4 = vector.extract_strided_slice %1 {offsets = [0, 0], sizes = [32, 21], strides = [1, 1]} : vector<32x26xf32> to vector<32x21xf32>
    %cst_3 = arith.constant 0.00405793311 : f32
    %5 = vector.broadcast %cst_3 : f32 to vector<32x21xf32>
    %6 = arith.mulf %5, %4 : vector<32x21xf32>
    %7 = arith.addf %2, %6 : vector<32x21xf32>
    %cst_4 = arith.constant 0.0187789276 : f32
    %8 = vector.broadcast %cst_4 : f32 to vector<32x21xf32>
    %9 = arith.mulf %8, %4 : vector<32x21xf32>
    %10 = arith.addf %3, %9 : vector<32x21xf32>
    %11 = vector.extract_strided_slice %1 {offsets = [0, 1], sizes = [32, 21], strides = [1, 1]} : vector<32x26xf32> to vector<32x21xf32>
    %cst_5 = arith.constant -0.0510869287 : f32
    %12 = vector.broadcast %cst_5 : f32 to vector<32x21xf32>
    %13 = arith.mulf %12, %11 : vector<32x21xf32>
    %14 = arith.addf %7, %13 : vector<32x21xf32>
    %cst_6 = arith.constant -0.115314752 : f32
    %15 = vector.broadcast %cst_6 : f32 to vector<32x21xf32>
    %16 = arith.mulf %15, %11 : vector<32x21xf32>
    %17 = arith.addf %10, %16 : vector<32x21xf32>
    %18 = vector.extract_strided_slice %1 {offsets = [0, 2], sizes = [32, 21], strides = [1, 1]} : vector<32x26xf32> to vector<32x21xf32>
    %cst_7 = arith.constant 0.257145226 : f32
    %19 = vector.broadcast %cst_7 : f32 to vector<32x21xf32>
    %20 = arith.mulf %19, %18 : vector<32x21xf32>
    %21 = arith.addf %14, %20 : vector<32x21xf32>
    %cst_8 = arith.constant 0.886419594 : f32
    %22 = vector.broadcast %cst_8 : f32 to vector<32x21xf32>
    %23 = arith.mulf %22, %18 : vector<32x21xf32>
    %24 = arith.addf %17, %23 : vector<32x21xf32>
    %25 = vector.extract_strided_slice %1 {offsets = [0, 3], sizes = [32, 21], strides = [1, 1]} : vector<32x26xf32> to vector<32x21xf32>
    %cst_9 = arith.constant 0.886419594 : f32
    %26 = vector.broadcast %cst_9 : f32 to vector<32x21xf32>
    %27 = arith.mulf %26, %25 : vector<32x21xf32>
    %28 = arith.addf %21, %27 : vector<32x21xf32>
    %cst_10 = arith.constant 0.257145226 : f32
    %29 = vector.broadcast %cst_10 : f32 to vector<32x21xf32>
    %30 = arith.mulf %29, %25 : vector<32x21xf32>
    %31 = arith.addf %24, %30 : vector<32x21xf32>
    %32 = vector.extract_strided_slice %1 {offsets = [0, 4], sizes = [32, 21], strides = [1, 1]} : vector<32x26xf32> to vector<32x21xf32>
    %cst_11 = arith.constant -0.115314752 : f32
    %33 = vector.broadcast %cst_11 : f32 to vector<32x21xf32>
    %34 = arith.mulf %33, %32 : vector<32x21xf32>
    %35 = arith.addf %28, %34 : vector<32x21xf32>
    %cst_12 = arith.constant -0.0510869287 : f32
    %36 = vector.broadcast %cst_12 : f32 to vector<32x21xf32>
    %37 = arith.mulf %36, %32 : vector<32x21xf32>
    %38 = arith.addf %31, %37 : vector<32x21xf32>
    %39 = vector.extract_strided_slice %1 {offsets = [0, 5], sizes = [32, 21], strides = [1, 1]} : vector<32x26xf32> to vector<32x21xf32>
    %cst_13 = arith.constant 0.0187789276 : f32
    %40 = vector.broadcast %cst_13 : f32 to vector<32x21xf32>
    %41 = arith.mulf %40, %39 : vector<32x21xf32>
    %42 = arith.addf %35, %41 : vector<32x21xf32>
    %cst_14 = arith.constant 0.00405793311 : f32
    %43 = vector.broadcast %cst_14 : f32 to vector<32x21xf32>
    %44 = arith.mulf %43, %39 : vector<32x21xf32>
    %45 = arith.addf %38, %44 : vector<32x21xf32>
    %c0_15 = arith.constant 0 : index
    %c0_16 = arith.constant 0 : index
    %46 = vector.load %arg3[%c0_15, %c0_16] : memref<32x1xf32, #tpu.memory_space<vmem>>, vector<32x1xf32>
    %c0_17 = arith.constant 0 : index
    %c0_18 = arith.constant 0 : index
    %47 = vector.load %arg4[%c0_17, %c0_18] : memref<32x1xf32, #tpu.memory_space<vmem>>, vector<32x1xf32>
    %48 = vector.broadcast %46 : vector<32x1xf32> to vector<32x21xf32>
    %49 = arith.mulf %42, %48 : vector<32x21xf32>
    %50 = math.sin %49 : vector<32x21xf32>
    %51 = arith.mulf %50, %50 : vector<32x21xf32>
    %52 = vector.broadcast %47 : vector<32x1xf32> to vector<32x21xf32>
    %53 = arith.mulf %52, %51 : vector<32x21xf32>
    %54 = arith.addf %42, %53 : vector<32x21xf32>
    %55 = vector.broadcast %46 : vector<32x1xf32> to vector<32x21xf32>
    %56 = arith.mulf %45, %55 : vector<32x21xf32>
    %57 = math.sin %56 : vector<32x21xf32>
    %58 = arith.mulf %57, %57 : vector<32x21xf32>
    %59 = vector.broadcast %47 : vector<32x1xf32> to vector<32x21xf32>
    %60 = arith.mulf %59, %58 : vector<32x21xf32>
    %61 = arith.addf %45, %60 : vector<32x21xf32>
    %c16_i32 = arith.constant 16 : i32
    %62 = arith.muli %arg1, %c16_i32 : i32
    %63 = tpu.iota {dimensions = array<i32: 1>} : vector<32x21xi32>
    %64 = vector.broadcast %62 : i32 to vector<32x21xi32>
    %65 = arith.addi %64, %63 : vector<32x21xi32>
    %c0_19 = arith.constant 0 : index
    %c0_20 = arith.constant 0 : index
    %c0_21 = arith.constant 0 : index
    %66 = vector.load %arg5[%c0_19, %c0_20, %c0_21] : memref<1x32x1xf32, #tpu.memory_space<vmem>>, vector<1x32x1xf32>
    %67 = vector.shape_cast %66 : vector<1x32x1xf32> to vector<32x1xf32>
    %c0_22 = arith.constant 0 : index
    %c0_23 = arith.constant 0 : index
    %c0_24 = arith.constant 0 : index
    %68 = vector.load %arg6[%c0_22, %c0_23, %c0_24] : memref<1x32x1xf32, #tpu.memory_space<vmem>>, vector<1x32x1xf32>
    %69 = vector.shape_cast %68 : vector<1x32x1xf32> to vector<32x1xf32>
    %c2_i32 = arith.constant 2 : i32
    %70 = vector.broadcast %c2_i32 : i32 to vector<32x21xi32>
    %71 = arith.cmpi slt, %65, %70 : vector<32x21xi32>
    %c18_i32 = arith.constant 18 : i32
    %72 = vector.broadcast %c18_i32 : i32 to vector<32x21xi32>
    %73 = arith.cmpi sge, %65, %72 : vector<32x21xi32>
    %74 = vector.shape_cast %69 : vector<32x1xf32> to vector<32x1xf32>
    %75 = vector.broadcast %74 : vector<32x1xf32> to vector<32x21xf32>
    %76 = arith.select %73, %75, %54 : vector<32x21xi1>, vector<32x21xf32>
    %77 = vector.shape_cast %67 : vector<32x1xf32> to vector<32x1xf32>
    %78 = vector.broadcast %77 : vector<32x1xf32> to vector<32x21xf32>
    %79 = arith.select %71, %78, %76 : vector<32x21xi1>, vector<32x21xf32>
    %c3_i32 = arith.constant 3 : i32
    %80 = vector.broadcast %c3_i32 : i32 to vector<32x21xi32>
    %81 = arith.cmpi slt, %65, %80 : vector<32x21xi32>
    %c19_i32 = arith.constant 19 : i32
    %82 = vector.broadcast %c19_i32 : i32 to vector<32x21xi32>
    %83 = arith.cmpi sge, %65, %82 : vector<32x21xi32>
    %84 = vector.shape_cast %69 : vector<32x1xf32> to vector<32x1xf32>
    %85 = vector.broadcast %84 : vector<32x1xf32> to vector<32x21xf32>
    %86 = arith.select %83, %85, %61 : vector<32x21xi1>, vector<32x21xf32>
    %87 = vector.shape_cast %67 : vector<32x1xf32> to vector<32x1xf32>
    %88 = vector.broadcast %87 : vector<32x1xf32> to vector<32x21xf32>
    %89 = arith.select %81, %88, %86 : vector<32x21xi1>, vector<32x21xf32>
    %cst_25 = arith.constant 0.000000e+00 : f32
    %90 = vector.broadcast %cst_25 : f32 to vector<32x16xf32>
    %91 = vector.extract_strided_slice %79 {offsets = [0, 0], sizes = [32, 16], strides = [1, 1]} : vector<32x21xf32> to vector<32x16xf32>
    %cst_26 = arith.constant 0.00938946381 : f32
    %92 = vector.broadcast %cst_26 : f32 to vector<32x16xf32>
    %93 = arith.mulf %92, %91 : vector<32x16xf32>
    %94 = arith.addf %90, %93 : vector<32x16xf32>
    %95 = vector.extract_strided_slice %89 {offsets = [0, 0], sizes = [32, 16], strides = [1, 1]} : vector<32x21xf32> to vector<32x16xf32>
    %cst_27 = arith.constant 0.00202896656 : f32
    %96 = vector.broadcast %cst_27 : f32 to vector<32x16xf32>
    %97 = arith.mulf %96, %95 : vector<32x16xf32>
    %98 = arith.addf %94, %97 : vector<32x16xf32>
    %99 = vector.extract_strided_slice %79 {offsets = [0, 1], sizes = [32, 16], strides = [1, 1]} : vector<32x21xf32> to vector<32x16xf32>
    %cst_28 = arith.constant -0.0576573759 : f32
    %100 = vector.broadcast %cst_28 : f32 to vector<32x16xf32>
    %101 = arith.mulf %100, %99 : vector<32x16xf32>
    %102 = arith.addf %98, %101 : vector<32x16xf32>
    %103 = vector.extract_strided_slice %89 {offsets = [0, 1], sizes = [32, 16], strides = [1, 1]} : vector<32x21xf32> to vector<32x16xf32>
    %cst_29 = arith.constant -0.0255434643 : f32
    %104 = vector.broadcast %cst_29 : f32 to vector<32x16xf32>
    %105 = arith.mulf %104, %103 : vector<32x16xf32>
    %106 = arith.addf %102, %105 : vector<32x16xf32>
    %107 = vector.extract_strided_slice %79 {offsets = [0, 2], sizes = [32, 16], strides = [1, 1]} : vector<32x21xf32> to vector<32x16xf32>
    %cst_30 = arith.constant 0.443209797 : f32
    %108 = vector.broadcast %cst_30 : f32 to vector<32x16xf32>
    %109 = arith.mulf %108, %107 : vector<32x16xf32>
    %110 = arith.addf %106, %109 : vector<32x16xf32>
    %111 = vector.extract_strided_slice %89 {offsets = [0, 2], sizes = [32, 16], strides = [1, 1]} : vector<32x21xf32> to vector<32x16xf32>
    %cst_31 = arith.constant 0.128572613 : f32
    %112 = vector.broadcast %cst_31 : f32 to vector<32x16xf32>
    %113 = arith.mulf %112, %111 : vector<32x16xf32>
    %114 = arith.addf %110, %113 : vector<32x16xf32>
    %115 = vector.extract_strided_slice %79 {offsets = [0, 3], sizes = [32, 16], strides = [1, 1]} : vector<32x21xf32> to vector<32x16xf32>
    %cst_32 = arith.constant 0.128572613 : f32
    %116 = vector.broadcast %cst_32 : f32 to vector<32x16xf32>
    %117 = arith.mulf %116, %115 : vector<32x16xf32>
    %118 = arith.addf %114, %117 : vector<32x16xf32>
    %119 = vector.extract_strided_slice %89 {offsets = [0, 3], sizes = [32, 16], strides = [1, 1]} : vector<32x21xf32> to vector<32x16xf32>
    %cst_33 = arith.constant 0.443209797 : f32
    %120 = vector.broadcast %cst_33 : f32 to vector<32x16xf32>
    %121 = arith.mulf %120, %119 : vector<32x16xf32>
    %122 = arith.addf %118, %121 : vector<32x16xf32>
    %123 = vector.extract_strided_slice %79 {offsets = [0, 4], sizes = [32, 16], strides = [1, 1]} : vector<32x21xf32> to vector<32x16xf32>
    %cst_34 = arith.constant -0.0255434643 : f32
    %124 = vector.broadcast %cst_34 : f32 to vector<32x16xf32>
    %125 = arith.mulf %124, %123 : vector<32x16xf32>
    %126 = arith.addf %122, %125 : vector<32x16xf32>
    %127 = vector.extract_strided_slice %89 {offsets = [0, 4], sizes = [32, 16], strides = [1, 1]} : vector<32x21xf32> to vector<32x16xf32>
    %cst_35 = arith.constant -0.0576573759 : f32
    %128 = vector.broadcast %cst_35 : f32 to vector<32x16xf32>
    %129 = arith.mulf %128, %127 : vector<32x16xf32>
    %130 = arith.addf %126, %129 : vector<32x16xf32>
    %131 = vector.extract_strided_slice %79 {offsets = [0, 5], sizes = [32, 16], strides = [1, 1]} : vector<32x21xf32> to vector<32x16xf32>
    %cst_36 = arith.constant 0.00202896656 : f32
    %132 = vector.broadcast %cst_36 : f32 to vector<32x16xf32>
    %133 = arith.mulf %132, %131 : vector<32x16xf32>
    %134 = arith.addf %130, %133 : vector<32x16xf32>
    %135 = vector.extract_strided_slice %89 {offsets = [0, 5], sizes = [32, 16], strides = [1, 1]} : vector<32x21xf32> to vector<32x16xf32>
    %cst_37 = arith.constant 0.00938946381 : f32
    %136 = vector.broadcast %cst_37 : f32 to vector<32x16xf32>
    %137 = arith.mulf %136, %135 : vector<32x16xf32>
    %138 = arith.addf %134, %137 : vector<32x16xf32>
    %c0_38 = arith.constant 0 : index
    %c0_39 = arith.constant 0 : index
    %c0_40 = arith.constant 0 : index
    %139 = vector.load %arg7[%c0_38, %c0_39, %c0_40] : memref<1x32x16xf32, #tpu.memory_space<vmem>>, vector<1x32x16xf32>
    %140 = vector.shape_cast %139 : vector<1x32x16xf32> to vector<32x16xf32>
    %141 = vector.shape_cast %138 : vector<32x16xf32> to vector<1x32x16xf32>
    tpu.vector_store %arg7[%c0_38, %c0_39, %c0_40], %141 {strides = array<i32>} : memref<1x32x16xf32, #tpu.memory_space<vmem>>, vector<1x32x16xf32>,
    return
  }
  func.func @transform_0(%arg0: i32, %arg1: i32) -> (i32, i32, i32) {
    %c0_i32 = arith.constant 0 : i32
    %c0_i32_0 = arith.constant 0 : i32
    %c0_i32_1 = arith.constant 0 : i32
    return %arg0, %c0_i32, %c0_i32_0 : i32, i32, i32
  }
  func.func @transform_1(%arg0: i32, %arg1: i32) -> (i32, i32) {
    %c0_i32 = arith.constant 0 : i32
    %c0_i32_0 = arith.constant 0 : i32
    %c0_i32_1 = arith.constant 0 : i32
    return %c0_i32, %c0_i32_0 : i32, i32
  }
  func.func @transform_2(%arg0: i32, %arg1: i32) -> (i32, i32) {
    %c0_i32 = arith.constant 0 : i32
    %c0_i32_0 = arith.constant 0 : i32
    %c0_i32_1 = arith.constant 0 : i32
    return %c0_i32, %c0_i32_0 : i32, i32
  }
  func.func @transform_3(%arg0: i32, %arg1: i32) -> (i32, i32, i32) {
    %c0_i32 = arith.constant 0 : i32
    %c0_i32_0 = arith.constant 0 : i32
    %c0_i32_1 = arith.constant 0 : i32
    return %arg0, %c0_i32, %c0_i32_0 : i32, i32, i32
  }
  func.func @transform_4(%arg0: i32, %arg1: i32) -> (i32, i32, i32) {
    %c0_i32 = arith.constant 0 : i32
    %c0_i32_0 = arith.constant 0 : i32
    %c0_i32_1 = arith.constant 0 : i32
    return %arg0, %c0_i32, %c0_i32_0 : i32, i32, i32
  }
  func.func @transform_5(%arg0: i32, %arg1: i32) -> (i32, i32, i32) {
    %c0_i32 = arith.constant 0 : i32
    %c0_i32_0 = arith.constant 0 : i32
    return %arg0, %c0_i32, %arg1 : i32, i32, i32
  }
}

module attributes {stable_mosaic.version = 11 : i64} {
  func.func @kernel(%arg0: i32, %arg1: i32, %arg2: memref<1x32x22xf32, #tpu.memory_space<vmem>>, %arg3: memref<32x96xf32, #tpu.memory_space<vmem>>, %arg4: memref<32x1xf32, #tpu.memory_space<vmem>>, %arg5: memref<1x32x16xf32, #tpu.memory_space<vmem>>) attributes {dimension_semantics = [#tpu.dimension_semantics<parallel>, #tpu.dimension_semantics<parallel>], iteration_bounds = array<i64: 2, 1>, scalar_prefetch = 0 : i64, scratch_operands = 0 : i64, tpu.core_type = #tpu.core_type<tc>, window_params = [{transform_indices = @transform_0, window_bounds = array<i64: 1, 32, 22>}, {pipeline_mode = #tpu.pipeline_mode<synchronous>, transform_indices = @transform_1, window_bounds = array<i64: 32, 96>}, {pipeline_mode = #tpu.pipeline_mode<synchronous>, transform_indices = @transform_2, window_bounds = array<i64: 32, 1>}, {transform_indices = @transform_3, window_bounds = array<i64: 1, 32, 16>}]} {
    %c0 = arith.constant 0 : index
    %c0_0 = arith.constant 0 : index
    %c0_1 = arith.constant 0 : index
    %0 = vector.load %arg2[%c0, %c0_0, %c0_1] : memref<1x32x22xf32, #tpu.memory_space<vmem>>, vector<1x32x22xf32>
    %1 = vector.shape_cast %0 : vector<1x32x22xf32> to vector<32x22xf32>
    %2 = vector.extract_strided_slice %1 {offsets = [0, 0], sizes = [32, 16], strides = [1, 1]} : vector<32x22xf32> to vector<32x16xf32>
    %3 = vector.extract_strided_slice %1 {offsets = [0, 3], sizes = [32, 16], strides = [1, 1]} : vector<32x22xf32> to vector<32x16xf32>
    %4 = vector.extract_strided_slice %1 {offsets = [0, 6], sizes = [32, 16], strides = [1, 1]} : vector<32x22xf32> to vector<32x16xf32>
    %5 = tpu.concatenate %2, %3, %4 in 0 : vector<32x16xf32>, vector<32x16xf32>, vector<32x16xf32> -> vector<96x16xf32>
    %c0_2 = arith.constant 0 : index
    %c0_3 = arith.constant 0 : index
    %6 = vector.load %arg3[%c0_2, %c0_3] : memref<32x96xf32, #tpu.memory_space<vmem>>, vector<32x96xf32>
    %cst = arith.constant dense<0.000000e+00> : vector<32x16xf32>
    %7 = tpu.matmul %6, %5, %cst {dimension_numbers = #tpu.dot_dimension_numbers<[1], [0], [0], [1], [0, 0, 1, 1], [], []>} : vector<32x96xf32>, vector<96x16xf32>, vector<32x16xf32> -> vector<32x16xf32>
    %c0_4 = arith.constant 0 : index
    %c0_5 = arith.constant 0 : index
    %8 = vector.load %arg4[%c0_4, %c0_5] : memref<32x1xf32, #tpu.memory_space<vmem>>, vector<32x1xf32>
    %9 = vector.broadcast %8 : vector<32x1xf32> to vector<32x16xf32>
    %10 = arith.addf %7, %9 : vector<32x16xf32>
    %c0_6 = arith.constant 0 : index
    %c0_7 = arith.constant 0 : index
    %c0_8 = arith.constant 0 : index
    %11 = vector.load %arg5[%c0_6, %c0_7, %c0_8] : memref<1x32x16xf32, #tpu.memory_space<vmem>>, vector<1x32x16xf32>
    %12 = vector.shape_cast %11 : vector<1x32x16xf32> to vector<32x16xf32>
    %13 = vector.shape_cast %10 : vector<32x16xf32> to vector<1x32x16xf32>
    tpu.vector_store %arg5[%c0_6, %c0_7, %c0_8], %13 {strides = array<i32>} : memref<1x32x16xf32, #tpu.memory_space<vmem>>, vector<1x32x16xf32>,
    return
  }
  func.func @transform_0(%arg0: i32, %arg1: i32) -> (i32, i32, i32) {
    %c0_i32 = arith.constant 0 : i32
    %c0_i32_0 = arith.constant 0 : i32
    %c0_i32_1 = arith.constant 0 : i32
    return %arg0, %c0_i32, %c0_i32_0 : i32, i32, i32
  }
  func.func @transform_1(%arg0: i32, %arg1: i32) -> (i32, i32) {
    %c0_i32 = arith.constant 0 : i32
    %c0_i32_0 = arith.constant 0 : i32
    %c0_i32_1 = arith.constant 0 : i32
    return %c0_i32, %c0_i32_0 : i32, i32
  }
  func.func @transform_2(%arg0: i32, %arg1: i32) -> (i32, i32) {
    %c0_i32 = arith.constant 0 : i32
    %c0_i32_0 = arith.constant 0 : i32
    %c0_i32_1 = arith.constant 0 : i32
    return %c0_i32, %c0_i32_0 : i32, i32
  }
  func.func @transform_3(%arg0: i32, %arg1: i32) -> (i32, i32, i32) {
    %c0_i32 = arith.constant 0 : i32
    %c0_i32_0 = arith.constant 0 : i32
    return %arg0, %c0_i32, %arg1 : i32, i32, i32
  }
}

module attributes {stable_mosaic.version = 11 : i64} {
  func.func @kernel(%arg0: i32, %arg1: i32, %arg2: memref<1x32x18xf32, #tpu.memory_space<vmem>>, %arg3: memref<32x96xf32, #tpu.memory_space<vmem>>, %arg4: memref<32x1xf32, #tpu.memory_space<vmem>>, %arg5: memref<1x32x16xf32, #tpu.memory_space<vmem>>, %arg6: memref<1x32x16xf32, #tpu.memory_space<vmem>>) attributes {dimension_semantics = [#tpu.dimension_semantics<parallel>, #tpu.dimension_semantics<parallel>], iteration_bounds = array<i64: 2, 1>, scalar_prefetch = 0 : i64, scratch_operands = 0 : i64, tpu.core_type = #tpu.core_type<tc>, window_params = [{transform_indices = @transform_0, window_bounds = array<i64: 1, 32, 18>}, {pipeline_mode = #tpu.pipeline_mode<synchronous>, transform_indices = @transform_1, window_bounds = array<i64: 32, 96>}, {pipeline_mode = #tpu.pipeline_mode<synchronous>, transform_indices = @transform_2, window_bounds = array<i64: 32, 1>}, {transform_indices = @transform_3, window_bounds = array<i64: 1, 32, 16>}, {transform_indices = @transform_4, window_bounds = array<i64: 1, 32, 16>}]} {
    %c0 = arith.constant 0 : index
    %c0_0 = arith.constant 0 : index
    %c0_1 = arith.constant 0 : index
    %0 = vector.load %arg2[%c0, %c0_0, %c0_1] : memref<1x32x18xf32, #tpu.memory_space<vmem>>, vector<1x32x18xf32>
    %1 = vector.shape_cast %0 : vector<1x32x18xf32> to vector<32x18xf32>
    %2 = vector.extract_strided_slice %1 {offsets = [0, 0], sizes = [32, 16], strides = [1, 1]} : vector<32x18xf32> to vector<32x16xf32>
    %3 = vector.extract_strided_slice %1 {offsets = [0, 1], sizes = [32, 16], strides = [1, 1]} : vector<32x18xf32> to vector<32x16xf32>
    %4 = vector.extract_strided_slice %1 {offsets = [0, 2], sizes = [32, 16], strides = [1, 1]} : vector<32x18xf32> to vector<32x16xf32>
    %5 = tpu.concatenate %2, %3, %4 in 0 : vector<32x16xf32>, vector<32x16xf32>, vector<32x16xf32> -> vector<96x16xf32>
    %c0_2 = arith.constant 0 : index
    %c0_3 = arith.constant 0 : index
    %6 = vector.load %arg3[%c0_2, %c0_3] : memref<32x96xf32, #tpu.memory_space<vmem>>, vector<32x96xf32>
    %cst = arith.constant dense<0.000000e+00> : vector<32x16xf32>
    %7 = tpu.matmul %6, %5, %cst {dimension_numbers = #tpu.dot_dimension_numbers<[1], [0], [0], [1], [0, 0, 1, 1], [], []>} : vector<32x96xf32>, vector<96x16xf32>, vector<32x16xf32> -> vector<32x16xf32>
    %c0_4 = arith.constant 0 : index
    %c0_5 = arith.constant 0 : index
    %8 = vector.load %arg4[%c0_4, %c0_5] : memref<32x1xf32, #tpu.memory_space<vmem>>, vector<32x1xf32>
    %9 = vector.broadcast %8 : vector<32x1xf32> to vector<32x16xf32>
    %10 = arith.addf %7, %9 : vector<32x16xf32>
    %c0_6 = arith.constant 0 : index
    %c0_7 = arith.constant 0 : index
    %c0_8 = arith.constant 0 : index
    %11 = vector.load %arg5[%c0_6, %c0_7, %c0_8] : memref<1x32x16xf32, #tpu.memory_space<vmem>>, vector<1x32x16xf32>
    %12 = vector.shape_cast %11 : vector<1x32x16xf32> to vector<32x16xf32>
    %13 = arith.addf %10, %12 : vector<32x16xf32>
    %c0_9 = arith.constant 0 : index
    %c0_10 = arith.constant 0 : index
    %c0_11 = arith.constant 0 : index
    %14 = vector.load %arg6[%c0_9, %c0_10, %c0_11] : memref<1x32x16xf32, #tpu.memory_space<vmem>>, vector<1x32x16xf32>
    %15 = vector.shape_cast %14 : vector<1x32x16xf32> to vector<32x16xf32>
    %16 = vector.shape_cast %13 : vector<32x16xf32> to vector<1x32x16xf32>
    tpu.vector_store %arg6[%c0_9, %c0_10, %c0_11], %16 {strides = array<i32>} : memref<1x32x16xf32, #tpu.memory_space<vmem>>, vector<1x32x16xf32>,
    return
  }
  func.func @transform_0(%arg0: i32, %arg1: i32) -> (i32, i32, i32) {
    %c0_i32 = arith.constant 0 : i32
    %c0_i32_0 = arith.constant 0 : i32
    %c0_i32_1 = arith.constant 0 : i32
    return %arg0, %c0_i32, %c0_i32_0 : i32, i32, i32
  }
  func.func @transform_1(%arg0: i32, %arg1: i32) -> (i32, i32) {
    %c0_i32 = arith.constant 0 : i32
    %c0_i32_0 = arith.constant 0 : i32
    %c0_i32_1 = arith.constant 0 : i32
    return %c0_i32, %c0_i32_0 : i32, i32
  }
  func.func @transform_2(%arg0: i32, %arg1: i32) -> (i32, i32) {
    %c0_i32 = arith.constant 0 : i32
    %c0_i32_0 = arith.constant 0 : i32
    %c0_i32_1 = arith.constant 0 : i32
    return %c0_i32, %c0_i32_0 : i32, i32
  }
  func.func @transform_3(%arg0: i32, %arg1: i32) -> (i32, i32, i32) {
    %c0_i32 = arith.constant 0 : i32
    %c0_i32_0 = arith.constant 0 : i32
    return %arg0, %c0_i32, %arg1 : i32, i32, i32
  }
  func.func @transform_4(%arg0: i32, %arg1: i32) -> (i32, i32, i32) {
    %c0_i32 = arith.constant 0 : i32
    %c0_i32_0 = arith.constant 0 : i32
    return %arg0, %c0_i32, %arg1 : i32, i32, i32
  }
}

module attributes {stable_mosaic.version = 11 : i64} {
  func.func @kernel(%arg0: i32, %arg1: i32, %arg2: memref<1x32x17xf32, #tpu.memory_space<vmem>>, %arg3: memref<16x64xf32, #tpu.memory_space<vmem>>, %arg4: memref<16x1xf32, #tpu.memory_space<vmem>>, %arg5: memref<1x16x16xf32, #tpu.memory_space<vmem>>) attributes {dimension_semantics = [#tpu.dimension_semantics<parallel>, #tpu.dimension_semantics<parallel>], iteration_bounds = array<i64: 2, 1>, scalar_prefetch = 0 : i64, scratch_operands = 0 : i64, tpu.core_type = #tpu.core_type<tc>, window_params = [{transform_indices = @transform_0, window_bounds = array<i64: 1, 32, 17>}, {pipeline_mode = #tpu.pipeline_mode<synchronous>, transform_indices = @transform_1, window_bounds = array<i64: 16, 64>}, {pipeline_mode = #tpu.pipeline_mode<synchronous>, transform_indices = @transform_2, window_bounds = array<i64: 16, 1>}, {transform_indices = @transform_3, window_bounds = array<i64: 1, 16, 16>}]} {
    %c0 = arith.constant 0 : index
    %c0_0 = arith.constant 0 : index
    %c0_1 = arith.constant 0 : index
    %0 = vector.load %arg2[%c0, %c0_0, %c0_1] : memref<1x32x17xf32, #tpu.memory_space<vmem>>, vector<1x32x17xf32>
    %1 = vector.shape_cast %0 : vector<1x32x17xf32> to vector<32x17xf32>
    %2 = vector.extract_strided_slice %1 {offsets = [0, 0], sizes = [32, 16], strides = [1, 1]} : vector<32x17xf32> to vector<32x16xf32>
    %3 = vector.extract_strided_slice %1 {offsets = [0, 1], sizes = [32, 16], strides = [1, 1]} : vector<32x17xf32> to vector<32x16xf32>
    %4 = tpu.concatenate %2, %3 in 0 : vector<32x16xf32>, vector<32x16xf32> -> vector<64x16xf32>
    %c0_2 = arith.constant 0 : index
    %c0_3 = arith.constant 0 : index
    %5 = vector.load %arg3[%c0_2, %c0_3] : memref<16x64xf32, #tpu.memory_space<vmem>>, vector<16x64xf32>
    %cst = arith.constant dense<0.000000e+00> : vector<16x16xf32>
    %6 = tpu.matmul %5, %4, %cst {dimension_numbers = #tpu.dot_dimension_numbers<[1], [0], [0], [1], [0, 0, 1, 1], [], []>} : vector<16x64xf32>, vector<64x16xf32>, vector<16x16xf32> -> vector<16x16xf32>
    %c0_4 = arith.constant 0 : index
    %c0_5 = arith.constant 0 : index
    %7 = vector.load %arg4[%c0_4, %c0_5] : memref<16x1xf32, #tpu.memory_space<vmem>>, vector<16x1xf32>
    %8 = vector.broadcast %7 : vector<16x1xf32> to vector<16x16xf32>
    %9 = arith.addf %6, %8 : vector<16x16xf32>
    %c0_6 = arith.constant 0 : index
    %c0_7 = arith.constant 0 : index
    %c0_8 = arith.constant 0 : index
    %10 = vector.load %arg5[%c0_6, %c0_7, %c0_8] : memref<1x16x16xf32, #tpu.memory_space<vmem>>, vector<1x16x16xf32>
    %11 = vector.shape_cast %10 : vector<1x16x16xf32> to vector<16x16xf32>
    %12 = vector.shape_cast %9 : vector<16x16xf32> to vector<1x16x16xf32>
    tpu.vector_store %arg5[%c0_6, %c0_7, %c0_8], %12 {strides = array<i32>} : memref<1x16x16xf32, #tpu.memory_space<vmem>>, vector<1x16x16xf32>,
    return
  }
  func.func @transform_0(%arg0: i32, %arg1: i32) -> (i32, i32, i32) {
    %c0_i32 = arith.constant 0 : i32
    %c0_i32_0 = arith.constant 0 : i32
    %c0_i32_1 = arith.constant 0 : i32
    return %arg0, %c0_i32, %c0_i32_0 : i32, i32, i32
  }
  func.func @transform_1(%arg0: i32, %arg1: i32) -> (i32, i32) {
    %c0_i32 = arith.constant 0 : i32
    %c0_i32_0 = arith.constant 0 : i32
    %c0_i32_1 = arith.constant 0 : i32
    return %c0_i32, %c0_i32_0 : i32, i32
  }
  func.func @transform_2(%arg0: i32, %arg1: i32) -> (i32, i32) {
    %c0_i32 = arith.constant 0 : i32
    %c0_i32_0 = arith.constant 0 : i32
    %c0_i32_1 = arith.constant 0 : i32
    return %c0_i32, %c0_i32_0 : i32, i32
  }
  func.func @transform_3(%arg0: i32, %arg1: i32) -> (i32, i32, i32) {
    %c0_i32 = arith.constant 0 : i32
    %c0_i32_0 = arith.constant 0 : i32
    return %arg0, %c0_i32, %arg1 : i32, i32, i32
  }
}

module attributes {stable_mosaic.version = 11 : i64} {
  func.func @kernel(%arg0: i32, %arg1: i32, %arg2: memref<1x16x42xf32, #tpu.memory_space<vmem>>, %arg3: memref<16x1xf32, #tpu.memory_space<vmem>>, %arg4: memref<16x1xf32, #tpu.memory_space<vmem>>, %arg5: memref<1x16x1xf32, #tpu.memory_space<vmem>>, %arg6: memref<1x16x1xf32, #tpu.memory_space<vmem>>, %arg7: memref<1x16x32xf32, #tpu.memory_space<vmem>>) attributes {dimension_semantics = [#tpu.dimension_semantics<parallel>, #tpu.dimension_semantics<parallel>], iteration_bounds = array<i64: 2, 1>, scalar_prefetch = 0 : i64, scratch_operands = 0 : i64, tpu.core_type = #tpu.core_type<tc>, window_params = [{transform_indices = @transform_0, window_bounds = array<i64: 1, 16, 42>}, {pipeline_mode = #tpu.pipeline_mode<synchronous>, transform_indices = @transform_1, window_bounds = array<i64: 16, 1>}, {pipeline_mode = #tpu.pipeline_mode<synchronous>, transform_indices = @transform_2, window_bounds = array<i64: 16, 1>}, {transform_indices = @transform_3, window_bounds = array<i64: 1, 16, 1>}, {transform_indices = @transform_4, window_bounds = array<i64: 1, 16, 1>}, {transform_indices = @transform_5, window_bounds = array<i64: 1, 16, 32>}]} {
    %c0 = arith.constant 0 : index
    %c0_0 = arith.constant 0 : index
    %c0_1 = arith.constant 0 : index
    %0 = vector.load %arg2[%c0, %c0_0, %c0_1] : memref<1x16x42xf32, #tpu.memory_space<vmem>>, vector<1x16x42xf32>
    %1 = vector.shape_cast %0 : vector<1x16x42xf32> to vector<16x42xf32>
    %cst = arith.constant 0.000000e+00 : f32
    %2 = vector.broadcast %cst : f32 to vector<16x37xf32>
    %cst_2 = arith.constant 0.000000e+00 : f32
    %3 = vector.broadcast %cst_2 : f32 to vector<16x37xf32>
    %4 = vector.extract_strided_slice %1 {offsets = [0, 0], sizes = [16, 37], strides = [1, 1]} : vector<16x42xf32> to vector<16x37xf32>
    %cst_3 = arith.constant 0.00405793311 : f32
    %5 = vector.broadcast %cst_3 : f32 to vector<16x37xf32>
    %6 = arith.mulf %5, %4 : vector<16x37xf32>
    %7 = arith.addf %2, %6 : vector<16x37xf32>
    %cst_4 = arith.constant 0.0187789276 : f32
    %8 = vector.broadcast %cst_4 : f32 to vector<16x37xf32>
    %9 = arith.mulf %8, %4 : vector<16x37xf32>
    %10 = arith.addf %3, %9 : vector<16x37xf32>
    %11 = vector.extract_strided_slice %1 {offsets = [0, 1], sizes = [16, 37], strides = [1, 1]} : vector<16x42xf32> to vector<16x37xf32>
    %cst_5 = arith.constant -0.0510869287 : f32
    %12 = vector.broadcast %cst_5 : f32 to vector<16x37xf32>
    %13 = arith.mulf %12, %11 : vector<16x37xf32>
    %14 = arith.addf %7, %13 : vector<16x37xf32>
    %cst_6 = arith.constant -0.115314752 : f32
    %15 = vector.broadcast %cst_6 : f32 to vector<16x37xf32>
    %16 = arith.mulf %15, %11 : vector<16x37xf32>
    %17 = arith.addf %10, %16 : vector<16x37xf32>
    %18 = vector.extract_strided_slice %1 {offsets = [0, 2], sizes = [16, 37], strides = [1, 1]} : vector<16x42xf32> to vector<16x37xf32>
    %cst_7 = arith.constant 0.257145226 : f32
    %19 = vector.broadcast %cst_7 : f32 to vector<16x37xf32>
    %20 = arith.mulf %19, %18 : vector<16x37xf32>
    %21 = arith.addf %14, %20 : vector<16x37xf32>
    %cst_8 = arith.constant 0.886419594 : f32
    %22 = vector.broadcast %cst_8 : f32 to vector<16x37xf32>
    %23 = arith.mulf %22, %18 : vector<16x37xf32>
    %24 = arith.addf %17, %23 : vector<16x37xf32>
    %25 = vector.extract_strided_slice %1 {offsets = [0, 3], sizes = [16, 37], strides = [1, 1]} : vector<16x42xf32> to vector<16x37xf32>
    %cst_9 = arith.constant 0.886419594 : f32
    %26 = vector.broadcast %cst_9 : f32 to vector<16x37xf32>
    %27 = arith.mulf %26, %25 : vector<16x37xf32>
    %28 = arith.addf %21, %27 : vector<16x37xf32>
    %cst_10 = arith.constant 0.257145226 : f32
    %29 = vector.broadcast %cst_10 : f32 to vector<16x37xf32>
    %30 = arith.mulf %29, %25 : vector<16x37xf32>
    %31 = arith.addf %24, %30 : vector<16x37xf32>
    %32 = vector.extract_strided_slice %1 {offsets = [0, 4], sizes = [16, 37], strides = [1, 1]} : vector<16x42xf32> to vector<16x37xf32>
    %cst_11 = arith.constant -0.115314752 : f32
    %33 = vector.broadcast %cst_11 : f32 to vector<16x37xf32>
    %34 = arith.mulf %33, %32 : vector<16x37xf32>
    %35 = arith.addf %28, %34 : vector<16x37xf32>
    %cst_12 = arith.constant -0.0510869287 : f32
    %36 = vector.broadcast %cst_12 : f32 to vector<16x37xf32>
    %37 = arith.mulf %36, %32 : vector<16x37xf32>
    %38 = arith.addf %31, %37 : vector<16x37xf32>
    %39 = vector.extract_strided_slice %1 {offsets = [0, 5], sizes = [16, 37], strides = [1, 1]} : vector<16x42xf32> to vector<16x37xf32>
    %cst_13 = arith.constant 0.0187789276 : f32
    %40 = vector.broadcast %cst_13 : f32 to vector<16x37xf32>
    %41 = arith.mulf %40, %39 : vector<16x37xf32>
    %42 = arith.addf %35, %41 : vector<16x37xf32>
    %cst_14 = arith.constant 0.00405793311 : f32
    %43 = vector.broadcast %cst_14 : f32 to vector<16x37xf32>
    %44 = arith.mulf %43, %39 : vector<16x37xf32>
    %45 = arith.addf %38, %44 : vector<16x37xf32>
    %c0_15 = arith.constant 0 : index
    %c0_16 = arith.constant 0 : index
    %46 = vector.load %arg3[%c0_15, %c0_16] : memref<16x1xf32, #tpu.memory_space<vmem>>, vector<16x1xf32>
    %c0_17 = arith.constant 0 : index
    %c0_18 = arith.constant 0 : index
    %47 = vector.load %arg4[%c0_17, %c0_18] : memref<16x1xf32, #tpu.memory_space<vmem>>, vector<16x1xf32>
    %48 = vector.broadcast %46 : vector<16x1xf32> to vector<16x37xf32>
    %49 = arith.mulf %42, %48 : vector<16x37xf32>
    %50 = math.sin %49 : vector<16x37xf32>
    %51 = arith.mulf %50, %50 : vector<16x37xf32>
    %52 = vector.broadcast %47 : vector<16x1xf32> to vector<16x37xf32>
    %53 = arith.mulf %52, %51 : vector<16x37xf32>
    %54 = arith.addf %42, %53 : vector<16x37xf32>
    %55 = vector.broadcast %46 : vector<16x1xf32> to vector<16x37xf32>
    %56 = arith.mulf %45, %55 : vector<16x37xf32>
    %57 = math.sin %56 : vector<16x37xf32>
    %58 = arith.mulf %57, %57 : vector<16x37xf32>
    %59 = vector.broadcast %47 : vector<16x1xf32> to vector<16x37xf32>
    %60 = arith.mulf %59, %58 : vector<16x37xf32>
    %61 = arith.addf %45, %60 : vector<16x37xf32>
    %c32_i32 = arith.constant 32 : i32
    %62 = arith.muli %arg1, %c32_i32 : i32
    %63 = tpu.iota {dimensions = array<i32: 1>} : vector<16x37xi32>
    %64 = vector.broadcast %62 : i32 to vector<16x37xi32>
    %65 = arith.addi %64, %63 : vector<16x37xi32>
    %c0_19 = arith.constant 0 : index
    %c0_20 = arith.constant 0 : index
    %c0_21 = arith.constant 0 : index
    %66 = vector.load %arg5[%c0_19, %c0_20, %c0_21] : memref<1x16x1xf32, #tpu.memory_space<vmem>>, vector<1x16x1xf32>
    %67 = vector.shape_cast %66 : vector<1x16x1xf32> to vector<16x1xf32>
    %c0_22 = arith.constant 0 : index
    %c0_23 = arith.constant 0 : index
    %c0_24 = arith.constant 0 : index
    %68 = vector.load %arg6[%c0_22, %c0_23, %c0_24] : memref<1x16x1xf32, #tpu.memory_space<vmem>>, vector<1x16x1xf32>
    %69 = vector.shape_cast %68 : vector<1x16x1xf32> to vector<16x1xf32>
    %c2_i32 = arith.constant 2 : i32
    %70 = vector.broadcast %c2_i32 : i32 to vector<16x37xi32>
    %71 = arith.cmpi slt, %65, %70 : vector<16x37xi32>
    %c34_i32 = arith.constant 34 : i32
    %72 = vector.broadcast %c34_i32 : i32 to vector<16x37xi32>
    %73 = arith.cmpi sge, %65, %72 : vector<16x37xi32>
    %74 = vector.shape_cast %69 : vector<16x1xf32> to vector<16x1xf32>
    %75 = vector.broadcast %74 : vector<16x1xf32> to vector<16x37xf32>
    %76 = arith.select %73, %75, %54 : vector<16x37xi1>, vector<16x37xf32>
    %77 = vector.shape_cast %67 : vector<16x1xf32> to vector<16x1xf32>
    %78 = vector.broadcast %77 : vector<16x1xf32> to vector<16x37xf32>
    %79 = arith.select %71, %78, %76 : vector<16x37xi1>, vector<16x37xf32>
    %c3_i32 = arith.constant 3 : i32
    %80 = vector.broadcast %c3_i32 : i32 to vector<16x37xi32>
    %81 = arith.cmpi slt, %65, %80 : vector<16x37xi32>
    %c35_i32 = arith.constant 35 : i32
    %82 = vector.broadcast %c35_i32 : i32 to vector<16x37xi32>
    %83 = arith.cmpi sge, %65, %82 : vector<16x37xi32>
    %84 = vector.shape_cast %69 : vector<16x1xf32> to vector<16x1xf32>
    %85 = vector.broadcast %84 : vector<16x1xf32> to vector<16x37xf32>
    %86 = arith.select %83, %85, %61 : vector<16x37xi1>, vector<16x37xf32>
    %87 = vector.shape_cast %67 : vector<16x1xf32> to vector<16x1xf32>
    %88 = vector.broadcast %87 : vector<16x1xf32> to vector<16x37xf32>
    %89 = arith.select %81, %88, %86 : vector<16x37xi1>, vector<16x37xf32>
    %cst_25 = arith.constant 0.000000e+00 : f32
    %90 = vector.broadcast %cst_25 : f32 to vector<16x32xf32>
    %91 = vector.extract_strided_slice %79 {offsets = [0, 0], sizes = [16, 32], strides = [1, 1]} : vector<16x37xf32> to vector<16x32xf32>
    %cst_26 = arith.constant 0.00938946381 : f32
    %92 = vector.broadcast %cst_26 : f32 to vector<16x32xf32>
    %93 = arith.mulf %92, %91 : vector<16x32xf32>
    %94 = arith.addf %90, %93 : vector<16x32xf32>
    %95 = vector.extract_strided_slice %89 {offsets = [0, 0], sizes = [16, 32], strides = [1, 1]} : vector<16x37xf32> to vector<16x32xf32>
    %cst_27 = arith.constant 0.00202896656 : f32
    %96 = vector.broadcast %cst_27 : f32 to vector<16x32xf32>
    %97 = arith.mulf %96, %95 : vector<16x32xf32>
    %98 = arith.addf %94, %97 : vector<16x32xf32>
    %99 = vector.extract_strided_slice %79 {offsets = [0, 1], sizes = [16, 32], strides = [1, 1]} : vector<16x37xf32> to vector<16x32xf32>
    %cst_28 = arith.constant -0.0576573759 : f32
    %100 = vector.broadcast %cst_28 : f32 to vector<16x32xf32>
    %101 = arith.mulf %100, %99 : vector<16x32xf32>
    %102 = arith.addf %98, %101 : vector<16x32xf32>
    %103 = vector.extract_strided_slice %89 {offsets = [0, 1], sizes = [16, 32], strides = [1, 1]} : vector<16x37xf32> to vector<16x32xf32>
    %cst_29 = arith.constant -0.0255434643 : f32
    %104 = vector.broadcast %cst_29 : f32 to vector<16x32xf32>
    %105 = arith.mulf %104, %103 : vector<16x32xf32>
    %106 = arith.addf %102, %105 : vector<16x32xf32>
    %107 = vector.extract_strided_slice %79 {offsets = [0, 2], sizes = [16, 32], strides = [1, 1]} : vector<16x37xf32> to vector<16x32xf32>
    %cst_30 = arith.constant 0.443209797 : f32
    %108 = vector.broadcast %cst_30 : f32 to vector<16x32xf32>
    %109 = arith.mulf %108, %107 : vector<16x32xf32>
    %110 = arith.addf %106, %109 : vector<16x32xf32>
    %111 = vector.extract_strided_slice %89 {offsets = [0, 2], sizes = [16, 32], strides = [1, 1]} : vector<16x37xf32> to vector<16x32xf32>
    %cst_31 = arith.constant 0.128572613 : f32
    %112 = vector.broadcast %cst_31 : f32 to vector<16x32xf32>
    %113 = arith.mulf %112, %111 : vector<16x32xf32>
    %114 = arith.addf %110, %113 : vector<16x32xf32>
    %115 = vector.extract_strided_slice %79 {offsets = [0, 3], sizes = [16, 32], strides = [1, 1]} : vector<16x37xf32> to vector<16x32xf32>
    %cst_32 = arith.constant 0.128572613 : f32
    %116 = vector.broadcast %cst_32 : f32 to vector<16x32xf32>
    %117 = arith.mulf %116, %115 : vector<16x32xf32>
    %118 = arith.addf %114, %117 : vector<16x32xf32>
    %119 = vector.extract_strided_slice %89 {offsets = [0, 3], sizes = [16, 32], strides = [1, 1]} : vector<16x37xf32> to vector<16x32xf32>
    %cst_33 = arith.constant 0.443209797 : f32
    %120 = vector.broadcast %cst_33 : f32 to vector<16x32xf32>
    %121 = arith.mulf %120, %119 : vector<16x32xf32>
    %122 = arith.addf %118, %121 : vector<16x32xf32>
    %123 = vector.extract_strided_slice %79 {offsets = [0, 4], sizes = [16, 32], strides = [1, 1]} : vector<16x37xf32> to vector<16x32xf32>
    %cst_34 = arith.constant -0.0255434643 : f32
    %124 = vector.broadcast %cst_34 : f32 to vector<16x32xf32>
    %125 = arith.mulf %124, %123 : vector<16x32xf32>
    %126 = arith.addf %122, %125 : vector<16x32xf32>
    %127 = vector.extract_strided_slice %89 {offsets = [0, 4], sizes = [16, 32], strides = [1, 1]} : vector<16x37xf32> to vector<16x32xf32>
    %cst_35 = arith.constant -0.0576573759 : f32
    %128 = vector.broadcast %cst_35 : f32 to vector<16x32xf32>
    %129 = arith.mulf %128, %127 : vector<16x32xf32>
    %130 = arith.addf %126, %129 : vector<16x32xf32>
    %131 = vector.extract_strided_slice %79 {offsets = [0, 5], sizes = [16, 32], strides = [1, 1]} : vector<16x37xf32> to vector<16x32xf32>
    %cst_36 = arith.constant 0.00202896656 : f32
    %132 = vector.broadcast %cst_36 : f32 to vector<16x32xf32>
    %133 = arith.mulf %132, %131 : vector<16x32xf32>
    %134 = arith.addf %130, %133 : vector<16x32xf32>
    %135 = vector.extract_strided_slice %89 {offsets = [0, 5], sizes = [16, 32], strides = [1, 1]} : vector<16x37xf32> to vector<16x32xf32>
    %cst_37 = arith.constant 0.00938946381 : f32
    %136 = vector.broadcast %cst_37 : f32 to vector<16x32xf32>
    %137 = arith.mulf %136, %135 : vector<16x32xf32>
    %138 = arith.addf %134, %137 : vector<16x32xf32>
    %c0_38 = arith.constant 0 : index
    %c0_39 = arith.constant 0 : index
    %c0_40 = arith.constant 0 : index
    %139 = vector.load %arg7[%c0_38, %c0_39, %c0_40] : memref<1x16x32xf32, #tpu.memory_space<vmem>>, vector<1x16x32xf32>
    %140 = vector.shape_cast %139 : vector<1x16x32xf32> to vector<16x32xf32>
    %141 = vector.shape_cast %138 : vector<16x32xf32> to vector<1x16x32xf32>
    tpu.vector_store %arg7[%c0_38, %c0_39, %c0_40], %141 {strides = array<i32>} : memref<1x16x32xf32, #tpu.memory_space<vmem>>, vector<1x16x32xf32>,
    return
  }
  func.func @transform_0(%arg0: i32, %arg1: i32) -> (i32, i32, i32) {
    %c0_i32 = arith.constant 0 : i32
    %c0_i32_0 = arith.constant 0 : i32
    %c0_i32_1 = arith.constant 0 : i32
    return %arg0, %c0_i32, %c0_i32_0 : i32, i32, i32
  }
  func.func @transform_1(%arg0: i32, %arg1: i32) -> (i32, i32) {
    %c0_i32 = arith.constant 0 : i32
    %c0_i32_0 = arith.constant 0 : i32
    %c0_i32_1 = arith.constant 0 : i32
    return %c0_i32, %c0_i32_0 : i32, i32
  }
  func.func @transform_2(%arg0: i32, %arg1: i32) -> (i32, i32) {
    %c0_i32 = arith.constant 0 : i32
    %c0_i32_0 = arith.constant 0 : i32
    %c0_i32_1 = arith.constant 0 : i32
    return %c0_i32, %c0_i32_0 : i32, i32
  }
  func.func @transform_3(%arg0: i32, %arg1: i32) -> (i32, i32, i32) {
    %c0_i32 = arith.constant 0 : i32
    %c0_i32_0 = arith.constant 0 : i32
    %c0_i32_1 = arith.constant 0 : i32
    return %arg0, %c0_i32, %c0_i32_0 : i32, i32, i32
  }
  func.func @transform_4(%arg0: i32, %arg1: i32) -> (i32, i32, i32) {
    %c0_i32 = arith.constant 0 : i32
    %c0_i32_0 = arith.constant 0 : i32
    %c0_i32_1 = arith.constant 0 : i32
    return %arg0, %c0_i32, %c0_i32_0 : i32, i32, i32
  }
  func.func @transform_5(%arg0: i32, %arg1: i32) -> (i32, i32, i32) {
    %c0_i32 = arith.constant 0 : i32
    %c0_i32_0 = arith.constant 0 : i32
    return %arg0, %c0_i32, %arg1 : i32, i32, i32
  }
}

module attributes {stable_mosaic.version = 11 : i64} {
  func.func @kernel(%arg0: i32, %arg1: i32, %arg2: memref<1x16x34xf32, #tpu.memory_space<vmem>>, %arg3: memref<16x48xf32, #tpu.memory_space<vmem>>, %arg4: memref<16x1xf32, #tpu.memory_space<vmem>>, %arg5: memref<1x16x32xf32, #tpu.memory_space<vmem>>) attributes {dimension_semantics = [#tpu.dimension_semantics<parallel>, #tpu.dimension_semantics<parallel>], iteration_bounds = array<i64: 2, 1>, scalar_prefetch = 0 : i64, scratch_operands = 0 : i64, tpu.core_type = #tpu.core_type<tc>, window_params = [{transform_indices = @transform_0, window_bounds = array<i64: 1, 16, 34>}, {pipeline_mode = #tpu.pipeline_mode<synchronous>, transform_indices = @transform_1, window_bounds = array<i64: 16, 48>}, {pipeline_mode = #tpu.pipeline_mode<synchronous>, transform_indices = @transform_2, window_bounds = array<i64: 16, 1>}, {transform_indices = @transform_3, window_bounds = array<i64: 1, 16, 32>}]} {
    %c0 = arith.constant 0 : index
    %c0_0 = arith.constant 0 : index
    %c0_1 = arith.constant 0 : index
    %0 = vector.load %arg2[%c0, %c0_0, %c0_1] : memref<1x16x34xf32, #tpu.memory_space<vmem>>, vector<1x16x34xf32>
    %1 = vector.shape_cast %0 : vector<1x16x34xf32> to vector<16x34xf32>
    %2 = vector.extract_strided_slice %1 {offsets = [0, 0], sizes = [16, 32], strides = [1, 1]} : vector<16x34xf32> to vector<16x32xf32>
    %3 = vector.extract_strided_slice %1 {offsets = [0, 1], sizes = [16, 32], strides = [1, 1]} : vector<16x34xf32> to vector<16x32xf32>
    %4 = vector.extract_strided_slice %1 {offsets = [0, 2], sizes = [16, 32], strides = [1, 1]} : vector<16x34xf32> to vector<16x32xf32>
    %5 = tpu.concatenate %2, %3, %4 in 0 : vector<16x32xf32>, vector<16x32xf32>, vector<16x32xf32> -> vector<48x32xf32>
    %c0_2 = arith.constant 0 : index
    %c0_3 = arith.constant 0 : index
    %6 = vector.load %arg3[%c0_2, %c0_3] : memref<16x48xf32, #tpu.memory_space<vmem>>, vector<16x48xf32>
    %cst = arith.constant dense<0.000000e+00> : vector<16x32xf32>
    %7 = tpu.matmul %6, %5, %cst {dimension_numbers = #tpu.dot_dimension_numbers<[1], [0], [0], [1], [0, 0, 1, 1], [], []>} : vector<16x48xf32>, vector<48x32xf32>, vector<16x32xf32> -> vector<16x32xf32>
    %c0_4 = arith.constant 0 : index
    %c0_5 = arith.constant 0 : index
    %8 = vector.load %arg4[%c0_4, %c0_5] : memref<16x1xf32, #tpu.memory_space<vmem>>, vector<16x1xf32>
    %9 = vector.broadcast %8 : vector<16x1xf32> to vector<16x32xf32>
    %10 = arith.addf %7, %9 : vector<16x32xf32>
    %c0_6 = arith.constant 0 : index
    %c0_7 = arith.constant 0 : index
    %c0_8 = arith.constant 0 : index
    %11 = vector.load %arg5[%c0_6, %c0_7, %c0_8] : memref<1x16x32xf32, #tpu.memory_space<vmem>>, vector<1x16x32xf32>
    %12 = vector.shape_cast %11 : vector<1x16x32xf32> to vector<16x32xf32>
    %13 = vector.shape_cast %10 : vector<16x32xf32> to vector<1x16x32xf32>
    tpu.vector_store %arg5[%c0_6, %c0_7, %c0_8], %13 {strides = array<i32>} : memref<1x16x32xf32, #tpu.memory_space<vmem>>, vector<1x16x32xf32>,
    return
  }
  func.func @transform_0(%arg0: i32, %arg1: i32) -> (i32, i32, i32) {
    %c0_i32 = arith.constant 0 : i32
    %c0_i32_0 = arith.constant 0 : i32
    %c0_i32_1 = arith.constant 0 : i32
    return %arg0, %c0_i32, %c0_i32_0 : i32, i32, i32
  }
  func.func @transform_1(%arg0: i32, %arg1: i32) -> (i32, i32) {
    %c0_i32 = arith.constant 0 : i32
    %c0_i32_0 = arith.constant 0 : i32
    %c0_i32_1 = arith.constant 0 : i32
    return %c0_i32, %c0_i32_0 : i32, i32
  }
  func.func @transform_2(%arg0: i32, %arg1: i32) -> (i32, i32) {
    %c0_i32 = arith.constant 0 : i32
    %c0_i32_0 = arith.constant 0 : i32
    %c0_i32_1 = arith.constant 0 : i32
    return %c0_i32, %c0_i32_0 : i32, i32
  }
  func.func @transform_3(%arg0: i32, %arg1: i32) -> (i32, i32, i32) {
    %c0_i32 = arith.constant 0 : i32
    %c0_i32_0 = arith.constant 0 : i32
    return %arg0, %c0_i32, %arg1 : i32, i32, i32
  }
}

module attributes {stable_mosaic.version = 11 : i64} {
  func.func @kernel(%arg0: i32, %arg1: i32, %arg2: memref<1x16x34xf32, #tpu.memory_space<vmem>>, %arg3: memref<16x48xf32, #tpu.memory_space<vmem>>, %arg4: memref<16x1xf32, #tpu.memory_space<vmem>>, %arg5: memref<1x16x32xf32, #tpu.memory_space<vmem>>, %arg6: memref<1x16x32xf32, #tpu.memory_space<vmem>>) attributes {dimension_semantics = [#tpu.dimension_semantics<parallel>, #tpu.dimension_semantics<parallel>], iteration_bounds = array<i64: 2, 1>, scalar_prefetch = 0 : i64, scratch_operands = 0 : i64, tpu.core_type = #tpu.core_type<tc>, window_params = [{transform_indices = @transform_0, window_bounds = array<i64: 1, 16, 34>}, {pipeline_mode = #tpu.pipeline_mode<synchronous>, transform_indices = @transform_1, window_bounds = array<i64: 16, 48>}, {pipeline_mode = #tpu.pipeline_mode<synchronous>, transform_indices = @transform_2, window_bounds = array<i64: 16, 1>}, {transform_indices = @transform_3, window_bounds = array<i64: 1, 16, 32>}, {transform_indices = @transform_4, window_bounds = array<i64: 1, 16, 32>}]} {
    %c0 = arith.constant 0 : index
    %c0_0 = arith.constant 0 : index
    %c0_1 = arith.constant 0 : index
    %0 = vector.load %arg2[%c0, %c0_0, %c0_1] : memref<1x16x34xf32, #tpu.memory_space<vmem>>, vector<1x16x34xf32>
    %1 = vector.shape_cast %0 : vector<1x16x34xf32> to vector<16x34xf32>
    %2 = vector.extract_strided_slice %1 {offsets = [0, 0], sizes = [16, 32], strides = [1, 1]} : vector<16x34xf32> to vector<16x32xf32>
    %3 = vector.extract_strided_slice %1 {offsets = [0, 1], sizes = [16, 32], strides = [1, 1]} : vector<16x34xf32> to vector<16x32xf32>
    %4 = vector.extract_strided_slice %1 {offsets = [0, 2], sizes = [16, 32], strides = [1, 1]} : vector<16x34xf32> to vector<16x32xf32>
    %5 = tpu.concatenate %2, %3, %4 in 0 : vector<16x32xf32>, vector<16x32xf32>, vector<16x32xf32> -> vector<48x32xf32>
    %c0_2 = arith.constant 0 : index
    %c0_3 = arith.constant 0 : index
    %6 = vector.load %arg3[%c0_2, %c0_3] : memref<16x48xf32, #tpu.memory_space<vmem>>, vector<16x48xf32>
    %cst = arith.constant dense<0.000000e+00> : vector<16x32xf32>
    %7 = tpu.matmul %6, %5, %cst {dimension_numbers = #tpu.dot_dimension_numbers<[1], [0], [0], [1], [0, 0, 1, 1], [], []>} : vector<16x48xf32>, vector<48x32xf32>, vector<16x32xf32> -> vector<16x32xf32>
    %c0_4 = arith.constant 0 : index
    %c0_5 = arith.constant 0 : index
    %8 = vector.load %arg4[%c0_4, %c0_5] : memref<16x1xf32, #tpu.memory_space<vmem>>, vector<16x1xf32>
    %9 = vector.broadcast %8 : vector<16x1xf32> to vector<16x32xf32>
    %10 = arith.addf %7, %9 : vector<16x32xf32>
    %c0_6 = arith.constant 0 : index
    %c0_7 = arith.constant 0 : index
    %c0_8 = arith.constant 0 : index
    %11 = vector.load %arg5[%c0_6, %c0_7, %c0_8] : memref<1x16x32xf32, #tpu.memory_space<vmem>>, vector<1x16x32xf32>
    %12 = vector.shape_cast %11 : vector<1x16x32xf32> to vector<16x32xf32>
    %13 = arith.addf %10, %12 : vector<16x32xf32>
    %c0_9 = arith.constant 0 : index
    %c0_10 = arith.constant 0 : index
    %c0_11 = arith.constant 0 : index
    %14 = vector.load %arg6[%c0_9, %c0_10, %c0_11] : memref<1x16x32xf32, #tpu.memory_space<vmem>>, vector<1x16x32xf32>
    %15 = vector.shape_cast %14 : vector<1x16x32xf32> to vector<16x32xf32>
    %16 = vector.shape_cast %13 : vector<16x32xf32> to vector<1x16x32xf32>
    tpu.vector_store %arg6[%c0_9, %c0_10, %c0_11], %16 {strides = array<i32>} : memref<1x16x32xf32, #tpu.memory_space<vmem>>, vector<1x16x32xf32>,
    return
  }
  func.func @transform_0(%arg0: i32, %arg1: i32) -> (i32, i32, i32) {
    %c0_i32 = arith.constant 0 : i32
    %c0_i32_0 = arith.constant 0 : i32
    %c0_i32_1 = arith.constant 0 : i32
    return %arg0, %c0_i32, %c0_i32_0 : i32, i32, i32
  }
  func.func @transform_1(%arg0: i32, %arg1: i32) -> (i32, i32) {
    %c0_i32 = arith.constant 0 : i32
    %c0_i32_0 = arith.constant 0 : i32
    %c0_i32_1 = arith.constant 0 : i32
    return %c0_i32, %c0_i32_0 : i32, i32
  }
  func.func @transform_2(%arg0: i32, %arg1: i32) -> (i32, i32) {
    %c0_i32 = arith.constant 0 : i32
    %c0_i32_0 = arith.constant 0 : i32
    %c0_i32_1 = arith.constant 0 : i32
    return %c0_i32, %c0_i32_0 : i32, i32
  }
  func.func @transform_3(%arg0: i32, %arg1: i32) -> (i32, i32, i32) {
    %c0_i32 = arith.constant 0 : i32
    %c0_i32_0 = arith.constant 0 : i32
    return %arg0, %c0_i32, %arg1 : i32, i32, i32
  }
  func.func @transform_4(%arg0: i32, %arg1: i32) -> (i32, i32, i32) {
    %c0_i32 = arith.constant 0 : i32
    %c0_i32_0 = arith.constant 0 : i32
    return %arg0, %c0_i32, %arg1 : i32, i32, i32
  }
}

module attributes {stable_mosaic.version = 11 : i64} {
  func.func @kernel(%arg0: i32, %arg1: i32, %arg2: memref<1x16x38xf32, #tpu.memory_space<vmem>>, %arg3: memref<16x48xf32, #tpu.memory_space<vmem>>, %arg4: memref<16x1xf32, #tpu.memory_space<vmem>>, %arg5: memref<1x16x32xf32, #tpu.memory_space<vmem>>) attributes {dimension_semantics = [#tpu.dimension_semantics<parallel>, #tpu.dimension_semantics<parallel>], iteration_bounds = array<i64: 2, 1>, scalar_prefetch = 0 : i64, scratch_operands = 0 : i64, tpu.core_type = #tpu.core_type<tc>, window_params = [{transform_indices = @transform_0, window_bounds = array<i64: 1, 16, 38>}, {pipeline_mode = #tpu.pipeline_mode<synchronous>, transform_indices = @transform_1, window_bounds = array<i64: 16, 48>}, {pipeline_mode = #tpu.pipeline_mode<synchronous>, transform_indices = @transform_2, window_bounds = array<i64: 16, 1>}, {transform_indices = @transform_3, window_bounds = array<i64: 1, 16, 32>}]} {
    %c0 = arith.constant 0 : index
    %c0_0 = arith.constant 0 : index
    %c0_1 = arith.constant 0 : index
    %0 = vector.load %arg2[%c0, %c0_0, %c0_1] : memref<1x16x38xf32, #tpu.memory_space<vmem>>, vector<1x16x38xf32>
    %1 = vector.shape_cast %0 : vector<1x16x38xf32> to vector<16x38xf32>
    %2 = vector.extract_strided_slice %1 {offsets = [0, 0], sizes = [16, 32], strides = [1, 1]} : vector<16x38xf32> to vector<16x32xf32>
    %3 = vector.extract_strided_slice %1 {offsets = [0, 3], sizes = [16, 32], strides = [1, 1]} : vector<16x38xf32> to vector<16x32xf32>
    %4 = vector.extract_strided_slice %1 {offsets = [0, 6], sizes = [16, 32], strides = [1, 1]} : vector<16x38xf32> to vector<16x32xf32>
    %5 = tpu.concatenate %2, %3, %4 in 0 : vector<16x32xf32>, vector<16x32xf32>, vector<16x32xf32> -> vector<48x32xf32>
    %c0_2 = arith.constant 0 : index
    %c0_3 = arith.constant 0 : index
    %6 = vector.load %arg3[%c0_2, %c0_3] : memref<16x48xf32, #tpu.memory_space<vmem>>, vector<16x48xf32>
    %cst = arith.constant dense<0.000000e+00> : vector<16x32xf32>
    %7 = tpu.matmul %6, %5, %cst {dimension_numbers = #tpu.dot_dimension_numbers<[1], [0], [0], [1], [0, 0, 1, 1], [], []>} : vector<16x48xf32>, vector<48x32xf32>, vector<16x32xf32> -> vector<16x32xf32>
    %c0_4 = arith.constant 0 : index
    %c0_5 = arith.constant 0 : index
    %8 = vector.load %arg4[%c0_4, %c0_5] : memref<16x1xf32, #tpu.memory_space<vmem>>, vector<16x1xf32>
    %9 = vector.broadcast %8 : vector<16x1xf32> to vector<16x32xf32>
    %10 = arith.addf %7, %9 : vector<16x32xf32>
    %c0_6 = arith.constant 0 : index
    %c0_7 = arith.constant 0 : index
    %c0_8 = arith.constant 0 : index
    %11 = vector.load %arg5[%c0_6, %c0_7, %c0_8] : memref<1x16x32xf32, #tpu.memory_space<vmem>>, vector<1x16x32xf32>
    %12 = vector.shape_cast %11 : vector<1x16x32xf32> to vector<16x32xf32>
    %13 = vector.shape_cast %10 : vector<16x32xf32> to vector<1x16x32xf32>
    tpu.vector_store %arg5[%c0_6, %c0_7, %c0_8], %13 {strides = array<i32>} : memref<1x16x32xf32, #tpu.memory_space<vmem>>, vector<1x16x32xf32>,
    return
  }
  func.func @transform_0(%arg0: i32, %arg1: i32) -> (i32, i32, i32) {
    %c0_i32 = arith.constant 0 : i32
    %c0_i32_0 = arith.constant 0 : i32
    %c0_i32_1 = arith.constant 0 : i32
    return %arg0, %c0_i32, %c0_i32_0 : i32, i32, i32
  }
  func.func @transform_1(%arg0: i32, %arg1: i32) -> (i32, i32) {
    %c0_i32 = arith.constant 0 : i32
    %c0_i32_0 = arith.constant 0 : i32
    %c0_i32_1 = arith.constant 0 : i32
    return %c0_i32, %c0_i32_0 : i32, i32
  }
  func.func @transform_2(%arg0: i32, %arg1: i32) -> (i32, i32) {
    %c0_i32 = arith.constant 0 : i32
    %c0_i32_0 = arith.constant 0 : i32
    %c0_i32_1 = arith.constant 0 : i32
    return %c0_i32, %c0_i32_0 : i32, i32
  }
  func.func @transform_3(%arg0: i32, %arg1: i32) -> (i32, i32, i32) {
    %c0_i32 = arith.constant 0 : i32
    %c0_i32_0 = arith.constant 0 : i32
    return %arg0, %c0_i32, %arg1 : i32, i32, i32
  }
}

module attributes {stable_mosaic.version = 11 : i64} {
  func.func @kernel(%arg0: i32, %arg1: i32, %arg2: memref<1x16x38xf32, #tpu.memory_space<vmem>>, %arg3: memref<1x112xf32, #tpu.memory_space<vmem>>, %arg4: memref<1x1xf32, #tpu.memory_space<vmem>>, %arg5: memref<1x1x32xf32, #tpu.memory_space<vmem>>) attributes {dimension_semantics = [#tpu.dimension_semantics<parallel>, #tpu.dimension_semantics<parallel>], iteration_bounds = array<i64: 2, 1>, scalar_prefetch = 0 : i64, scratch_operands = 0 : i64, tpu.core_type = #tpu.core_type<tc>, window_params = [{transform_indices = @transform_0, window_bounds = array<i64: 1, 16, 38>}, {pipeline_mode = #tpu.pipeline_mode<synchronous>, transform_indices = @transform_1, window_bounds = array<i64: 1, 112>}, {pipeline_mode = #tpu.pipeline_mode<synchronous>, transform_indices = @transform_2, window_bounds = array<i64: 1, 1>}, {transform_indices = @transform_3, window_bounds = array<i64: 1, 1, 32>}]} {
    %c0 = arith.constant 0 : index
    %c0_0 = arith.constant 0 : index
    %c0_1 = arith.constant 0 : index
    %0 = vector.load %arg2[%c0, %c0_0, %c0_1] : memref<1x16x38xf32, #tpu.memory_space<vmem>>, vector<1x16x38xf32>
    %1 = vector.shape_cast %0 : vector<1x16x38xf32> to vector<16x38xf32>
    %2 = vector.extract_strided_slice %1 {offsets = [0, 0], sizes = [16, 32], strides = [1, 1]} : vector<16x38xf32> to vector<16x32xf32>
    %3 = vector.extract_strided_slice %1 {offsets = [0, 1], sizes = [16, 32], strides = [1, 1]} : vector<16x38xf32> to vector<16x32xf32>
    %4 = vector.extract_strided_slice %1 {offsets = [0, 2], sizes = [16, 32], strides = [1, 1]} : vector<16x38xf32> to vector<16x32xf32>
    %5 = vector.extract_strided_slice %1 {offsets = [0, 3], sizes = [16, 32], strides = [1, 1]} : vector<16x38xf32> to vector<16x32xf32>
    %6 = vector.extract_strided_slice %1 {offsets = [0, 4], sizes = [16, 32], strides = [1, 1]} : vector<16x38xf32> to vector<16x32xf32>
    %7 = vector.extract_strided_slice %1 {offsets = [0, 5], sizes = [16, 32], strides = [1, 1]} : vector<16x38xf32> to vector<16x32xf32>
    %8 = vector.extract_strided_slice %1 {offsets = [0, 6], sizes = [16, 32], strides = [1, 1]} : vector<16x38xf32> to vector<16x32xf32>
    %9 = tpu.concatenate %2, %3, %4, %5, %6, %7, %8 in 0 : vector<16x32xf32>, vector<16x32xf32>, vector<16x32xf32>, vector<16x32xf32>, vector<16x32xf32>, vector<16x32xf32>, vector<16x32xf32> -> vector<112x32xf32>
    %c0_2 = arith.constant 0 : index
    %c0_3 = arith.constant 0 : index
    %10 = vector.load %arg3[%c0_2, %c0_3] : memref<1x112xf32, #tpu.memory_space<vmem>>, vector<1x112xf32>
    %cst = arith.constant dense<0.000000e+00> : vector<1x32xf32>
    %11 = tpu.matmul %10, %9, %cst {dimension_numbers = #tpu.dot_dimension_numbers<[1], [0], [0], [1], [0, 0, 1, 1], [], []>} : vector<1x112xf32>, vector<112x32xf32>, vector<1x32xf32> -> vector<1x32xf32>
    %c0_4 = arith.constant 0 : index
    %c0_5 = arith.constant 0 : index
    %12 = vector.load %arg4[%c0_4, %c0_5] : memref<1x1xf32, #tpu.memory_space<vmem>>, vector<1x1xf32>
    %13 = vector.broadcast %12 : vector<1x1xf32> to vector<1x32xf32>
    %14 = arith.addf %11, %13 : vector<1x32xf32>
    %15 = math.tanh %14 : vector<1x32xf32>
    %c0_6 = arith.constant 0 : index
    %c0_7 = arith.constant 0 : index
    %c0_8 = arith.constant 0 : index
    %16 = vector.load %arg5[%c0_6, %c0_7, %c0_8] : memref<1x1x32xf32, #tpu.memory_space<vmem>>, vector<1x1x32xf32>
    %17 = vector.shape_cast %16 : vector<1x1x32xf32> to vector<1x32xf32>
    %18 = vector.shape_cast %15 : vector<1x32xf32> to vector<1x1x32xf32>
    tpu.vector_store %arg5[%c0_6, %c0_7, %c0_8], %18 {strides = array<i32>} : memref<1x1x32xf32, #tpu.memory_space<vmem>>, vector<1x1x32xf32>,
    return
  }
  func.func @transform_0(%arg0: i32, %arg1: i32) -> (i32, i32, i32) {
    %c0_i32 = arith.constant 0 : i32
    %c0_i32_0 = arith.constant 0 : i32
    %c0_i32_1 = arith.constant 0 : i32
    return %arg0, %c0_i32, %c0_i32_0 : i32, i32, i32
  }
  func.func @transform_1(%arg0: i32, %arg1: i32) -> (i32, i32) {
    %c0_i32 = arith.constant 0 : i32
    %c0_i32_0 = arith.constant 0 : i32
    %c0_i32_1 = arith.constant 0 : i32
    return %c0_i32, %c0_i32_0 : i32, i32
  }
  func.func @transform_2(%arg0: i32, %arg1: i32) -> (i32, i32) {
    %c0_i32 = arith.constant 0 : i32
    %c0_i32_0 = arith.constant 0 : i32
    %c0_i32_1 = arith.constant 0 : i32
    return %c0_i32, %c0_i32_0 : i32, i32
  }
  func.func @transform_3(%arg0: i32, %arg1: i32) -> (i32, i32, i32) {
    %c0_i32 = arith.constant 0 : i32
    %c0_i32_0 = arith.constant 0 : i32
    return %arg0, %c0_i32, %arg1 : i32, i32, i32
  }
}

</mosaic_0001>

<llo_original>
// kernel: forward.23
$region0: #{forward.23}
  #allocation0 [shape = 'u32[]', space=smem, size = 0x4, offset = 0x4, fixed_abs, tag = 'smem constant byte address 0x4 - core index']
  #allocation1 [shape = 'u32[72,128]{1,0:T(1,128)}', space=vmem, size = 0x9000, scoped, tag = 'internal scratch']
  %s0 = inlined_call_operand.vmem [shape: f32[2,32,14], index: 0, kind: input, shape index: {}]
  %s1 = inlined_call_operand.vmem [shape: f32[64,224], index: 1, kind: input, shape index: {}]
  %s2 = inlined_call_operand.vmem [shape: f32[64,1], index: 2, kind: input, shape index: {}]
  %s3 = inlined_call_operand.vmem [shape: f32[2,64,8], index: 3, kind: output, shape index: {}]
  %s4 = sld [smem:[#allocation0]]
  $region45: #{forward.23} parent=0
    _
  %s6 = ssub.s32 1, %s4
  %s7 = scalar_select 0, %s6, %s4
  loop: start=0, step=1, limit=4
  $region2: #{forward.23} parent=0 // loop_pre_header
    _
  $region3: #{forward.23} parent=0 // loop_header
    %s9 = sphi 0, %s13
    %p10 = scmp.ge.s32.totalorder %s9, 4
    %s16 = sphi 0, %s28
    %s17 = sphi 0, %s24
    %s18 = sphi 0, %s16
    %s19 = sphi 0, %s17
    %s20 = sphi 0, %s18
    %s21 = sphi 0, %s19
    %s31 = sphi 0, %s33
    %s34 = sphi 0, %s31
    %s35 = sphi 0, %s34
    %s51 = sphi 0, %s35
    %s55 = sphi 0, %s55
    %s57 = sphi 0, %s55
    %s58 = sphi 0, %s57
    %s72 = sphi 0, %s58
    %s76 = sphi 0, %s76
    %s78 = sphi 0, %s76
    %s79 = sphi 0, %s78
    %s93 = sphi 0, %s79
    %s101 = sphi 0, %s103
    %s104 = sphi 0, %s101
    %s105 = sphi 0, %s104
    %s121 = sphi 0, %s105
  $region4: #{forward.23} parent=0 // loop_header_branch
    %12 = sbr.rel (%p10) target = $region8
  $region5: #{forward.23} parent=0 // loop_body
    %s14 = ssub.s32 %s9, 1
    %s15 = ssub.s32 %s9, 2
    %s22 = sadd.s32 1, %s17
    %p23 = scmp.ge.s32.totalorder %s22, 1
    %s24 = scalar_select %p23, 0, %s22
    %s25 = sadd.s32 1, %s16
    %s26 = scalar_select %p23, %s25, %s16
    %p27 = scmp.ge.s32.totalorder %s26, 2
    %s28 = scalar_select %p27, 0, %s26
    %s29 = ssub.s32 %s16, %s28
    %p30 = scmp.eq.s32.totalorder %s29, 0
    %s32 = sadd.s32 %s31, 1
    %s33 = scalar_select %p30, %s31, %s32
    %p36 = pneg %p30
    %p37 = scmp.eq.s32.totalorder %s9, 1
    %p38 = por %p36, %p37
    %p39 = scmp.ne.s32.totalorder %s31, %s34
    %p40 = scmp.eq.s32.totalorder %s9, 0
    %p41 = por %p39, %p40
    %p42 = scmp.ne.s32.totalorder %s31, %s34
    %p43 = scmp.eq.s32.totalorder %s14, 1
    %p44 = por %p42, %p43
    %p45 = scmp.ne.s32.totalorder %s34, %s35
    %p46 = scmp.eq.s32.totalorder %s14, 0
    %p47 = por %p45, %p46
    %p48 = scmp.ne.s32.totalorder %s34, %s35
    %p49 = scmp.eq.s32.totalorder %s15, 1
    %p50 = por %p48, %p49
    %p52 = scmp.ne.s32.totalorder %s35, %s51
    %p53 = scmp.eq.s32.totalorder %s15, 0
    %p54 = por %p52, %p53
    %s56 = sadd.s32 %s55, 1
    %p59 = scmp.eq.s32.totalorder %s9, 1
    %p60 = scmp.ne.s32.totalorder %s55, %s57
    %p61 = scmp.eq.s32.totalorder %s9, 0
    %p62 = por %p60, %p61
    %p63 = scmp.ne.s32.totalorder %s55, %s57
    %p64 = scmp.eq.s32.totalorder %s14, 1
    %p65 = por %p63, %p64
    %p66 = scmp.ne.s32.totalorder %s57, %s58
    %p67 = scmp.eq.s32.totalorder %s14, 0
    %p68 = por %p66, %p67
    %p69 = scmp.ne.s32.totalorder %s57, %s58
    %p70 = scmp.eq.s32.totalorder %s15, 1
    %p71 = por %p69, %p70
    %p73 = scmp.ne.s32.totalorder %s58, %s72
    %p74 = scmp.eq.s32.totalorder %s15, 0
    %p75 = por %p73, %p74
    %s77 = sadd.s32 %s76, 1
    %p80 = scmp.eq.s32.totalorder %s9, 1
    %p81 = scmp.ne.s32.totalorder %s76, %s78
    %p82 = scmp.eq.s32.totalorder %s9, 0
    %p83 = por %p81, %p82
    %p84 = scmp.ne.s32.totalorder %s76, %s78
    %p85 = scmp.eq.s32.totalorder %s14, 1
    %p86 = por %p84, %p85
    %p87 = scmp.ne.s32.totalorder %s78, %s79
    %p88 = scmp.eq.s32.totalorder %s14, 0
    %p89 = por %p87, %p88
    %p90 = scmp.ne.s32.totalorder %s78, %s79
    %p91 = scmp.eq.s32.totalorder %s15, 1
    %p92 = por %p90, %p91
    %p94 = scmp.ne.s32.totalorder %s79, %s93
    %p95 = scmp.eq.s32.totalorder %s15, 0
    %p96 = por %p94, %p95
    %s97 = ssub.s32 %s16, %s28
    %s98 = ssub.s32 %s17, %s24
    %s99 = sor.u32 %s97, %s98
    %p100 = scmp.eq.s32.totalorder %s99, 0
    %s102 = sadd.s32 %s101, 1
    %s103 = scalar_select %p100, %s101, %s102
    %p106 = pneg %p100
    %p107 = scmp.eq.s32.totalorder %s9, 1
    %p108 = por %p106, %p107
    %p109 = scmp.ne.s32.totalorder %s101, %s104
    %p110 = scmp.eq.s32.totalorder %s9, 0
    %p111 = por %p109, %p110
    %p112 = scmp.ne.s32.totalorder %s101, %s104
    %p113 = scmp.eq.s32.totalorder %s14, 1
    %p114 = por %p112, %p113
    %p115 = scmp.ne.s32.totalorder %s104, %s105
    %p116 = scmp.eq.s32.totalorder %s14, 0
    %p117 = por %p115, %p116
    %p118 = scmp.ne.s32.totalorder %s104, %s105
    %p119 = scmp.eq.s32.totalorder %s15, 1
    %p120 = por %p118, %p119
    %p122 = scmp.ne.s32.totalorder %s105, %s121
    %p123 = scmp.eq.s32.totalorder %s15, 0
    %p124 = por %p122, %p123
    %p125 = scmp.le.s32.totalorder 1, %s9
    %p126 = scmp.lt.s32.totalorder %s9, 3
    %p127 = pnand %p125, %p126
    %p128 = pneg %p127
    // Predicated region
    $region9: #{forward.23} parent=5 // pred_check
      _
    $region10: #{forward.23} parent=5 // pred_check_branch
      %130 = sbr.rel (%p127) target = $region12
    $region11: #{forward.23} parent=5 // pred_region
      %s131 = ssub.s32 %s9, 1
      // Predicated region
      $region13: #{forward.23} parent=11 // pred_check
        %p132 = pneg %p68
      $region14: #{forward.23} parent=11 // pred_check_branch
        %134 = sbr.rel (%p132) target = $region16
      $region15: #{forward.23} parent=11 // pred_region
        _
      $region16: #{forward.23} parent=11 // pred_fallthru
        _
      // Predicated region
      $region17: #{forward.23} parent=11 // pred_check
        %p135 = pneg %p89
      $region18: #{forward.23} parent=11 // pred_check_branch
        %137 = sbr.rel (%p135) target = $region20
      $region19: #{forward.23} parent=11 // pred_region
        _
      $region20: #{forward.23} parent=11 // pred_fallthru
        _
    $region12: #{forward.23} parent=5 // pred_fallthru
      _
    %p138 = scmp.lt.s32.totalorder %s9, 2
    // Predicated region
    $region21: #{forward.23} parent=5 // pred_check
      %p139 = pneg %p138
    $region22: #{forward.23} parent=5 // pred_check_branch
      %141 = sbr.rel (%p139) target = $region24
    $region23: #{forward.23} parent=5 // pred_region
      // Predicated region
      $region25: #{forward.23} parent=23 // pred_check
        %p142 = pneg %p41
      $region26: #{forward.23} parent=23 // pred_check_branch
        %144 = sbr.rel (%p142) target = $region28
      $region27: #{forward.23} parent=23 // pred_region
        %p145 = scmp.lt.s32.totalorder %s16, 1
        %s146 = scalar_select %p145, %s16, 1
        %s147 = smul.addr %s146, 4
        %s148 = smul.addr %s147, 8
        %s149 = scalar_lea.vmem %s0, %s148
      $region28: #{forward.23} parent=23 // pred_fallthru
        _
    $region24: #{forward.23} parent=5 // pred_fallthru
      _
    %p150 = scmp.le.s32.totalorder 1, %s9
    %p151 = scmp.lt.s32.totalorder %s9, 3
    %p152 = pnand %p150, %p151
    %p153 = pneg %p152
    // Predicated region
    $region29: #{forward.23} parent=5 // pred_check
      _
    $region30: #{forward.23} parent=5 // pred_check_branch
      %155 = sbr.rel (%p152) target = $region32
    $region31: #{forward.23} parent=5 // pred_region
      %s156 = ssub.s32 %s9, 1
      %p157 = scmp.lt.s32.totalorder %s18, 1
      %s158 = scalar_select %p157, %s18, 1
      %s159 = smul.addr %s158, 4
      %s160 = smul.addr %s159, 8
      %s161 = scalar_lea.vmem %s0, %s160
      %p162 = pneg %p47
      %p163 = pneg %p44
      %p164 = pneg %p68
      %p165 = pneg %p65
      %p166 = pneg %p89
      %p167 = pneg %p86
      %p168 = pneg %p117
      %p169 = pneg %p114
      %p170 = scmp.lt.s32.totalorder %s18, 1
      %s171 = scalar_select %p170, %s18, 1
      %p172 = scmp.lt.s32.totalorder %s19, 0
      %s173 = scalar_select %p172, %s19, 0
      %s174 = smul.addr %s171, 8
      %s175 = sadd.s32 %s173, %s174
      %s176 = smul.addr %s175, 8
      %s177 = scalar_lea.vmem %s3, %s176
      %p178 = scmp.lt.s32.totalorder %s18, 1
      %s179 = scalar_select %p178, %s18, 1
      %s180 = smul.addr %s179, 4
      %s181 = smul.addr %s180, 8
      %s182 = scalar_lea.vmem %s0, %s181
      %p183 = scmp.lt.s32.totalorder %s18, 1
      %s184 = scalar_select %p183, %s18, 1
      %p185 = scmp.lt.s32.totalorder %s19, 0
      %s186 = scalar_select %p185, %s19, 0
      %s187 = smul.addr %s184, 8
      %s188 = sadd.s32 %s186, %s187
      %s189 = smul.addr %s188, 8
      %s190 = scalar_lea.vmem %s3, %s189
      %v191 = vld [vmem:[%s182] sm:$0xff]
      %v192 = vld [vmem:[%s182 + $0x8] sm:$0xff]
      %v193 = vld [vmem:[%s182 + $0x10] sm:$0xff]
      %v194 = vld [vmem:[%s182 + $0x18] sm:$0xff]
      %199 = vrot.lane.b32.xlu0 %v191, 127
      %v200 = vpop.permute.xlu0 %199
      %201 = vrot.lane.b32.xlu0 %v192, 127
      %v202 = vpop.permute.xlu0 %201
      %203 = vrot.lane.b32.xlu0 %v193, 127
      %v204 = vpop.permute.xlu0 %203
      %205 = vrot.lane.b32.xlu0 %v194, 127
      %v206 = vpop.permute.xlu0 %205
      %211 = vrot.lane.b32.xlu0 %v191, 126
      %v212 = vpop.permute.xlu0 %211
      %213 = vrot.lane.b32.xlu0 %v192, 126
      %v214 = vpop.permute.xlu0 %213
      %215 = vrot.lane.b32.xlu0 %v193, 126
      %v216 = vpop.permute.xlu0 %215
      %217 = vrot.lane.b32.xlu0 %v194, 126
      %v218 = vpop.permute.xlu0 %217
      %223 = vrot.lane.b32.xlu0 %v191, 125
      %v224 = vpop.permute.xlu0 %223
      %225 = vrot.lane.b32.xlu0 %v192, 125
      %v226 = vpop.permute.xlu0 %225
      %227 = vrot.lane.b32.xlu0 %v193, 125
      %v228 = vpop.permute.xlu0 %227
      %229 = vrot.lane.b32.xlu0 %v194, 125
      %v230 = vpop.permute.xlu0 %229
      %235 = vrot.lane.b32.xlu0 %v191, 124
      %v236 = vpop.permute.xlu0 %235
      %237 = vrot.lane.b32.xlu0 %v192, 124
      %v238 = vpop.permute.xlu0 %237
      %239 = vrot.lane.b32.xlu0 %v193, 124
      %v240 = vpop.permute.xlu0 %239
      %241 = vrot.lane.b32.xlu0 %v194, 124
      %v242 = vpop.permute.xlu0 %241
      %247 = vrot.lane.b32.xlu0 %v191, 123
      %v248 = vpop.permute.xlu0 %247
      %249 = vrot.lane.b32.xlu0 %v192, 123
      %v250 = vpop.permute.xlu0 %249
      %251 = vrot.lane.b32.xlu0 %v193, 123
      %v252 = vpop.permute.xlu0 %251
      %253 = vrot.lane.b32.xlu0 %v194, 123
      %v254 = vpop.permute.xlu0 %253
      %259 = vrot.lane.b32.xlu0 %v191, 122
      %v260 = vpop.permute.xlu0 %259
      %261 = vrot.lane.b32.xlu0 %v192, 122
      %v262 = vpop.permute.xlu0 %261
      %263 = vrot.lane.b32.xlu0 %v193, 122
      %v264 = vpop.permute.xlu0 %263
      %265 = vrot.lane.b32.xlu0 %v194, 122
      %v266 = vpop.permute.xlu0 %265
      %v271 = vld [vmem:[%s1] sm:$0xff]
      %v272 = vld [vmem:[%s1 + $0x8] sm:$0xff]
      %v273 = vld [vmem:[%s1 + $0x10] sm:$0xff]
      %v274 = vld [vmem:[%s1 + $0x18] sm:$0xff]
      %v275 = vld [vmem:[%s1 + $0x20] sm:$0xff]
      %v276 = vld [vmem:[%s1 + $0x28] sm:$0xff]
      %v277 = vld [vmem:[%s1 + $0x30] sm:$0xff]
      %v278 = vld [vmem:[%s1 + $0x38] sm:$0xff]
      %v279 = vld [vmem:[%s1 + $0x40] sm:$0xff]
      %v280 = vld [vmem:[%s1 + $0x48] sm:$0xff]
      %v281 = vld [vmem:[%s1 + $0x50] sm:$0xff]
      %v282 = vld [vmem:[%s1 + $0x58] sm:$0xff]
      %v283 = vld [vmem:[%s1 + $0x60] sm:$0xff]
      %v284 = vld [vmem:[%s1 + $0x68] sm:$0xff]
      %v285 = vld [vmem:[%s1 + $0x70] sm:$0xff]
      %v286 = vld [vmem:[%s1 + $0x78] sm:$0xff]
      %v287 = vld [vmem:[%s2] sm:$0xff]
      %v288 = vld [vmem:[%s2 + $0x8] sm:$0xff]
      %v289 = vld [vmem:[%s2 + $0x10] sm:$0xff]
      %v290 = vld [vmem:[%s2 + $0x18] sm:$0xff]
      %v291 = vld [vmem:[%s2 + $0x20] sm:$0xff]
      %v292 = vld [vmem:[%s2 + $0x28] sm:$0xff]
      %v293 = vld [vmem:[%s2 + $0x30] sm:$0xff]
      %v294 = vld [vmem:[%s2 + $0x38] sm:$0xff]
      %296 = vset.pattern.permute.xlu0 0
      %297 = vperm.xlu0 %296, %v287
      %v298 = vpop.permute.xlu0 %297
      %301 = vset.pattern.permute.xlu0 0
      %302 = vperm.xlu0 %301, %v288
      %v303 = vpop.permute.xlu0 %302
      %306 = vset.pattern.permute.xlu0 0
      %307 = vperm.xlu0 %306, %v289
      %v308 = vpop.permute.xlu0 %307
      %311 = vset.pattern.permute.xlu0 0
      %312 = vperm.xlu0 %311, %v290
      %v313 = vpop.permute.xlu0 %312
      %316 = vset.pattern.permute.xlu0 0
      %317 = vperm.xlu0 %316, %v291
      %v318 = vpop.permute.xlu0 %317
      %321 = vset.pattern.permute.xlu0 0
      %322 = vperm.xlu0 %321, %v292
      %v323 = vpop.permute.xlu0 %322
      %326 = vset.pattern.permute.xlu0 0
      %327 = vperm.xlu0 %326, %v293
      %v328 = vpop.permute.xlu0 %327
      %331 = vset.pattern.permute.xlu0 0
      %332 = vperm.xlu0 %331, %v294
      %v333 = vpop.permute.xlu0 %332
      %vm335 = vcmask 785408
      %v337 = vsel %vm335, %v272, 0
      %v340 = vsel %vm335, %v274, 0
      %v343 = vsel %vm335, %v276, 0
      %v346 = vsel %vm335, %v278, 0
      %v349 = vsel %vm335, %v280, 0
      %v352 = vsel %vm335, %v282, 0
      %v355 = vsel %vm335, %v284, 0
      %v358 = vsel %vm335, %v286, 0
      %360 = vmatpush.msra.mxu0 %v230
      %361 = vmatpush.msra.mxu0 %v228
      %362 = vmatpush.msra.mxu0 %v226
      %363 = vmatpush.msra.mxu0 %v224
      %364 = vmatpush.msra.mxu0 %v218
      %365 = vmatpush.msra.mxu0 %v216
      %366 = vmatpush.msra.mxu0 %v214
      %367 = vmatpush.msra.mxu0 %v212
      %368 = vmatpush.msra.mxu0 %v206
      %369 = vmatpush.msra.mxu0 %v204
      %370 = vmatpush.msra.mxu0 %v202
      %371 = vmatpush.msra.mxu0 %v200
      %372 = vmatpush.msra.mxu0 %v194
      %373 = vmatpush.msra.mxu0 %v193
      %374 = vmatpush.msra.mxu0 %v192
      %375 = vmatpush.msra.mxu0 %v191
      %376 = vmatmul.f32.gmra.mxu0 %v271
      %v377 = vpop.f32.mrf.mxu0
      %v378 = vadd.f32 %v298, %v377
      %379 = vmatmul.f32.gmra.mxu0 %v273
      %v380 = vpop.f32.mrf.mxu0
      %v381 = vadd.f32 %v303, %v380
      %382 = vmatmul.f32.gmra.mxu0 %v275
      %v383 = vpop.f32.mrf.mxu0
      %v384 = vadd.f32 %v308, %v383
      %385 = vmatmul.f32.gmra.mxu0 %v277
      %v386 = vpop.f32.mrf.mxu0
      %v387 = vadd.f32 %v313, %v386
      %388 = vmatmul.f32.gmra.mxu0 %v279
      %v389 = vpop.f32.mrf.mxu0
      %v390 = vadd.f32 %v318, %v389
      %391 = vmatmul.f32.gmra.mxu0 %v281
      %v392 = vpop.f32.mrf.mxu0
      %v393 = vadd.f32 %v323, %v392
      %394 = vmatmul.f32.gmra.mxu0 %v283
      %v395 = vpop.f32.mrf.mxu0
      %v396 = vadd.f32 %v328, %v395
      %397 = vmatmul.f32.gmra.mxu0 %v285
      %v398 = vpop.f32.mrf.mxu0
      %v399 = vadd.f32 %v333, %v398
      %400 = vdwg.mxu0
      %401 = vmatpush.msra.mxu0 0.0
      %402 = vmatpush.msra.mxu0 0.0
      %403 = vmatpush.msra.mxu0 0.0
      %404 = vmatpush.msra.mxu0 0.0
      %405 = vmatpush.msra.mxu0 %v266
      %406 = vmatpush.msra.mxu0 %v264
      %407 = vmatpush.msra.mxu0 %v262
      %408 = vmatpush.msra.mxu0 %v260
      %409 = vmatpush.msra.mxu0 %v254
      %410 = vmatpush.msra.mxu0 %v252
      %411 = vmatpush.msra.mxu0 %v250
      %412 = vmatpush.msra.mxu0 %v248
      %413 = vmatpush.msra.mxu0 %v242
      %414 = vmatpush.msra.mxu0 %v240
      %415 = vmatpush.msra.mxu0 %v238
      %416 = vmatpush.msra.mxu0 %v236
      %417 = vmatmul.f32.gmra.mxu0 %v337
      %v418 = vpop.f32.mrf.mxu0
      %v419 = vadd.f32 %v378, %v418
      %420 = vmatmul.f32.gmra.mxu0 %v340
      %v421 = vpop.f32.mrf.mxu0
      %v422 = vadd.f32 %v381, %v421
      %423 = vmatmul.f32.gmra.mxu0 %v343
      %v424 = vpop.f32.mrf.mxu0
      %v425 = vadd.f32 %v384, %v424
      %426 = vmatmul.f32.gmra.mxu0 %v346
      %v427 = vpop.f32.mrf.mxu0
      %v428 = vadd.f32 %v387, %v427
      %429 = vmatmul.f32.gmra.mxu0 %v349
      %v430 = vpop.f32.mrf.mxu0
      %v431 = vadd.f32 %v390, %v430
      %432 = vmatmul.f32.gmra.mxu0 %v352
      %v433 = vpop.f32.mrf.mxu0
      %v434 = vadd.f32 %v393, %v433
      %435 = vmatmul.f32.gmra.mxu0 %v355
      %v436 = vpop.f32.mrf.mxu0
      %v437 = vadd.f32 %v396, %v436
      %438 = vmatmul.f32.gmra.mxu0 %v358
      %v439 = vpop.f32.mrf.mxu0
      %v440 = vadd.f32 %v399, %v439
      %441 = vdwg.mxu0
      %vm442 = vcmask 64512
      %443 = vst.msk [vmem:[%s190] sm:$0xff] %vm442, %v419
      %444 = vst.msk [vmem:[%s190 + $0x8] sm:$0xff] %vm442, %v422
      %445 = vst.msk [vmem:[%s190 + $0x10] sm:$0xff] %vm442, %v425
      %446 = vst.msk [vmem:[%s190 + $0x18] sm:$0xff] %vm442, %v428
      %447 = vst.msk [vmem:[%s190 + $0x20] sm:$0xff] %vm442, %v431
      %448 = vst.msk [vmem:[%s190 + $0x28] sm:$0xff] %vm442, %v434
      %449 = vst.msk [vmem:[%s190 + $0x30] sm:$0xff] %vm442, %v437
      %450 = vst.msk [vmem:[%s190 + $0x38] sm:$0xff] %vm442, %v440
      %p451 = scmp.lt.s32.totalorder %s18, 1
      %s452 = scalar_select %p451, %s18, 1
      %p453 = scmp.lt.s32.totalorder %s19, 0
      %s454 = scalar_select %p453, %s19, 0
      %s455 = smul.addr %s452, 8
      %s456 = sadd.s32 %s454, %s455
      %s457 = smul.addr %s456, 8
      %s458 = scalar_lea.vmem %s3, %s457
      // Predicated region
      $region33: #{forward.23} parent=31 // pred_check
        %p459 = pneg %p114
      $region34: #{forward.23} parent=31 // pred_check_branch
        %461 = sbr.rel (%p459) target = $region36
      $region35: #{forward.23} parent=31 // pred_region
        _
      $region36: #{forward.23} parent=31 // pred_fallthru
        _
    $region32: #{forward.23} parent=5 // pred_fallthru
      _
    %p462 = scmp.le.s32.totalorder 2, %s9
    // Predicated region
    $region37: #{forward.23} parent=5 // pred_check
      %p463 = pneg %p462
    $region38: #{forward.23} parent=5 // pred_check_branch
      %465 = sbr.rel (%p463) target = $region40
    $region39: #{forward.23} parent=5 // pred_region
      %s466 = ssub.s32 %s9, 2
      // Predicated region
      $region41: #{forward.23} parent=39 // pred_check
        %p467 = pneg %p120
      $region42: #{forward.23} parent=39 // pred_check_branch
        %469 = sbr.rel (%p467) target = $region44
      $region43: #{forward.23} parent=39 // pred_region
        %p470 = scmp.lt.s32.totalorder %s20, 1
        %s471 = scalar_select %p470, %s20, 1
        %p472 = scmp.lt.s32.totalorder %s21, 0
        %s473 = scalar_select %p472, %s21, 0
        %s474 = smul.addr %s471, 8
        %s475 = sadd.s32 %s473, %s474
        %s476 = smul.addr %s475, 8
        %s477 = scalar_lea.vmem %s3, %s476
      $region44: #{forward.23} parent=39 // pred_fallthru
        _
    $region40: #{forward.23} parent=5 // pred_fallthru
      _
  $region6: #{forward.23} parent=0 // loop_footer
    %s13 = sadd.s32 1, %s9
  $region7: #{forward.23} parent=0 // loop_footer_branch
    %8 = sbr.rel target = $region3
  $region8: #{forward.23} parent=0 // loop_exit
    _

// kernel: forward.25
$region0: #{forward.25}
  #allocation0 [shape = 'u32[]', space=smem, size = 0x4, offset = 0x4, fixed_abs, tag = 'smem constant byte address 0x4 - core index']
  #allocation1 [shape = 'u32[72,128]{1,0:T(1,128)}', space=vmem, size = 0x9000, scoped, tag = 'internal scratch']
  %s0 = inlined_call_operand.vmem [shape: f32[2,64,9], index: 0, kind: input, shape index: {}]
  %s1 = inlined_call_operand.vmem [shape: f32[32,128], index: 1, kind: input, shape index: {}]
  %s2 = inlined_call_operand.vmem [shape: f32[32,1], index: 2, kind: input, shape index: {}]
  %s3 = inlined_call_operand.vmem [shape: f32[2,32,8], index: 3, kind: output, shape index: {}]
  %s4 = sld [smem:[#allocation0]]
  $region45: #{forward.25} parent=0
    _
  %s6 = ssub.s32 1, %s4
  %s7 = scalar_select 0, %s6, %s4
  loop: start=0, step=1, limit=4
  $region2: #{forward.25} parent=0 // loop_pre_header
    _
  $region3: #{forward.25} parent=0 // loop_header
    %s9 = sphi 0, %s13
    %p10 = scmp.ge.s32.totalorder %s9, 4
    %s16 = sphi 0, %s28
    %s17 = sphi 0, %s24
    %s18 = sphi 0, %s16
    %s19 = sphi 0, %s17
    %s20 = sphi 0, %s18
    %s21 = sphi 0, %s19
    %s31 = sphi 0, %s33
    %s34 = sphi 0, %s31
    %s35 = sphi 0, %s34
    %s51 = sphi 0, %s35
    %s55 = sphi 0, %s55
    %s57 = sphi 0, %s55
    %s58 = sphi 0, %s57
    %s72 = sphi 0, %s58
    %s76 = sphi 0, %s76
    %s78 = sphi 0, %s76
    %s79 = sphi 0, %s78
    %s93 = sphi 0, %s79
    %s101 = sphi 0, %s103
    %s104 = sphi 0, %s101
    %s105 = sphi 0, %s104
    %s121 = sphi 0, %s105
  $region4: #{forward.25} parent=0 // loop_header_branch
    %12 = sbr.rel (%p10) target = $region8
  $region5: #{forward.25} parent=0 // loop_body
    %s14 = ssub.s32 %s9, 1
    %s15 = ssub.s32 %s9, 2
    %s22 = sadd.s32 1, %s17
    %p23 = scmp.ge.s32.totalorder %s22, 1
    %s24 = scalar_select %p23, 0, %s22
    %s25 = sadd.s32 1, %s16
    %s26 = scalar_select %p23, %s25, %s16
    %p27 = scmp.ge.s32.totalorder %s26, 2
    %s28 = scalar_select %p27, 0, %s26
    %s29 = ssub.s32 %s16, %s28
    %p30 = scmp.eq.s32.totalorder %s29, 0
    %s32 = sadd.s32 %s31, 1
    %s33 = scalar_select %p30, %s31, %s32
    %p36 = pneg %p30
    %p37 = scmp.eq.s32.totalorder %s9, 1
    %p38 = por %p36, %p37
    %p39 = scmp.ne.s32.totalorder %s31, %s34
    %p40 = scmp.eq.s32.totalorder %s9, 0
    %p41 = por %p39, %p40
    %p42 = scmp.ne.s32.totalorder %s31, %s34
    %p43 = scmp.eq.s32.totalorder %s14, 1
    %p44 = por %p42, %p43
    %p45 = scmp.ne.s32.totalorder %s34, %s35
    %p46 = scmp.eq.s32.totalorder %s14, 0
    %p47 = por %p45, %p46
    %p48 = scmp.ne.s32.totalorder %s34, %s35
    %p49 = scmp.eq.s32.totalorder %s15, 1
    %p50 = por %p48, %p49
    %p52 = scmp.ne.s32.totalorder %s35, %s51
    %p53 = scmp.eq.s32.totalorder %s15, 0
    %p54 = por %p52, %p53
    %s56 = sadd.s32 %s55, 1
    %p59 = scmp.eq.s32.totalorder %s9, 1
    %p60 = scmp.ne.s32.totalorder %s55, %s57
    %p61 = scmp.eq.s32.totalorder %s9, 0
    %p62 = por %p60, %p61
    %p63 = scmp.ne.s32.totalorder %s55, %s57
    %p64 = scmp.eq.s32.totalorder %s14, 1
    %p65 = por %p63, %p64
    %p66 = scmp.ne.s32.totalorder %s57, %s58
    %p67 = scmp.eq.s32.totalorder %s14, 0
    %p68 = por %p66, %p67
    %p69 = scmp.ne.s32.totalorder %s57, %s58
    %p70 = scmp.eq.s32.totalorder %s15, 1
    %p71 = por %p69, %p70
    %p73 = scmp.ne.s32.totalorder %s58, %s72
    %p74 = scmp.eq.s32.totalorder %s15, 0
    %p75 = por %p73, %p74
    %s77 = sadd.s32 %s76, 1
    %p80 = scmp.eq.s32.totalorder %s9, 1
    %p81 = scmp.ne.s32.totalorder %s76, %s78
    %p82 = scmp.eq.s32.totalorder %s9, 0
    %p83 = por %p81, %p82
    %p84 = scmp.ne.s32.totalorder %s76, %s78
    %p85 = scmp.eq.s32.totalorder %s14, 1
    %p86 = por %p84, %p85
    %p87 = scmp.ne.s32.totalorder %s78, %s79
    %p88 = scmp.eq.s32.totalorder %s14, 0
    %p89 = por %p87, %p88
    %p90 = scmp.ne.s32.totalorder %s78, %s79
    %p91 = scmp.eq.s32.totalorder %s15, 1
    %p92 = por %p90, %p91
    %p94 = scmp.ne.s32.totalorder %s79, %s93
    %p95 = scmp.eq.s32.totalorder %s15, 0
    %p96 = por %p94, %p95
    %s97 = ssub.s32 %s16, %s28
    %s98 = ssub.s32 %s17, %s24
    %s99 = sor.u32 %s97, %s98
    %p100 = scmp.eq.s32.totalorder %s99, 0
    %s102 = sadd.s32 %s101, 1
    %s103 = scalar_select %p100, %s101, %s102
    %p106 = pneg %p100
    %p107 = scmp.eq.s32.totalorder %s9, 1
    %p108 = por %p106, %p107
    %p109 = scmp.ne.s32.totalorder %s101, %s104
    %p110 = scmp.eq.s32.totalorder %s9, 0
    %p111 = por %p109, %p110
    %p112 = scmp.ne.s32.totalorder %s101, %s104
    %p113 = scmp.eq.s32.totalorder %s14, 1
    %p114 = por %p112, %p113
    %p115 = scmp.ne.s32.totalorder %s104, %s105
    %p116 = scmp.eq.s32.totalorder %s14, 0
    %p117 = por %p115, %p116
    %p118 = scmp.ne.s32.totalorder %s104, %s105
    %p119 = scmp.eq.s32.totalorder %s15, 1
    %p120 = por %p118, %p119
    %p122 = scmp.ne.s32.totalorder %s105, %s121
    %p123 = scmp.eq.s32.totalorder %s15, 0
    %p124 = por %p122, %p123
    %p125 = scmp.le.s32.totalorder 1, %s9
    %p126 = scmp.lt.s32.totalorder %s9, 3
    %p127 = pnand %p125, %p126
    %p128 = pneg %p127
    // Predicated region
    $region9: #{forward.25} parent=5 // pred_check
      _
    $region10: #{forward.25} parent=5 // pred_check_branch
      %130 = sbr.rel (%p127) target = $region12
    $region11: #{forward.25} parent=5 // pred_region
      %s131 = ssub.s32 %s9, 1
      // Predicated region
      $region13: #{forward.25} parent=11 // pred_check
        %p132 = pneg %p68
      $region14: #{forward.25} parent=11 // pred_check_branch
        %134 = sbr.rel (%p132) target = $region16
      $region15: #{forward.25} parent=11 // pred_region
        _
      $region16: #{forward.25} parent=11 // pred_fallthru
        _
      // Predicated region
      $region17: #{forward.25} parent=11 // pred_check
        %p135 = pneg %p89
      $region18: #{forward.25} parent=11 // pred_check_branch
        %137 = sbr.rel (%p135) target = $region20
      $region19: #{forward.25} parent=11 // pred_region
        _
      $region20: #{forward.25} parent=11 // pred_fallthru
        _
    $region12: #{forward.25} parent=5 // pred_fallthru
      _
    %p138 = scmp.lt.s32.totalorder %s9, 2
    // Predicated region
    $region21: #{forward.25} parent=5 // pred_check
      %p139 = pneg %p138
    $region22: #{forward.25} parent=5 // pred_check_branch
      %141 = sbr.rel (%p139) target = $region24
    $region23: #{forward.25} parent=5 // pred_region
      // Predicated region
      $region25: #{forward.25} parent=23 // pred_check
        %p142 = pneg %p41
      $region26: #{forward.25} parent=23 // pred_check_branch
        %144 = sbr.rel (%p142) target = $region28
      $region27: #{forward.25} parent=23 // pred_region
        %p145 = scmp.lt.s32.totalorder %s16, 1
        %s146 = scalar_select %p145, %s16, 1
        %s147 = smul.addr %s146, 8
        %s148 = smul.addr %s147, 8
        %s149 = scalar_lea.vmem %s0, %s148
      $region28: #{forward.25} parent=23 // pred_fallthru
        _
    $region24: #{forward.25} parent=5 // pred_fallthru
      _
    %p150 = scmp.le.s32.totalorder 1, %s9
    %p151 = scmp.lt.s32.totalorder %s9, 3
    %p152 = pnand %p150, %p151
    %p153 = pneg %p152
    // Predicated region
    $region29: #{forward.25} parent=5 // pred_check
      _
    $region30: #{forward.25} parent=5 // pred_check_branch
      %155 = sbr.rel (%p152) target = $region32
    $region31: #{forward.25} parent=5 // pred_region
      %s156 = ssub.s32 %s9, 1
      %p157 = scmp.lt.s32.totalorder %s18, 1
      %s158 = scalar_select %p157, %s18, 1
      %s159 = smul.addr %s158, 8
      %s160 = smul.addr %s159, 8
      %s161 = scalar_lea.vmem %s0, %s160
      %p162 = pneg %p47
      %p163 = pneg %p44
      %p164 = pneg %p68
      %p165 = pneg %p65
      %p166 = pneg %p89
      %p167 = pneg %p86
      %p168 = pneg %p117
      %p169 = pneg %p114
      %p170 = scmp.lt.s32.totalorder %s18, 1
      %s171 = scalar_select %p170, %s18, 1
      %p172 = scmp.lt.s32.totalorder %s19, 0
      %s173 = scalar_select %p172, %s19, 0
      %s174 = smul.addr %s171, 4
      %s175 = sadd.s32 %s173, %s174
      %s176 = smul.addr %s175, 8
      %s177 = scalar_lea.vmem %s3, %s176
      %p178 = scmp.lt.s32.totalorder %s18, 1
      %s179 = scalar_select %p178, %s18, 1
      %s180 = smul.addr %s179, 8
      %s181 = smul.addr %s180, 8
      %s182 = scalar_lea.vmem %s0, %s181
      %p183 = scmp.lt.s32.totalorder %s18, 1
      %s184 = scalar_select %p183, %s18, 1
      %p185 = scmp.lt.s32.totalorder %s19, 0
      %s186 = scalar_select %p185, %s19, 0
      %s187 = smul.addr %s184, 4
      %s188 = sadd.s32 %s186, %s187
      %s189 = smul.addr %s188, 8
      %s190 = scalar_lea.vmem %s3, %s189
      %v191 = vld [vmem:[%s182] sm:$0xff]
      %v192 = vld [vmem:[%s182 + $0x8] sm:$0xff]
      %v193 = vld [vmem:[%s182 + $0x10] sm:$0xff]
      %v194 = vld [vmem:[%s182 + $0x18] sm:$0xff]
      %v195 = vld [vmem:[%s182 + $0x20] sm:$0xff]
      %v196 = vld [vmem:[%s182 + $0x28] sm:$0xff]
      %v197 = vld [vmem:[%s182 + $0x30] sm:$0xff]
      %v198 = vld [vmem:[%s182 + $0x38] sm:$0xff]
      %207 = vrot.lane.b32.xlu0 %v191, 127
      %v208 = vpop.permute.xlu0 %207
      %209 = vrot.lane.b32.xlu0 %v192, 127
      %v210 = vpop.permute.xlu0 %209
      %211 = vrot.lane.b32.xlu0 %v193, 127
      %v212 = vpop.permute.xlu0 %211
      %213 = vrot.lane.b32.xlu0 %v194, 127
      %v214 = vpop.permute.xlu0 %213
      %215 = vrot.lane.b32.xlu0 %v195, 127
      %v216 = vpop.permute.xlu0 %215
      %217 = vrot.lane.b32.xlu0 %v196, 127
      %v218 = vpop.permute.xlu0 %217
      %219 = vrot.lane.b32.xlu0 %v197, 127
      %v220 = vpop.permute.xlu0 %219
      %221 = vrot.lane.b32.xlu0 %v198, 127
      %v222 = vpop.permute.xlu0 %221
      %v231 = vld [vmem:[%s1] sm:$0xff]
      %v232 = vld [vmem:[%s1 + $0x8] sm:$0xff]
      %v233 = vld [vmem:[%s1 + $0x10] sm:$0xff]
      %v234 = vld [vmem:[%s1 + $0x18] sm:$0xff]
      %v235 = vld [vmem:[%s2] sm:$0xff]
      %v236 = vld [vmem:[%s2 + $0x8] sm:$0xff]
      %v237 = vld [vmem:[%s2 + $0x10] sm:$0xff]
      %v238 = vld [vmem:[%s2 + $0x18] sm:$0xff]
      %240 = vset.pattern.permute.xlu0 0
      %241 = vperm.xlu0 %240, %v235
      %v242 = vpop.permute.xlu0 %241
      %245 = vset.pattern.permute.xlu0 0
      %246 = vperm.xlu0 %245, %v236
      %v247 = vpop.permute.xlu0 %246
      %250 = vset.pattern.permute.xlu0 0
      %251 = vperm.xlu0 %250, %v237
      %v252 = vpop.permute.xlu0 %251
      %255 = vset.pattern.permute.xlu0 0
      %256 = vperm.xlu0 %255, %v238
      %v257 = vpop.permute.xlu0 %256
      %259 = vmatpush.msra.mxu0 %v222
      %260 = vmatpush.msra.mxu0 %v220
      %261 = vmatpush.msra.mxu0 %v218
      %262 = vmatpush.msra.mxu0 %v216
      %263 = vmatpush.msra.mxu0 %v214
      %264 = vmatpush.msra.mxu0 %v212
      %265 = vmatpush.msra.mxu0 %v210
      %266 = vmatpush.msra.mxu0 %v208
      %267 = vmatpush.msra.mxu0 %v198
      %268 = vmatpush.msra.mxu0 %v197
      %269 = vmatpush.msra.mxu0 %v196
      %270 = vmatpush.msra.mxu0 %v195
      %271 = vmatpush.msra.mxu0 %v194
      %272 = vmatpush.msra.mxu0 %v193
      %273 = vmatpush.msra.mxu0 %v192
      %274 = vmatpush.msra.mxu0 %v191
      %275 = vmatmul.f32.gmra.mxu0 %v231
      %v276 = vpop.f32.mrf.mxu0
      %v277 = vadd.f32 %v242, %v276
      %278 = vmatmul.f32.gmra.mxu0 %v232
      %v279 = vpop.f32.mrf.mxu0
      %v280 = vadd.f32 %v247, %v279
      %281 = vmatmul.f32.gmra.mxu0 %v233
      %v282 = vpop.f32.mrf.mxu0
      %v283 = vadd.f32 %v252, %v282
      %284 = vmatmul.f32.gmra.mxu0 %v234
      %v285 = vpop.f32.mrf.mxu0
      %v286 = vadd.f32 %v257, %v285
      %287 = vdwg.mxu0
      %vm288 = vcmask 64512
      %289 = vst.msk [vmem:[%s190] sm:$0xff] %vm288, %v277
      %290 = vst.msk [vmem:[%s190 + $0x8] sm:$0xff] %vm288, %v280
      %291 = vst.msk [vmem:[%s190 + $0x10] sm:$0xff] %vm288, %v283
      %292 = vst.msk [vmem:[%s190 + $0x18] sm:$0xff] %vm288, %v286
      %p293 = scmp.lt.s32.totalorder %s18, 1
      %s294 = scalar_select %p293, %s18, 1
      %p295 = scmp.lt.s32.totalorder %s19, 0
      %s296 = scalar_select %p295, %s19, 0
      %s297 = smul.addr %s294, 4
      %s298 = sadd.s32 %s296, %s297
      %s299 = smul.addr %s298, 8
      %s300 = scalar_lea.vmem %s3, %s299
      // Predicated region
      $region33: #{forward.25} parent=31 // pred_check
        %p301 = pneg %p114
      $region34: #{forward.25} parent=31 // pred_check_branch
        %303 = sbr.rel (%p301) target = $region36
      $region35: #{forward.25} parent=31 // pred_region
        _
      $region36: #{forward.25} parent=31 // pred_fallthru
        _
    $region32: #{forward.25} parent=5 // pred_fallthru
      _
    %p304 = scmp.le.s32.totalorder 2, %s9
    // Predicated region
    $region37: #{forward.25} parent=5 // pred_check
      %p305 = pneg %p304
    $region38: #{forward.25} parent=5 // pred_check_branch
      %307 = sbr.rel (%p305) target = $region40
    $region39: #{forward.25} parent=5 // pred_region
      %s308 = ssub.s32 %s9, 2
      // Predicated region
      $region41: #{forward.25} parent=39 // pred_check
        %p309 = pneg %p120
      $region42: #{forward.25} parent=39 // pred_check_branch
        %311 = sbr.rel (%p309) target = $region44
      $region43: #{forward.25} parent=39 // pred_region
        %p312 = scmp.lt.s32.totalorder %s20, 1
        %s313 = scalar_select %p312, %s20, 1
        %p314 = scmp.lt.s32.totalorder %s21, 0
        %s315 = scalar_select %p314, %s21, 0
        %s316 = smul.addr %s313, 4
        %s317 = sadd.s32 %s315, %s316
        %s318 = smul.addr %s317, 8
        %s319 = scalar_lea.vmem %s3, %s318
      $region44: #{forward.25} parent=39 // pred_fallthru
        _
    $region40: #{forward.25} parent=5 // pred_fallthru
      _
  $region6: #{forward.25} parent=0 // loop_footer
    %s13 = sadd.s32 1, %s9
  $region7: #{forward.25} parent=0 // loop_footer_branch
    %8 = sbr.rel target = $region3
  $region8: #{forward.25} parent=0 // loop_exit
    _

// kernel: forward.27
$region0: #{forward.27}
  #allocation0 [shape = 'u32[]', space=smem, size = 0x4, offset = 0x4, fixed_abs, tag = 'smem constant byte address 0x4 - core index']
  #allocation1 [shape = 'u32[72,128]{1,0:T(1,128)}', space=vmem, size = 0x9000, scoped, tag = 'internal scratch']
  %s0 = inlined_call_operand.vmem [shape: f32[2,32,18], index: 0, kind: input, shape index: {}]
  %s1 = inlined_call_operand.vmem [shape: f32[32,96], index: 1, kind: input, shape index: {}]
  %s2 = inlined_call_operand.vmem [shape: f32[32,1], index: 2, kind: input, shape index: {}]
  %s3 = inlined_call_operand.vmem [shape: f32[2,32,16], index: 3, kind: output, shape index: {}]
  %s4 = sld [smem:[#allocation0]]
  $region45: #{forward.27} parent=0
    _
  %s6 = ssub.s32 1, %s4
  %s7 = scalar_select 0, %s6, %s4
  loop: start=0, step=1, limit=4
  $region2: #{forward.27} parent=0 // loop_pre_header
    _
  $region3: #{forward.27} parent=0 // loop_header
    %s9 = sphi 0, %s13
    %p10 = scmp.ge.s32.totalorder %s9, 4
    %s16 = sphi 0, %s28
    %s17 = sphi 0, %s24
    %s18 = sphi 0, %s16
    %s19 = sphi 0, %s17
    %s20 = sphi 0, %s18
    %s21 = sphi 0, %s19
    %s31 = sphi 0, %s33
    %s34 = sphi 0, %s31
    %s35 = sphi 0, %s34
    %s51 = sphi 0, %s35
    %s55 = sphi 0, %s55
    %s57 = sphi 0, %s55
    %s58 = sphi 0, %s57
    %s72 = sphi 0, %s58
    %s76 = sphi 0, %s76
    %s78 = sphi 0, %s76
    %s79 = sphi 0, %s78
    %s93 = sphi 0, %s79
    %s101 = sphi 0, %s103
    %s104 = sphi 0, %s101
    %s105 = sphi 0, %s104
    %s121 = sphi 0, %s105
  $region4: #{forward.27} parent=0 // loop_header_branch
    %12 = sbr.rel (%p10) target = $region8
  $region5: #{forward.27} parent=0 // loop_body
    %s14 = ssub.s32 %s9, 1
    %s15 = ssub.s32 %s9, 2
    %s22 = sadd.s32 1, %s17
    %p23 = scmp.ge.s32.totalorder %s22, 1
    %s24 = scalar_select %p23, 0, %s22
    %s25 = sadd.s32 1, %s16
    %s26 = scalar_select %p23, %s25, %s16
    %p27 = scmp.ge.s32.totalorder %s26, 2
    %s28 = scalar_select %p27, 0, %s26
    %s29 = ssub.s32 %s16, %s28
    %p30 = scmp.eq.s32.totalorder %s29, 0
    %s32 = sadd.s32 %s31, 1
    %s33 = scalar_select %p30, %s31, %s32
    %p36 = pneg %p30
    %p37 = scmp.eq.s32.totalorder %s9, 1
    %p38 = por %p36, %p37
    %p39 = scmp.ne.s32.totalorder %s31, %s34
    %p40 = scmp.eq.s32.totalorder %s9, 0
    %p41 = por %p39, %p40
    %p42 = scmp.ne.s32.totalorder %s31, %s34
    %p43 = scmp.eq.s32.totalorder %s14, 1
    %p44 = por %p42, %p43
    %p45 = scmp.ne.s32.totalorder %s34, %s35
    %p46 = scmp.eq.s32.totalorder %s14, 0
    %p47 = por %p45, %p46
    %p48 = scmp.ne.s32.totalorder %s34, %s35
    %p49 = scmp.eq.s32.totalorder %s15, 1
    %p50 = por %p48, %p49
    %p52 = scmp.ne.s32.totalorder %s35, %s51
    %p53 = scmp.eq.s32.totalorder %s15, 0
    %p54 = por %p52, %p53
    %s56 = sadd.s32 %s55, 1
    %p59 = scmp.eq.s32.totalorder %s9, 1
    %p60 = scmp.ne.s32.totalorder %s55, %s57
    %p61 = scmp.eq.s32.totalorder %s9, 0
    %p62 = por %p60, %p61
    %p63 = scmp.ne.s32.totalorder %s55, %s57
    %p64 = scmp.eq.s32.totalorder %s14, 1
    %p65 = por %p63, %p64
    %p66 = scmp.ne.s32.totalorder %s57, %s58
    %p67 = scmp.eq.s32.totalorder %s14, 0
    %p68 = por %p66, %p67
    %p69 = scmp.ne.s32.totalorder %s57, %s58
    %p70 = scmp.eq.s32.totalorder %s15, 1
    %p71 = por %p69, %p70
    %p73 = scmp.ne.s32.totalorder %s58, %s72
    %p74 = scmp.eq.s32.totalorder %s15, 0
    %p75 = por %p73, %p74
    %s77 = sadd.s32 %s76, 1
    %p80 = scmp.eq.s32.totalorder %s9, 1
    %p81 = scmp.ne.s32.totalorder %s76, %s78
    %p82 = scmp.eq.s32.totalorder %s9, 0
    %p83 = por %p81, %p82
    %p84 = scmp.ne.s32.totalorder %s76, %s78
    %p85 = scmp.eq.s32.totalorder %s14, 1
    %p86 = por %p84, %p85
    %p87 = scmp.ne.s32.totalorder %s78, %s79
    %p88 = scmp.eq.s32.totalorder %s14, 0
    %p89 = por %p87, %p88
    %p90 = scmp.ne.s32.totalorder %s78, %s79
    %p91 = scmp.eq.s32.totalorder %s15, 1
    %p92 = por %p90, %p91
    %p94 = scmp.ne.s32.totalorder %s79, %s93
    %p95 = scmp.eq.s32.totalorder %s15, 0
    %p96 = por %p94, %p95
    %s97 = ssub.s32 %s16, %s28
    %s98 = ssub.s32 %s17, %s24
    %s99 = sor.u32 %s97, %s98
    %p100 = scmp.eq.s32.totalorder %s99, 0
    %s102 = sadd.s32 %s101, 1
    %s103 = scalar_select %p100, %s101, %s102
    %p106 = pneg %p100
    %p107 = scmp.eq.s32.totalorder %s9, 1
    %p108 = por %p106, %p107
    %p109 = scmp.ne.s32.totalorder %s101, %s104
    %p110 = scmp.eq.s32.totalorder %s9, 0
    %p111 = por %p109, %p110
    %p112 = scmp.ne.s32.totalorder %s101, %s104
    %p113 = scmp.eq.s32.totalorder %s14, 1
    %p114 = por %p112, %p113
    %p115 = scmp.ne.s32.totalorder %s104, %s105
    %p116 = scmp.eq.s32.totalorder %s14, 0
    %p117 = por %p115, %p116
    %p118 = scmp.ne.s32.totalorder %s104, %s105
    %p119 = scmp.eq.s32.totalorder %s15, 1
    %p120 = por %p118, %p119
    %p122 = scmp.ne.s32.totalorder %s105, %s121
    %p123 = scmp.eq.s32.totalorder %s15, 0
    %p124 = por %p122, %p123
    %p125 = scmp.le.s32.totalorder 1, %s9
    %p126 = scmp.lt.s32.totalorder %s9, 3
    %p127 = pnand %p125, %p126
    %p128 = pneg %p127
    // Predicated region
    $region9: #{forward.27} parent=5 // pred_check
      _
    $region10: #{forward.27} parent=5 // pred_check_branch
      %130 = sbr.rel (%p127) target = $region12
    $region11: #{forward.27} parent=5 // pred_region
      %s131 = ssub.s32 %s9, 1
      // Predicated region
      $region13: #{forward.27} parent=11 // pred_check
        %p132 = pneg %p68
      $region14: #{forward.27} parent=11 // pred_check_branch
        %134 = sbr.rel (%p132) target = $region16
      $region15: #{forward.27} parent=11 // pred_region
        _
      $region16: #{forward.27} parent=11 // pred_fallthru
        _
      // Predicated region
      $region17: #{forward.27} parent=11 // pred_check
        %p135 = pneg %p89
      $region18: #{forward.27} parent=11 // pred_check_branch
        %137 = sbr.rel (%p135) target = $region20
      $region19: #{forward.27} parent=11 // pred_region
        _
      $region20: #{forward.27} parent=11 // pred_fallthru
        _
    $region12: #{forward.27} parent=5 // pred_fallthru
      _
    %p138 = scmp.lt.s32.totalorder %s9, 2
    // Predicated region
    $region21: #{forward.27} parent=5 // pred_check
      %p139 = pneg %p138
    $region22: #{forward.27} parent=5 // pred_check_branch
      %141 = sbr.rel (%p139) target = $region24
    $region23: #{forward.27} parent=5 // pred_region
      // Predicated region
      $region25: #{forward.27} parent=23 // pred_check
        %p142 = pneg %p41
      $region26: #{forward.27} parent=23 // pred_check_branch
        %144 = sbr.rel (%p142) target = $region28
      $region27: #{forward.27} parent=23 // pred_region
        %p145 = scmp.lt.s32.totalorder %s16, 1
        %s146 = scalar_select %p145, %s16, 1
        %s147 = smul.addr %s146, 4
        %s148 = smul.addr %s147, 8
        %s149 = scalar_lea.vmem %s0, %s148
      $region28: #{forward.27} parent=23 // pred_fallthru
        _
    $region24: #{forward.27} parent=5 // pred_fallthru
      _
    %p150 = scmp.le.s32.totalorder 1, %s9
    %p151 = scmp.lt.s32.totalorder %s9, 3
    %p152 = pnand %p150, %p151
    %p153 = pneg %p152
    // Predicated region
    $region29: #{forward.27} parent=5 // pred_check
      _
    $region30: #{forward.27} parent=5 // pred_check_branch
      %155 = sbr.rel (%p152) target = $region32
    $region31: #{forward.27} parent=5 // pred_region
      %s156 = ssub.s32 %s9, 1
      %p157 = scmp.lt.s32.totalorder %s18, 1
      %s158 = scalar_select %p157, %s18, 1
      %s159 = smul.addr %s158, 4
      %s160 = smul.addr %s159, 8
      %s161 = scalar_lea.vmem %s0, %s160
      %p162 = pneg %p47
      %p163 = pneg %p44
      %p164 = pneg %p68
      %p165 = pneg %p65
      %p166 = pneg %p89
      %p167 = pneg %p86
      %p168 = pneg %p117
      %p169 = pneg %p114
      %p170 = scmp.lt.s32.totalorder %s18, 1
      %s171 = scalar_select %p170, %s18, 1
      %p172 = scmp.lt.s32.totalorder %s19, 0
      %s173 = scalar_select %p172, %s19, 0
      %s174 = smul.addr %s171, 4
      %s175 = sadd.s32 %s173, %s174
      %s176 = smul.addr %s175, 8
      %s177 = scalar_lea.vmem %s3, %s176
      %p178 = scmp.lt.s32.totalorder %s18, 1
      %s179 = scalar_select %p178, %s18, 1
      %s180 = smul.addr %s179, 4
      %s181 = smul.addr %s180, 8
      %s182 = scalar_lea.vmem %s0, %s181
      %p183 = scmp.lt.s32.totalorder %s18, 1
      %s184 = scalar_select %p183, %s18, 1
      %p185 = scmp.lt.s32.totalorder %s19, 0
      %s186 = scalar_select %p185, %s19, 0
      %s187 = smul.addr %s184, 4
      %s188 = sadd.s32 %s186, %s187
      %s189 = smul.addr %s188, 8
      %s190 = scalar_lea.vmem %s3, %s189
      %v191 = vld [vmem:[%s182] sm:$0xff]
      %v192 = vld [vmem:[%s182 + $0x8] sm:$0xff]
      %v193 = vld [vmem:[%s182 + $0x10] sm:$0xff]
      %v194 = vld [vmem:[%s182 + $0x18] sm:$0xff]
      %199 = vrot.lane.b32.xlu0 %v191, 127
      %v200 = vpop.permute.xlu0 %199
      %201 = vrot.lane.b32.xlu0 %v192, 127
      %v202 = vpop.permute.xlu0 %201
      %203 = vrot.lane.b32.xlu0 %v193, 127
      %v204 = vpop.permute.xlu0 %203
      %205 = vrot.lane.b32.xlu0 %v194, 127
      %v206 = vpop.permute.xlu0 %205
      %211 = vrot.lane.b32.xlu0 %v191, 126
      %v212 = vpop.permute.xlu0 %211
      %213 = vrot.lane.b32.xlu0 %v192, 126
      %v214 = vpop.permute.xlu0 %213
      %215 = vrot.lane.b32.xlu0 %v193, 126
      %v216 = vpop.permute.xlu0 %215
      %217 = vrot.lane.b32.xlu0 %v194, 126
      %v218 = vpop.permute.xlu0 %217
      %v223 = vld [vmem:[%s1] sm:$0xff]
      %v224 = vld [vmem:[%s1 + $0x8] sm:$0xff]
      %v225 = vld [vmem:[%s1 + $0x10] sm:$0xff]
      %v226 = vld [vmem:[%s1 + $0x18] sm:$0xff]
      %v227 = vld [vmem:[%s2] sm:$0xff]
      %v228 = vld [vmem:[%s2 + $0x8] sm:$0xff]
      %v229 = vld [vmem:[%s2 + $0x10] sm:$0xff]
      %v230 = vld [vmem:[%s2 + $0x18] sm:$0xff]
      %232 = vset.pattern.permute.xlu0 0
      %233 = vperm.xlu0 %232, %v227
      %v234 = vpop.permute.xlu0 %233
      %237 = vset.pattern.permute.xlu0 0
      %238 = vperm.xlu0 %237, %v228
      %v239 = vpop.permute.xlu0 %238
      %242 = vset.pattern.permute.xlu0 0
      %243 = vperm.xlu0 %242, %v229
      %v244 = vpop.permute.xlu0 %243
      %247 = vset.pattern.permute.xlu0 0
      %248 = vperm.xlu0 %247, %v230
      %v249 = vpop.permute.xlu0 %248
      %vm251 = vcmask 785408
      %v253 = vsel %vm251, %v223, 0
      %v256 = vsel %vm251, %v224, 0
      %v259 = vsel %vm251, %v225, 0
      %v262 = vsel %vm251, %v226, 0
      %264 = vmatpush.msra.mxu0 0.0
      %265 = vmatpush.msra.mxu0 0.0
      %266 = vmatpush.msra.mxu0 0.0
      %267 = vmatpush.msra.mxu0 0.0
      %268 = vmatpush.msra.mxu0 %v218
      %269 = vmatpush.msra.mxu0 %v216
      %270 = vmatpush.msra.mxu0 %v214
      %271 = vmatpush.msra.mxu0 %v212
      %272 = vmatpush.msra.mxu0 %v206
      %273 = vmatpush.msra.mxu0 %v204
      %274 = vmatpush.msra.mxu0 %v202
      %275 = vmatpush.msra.mxu0 %v200
      %276 = vmatpush.msra.mxu0 %v194
      %277 = vmatpush.msra.mxu0 %v193
      %278 = vmatpush.msra.mxu0 %v192
      %279 = vmatpush.msra.mxu0 %v191
      %280 = vmatmul.f32.gmra.mxu0 %v253
      %v281 = vpop.f32.mrf.mxu0
      %v282 = vadd.f32 %v234, %v281
      %283 = vmatmul.f32.gmra.mxu0 %v256
      %v284 = vpop.f32.mrf.mxu0
      %v285 = vadd.f32 %v239, %v284
      %286 = vmatmul.f32.gmra.mxu0 %v259
      %v287 = vpop.f32.mrf.mxu0
      %v288 = vadd.f32 %v244, %v287
      %289 = vmatmul.f32.gmra.mxu0 %v262
      %v290 = vpop.f32.mrf.mxu0
      %v291 = vadd.f32 %v249, %v290
      %292 = vdwg.mxu0
      %vm293 = vcmask 130048
      %294 = vst.msk [vmem:[%s190] sm:$0xff] %vm293, %v282
      %295 = vst.msk [vmem:[%s190 + $0x8] sm:$0xff] %vm293, %v285
      %296 = vst.msk [vmem:[%s190 + $0x10] sm:$0xff] %vm293, %v288
      %297 = vst.msk [vmem:[%s190 + $0x18] sm:$0xff] %vm293, %v291
      %p298 = scmp.lt.s32.totalorder %s18, 1
      %s299 = scalar_select %p298, %s18, 1
      %p300 = scmp.lt.s32.totalorder %s19, 0
      %s301 = scalar_select %p300, %s19, 0
      %s302 = smul.addr %s299, 4
      %s303 = sadd.s32 %s301, %s302
      %s304 = smul.addr %s303, 8
      %s305 = scalar_lea.vmem %s3, %s304
      // Predicated region
      $region33: #{forward.27} parent=31 // pred_check
        %p306 = pneg %p114
      $region34: #{forward.27} parent=31 // pred_check_branch
        %308 = sbr.rel (%p306) target = $region36
      $region35: #{forward.27} parent=31 // pred_region
        _
      $region36: #{forward.27} parent=31 // pred_fallthru
        _
    $region32: #{forward.27} parent=5 // pred_fallthru
      _
    %p309 = scmp.le.s32.totalorder 2, %s9
    // Predicated region
    $region37: #{forward.27} parent=5 // pred_check
      %p310 = pneg %p309
    $region38: #{forward.27} parent=5 // pred_check_branch
      %312 = sbr.rel (%p310) target = $region40
    $region39: #{forward.27} parent=5 // pred_region
      %s313 = ssub.s32 %s9, 2
      // Predicated region
      $region41: #{forward.27} parent=39 // pred_check
        %p314 = pneg %p120
      $region42: #{forward.27} parent=39 // pred_check_branch
        %316 = sbr.rel (%p314) target = $region44
      $region43: #{forward.27} parent=39 // pred_region
        %p317 = scmp.lt.s32.totalorder %s20, 1
        %s318 = scalar_select %p317, %s20, 1
        %p319 = scmp.lt.s32.totalorder %s21, 0
        %s320 = scalar_select %p319, %s21, 0
        %s321 = smul.addr %s318, 4
        %s322 = sadd.s32 %s320, %s321
        %s323 = smul.addr %s322, 8
        %s324 = scalar_lea.vmem %s3, %s323
      $region44: #{forward.27} parent=39 // pred_fallthru
        _
    $region40: #{forward.27} parent=5 // pred_fallthru
      _
  $region6: #{forward.27} parent=0 // loop_footer
    %s13 = sadd.s32 1, %s9
  $region7: #{forward.27} parent=0 // loop_footer_branch
    %8 = sbr.rel target = $region3
  $region8: #{forward.27} parent=0 // loop_exit
    _

// kernel: forward.26
$region0: #{forward.26}
  #allocation0 [shape = 'u32[]', space=smem, size = 0x4, offset = 0x4, fixed_abs, tag = 'smem constant byte address 0x4 - core index']
  #allocation1 [shape = 'u32[72,128]{1,0:T(1,128)}', space=vmem, size = 0x9000, scoped, tag = 'internal scratch']
  %s0 = inlined_call_operand.vmem [shape: f32[2,32,26], index: 0, kind: input, shape index: {}]
  %s1 = inlined_call_operand.vmem [shape: f32[32,1], index: 1, kind: input, shape index: {}]
  %s2 = inlined_call_operand.vmem [shape: f32[32,1], index: 2, kind: input, shape index: {}]
  %s3 = inlined_call_operand.vmem [shape: f32[2,32,1], index: 3, kind: input, shape index: {}]
  %s4 = inlined_call_operand.vmem [shape: f32[2,32,1], index: 4, kind: input, shape index: {}]
  %s5 = inlined_call_operand.vmem [shape: f32[2,32,16], index: 5, kind: output, shape index: {}]
  %s6 = sld [smem:[#allocation0]]
  $region53: #{forward.26} parent=0
    _
  %s8 = ssub.s32 1, %s6
  %s9 = scalar_select 0, %s8, %s6
  loop: start=0, step=1, limit=4
  $region2: #{forward.26} parent=0 // loop_pre_header
    _
  $region3: #{forward.26} parent=0 // loop_header
    %s11 = sphi 0, %s15
    %p12 = scmp.ge.s32.totalorder %s11, 4
    %s18 = sphi 0, %s30
    %s19 = sphi 0, %s26
    %s20 = sphi 0, %s18
    %s21 = sphi 0, %s19
    %s22 = sphi 0, %s20
    %s23 = sphi 0, %s21
    %s33 = sphi 0, %s35
    %s36 = sphi 0, %s33
    %s37 = sphi 0, %s36
    %s53 = sphi 0, %s37
    %s57 = sphi 0, %s57
    %s59 = sphi 0, %s57
    %s60 = sphi 0, %s59
    %s74 = sphi 0, %s60
    %s78 = sphi 0, %s78
    %s80 = sphi 0, %s78
    %s81 = sphi 0, %s80
    %s95 = sphi 0, %s81
    %s101 = sphi 0, %s103
    %s104 = sphi 0, %s101
    %s105 = sphi 0, %s104
    %s121 = sphi 0, %s105
    %s127 = sphi 0, %s129
    %s130 = sphi 0, %s127
    %s131 = sphi 0, %s130
    %s147 = sphi 0, %s131
    %s155 = sphi 0, %s157
    %s158 = sphi 0, %s155
    %s159 = sphi 0, %s158
    %s175 = sphi 0, %s159
  $region4: #{forward.26} parent=0 // loop_header_branch
    %14 = sbr.rel (%p12) target = $region8
  $region5: #{forward.26} parent=0 // loop_body
    %s16 = ssub.s32 %s11, 1
    %s17 = ssub.s32 %s11, 2
    %s24 = sadd.s32 1, %s19
    %p25 = scmp.ge.s32.totalorder %s24, 1
    %s26 = scalar_select %p25, 0, %s24
    %s27 = sadd.s32 1, %s18
    %s28 = scalar_select %p25, %s27, %s18
    %p29 = scmp.ge.s32.totalorder %s28, 2
    %s30 = scalar_select %p29, 0, %s28
    %s31 = ssub.s32 %s18, %s30
    %p32 = scmp.eq.s32.totalorder %s31, 0
    %s34 = sadd.s32 %s33, 1
    %s35 = scalar_select %p32, %s33, %s34
    %p38 = pneg %p32
    %p39 = scmp.eq.s32.totalorder %s11, 1
    %p40 = por %p38, %p39
    %p41 = scmp.ne.s32.totalorder %s33, %s36
    %p42 = scmp.eq.s32.totalorder %s11, 0
    %p43 = por %p41, %p42
    %p44 = scmp.ne.s32.totalorder %s33, %s36
    %p45 = scmp.eq.s32.totalorder %s16, 1
    %p46 = por %p44, %p45
    %p47 = scmp.ne.s32.totalorder %s36, %s37
    %p48 = scmp.eq.s32.totalorder %s16, 0
    %p49 = por %p47, %p48
    %p50 = scmp.ne.s32.totalorder %s36, %s37
    %p51 = scmp.eq.s32.totalorder %s17, 1
    %p52 = por %p50, %p51
    %p54 = scmp.ne.s32.totalorder %s37, %s53
    %p55 = scmp.eq.s32.totalorder %s17, 0
    %p56 = por %p54, %p55
    %s58 = sadd.s32 %s57, 1
    %p61 = scmp.eq.s32.totalorder %s11, 1
    %p62 = scmp.ne.s32.totalorder %s57, %s59
    %p63 = scmp.eq.s32.totalorder %s11, 0
    %p64 = por %p62, %p63
    %p65 = scmp.ne.s32.totalorder %s57, %s59
    %p66 = scmp.eq.s32.totalorder %s16, 1
    %p67 = por %p65, %p66
    %p68 = scmp.ne.s32.totalorder %s59, %s60
    %p69 = scmp.eq.s32.totalorder %s16, 0
    %p70 = por %p68, %p69
    %p71 = scmp.ne.s32.totalorder %s59, %s60
    %p72 = scmp.eq.s32.totalorder %s17, 1
    %p73 = por %p71, %p72
    %p75 = scmp.ne.s32.totalorder %s60, %s74
    %p76 = scmp.eq.s32.totalorder %s17, 0
    %p77 = por %p75, %p76
    %s79 = sadd.s32 %s78, 1
    %p82 = scmp.eq.s32.totalorder %s11, 1
    %p83 = scmp.ne.s32.totalorder %s78, %s80
    %p84 = scmp.eq.s32.totalorder %s11, 0
    %p85 = por %p83, %p84
    %p86 = scmp.ne.s32.totalorder %s78, %s80
    %p87 = scmp.eq.s32.totalorder %s16, 1
    %p88 = por %p86, %p87
    %p89 = scmp.ne.s32.totalorder %s80, %s81
    %p90 = scmp.eq.s32.totalorder %s16, 0
    %p91 = por %p89, %p90
    %p92 = scmp.ne.s32.totalorder %s80, %s81
    %p93 = scmp.eq.s32.totalorder %s17, 1
    %p94 = por %p92, %p93
    %p96 = scmp.ne.s32.totalorder %s81, %s95
    %p97 = scmp.eq.s32.totalorder %s17, 0
    %p98 = por %p96, %p97
    %s99 = ssub.s32 %s18, %s30
    %p100 = scmp.eq.s32.totalorder %s99, 0
    %s102 = sadd.s32 %s101, 1
    %s103 = scalar_select %p100, %s101, %s102
    %p106 = pneg %p100
    %p107 = scmp.eq.s32.totalorder %s11, 1
    %p108 = por %p106, %p107
    %p109 = scmp.ne.s32.totalorder %s101, %s104
    %p110 = scmp.eq.s32.totalorder %s11, 0
    %p111 = por %p109, %p110
    %p112 = scmp.ne.s32.totalorder %s101, %s104
    %p113 = scmp.eq.s32.totalorder %s16, 1
    %p114 = por %p112, %p113
    %p115 = scmp.ne.s32.totalorder %s104, %s105
    %p116 = scmp.eq.s32.totalorder %s16, 0
    %p117 = por %p115, %p116
    %p118 = scmp.ne.s32.totalorder %s104, %s105
    %p119 = scmp.eq.s32.totalorder %s17, 1
    %p120 = por %p118, %p119
    %p122 = scmp.ne.s32.totalorder %s105, %s121
    %p123 = scmp.eq.s32.totalorder %s17, 0
    %p124 = por %p122, %p123
    %s125 = ssub.s32 %s18, %s30
    %p126 = scmp.eq.s32.totalorder %s125, 0
    %s128 = sadd.s32 %s127, 1
    %s129 = scalar_select %p126, %s127, %s128
    %p132 = pneg %p126
    %p133 = scmp.eq.s32.totalorder %s11, 1
    %p134 = por %p132, %p133
    %p135 = scmp.ne.s32.totalorder %s127, %s130
    %p136 = scmp.eq.s32.totalorder %s11, 0
    %p137 = por %p135, %p136
    %p138 = scmp.ne.s32.totalorder %s127, %s130
    %p139 = scmp.eq.s32.totalorder %s16, 1
    %p140 = por %p138, %p139
    %p141 = scmp.ne.s32.totalorder %s130, %s131
    %p142 = scmp.eq.s32.totalorder %s16, 0
    %p143 = por %p141, %p142
    %p144 = scmp.ne.s32.totalorder %s130, %s131
    %p145 = scmp.eq.s32.totalorder %s17, 1
    %p146 = por %p144, %p145
    %p148 = scmp.ne.s32.totalorder %s131, %s147
    %p149 = scmp.eq.s32.totalorder %s17, 0
    %p150 = por %p148, %p149
    %s151 = ssub.s32 %s18, %s30
    %s152 = ssub.s32 %s19, %s26
    %s153 = sor.u32 %s151, %s152
    %p154 = scmp.eq.s32.totalorder %s153, 0
    %s156 = sadd.s32 %s155, 1
    %s157 = scalar_select %p154, %s155, %s156
    %p160 = pneg %p154
    %p161 = scmp.eq.s32.totalorder %s11, 1
    %p162 = por %p160, %p161
    %p163 = scmp.ne.s32.totalorder %s155, %s158
    %p164 = scmp.eq.s32.totalorder %s11, 0
    %p165 = por %p163, %p164
    %p166 = scmp.ne.s32.totalorder %s155, %s158
    %p167 = scmp.eq.s32.totalorder %s16, 1
    %p168 = por %p166, %p167
    %p169 = scmp.ne.s32.totalorder %s158, %s159
    %p170 = scmp.eq.s32.totalorder %s16, 0
    %p171 = por %p169, %p170
    %p172 = scmp.ne.s32.totalorder %s158, %s159
    %p173 = scmp.eq.s32.totalorder %s17, 1
    %p174 = por %p172, %p173
    %p176 = scmp.ne.s32.totalorder %s159, %s175
    %p177 = scmp.eq.s32.totalorder %s17, 0
    %p178 = por %p176, %p177
    %p179 = scmp.le.s32.totalorder 1, %s11
    %p180 = scmp.lt.s32.totalorder %s11, 3
    %p181 = pnand %p179, %p180
    %p182 = pneg %p181
    // Predicated region
    $region9: #{forward.26} parent=5 // pred_check
      _
    $region10: #{forward.26} parent=5 // pred_check_branch
      %184 = sbr.rel (%p181) target = $region12
    $region11: #{forward.26} parent=5 // pred_region
      %s185 = ssub.s32 %s11, 1
      // Predicated region
      $region13: #{forward.26} parent=11 // pred_check
        %p186 = pneg %p70
      $region14: #{forward.26} parent=11 // pred_check_branch
        %188 = sbr.rel (%p186) target = $region16
      $region15: #{forward.26} parent=11 // pred_region
        _
      $region16: #{forward.26} parent=11 // pred_fallthru
        _
      // Predicated region
      $region17: #{forward.26} parent=11 // pred_check
        %p189 = pneg %p91
      $region18: #{forward.26} parent=11 // pred_check_branch
        %191 = sbr.rel (%p189) target = $region20
      $region19: #{forward.26} parent=11 // pred_region
        _
      $region20: #{forward.26} parent=11 // pred_fallthru
        _
    $region12: #{forward.26} parent=5 // pred_fallthru
      _
    %p192 = scmp.lt.s32.totalorder %s11, 2
    // Predicated region
    $region21: #{forward.26} parent=5 // pred_check
      %p193 = pneg %p192
    $region22: #{forward.26} parent=5 // pred_check_branch
      %195 = sbr.rel (%p193) target = $region24
    $region23: #{forward.26} parent=5 // pred_region
      // Predicated region
      $region25: #{forward.26} parent=23 // pred_check
        %p196 = pneg %p43
      $region26: #{forward.26} parent=23 // pred_check_branch
        %198 = sbr.rel (%p196) target = $region28
      $region27: #{forward.26} parent=23 // pred_region
        %p199 = scmp.lt.s32.totalorder %s18, 1
        %s200 = scalar_select %p199, %s18, 1
        %s201 = smul.addr %s200, 4
        %s202 = smul.addr %s201, 8
        %s203 = scalar_lea.vmem %s0, %s202
      $region28: #{forward.26} parent=23 // pred_fallthru
        _
      // Predicated region
      $region29: #{forward.26} parent=23 // pred_check
        %p204 = pneg %p111
      $region30: #{forward.26} parent=23 // pred_check_branch
        %206 = sbr.rel (%p204) target = $region32
      $region31: #{forward.26} parent=23 // pred_region
        %p207 = scmp.lt.s32.totalorder %s18, 1
        %s208 = scalar_select %p207, %s18, 1
        %s209 = smul.addr %s208, 4
        %s210 = smul.addr %s209, 8
        %s211 = scalar_lea.vmem %s3, %s210
      $region32: #{forward.26} parent=23 // pred_fallthru
        _
      // Predicated region
      $region33: #{forward.26} parent=23 // pred_check
        %p212 = pneg %p137
      $region34: #{forward.26} parent=23 // pred_check_branch
        %214 = sbr.rel (%p212) target = $region36
      $region35: #{forward.26} parent=23 // pred_region
        %p215 = scmp.lt.s32.totalorder %s18, 1
        %s216 = scalar_select %p215, %s18, 1
        %s217 = smul.addr %s216, 4
        %s218 = smul.addr %s217, 8
        %s219 = scalar_lea.vmem %s4, %s218
      $region36: #{forward.26} parent=23 // pred_fallthru
        _
    $region24: #{forward.26} parent=5 // pred_fallthru
      _
    %p220 = scmp.le.s32.totalorder 1, %s11
    %p221 = scmp.lt.s32.totalorder %s11, 3
    %p222 = pnand %p220, %p221
    %p223 = pneg %p222
    // Predicated region
    $region37: #{forward.26} parent=5 // pred_check
      _
    $region38: #{forward.26} parent=5 // pred_check_branch
      %225 = sbr.rel (%p222) target = $region40
    $region39: #{forward.26} parent=5 // pred_region
      %s226 = ssub.s32 %s11, 1
      %p227 = scmp.lt.s32.totalorder %s20, 1
      %s228 = scalar_select %p227, %s20, 1
      %s229 = smul.addr %s228, 4
      %s230 = smul.addr %s229, 8
      %s231 = scalar_lea.vmem %s0, %s230
      %p232 = pneg %p49
      %p233 = pneg %p46
      %p234 = pneg %p70
      %p235 = pneg %p67
      %p236 = pneg %p91
      %p237 = pneg %p88
      %p238 = scmp.lt.s32.totalorder %s20, 1
      %s239 = scalar_select %p238, %s20, 1
      %s240 = smul.addr %s239, 4
      %s241 = smul.addr %s240, 8
      %s242 = scalar_lea.vmem %s3, %s241
      %p243 = pneg %p117
      %p244 = pneg %p114
      %p245 = scmp.lt.s32.totalorder %s20, 1
      %s246 = scalar_select %p245, %s20, 1
      %s247 = smul.addr %s246, 4
      %s248 = smul.addr %s247, 8
      %s249 = scalar_lea.vmem %s4, %s248
      %p250 = pneg %p143
      %p251 = pneg %p140
      %p252 = pneg %p171
      %p253 = pneg %p168
      %p254 = scmp.lt.s32.totalorder %s20, 1
      %s255 = scalar_select %p254, %s20, 1
      %p256 = scmp.lt.s32.totalorder %s21, 0
      %s257 = scalar_select %p256, %s21, 0
      %s258 = smul.addr %s255, 4
      %s259 = sadd.s32 %s257, %s258
      %s260 = smul.addr %s259, 8
      %s261 = scalar_lea.vmem %s5, %s260
      %p262 = scmp.lt.s32.totalorder %s20, 1
      %s263 = scalar_select %p262, %s20, 1
      %s264 = smul.addr %s263, 4
      %s265 = smul.addr %s264, 8
      %s266 = scalar_lea.vmem %s0, %s265
      %p267 = scmp.lt.s32.totalorder %s20, 1
      %s268 = scalar_select %p267, %s20, 1
      %s269 = smul.addr %s268, 4
      %s270 = smul.addr %s269, 8
      %s271 = scalar_lea.vmem %s3, %s270
      %p272 = scmp.lt.s32.totalorder %s20, 1
      %s273 = scalar_select %p272, %s20, 1
      %s274 = smul.addr %s273, 4
      %s275 = smul.addr %s274, 8
      %s276 = scalar_lea.vmem %s4, %s275
      %p277 = scmp.lt.s32.totalorder %s20, 1
      %s278 = scalar_select %p277, %s20, 1
      %p279 = scmp.lt.s32.totalorder %s21, 0
      %s280 = scalar_select %p279, %s21, 0
      %s281 = smul.addr %s278, 4
      %s282 = sadd.s32 %s280, %s281
      %s283 = smul.addr %s282, 8
      %s284 = scalar_lea.vmem %s5, %s283
      %v285 = vld [vmem:[%s266] sm:$0xff]
      %v286 = vld [vmem:[%s266 + $0x8] sm:$0xff]
      %v287 = vld [vmem:[%s266 + $0x10] sm:$0xff]
      %v288 = vld [vmem:[%s266 + $0x18] sm:$0xff]
      %v289 = vmul.f32 %v285, 0.004057933
      %v290 = vmul.f32 %v286, 0.004057933
      %v291 = vmul.f32 %v287, 0.004057933
      %v292 = vmul.f32 %v288, 0.004057933
      %v293 = vadd.f32 %v289, 0.0
      %v294 = vadd.f32 %v290, 0.0
      %v295 = vadd.f32 %v291, 0.0
      %v296 = vadd.f32 %v292, 0.0
      %v297 = vmul.f32 %v285, 0.018778928
      %v298 = vmul.f32 %v286, 0.018778928
      %v299 = vmul.f32 %v287, 0.018778928
      %v300 = vmul.f32 %v288, 0.018778928
      %v301 = vadd.f32 %v297, 0.0
      %v302 = vadd.f32 %v298, 0.0
      %v303 = vadd.f32 %v299, 0.0
      %v304 = vadd.f32 %v300, 0.0
      %v305 = vmul.f32 %v285, -0.05108693
      %v306 = vmul.f32 %v286, -0.05108693
      %v307 = vmul.f32 %v287, -0.05108693
      %v308 = vmul.f32 %v288, -0.05108693
      %313 = vrot.lane.b32.xlu0 %v305, 127
      %v314 = vpop.permute.xlu0 %313
      %315 = vrot.lane.b32.xlu0 %v306, 127
      %v316 = vpop.permute.xlu0 %315
      %317 = vrot.lane.b32.xlu0 %v307, 127
      %v318 = vpop.permute.xlu0 %317
      %319 = vrot.lane.b32.xlu0 %v308, 127
      %v320 = vpop.permute.xlu0 %319
      %v325 = vadd.f32 %v293, %v314
      %v326 = vadd.f32 %v294, %v316
      %v327 = vadd.f32 %v295, %v318
      %v328 = vadd.f32 %v296, %v320
      %v329 = vmul.f32 %v285, -0.11531475
      %v330 = vmul.f32 %v286, -0.11531475
      %v331 = vmul.f32 %v287, -0.11531475
      %v332 = vmul.f32 %v288, -0.11531475
      %337 = vrot.lane.b32.xlu0 %v329, 127
      %v338 = vpop.permute.xlu0 %337
      %339 = vrot.lane.b32.xlu0 %v330, 127
      %v340 = vpop.permute.xlu0 %339
      %341 = vrot.lane.b32.xlu0 %v331, 127
      %v342 = vpop.permute.xlu0 %341
      %343 = vrot.lane.b32.xlu0 %v332, 127
      %v344 = vpop.permute.xlu0 %343
      %v349 = vadd.f32 %v301, %v338
      %v350 = vadd.f32 %v302, %v340
      %v351 = vadd.f32 %v303, %v342
      %v352 = vadd.f32 %v304, %v344
      %v353 = vmul.f32 %v285, 0.25714523
      %v354 = vmul.f32 %v286, 0.25714523
      %v355 = vmul.f32 %v287, 0.25714523
      %v356 = vmul.f32 %v288, 0.25714523
      %361 = vrot.lane.b32.xlu0 %v353, 126
      %v362 = vpop.permute.xlu0 %361
      %363 = vrot.lane.b32.xlu0 %v354, 126
      %v364 = vpop.permute.xlu0 %363
      %365 = vrot.lane.b32.xlu0 %v355, 126
      %v366 = vpop.permute.xlu0 %365
      %367 = vrot.lane.b32.xlu0 %v356, 126
      %v368 = vpop.permute.xlu0 %367
      %v373 = vadd.f32 %v325, %v362
      %v374 = vadd.f32 %v326, %v364
      %v375 = vadd.f32 %v327, %v366
      %v376 = vadd.f32 %v328, %v368
      %v377 = vmul.f32 %v285, 0.8864196
      %v378 = vmul.f32 %v286, 0.8864196
      %v379 = vmul.f32 %v287, 0.8864196
      %v380 = vmul.f32 %v288, 0.8864196
      %385 = vrot.lane.b32.xlu0 %v377, 126
      %v386 = vpop.permute.xlu0 %385
      %387 = vrot.lane.b32.xlu0 %v378, 126
      %v388 = vpop.permute.xlu0 %387
      %389 = vrot.lane.b32.xlu0 %v379, 126
      %v390 = vpop.permute.xlu0 %389
      %391 = vrot.lane.b32.xlu0 %v380, 126
      %v392 = vpop.permute.xlu0 %391
      %v397 = vadd.f32 %v349, %v386
      %v398 = vadd.f32 %v350, %v388
      %v399 = vadd.f32 %v351, %v390
      %v400 = vadd.f32 %v352, %v392
      %401 = vrot.lane.b32.xlu0 %v377, 125
      %v402 = vpop.permute.xlu0 %401
      %403 = vrot.lane.b32.xlu0 %v378, 125
      %v404 = vpop.permute.xlu0 %403
      %405 = vrot.lane.b32.xlu0 %v379, 125
      %v406 = vpop.permute.xlu0 %405
      %407 = vrot.lane.b32.xlu0 %v380, 125
      %v408 = vpop.permute.xlu0 %407
      %v413 = vadd.f32 %v373, %v402
      %v414 = vadd.f32 %v374, %v404
      %v415 = vadd.f32 %v375, %v406
      %v416 = vadd.f32 %v376, %v408
      %417 = vrot.lane.b32.xlu0 %v353, 125
      %v418 = vpop.permute.xlu0 %417
      %419 = vrot.lane.b32.xlu0 %v354, 125
      %v420 = vpop.permute.xlu0 %419
      %421 = vrot.lane.b32.xlu0 %v355, 125
      %v422 = vpop.permute.xlu0 %421
      %423 = vrot.lane.b32.xlu0 %v356, 125
      %v424 = vpop.permute.xlu0 %423
      %v429 = vadd.f32 %v397, %v418
      %v430 = vadd.f32 %v398, %v420
      %v431 = vadd.f32 %v399, %v422
      %v432 = vadd.f32 %v400, %v424
      %433 = vrot.lane.b32.xlu0 %v329, 124
      %v434 = vpop.permute.xlu0 %433
      %435 = vrot.lane.b32.xlu0 %v330, 124
      %v436 = vpop.permute.xlu0 %435
      %437 = vrot.lane.b32.xlu0 %v331, 124
      %v438 = vpop.permute.xlu0 %437
      %439 = vrot.lane.b32.xlu0 %v332, 124
      %v440 = vpop.permute.xlu0 %439
      %v445 = vadd.f32 %v413, %v434
      %v446 = vadd.f32 %v414, %v436
      %v447 = vadd.f32 %v415, %v438
      %v448 = vadd.f32 %v416, %v440
      %449 = vrot.lane.b32.xlu0 %v305, 124
      %v450 = vpop.permute.xlu0 %449
      %451 = vrot.lane.b32.xlu0 %v306, 124
      %v452 = vpop.permute.xlu0 %451
      %453 = vrot.lane.b32.xlu0 %v307, 124
      %v454 = vpop.permute.xlu0 %453
      %455 = vrot.lane.b32.xlu0 %v308, 124
      %v456 = vpop.permute.xlu0 %455
      %v461 = vadd.f32 %v429, %v450
      %v462 = vadd.f32 %v430, %v452
      %v463 = vadd.f32 %v431, %v454
      %v464 = vadd.f32 %v432, %v456
      %469 = vrot.lane.b32.xlu0 %v297, 123
      %v470 = vpop.permute.xlu0 %469
      %471 = vrot.lane.b32.xlu0 %v298, 123
      %v472 = vpop.permute.xlu0 %471
      %473 = vrot.lane.b32.xlu0 %v299, 123
      %v474 = vpop.permute.xlu0 %473
      %475 = vrot.lane.b32.xlu0 %v300, 123
      %v476 = vpop.permute.xlu0 %475
      %v481 = vadd.f32 %v445, %v470
      %v482 = vadd.f32 %v446, %v472
      %v483 = vadd.f32 %v447, %v474
      %v484 = vadd.f32 %v448, %v476
      %489 = vrot.lane.b32.xlu0 %v289, 123
      %v490 = vpop.permute.xlu0 %489
      %491 = vrot.lane.b32.xlu0 %v290, 123
      %v492 = vpop.permute.xlu0 %491
      %493 = vrot.lane.b32.xlu0 %v291, 123
      %v494 = vpop.permute.xlu0 %493
      %495 = vrot.lane.b32.xlu0 %v292, 123
      %v496 = vpop.permute.xlu0 %495
      %v501 = vadd.f32 %v461, %v490
      %v502 = vadd.f32 %v462, %v492
      %v503 = vadd.f32 %v463, %v494
      %v504 = vadd.f32 %v464, %v496
      %v505 = vld [vmem:[%s1] sm:$0xff]
      %v506 = vld [vmem:[%s1 + $0x8] sm:$0xff]
      %v507 = vld [vmem:[%s1 + $0x10] sm:$0xff]
      %v508 = vld [vmem:[%s1 + $0x18] sm:$0xff]
      %v509 = vld [vmem:[%s2] sm:$0xff]
      %v510 = vld [vmem:[%s2 + $0x8] sm:$0xff]
      %v511 = vld [vmem:[%s2 + $0x10] sm:$0xff]
      %v512 = vld [vmem:[%s2 + $0x18] sm:$0xff]
      %514 = vset.pattern.permute.xlu0 0
      %515 = vperm.xlu0 %514, %v505
      %v516 = vpop.permute.xlu0 %515
      %519 = vset.pattern.permute.xlu0 0
      %520 = vperm.xlu0 %519, %v506
      %v521 = vpop.permute.xlu0 %520
      %524 = vset.pattern.permute.xlu0 0
      %525 = vperm.xlu0 %524, %v507
      %v526 = vpop.permute.xlu0 %525
      %529 = vset.pattern.permute.xlu0 0
      %530 = vperm.xlu0 %529, %v508
      %v531 = vpop.permute.xlu0 %530
      %v533 = vmul.f32 %v481, %v516
      %v534 = vmul.f32 %v482, %v521
      %v535 = vmul.f32 %v483, %v526
      %v536 = vmul.f32 %v484, %v531
      %v537 = vand.u32 2147483647, %v533
      %vm538 = vcmp.le.f32.partialorder %v537, 0.7853982
      %vm539 = vcmp.lt.s32.totalorder %v533, 0
      %v540 = vand.u32 %v533, 2139095040
      %v541 = vshrl.u32 %v540, 23
      %v542 = vsub.s32 %v541, 127
      %v543 = vand.u32 2147483647, %v533
      %v544 = vand.u32 %v543, 8388607
      %v545 = vor.u32 %v544, 8388608
      %v546 = vsub.s32 0, %v545
      %v547 = vadd.s32 %v542, 1
      %vm548 = vcmp.gt.s32.totalorder %v547, 0
      %v549 = vsel %vm548, %v547, 0
      %v550 = vshrl.u32 %v549, 5
      %v551 = vand.u32 %v549, 31
      %v552 = vsub.s32 32, %v551
      %v553 = vshrl.u32 683565275, %v552
      %v554 = vshll.u32 683565275, %v551
      %v555 = vshrl.u32 2475754826, %v552
      %v556 = vor.u32 %v554, %v555
      %v557 = vshll.u32 2475754826, %v551
      %v558 = vshrl.u32 2131351028, %v552
      %v559 = vor.u32 %v557, %v558
      %v560 = vshll.u32 2131351028, %v551
      %v561 = vshrl.u32 2102212464, %v552
      %v562 = vor.u32 %v560, %v561
      %v563 = vshll.u32 2102212464, %v551
      %v564 = vshrl.u32 920167782, %v552
      %v565 = vor.u32 %v563, %v564
      %v566 = vshll.u32 920167782, %v551
      %v567 = vshrl.u32 1326507024, %v552
      %v568 = vor.u32 %v566, %v567
      %vm569 = vcmp.lt.s32.totalorder %v550, 1
      %vm570 = vcmp.lt.s32.totalorder %v550, 2
      %vm571 = vcmp.lt.s32.totalorder %v550, 3
      %vm572 = vcmp.lt.s32.totalorder %v550, 4
      %v573 = vsel %vm569, %v553, %v556
      %v574 = vsel %vm572, %v562, 2102212464
      %v575 = vsel %vm571, %v559, %v574
      %v576 = vsel %vm570, %v573, %v575
      %v577 = vsel %vm569, %v556, %v559
      %v578 = vsel %vm572, %v565, 920167782
      %v579 = vsel %vm571, %v562, %v578
      %v580 = vsel %vm570, %v577, %v579
      %v581 = vsel %vm569, %v559, %v562
      %v582 = vsel %vm572, %v568, 1326507024
      %v583 = vsel %vm571, %v565, %v582
      %v584 = vsel %vm570, %v581, %v583
      %v585 = vshll.u32 %v545, 8
      %v586 = vand.u32 %v585, 65535
      %v587 = vshrl.u32 %v585, 16
      %v588 = vand.u32 %v584, 65535
      %v589 = vshrl.u32 %v584, 16
      %v590 = vmul.u32 %v586, %v588
      %v591 = vmul.u32 %v586, %v589
      %v592 = vmul.u32 %v587, %v588
      %v593 = vmul.u32 %v587, %v589
      %v594 = vshll.u32 %v591, 16
      %v595 = vshrl.u32 %v591, 16
      %v596 = vshll.u32 %v592, 16
      %v597 = vshrl.u32 %v592, 16
      %vm598 = vc.u32 %v590, %v594
      %v599 = vsel %vm598, 1, 0
      %v600 = vadd.s32 %v590, %v594
      %v601 = vadd.s32 %v593, %v599
      %vm602 = vc.u32 %v600, %v596
      %v603 = vsel %vm602, 1, 0
      %v604 = vadd.s32 %v600, %v596
      %v605 = vadd.s32 %v601, %v603
      %v606 = vadd.s32 %v605, %v595
      %v607 = vadd.s32 %v606, %v597
      %v608 = vand.u32 %v585, 65535
      %v609 = vshrl.u32 %v585, 16
      %v610 = vand.u32 %v580, 65535
      %v611 = vshrl.u32 %v580, 16
      %v612 = vmul.u32 %v608, %v610
      %v613 = vmul.u32 %v608, %v611
      %v614 = vmul.u32 %v609, %v610
      %v615 = vmul.u32 %v609, %v611
      %v616 = vshll.u32 %v613, 16
      %v617 = vshrl.u32 %v613, 16
      %v618 = vshll.u32 %v614, 16
      %v619 = vshrl.u32 %v614, 16
      %vm620 = vc.u32 %v612, %v616
      %v621 = vsel %vm620, 1, 0
      %v622 = vadd.s32 %v612, %v616
      %v623 = vadd.s32 %v615, %v621
      %vm624 = vc.u32 %v622, %v618
      %v625 = vsel %vm624, 1, 0
      %v626 = vadd.s32 %v622, %v618
      %v627 = vadd.s32 %v623, %v625
      %v628 = vadd.s32 %v627, %v617
      %v629 = vadd.s32 %v628, %v619
      %v630 = vmul.u32 %v585, %v576
      %v631 = vadd.s32 %v607, %v626
      %vm632 = vc.u32 %v607, %v626
      %v633 = vadd.s32 %v629, 1
      %v634 = vsel %vm632, %v633, %v629
      %v635 = vadd.s32 %v630, %v634
      %v636 = vadd.s32 %v635, 536870912
      %v637 = vshrl.u32 %v636, 30
      %v638 = vshll.u32 %v637, 30
      %v639 = vsub.s32 %v635, %v638
      %vm640 = vcmp.lt.s32.totalorder %v639, 0
      %v641 = vsub.s32 0, %v639
      %v642 = vsel %vm640, %v641, %v639
      %v643 = vclz %v642
      %v644 = vsub.s32 %v643, 2
      %vm645 = vcmp.gt.s32.totalorder 0, %v644
      %v646 = vsel %vm645, 0, %v644
      %v647 = vsub.s32 32, %v646
      %v648 = vshll.u32 %v639, %v646
      %v649 = vshrl.u32 %v631, %v647
      %v650 = vor.u32 %v648, %v649
      %v651 = vsub.s32 4294967266, %v646
      %v652 = vadd.s32 %v651, 127
      %v653 = vshll.u32 %v652, 23
      %v654 = vor.u32 4788187, %v653
      %v655 = vand.u32 2147483647, %v654
      %v657 = vcvt.s32.f32 %v650
      %v658 = vmul.f32 %v657, %v655
      %v659 = vxor.u32 %v658, 2147483648
      %v660 = vsel %vm539, %v659, %v658
      %v661 = vsub.s32 4, %v637
      %v662 = vsel %vm539, %v661, %v637
      %v663 = vsel %vm538, %v533, %v660
      %v664 = vsel %vm538, 0, %v662
      %v665 = vmul.f32 %v663, %v663
      %v666 = vmul.f32 %v665, -0.001358992
      %v667 = vadd.f32 %v666, 0.041655596
      %v668 = vmul.f32 %v665, %v667
      %v669 = vadd.f32 %v668, -0.4999988
      %v670 = vmul.f32 %v665, %v669
      %v671 = vadd.f32 1.0, %v670
      %v672 = vmul.f32 %v663, %v663
      %v673 = vmul.f32 %v672, -0.00019511016
      %v674 = vadd.f32 %v673, 0.008332121
      %v675 = vmul.f32 %v672, %v674
      %v676 = vadd.f32 %v675, -0.16666654
      %v677 = vmul.f32 %v672, %v676
      %v678 = vadd.f32 %v677, 1.0
      %v679 = vmul.f32 %v678, %v663
      %vm680 = vweird.f32 %v533
      %v681 = vadd.s32 %v664, 3
      %v682 = vand.u32 %v681, 3
      %vm683 = vcmp.lt.s32.totalorder %v682, 2
      %vm684 = vcmp.eq.s32.totalorder %v682, 0
      %v685 = vxor.u32 %v679, 2147483648
      %v686 = vsel %vm684, %v671, %v685
      %vm687 = vcmp.eq.s32.totalorder %v682, 2
      %v688 = vxor.u32 %v671, 2147483648
      %v689 = vsel %vm687, %v688, %v679
      %v690 = vsel %vm683, %v686, %v689
      %v691 = vsel %vm680, nan, %v690
      %v692 = vand.u32 2147483647, %v534
      %vm693 = vcmp.le.f32.partialorder %v692, 0.7853982
      %vm694 = vcmp.lt.s32.totalorder %v534, 0
      %v695 = vand.u32 %v534, 2139095040
      %v696 = vshrl.u32 %v695, 23
      %v697 = vsub.s32 %v696, 127
      %v698 = vand.u32 2147483647, %v534
      %v699 = vand.u32 %v698, 8388607
      %v700 = vor.u32 %v699, 8388608
      %v701 = vsub.s32 0, %v700
      %v702 = vadd.s32 %v697, 1
      %vm703 = vcmp.gt.s32.totalorder %v702, 0
      %v704 = vsel %vm703, %v702, 0
      %v705 = vshrl.u32 %v704, 5
      %v706 = vand.u32 %v704, 31
      %v707 = vsub.s32 32, %v706
      %v708 = vshrl.u32 683565275, %v707
      %v709 = vshll.u32 683565275, %v706
      %v710 = vshrl.u32 2475754826, %v707
      %v711 = vor.u32 %v709, %v710
      %v712 = vshll.u32 2475754826, %v706
      %v713 = vshrl.u32 2131351028, %v707
      %v714 = vor.u32 %v712, %v713
      %v715 = vshll.u32 2131351028, %v706
      %v716 = vshrl.u32 2102212464, %v707
      %v717 = vor.u32 %v715, %v716
      %v718 = vshll.u32 2102212464, %v706
      %v719 = vshrl.u32 920167782, %v707
      %v720 = vor.u32 %v718, %v719
      %v721 = vshll.u32 920167782, %v706
      %v722 = vshrl.u32 1326507024, %v707
      %v723 = vor.u32 %v721, %v722
      %vm724 = vcmp.lt.s32.totalorder %v705, 1
      %vm725 = vcmp.lt.s32.totalorder %v705, 2
      %vm726 = vcmp.lt.s32.totalorder %v705, 3
      %vm727 = vcmp.lt.s32.totalorder %v705, 4
      %v728 = vsel %vm724, %v708, %v711
      %v729 = vsel %vm727, %v717, 2102212464
      %v730 = vsel %vm726, %v714, %v729
      %v731 = vsel %vm725, %v728, %v730
      %v732 = vsel %vm724, %v711, %v714
      %v733 = vsel %vm727, %v720, 920167782
      %v734 = vsel %vm726, %v717, %v733
      %v735 = vsel %vm725, %v732, %v734
      %v736 = vsel %vm724, %v714, %v717
      %v737 = vsel %vm727, %v723, 1326507024
      %v738 = vsel %vm726, %v720, %v737
      %v739 = vsel %vm725, %v736, %v738
      %v740 = vshll.u32 %v700, 8
      %v741 = vand.u32 %v740, 65535
      %v742 = vshrl.u32 %v740, 16
      %v743 = vand.u32 %v739, 65535
      %v744 = vshrl.u32 %v739, 16
      %v745 = vmul.u32 %v741, %v743
      %v746 = vmul.u32 %v741, %v744
      %v747 = vmul.u32 %v742, %v743
      %v748 = vmul.u32 %v742, %v744
      %v749 = vshll.u32 %v746, 16
      %v750 = vshrl.u32 %v746, 16
      %v751 = vshll.u32 %v747, 16
      %v752 = vshrl.u32 %v747, 16
      %vm753 = vc.u32 %v745, %v749
      %v754 = vsel %vm753, 1, 0
      %v755 = vadd.s32 %v745, %v749
      %v756 = vadd.s32 %v748, %v754
      %vm757 = vc.u32 %v755, %v751
      %v758 = vsel %vm757, 1, 0
      %v759 = vadd.s32 %v755, %v751
      %v760 = vadd.s32 %v756, %v758
      %v761 = vadd.s32 %v760, %v750
      %v762 = vadd.s32 %v761, %v752
      %v763 = vand.u32 %v740, 65535
      %v764 = vshrl.u32 %v740, 16
      %v765 = vand.u32 %v735, 65535
      %v766 = vshrl.u32 %v735, 16
      %v767 = vmul.u32 %v763, %v765
      %v768 = vmul.u32 %v763, %v766
      %v769 = vmul.u32 %v764, %v765
      %v770 = vmul.u32 %v764, %v766
      %v771 = vshll.u32 %v768, 16
      %v772 = vshrl.u32 %v768, 16
      %v773 = vshll.u32 %v769, 16
      %v774 = vshrl.u32 %v769, 16
      %vm775 = vc.u32 %v767, %v771
      %v776 = vsel %vm775, 1, 0
      %v777 = vadd.s32 %v767, %v771
      %v778 = vadd.s32 %v770, %v776
      %vm779 = vc.u32 %v777, %v773
      %v780 = vsel %vm779, 1, 0
      %v781 = vadd.s32 %v777, %v773
      %v782 = vadd.s32 %v778, %v780
      %v783 = vadd.s32 %v782, %v772
      %v784 = vadd.s32 %v783, %v774
      %v785 = vmul.u32 %v740, %v731
      %v786 = vadd.s32 %v762, %v781
      %vm787 = vc.u32 %v762, %v781
      %v788 = vadd.s32 %v784, 1
      %v789 = vsel %vm787, %v788, %v784
      %v790 = vadd.s32 %v785, %v789
      %v791 = vadd.s32 %v790, 536870912
      %v792 = vshrl.u32 %v791, 30
      %v793 = vshll.u32 %v792, 30
      %v794 = vsub.s32 %v790, %v793
      %vm795 = vcmp.lt.s32.totalorder %v794, 0
      %v796 = vsub.s32 0, %v794
      %v797 = vsel %vm795, %v796, %v794
      %v798 = vclz %v797
      %v799 = vsub.s32 %v798, 2
      %vm800 = vcmp.gt.s32.totalorder 0, %v799
      %v801 = vsel %vm800, 0, %v799
      %v802 = vsub.s32 32, %v801
      %v803 = vshll.u32 %v794, %v801
      %v804 = vshrl.u32 %v786, %v802
      %v805 = vor.u32 %v803, %v804
      %v806 = vsub.s32 4294967266, %v801
      %v807 = vadd.s32 %v806, 127
      %v808 = vshll.u32 %v807, 23
      %v809 = vor.u32 4788187, %v808
      %v810 = vand.u32 2147483647, %v809
      %v812 = vcvt.s32.f32 %v805
      %v813 = vmul.f32 %v812, %v810
      %v814 = vxor.u32 %v813, 2147483648
      %v815 = vsel %vm694, %v814, %v813
      %v816 = vsub.s32 4, %v792
      %v817 = vsel %vm694, %v816, %v792
      %v818 = vsel %vm693, %v534, %v815
      %v819 = vsel %vm693, 0, %v817
      %v820 = vmul.f32 %v818, %v818
      %v821 = vmul.f32 %v820, -0.001358992
      %v822 = vadd.f32 %v821, 0.041655596
      %v823 = vmul.f32 %v820, %v822
      %v824 = vadd.f32 %v823, -0.4999988
      %v825 = vmul.f32 %v820, %v824
      %v826 = vadd.f32 1.0, %v825
      %v827 = vmul.f32 %v818, %v818
      %v828 = vmul.f32 %v827, -0.00019511016
      %v829 = vadd.f32 %v828, 0.008332121
      %v830 = vmul.f32 %v827, %v829
      %v831 = vadd.f32 %v830, -0.16666654
      %v832 = vmul.f32 %v827, %v831
      %v833 = vadd.f32 %v832, 1.0
      %v834 = vmul.f32 %v833, %v818
      %vm835 = vweird.f32 %v534
      %v836 = vadd.s32 %v819, 3
      %v837 = vand.u32 %v836, 3
      %vm838 = vcmp.lt.s32.totalorder %v837, 2
      %vm839 = vcmp.eq.s32.totalorder %v837, 0
      %v840 = vxor.u32 %v834, 2147483648
      %v841 = vsel %vm839, %v826, %v840
      %vm842 = vcmp.eq.s32.totalorder %v837, 2
      %v843 = vxor.u32 %v826, 2147483648
      %v844 = vsel %vm842, %v843, %v834
      %v845 = vsel %vm838, %v841, %v844
      %v846 = vsel %vm835, nan, %v845
      %v847 = vand.u32 2147483647, %v535
      %vm848 = vcmp.le.f32.partialorder %v847, 0.7853982
      %vm849 = vcmp.lt.s32.totalorder %v535, 0
      %v850 = vand.u32 %v535, 2139095040
      %v851 = vshrl.u32 %v850, 23
      %v852 = vsub.s32 %v851, 127
      %v853 = vand.u32 2147483647, %v535
      %v854 = vand.u32 %v853, 8388607
      %v855 = vor.u32 %v854, 8388608
      %v856 = vsub.s32 0, %v855
      %v857 = vadd.s32 %v852, 1
      %vm858 = vcmp.gt.s32.totalorder %v857, 0
      %v859 = vsel %vm858, %v857, 0
      %v860 = vshrl.u32 %v859, 5
      %v861 = vand.u32 %v859, 31
      %v862 = vsub.s32 32, %v861
      %v863 = vshrl.u32 683565275, %v862
      %v864 = vshll.u32 683565275, %v861
      %v865 = vshrl.u32 2475754826, %v862
      %v866 = vor.u32 %v864, %v865
      %v867 = vshll.u32 2475754826, %v861
      %v868 = vshrl.u32 2131351028, %v862
      %v869 = vor.u32 %v867, %v868
      %v870 = vshll.u32 2131351028, %v861
      %v871 = vshrl.u32 2102212464, %v862
      %v872 = vor.u32 %v870, %v871
      %v873 = vshll.u32 2102212464, %v861
      %v874 = vshrl.u32 920167782, %v862
      %v875 = vor.u32 %v873, %v874
      %v876 = vshll.u32 920167782, %v861
      %v877 = vshrl.u32 1326507024, %v862
      %v878 = vor.u32 %v876, %v877
      %vm879 = vcmp.lt.s32.totalorder %v860, 1
      %vm880 = vcmp.lt.s32.totalorder %v860, 2
      %vm881 = vcmp.lt.s32.totalorder %v860, 3
      %vm882 = vcmp.lt.s32.totalorder %v860, 4
      %v883 = vsel %vm879, %v863, %v866
      %v884 = vsel %vm882, %v872, 2102212464
      %v885 = vsel %vm881, %v869, %v884
      %v886 = vsel %vm880, %v883, %v885
      %v887 = vsel %vm879, %v866, %v869
      %v888 = vsel %vm882, %v875, 920167782
      %v889 = vsel %vm881, %v872, %v888
      %v890 = vsel %vm880, %v887, %v889
      %v891 = vsel %vm879, %v869, %v872
      %v892 = vsel %vm882, %v878, 1326507024
      %v893 = vsel %vm881, %v875, %v892
      %v894 = vsel %vm880, %v891, %v893
      %v895 = vshll.u32 %v855, 8
      %v896 = vand.u32 %v895, 65535
      %v897 = vshrl.u32 %v895, 16
      %v898 = vand.u32 %v894, 65535
      %v899 = vshrl.u32 %v894, 16
      %v900 = vmul.u32 %v896, %v898
      %v901 = vmul.u32 %v896, %v899
      %v902 = vmul.u32 %v897, %v898
      %v903 = vmul.u32 %v897, %v899
      %v904 = vshll.u32 %v901, 16
      %v905 = vshrl.u32 %v901, 16
      %v906 = vshll.u32 %v902, 16
      %v907 = vshrl.u32 %v902, 16
      %vm908 = vc.u32 %v900, %v904
      %v909 = vsel %vm908, 1, 0
      %v910 = vadd.s32 %v900, %v904
      %v911 = vadd.s32 %v903, %v909
      %vm912 = vc.u32 %v910, %v906
      %v913 = vsel %vm912, 1, 0
      %v914 = vadd.s32 %v910, %v906
      %v915 = vadd.s32 %v911, %v913
      %v916 = vadd.s32 %v915, %v905
      %v917 = vadd.s32 %v916, %v907
      %v918 = vand.u32 %v895, 65535
      %v919 = vshrl.u32 %v895, 16
      %v920 = vand.u32 %v890, 65535
      %v921 = vshrl.u32 %v890, 16
      %v922 = vmul.u32 %v918, %v920
      %v923 = vmul.u32 %v918, %v921
      %v924 = vmul.u32 %v919, %v920
      %v925 = vmul.u32 %v919, %v921
      %v926 = vshll.u32 %v923, 16
      %v927 = vshrl.u32 %v923, 16
      %v928 = vshll.u32 %v924, 16
      %v929 = vshrl.u32 %v924, 16
      %vm930 = vc.u32 %v922, %v926
      %v931 = vsel %vm930, 1, 0
      %v932 = vadd.s32 %v922, %v926
      %v933 = vadd.s32 %v925, %v931
      %vm934 = vc.u32 %v932, %v928
      %v935 = vsel %vm934, 1, 0
      %v936 = vadd.s32 %v932, %v928
      %v937 = vadd.s32 %v933, %v935
      %v938 = vadd.s32 %v937, %v927
      %v939 = vadd.s32 %v938, %v929
      %v940 = vmul.u32 %v895, %v886
      %v941 = vadd.s32 %v917, %v936
      %vm942 = vc.u32 %v917, %v936
      %v943 = vadd.s32 %v939, 1
      %v944 = vsel %vm942, %v943, %v939
      %v945 = vadd.s32 %v940, %v944
      %v946 = vadd.s32 %v945, 536870912
      %v947 = vshrl.u32 %v946, 30
      %v948 = vshll.u32 %v947, 30
      %v949 = vsub.s32 %v945, %v948
      %vm950 = vcmp.lt.s32.totalorder %v949, 0
      %v951 = vsub.s32 0, %v949
      %v952 = vsel %vm950, %v951, %v949
      %v953 = vclz %v952
      %v954 = vsub.s32 %v953, 2
      %vm955 = vcmp.gt.s32.totalorder 0, %v954
      %v956 = vsel %vm955, 0, %v954
      %v957 = vsub.s32 32, %v956
      %v958 = vshll.u32 %v949, %v956
      %v959 = vshrl.u32 %v941, %v957
      %v960 = vor.u32 %v958, %v959
      %v961 = vsub.s32 4294967266, %v956
      %v962 = vadd.s32 %v961, 127
      %v963 = vshll.u32 %v962, 23
      %v964 = vor.u32 4788187, %v963
      %v965 = vand.u32 2147483647, %v964
      %v967 = vcvt.s32.f32 %v960
      %v968 = vmul.f32 %v967, %v965
      %v969 = vxor.u32 %v968, 2147483648
      %v970 = vsel %vm849, %v969, %v968
      %v971 = vsub.s32 4, %v947
      %v972 = vsel %vm849, %v971, %v947
      %v973 = vsel %vm848, %v535, %v970
      %v974 = vsel %vm848, 0, %v972
      %v975 = vmul.f32 %v973, %v973
      %v976 = vmul.f32 %v975, -0.001358992
      %v977 = vadd.f32 %v976, 0.041655596
      %v978 = vmul.f32 %v975, %v977
      %v979 = vadd.f32 %v978, -0.4999988
      %v980 = vmul.f32 %v975, %v979
      %v981 = vadd.f32 1.0, %v980
      %v982 = vmul.f32 %v973, %v973
      %v983 = vmul.f32 %v982, -0.00019511016
      %v984 = vadd.f32 %v983, 0.008332121
      %v985 = vmul.f32 %v982, %v984
      %v986 = vadd.f32 %v985, -0.16666654
      %v987 = vmul.f32 %v982, %v986
      %v988 = vadd.f32 %v987, 1.0
      %v989 = vmul.f32 %v988, %v973
      %vm990 = vweird.f32 %v535
      %v991 = vadd.s32 %v974, 3
      %v992 = vand.u32 %v991, 3
      %vm993 = vcmp.lt.s32.totalorder %v992, 2
      %vm994 = vcmp.eq.s32.totalorder %v992, 0
      %v995 = vxor.u32 %v989, 2147483648
      %v996 = vsel %vm994, %v981, %v995
      %vm997 = vcmp.eq.s32.totalorder %v992, 2
      %v998 = vxor.u32 %v981, 2147483648
      %v999 = vsel %vm997, %v998, %v989
      %v1000 = vsel %vm993, %v996, %v999
      %v1001 = vsel %vm990, nan, %v1000
      %v1002 = vand.u32 2147483647, %v536
      %vm1003 = vcmp.le.f32.partialorder %v1002, 0.7853982
      %vm1004 = vcmp.lt.s32.totalorder %v536, 0
      %v1005 = vand.u32 %v536, 2139095040
      %v1006 = vshrl.u32 %v1005, 23
      %v1007 = vsub.s32 %v1006, 127
      %v1008 = vand.u32 2147483647, %v536
      %v1009 = vand.u32 %v1008, 8388607
      %v1010 = vor.u32 %v1009, 8388608
      %v1011 = vsub.s32 0, %v1010
      %v1012 = vadd.s32 %v1007, 1
      %vm1013 = vcmp.gt.s32.totalorder %v1012, 0
      %v1014 = vsel %vm1013, %v1012, 0
      %v1015 = vshrl.u32 %v1014, 5
      %v1016 = vand.u32 %v1014, 31
      %v1017 = vsub.s32 32, %v1016
      %v1018 = vshrl.u32 683565275, %v1017
      %v1019 = vshll.u32 683565275, %v1016
      %v1020 = vshrl.u32 2475754826, %v1017
      %v1021 = vor.u32 %v1019, %v1020
      %v1022 = vshll.u32 2475754826, %v1016
      %v1023 = vshrl.u32 2131351028, %v1017
      %v1024 = vor.u32 %v1022, %v1023
      %v1025 = vshll.u32 2131351028, %v1016
      %v1026 = vshrl.u32 2102212464, %v1017
      %v1027 = vor.u32 %v1025, %v1026
      %v1028 = vshll.u32 2102212464, %v1016
      %v1029 = vshrl.u32 920167782, %v1017
      %v1030 = vor.u32 %v1028, %v1029
      %v1031 = vshll.u32 920167782, %v1016
      %v1032 = vshrl.u32 1326507024, %v1017
      %v1033 = vor.u32 %v1031, %v1032
      %vm1034 = vcmp.lt.s32.totalorder %v1015, 1
      %vm1035 = vcmp.lt.s32.totalorder %v1015, 2
      %vm1036 = vcmp.lt.s32.totalorder %v1015, 3
      %vm1037 = vcmp.lt.s32.totalorder %v1015, 4
      %v1038 = vsel %vm1034, %v1018, %v1021
      %v1039 = vsel %vm1037, %v1027, 2102212464
      %v1040 = vsel %vm1036, %v1024, %v1039
      %v1041 = vsel %vm1035, %v1038, %v1040
      %v1042 = vsel %vm1034, %v1021, %v1024
      %v1043 = vsel %vm1037, %v1030, 920167782
      %v1044 = vsel %vm1036, %v1027, %v1043
      %v1045 = vsel %vm1035, %v1042, %v1044
      %v1046 = vsel %vm1034, %v1024, %v1027
      %v1047 = vsel %vm1037, %v1033, 1326507024
      %v1048 = vsel %vm1036, %v1030, %v1047
      %v1049 = vsel %vm1035, %v1046, %v1048
      %v1050 = vshll.u32 %v1010, 8
      %v1051 = vand.u32 %v1050, 65535
      %v1052 = vshrl.u32 %v1050, 16
      %v1053 = vand.u32 %v1049, 65535
      %v1054 = vshrl.u32 %v1049, 16
      %v1055 = vmul.u32 %v1051, %v1053
      %v1056 = vmul.u32 %v1051, %v1054
      %v1057 = vmul.u32 %v1052, %v1053
      %v1058 = vmul.u32 %v1052, %v1054
      %v1059 = vshll.u32 %v1056, 16
      %v1060 = vshrl.u32 %v1056, 16
      %v1061 = vshll.u32 %v1057, 16
      %v1062 = vshrl.u32 %v1057, 16
      %vm1063 = vc.u32 %v1055, %v1059
      %v1064 = vsel %vm1063, 1, 0
      %v1065 = vadd.s32 %v1055, %v1059
      %v1066 = vadd.s32 %v1058, %v1064
      %vm1067 = vc.u32 %v1065, %v1061
      %v1068 = vsel %vm1067, 1, 0
      %v1069 = vadd.s32 %v1065, %v1061
      %v1070 = vadd.s32 %v1066, %v1068
      %v1071 = vadd.s32 %v1070, %v1060
      %v1072 = vadd.s32 %v1071, %v1062
      %v1073 = vand.u32 %v1050, 65535
      %v1074 = vshrl.u32 %v1050, 16
      %v1075 = vand.u32 %v1045, 65535
      %v1076 = vshrl.u32 %v1045, 16
      %v1077 = vmul.u32 %v1073, %v1075
      %v1078 = vmul.u32 %v1073, %v1076
      %v1079 = vmul.u32 %v1074, %v1075
      %v1080 = vmul.u32 %v1074, %v1076
      %v1081 = vshll.u32 %v1078, 16
      %v1082 = vshrl.u32 %v1078, 16
      %v1083 = vshll.u32 %v1079, 16
      %v1084 = vshrl.u32 %v1079, 16
      %vm1085 = vc.u32 %v1077, %v1081
      %v1086 = vsel %vm1085, 1, 0
      %v1087 = vadd.s32 %v1077, %v1081
      %v1088 = vadd.s32 %v1080, %v1086
      %vm1089 = vc.u32 %v1087, %v1083
      %v1090 = vsel %vm1089, 1, 0
      %v1091 = vadd.s32 %v1087, %v1083
      %v1092 = vadd.s32 %v1088, %v1090
      %v1093 = vadd.s32 %v1092, %v1082
      %v1094 = vadd.s32 %v1093, %v1084
      %v1095 = vmul.u32 %v1050, %v1041
      %v1096 = vadd.s32 %v1072, %v1091
      %vm1097 = vc.u32 %v1072, %v1091
      %v1098 = vadd.s32 %v1094, 1
      %v1099 = vsel %vm1097, %v1098, %v1094
      %v1100 = vadd.s32 %v1095, %v1099
      %v1101 = vadd.s32 %v1100, 536870912
      %v1102 = vshrl.u32 %v1101, 30
      %v1103 = vshll.u32 %v1102, 30
      %v1104 = vsub.s32 %v1100, %v1103
      %vm1105 = vcmp.lt.s32.totalorder %v1104, 0
      %v1106 = vsub.s32 0, %v1104
      %v1107 = vsel %vm1105, %v1106, %v1104
      %v1108 = vclz %v1107
      %v1109 = vsub.s32 %v1108, 2
      %vm1110 = vcmp.gt.s32.totalorder 0, %v1109
      %v1111 = vsel %vm1110, 0, %v1109
      %v1112 = vsub.s32 32, %v1111
      %v1113 = vshll.u32 %v1104, %v1111
      %v1114 = vshrl.u32 %v1096, %v1112
      %v1115 = vor.u32 %v1113, %v1114
      %v1116 = vsub.s32 4294967266, %v1111
      %v1117 = vadd.s32 %v1116, 127
      %v1118 = vshll.u32 %v1117, 23
      %v1119 = vor.u32 4788187, %v1118
      %v1120 = vand.u32 2147483647, %v1119
      %v1122 = vcvt.s32.f32 %v1115
      %v1123 = vmul.f32 %v1122, %v1120
      %v1124 = vxor.u32 %v1123, 2147483648
      %v1125 = vsel %vm1004, %v1124, %v1123
      %v1126 = vsub.s32 4, %v1102
      %v1127 = vsel %vm1004, %v1126, %v1102
      %v1128 = vsel %vm1003, %v536, %v1125
      %v1129 = vsel %vm1003, 0, %v1127
      %v1130 = vmul.f32 %v1128, %v1128
      %v1131 = vmul.f32 %v1130, -0.001358992
      %v1132 = vadd.f32 %v1131, 0.041655596
      %v1133 = vmul.f32 %v1130, %v1132
      %v1134 = vadd.f32 %v1133, -0.4999988
      %v1135 = vmul.f32 %v1130, %v1134
      %v1136 = vadd.f32 1.0, %v1135
      %v1137 = vmul.f32 %v1128, %v1128
      %v1138 = vmul.f32 %v1137, -0.00019511016
      %v1139 = vadd.f32 %v1138, 0.008332121
      %v1140 = vmul.f32 %v1137, %v1139
      %v1141 = vadd.f32 %v1140, -0.16666654
      %v1142 = vmul.f32 %v1137, %v1141
      %v1143 = vadd.f32 %v1142, 1.0
      %v1144 = vmul.f32 %v1143, %v1128
      %vm1145 = vweird.f32 %v536
      %v1146 = vadd.s32 %v1129, 3
      %v1147 = vand.u32 %v1146, 3
      %vm1148 = vcmp.lt.s32.totalorder %v1147, 2
      %vm1149 = vcmp.eq.s32.totalorder %v1147, 0
      %v1150 = vxor.u32 %v1144, 2147483648
      %v1151 = vsel %vm1149, %v1136, %v1150
      %vm1152 = vcmp.eq.s32.totalorder %v1147, 2
      %v1153 = vxor.u32 %v1136, 2147483648
      %v1154 = vsel %vm1152, %v1153, %v1144
      %v1155 = vsel %vm1148, %v1151, %v1154
      %v1156 = vsel %vm1145, nan, %v1155
      %v1157 = vmul.f32 %v691, %v691
      %v1158 = vmul.f32 %v846, %v846
      %v1159 = vmul.f32 %v1001, %v1001
      %v1160 = vmul.f32 %v1156, %v1156
      %1162 = vset.pattern.permute.xlu0 0
      %1163 = vperm.xlu0 %1162, %v509
      %v1164 = vpop.permute.xlu0 %1163
      %1167 = vset.pattern.permute.xlu0 0
      %1168 = vperm.xlu0 %1167, %v510
      %v1169 = vpop.permute.xlu0 %1168
      %1172 = vset.pattern.permute.xlu0 0
      %1173 = vperm.xlu0 %1172, %v511
      %v1174 = vpop.permute.xlu0 %1173
      %1177 = vset.pattern.permute.xlu0 0
      %1178 = vperm.xlu0 %1177, %v512
      %v1179 = vpop.permute.xlu0 %1178
      %v1181 = vmul.f32 %v1164, %v1157
      %v1182 = vmul.f32 %v1169, %v1158
      %v1183 = vmul.f32 %v1174, %v1159
      %v1184 = vmul.f32 %v1179, %v1160
      %v1185 = vadd.f32 %v481, %v1181
      %v1186 = vadd.f32 %v482, %v1182
      %v1187 = vadd.f32 %v483, %v1183
      %v1188 = vadd.f32 %v484, %v1184
      %v1189 = vmul.f32 %v501, %v516
      %v1190 = vmul.f32 %v502, %v521
      %v1191 = vmul.f32 %v503, %v526
      %v1192 = vmul.f32 %v504, %v531
      %v1193 = vand.u32 2147483647, %v1189
      %vm1194 = vcmp.le.f32.partialorder %v1193, 0.7853982
      %vm1195 = vcmp.lt.s32.totalorder %v1189, 0
      %v1196 = vand.u32 %v1189, 2139095040
      %v1197 = vshrl.u32 %v1196, 23
      %v1198 = vsub.s32 %v1197, 127
      %v1199 = vand.u32 2147483647, %v1189
      %v1200 = vand.u32 %v1199, 8388607
      %v1201 = vor.u32 %v1200, 8388608
      %v1202 = vsub.s32 0, %v1201
      %v1203 = vadd.s32 %v1198, 1
      %vm1204 = vcmp.gt.s32.totalorder %v1203, 0
      %v1205 = vsel %vm1204, %v1203, 0
      %v1206 = vshrl.u32 %v1205, 5
      %v1207 = vand.u32 %v1205, 31
      %v1208 = vsub.s32 32, %v1207
      %v1209 = vshrl.u32 683565275, %v1208
      %v1210 = vshll.u32 683565275, %v1207
      %v1211 = vshrl.u32 2475754826, %v1208
      %v1212 = vor.u32 %v1210, %v1211
      %v1213 = vshll.u32 2475754826, %v1207
      %v1214 = vshrl.u32 2131351028, %v1208
      %v1215 = vor.u32 %v1213, %v1214
      %v1216 = vshll.u32 2131351028, %v1207
      %v1217 = vshrl.u32 2102212464, %v1208
      %v1218 = vor.u32 %v1216, %v1217
      %v1219 = vshll.u32 2102212464, %v1207
      %v1220 = vshrl.u32 920167782, %v1208
      %v1221 = vor.u32 %v1219, %v1220
      %v1222 = vshll.u32 920167782, %v1207
      %v1223 = vshrl.u32 1326507024, %v1208
      %v1224 = vor.u32 %v1222, %v1223
      %vm1225 = vcmp.lt.s32.totalorder %v1206, 1
      %vm1226 = vcmp.lt.s32.totalorder %v1206, 2
      %vm1227 = vcmp.lt.s32.totalorder %v1206, 3
      %vm1228 = vcmp.lt.s32.totalorder %v1206, 4
      %v1229 = vsel %vm1225, %v1209, %v1212
      %v1230 = vsel %vm1228, %v1218, 2102212464
      %v1231 = vsel %vm1227, %v1215, %v1230
      %v1232 = vsel %vm1226, %v1229, %v1231
      %v1233 = vsel %vm1225, %v1212, %v1215
      %v1234 = vsel %vm1228, %v1221, 920167782
      %v1235 = vsel %vm1227, %v1218, %v1234
      %v1236 = vsel %vm1226, %v1233, %v1235
      %v1237 = vsel %vm1225, %v1215, %v1218
      %v1238 = vsel %vm1228, %v1224, 1326507024
      %v1239 = vsel %vm1227, %v1221, %v1238
      %v1240 = vsel %vm1226, %v1237, %v1239
      %v1241 = vshll.u32 %v1201, 8
      %v1242 = vand.u32 %v1241, 65535
      %v1243 = vshrl.u32 %v1241, 16
      %v1244 = vand.u32 %v1240, 65535
      %v1245 = vshrl.u32 %v1240, 16
      %v1246 = vmul.u32 %v1242, %v1244
      %v1247 = vmul.u32 %v1242, %v1245
      %v1248 = vmul.u32 %v1243, %v1244
      %v1249 = vmul.u32 %v1243, %v1245
      %v1250 = vshll.u32 %v1247, 16
      %v1251 = vshrl.u32 %v1247, 16
      %v1252 = vshll.u32 %v1248, 16
      %v1253 = vshrl.u32 %v1248, 16
      %vm1254 = vc.u32 %v1246, %v1250
      %v1255 = vsel %vm1254, 1, 0
      %v1256 = vadd.s32 %v1246, %v1250
      %v1257 = vadd.s32 %v1249, %v1255
      %vm1258 = vc.u32 %v1256, %v1252
      %v1259 = vsel %vm1258, 1, 0
      %v1260 = vadd.s32 %v1256, %v1252
      %v1261 = vadd.s32 %v1257, %v1259
      %v1262 = vadd.s32 %v1261, %v1251
      %v1263 = vadd.s32 %v1262, %v1253
      %v1264 = vand.u32 %v1241, 65535
      %v1265 = vshrl.u32 %v1241, 16
      %v1266 = vand.u32 %v1236, 65535
      %v1267 = vshrl.u32 %v1236, 16
      %v1268 = vmul.u32 %v1264, %v1266
      %v1269 = vmul.u32 %v1264, %v1267
      %v1270 = vmul.u32 %v1265, %v1266
      %v1271 = vmul.u32 %v1265, %v1267
      %v1272 = vshll.u32 %v1269, 16
      %v1273 = vshrl.u32 %v1269, 16
      %v1274 = vshll.u32 %v1270, 16
      %v1275 = vshrl.u32 %v1270, 16
      %vm1276 = vc.u32 %v1268, %v1272
      %v1277 = vsel %vm1276, 1, 0
      %v1278 = vadd.s32 %v1268, %v1272
      %v1279 = vadd.s32 %v1271, %v1277
      %vm1280 = vc.u32 %v1278, %v1274
      %v1281 = vsel %vm1280, 1, 0
      %v1282 = vadd.s32 %v1278, %v1274
      %v1283 = vadd.s32 %v1279, %v1281
      %v1284 = vadd.s32 %v1283, %v1273
      %v1285 = vadd.s32 %v1284, %v1275
      %v1286 = vmul.u32 %v1241, %v1232
      %v1287 = vadd.s32 %v1263, %v1282
      %vm1288 = vc.u32 %v1263, %v1282
      %v1289 = vadd.s32 %v1285, 1
      %v1290 = vsel %vm1288, %v1289, %v1285
      %v1291 = vadd.s32 %v1286, %v1290
      %v1292 = vadd.s32 %v1291, 536870912
      %v1293 = vshrl.u32 %v1292, 30
      %v1294 = vshll.u32 %v1293, 30
      %v1295 = vsub.s32 %v1291, %v1294
      %vm1296 = vcmp.lt.s32.totalorder %v1295, 0
      %v1297 = vsub.s32 0, %v1295
      %v1298 = vsel %vm1296, %v1297, %v1295
      %v1299 = vclz %v1298
      %v1300 = vsub.s32 %v1299, 2
      %vm1301 = vcmp.gt.s32.totalorder 0, %v1300
      %v1302 = vsel %vm1301, 0, %v1300
      %v1303 = vsub.s32 32, %v1302
      %v1304 = vshll.u32 %v1295, %v1302
      %v1305 = vshrl.u32 %v1287, %v1303
      %v1306 = vor.u32 %v1304, %v1305
      %v1307 = vsub.s32 4294967266, %v1302
      %v1308 = vadd.s32 %v1307, 127
      %v1309 = vshll.u32 %v1308, 23
      %v1310 = vor.u32 4788187, %v1309
      %v1311 = vand.u32 2147483647, %v1310
      %v1313 = vcvt.s32.f32 %v1306
      %v1314 = vmul.f32 %v1313, %v1311
      %v1315 = vxor.u32 %v1314, 2147483648
      %v1316 = vsel %vm1195, %v1315, %v1314
      %v1317 = vsub.s32 4, %v1293
      %v1318 = vsel %vm1195, %v1317, %v1293
      %v1319 = vsel %vm1194, %v1189, %v1316
      %v1320 = vsel %vm1194, 0, %v1318
      %v1321 = vmul.f32 %v1319, %v1319
      %v1322 = vmul.f32 %v1321, -0.001358992
      %v1323 = vadd.f32 %v1322, 0.041655596
      %v1324 = vmul.f32 %v1321, %v1323
      %v1325 = vadd.f32 %v1324, -0.4999988
      %v1326 = vmul.f32 %v1321, %v1325
      %v1327 = vadd.f32 1.0, %v1326
      %v1328 = vmul.f32 %v1319, %v1319
      %v1329 = vmul.f32 %v1328, -0.00019511016
      %v1330 = vadd.f32 %v1329, 0.008332121
      %v1331 = vmul.f32 %v1328, %v1330
      %v1332 = vadd.f32 %v1331, -0.16666654
      %v1333 = vmul.f32 %v1328, %v1332
      %v1334 = vadd.f32 %v1333, 1.0
      %v1335 = vmul.f32 %v1334, %v1319
      %vm1336 = vweird.f32 %v1189
      %v1337 = vadd.s32 %v1320, 3
      %v1338 = vand.u32 %v1337, 3
      %vm1339 = vcmp.lt.s32.totalorder %v1338, 2
      %vm1340 = vcmp.eq.s32.totalorder %v1338, 0
      %v1341 = vxor.u32 %v1335, 2147483648
      %v1342 = vsel %vm1340, %v1327, %v1341
      %vm1343 = vcmp.eq.s32.totalorder %v1338, 2
      %v1344 = vxor.u32 %v1327, 2147483648
      %v1345 = vsel %vm1343, %v1344, %v1335
      %v1346 = vsel %vm1339, %v1342, %v1345
      %v1347 = vsel %vm1336, nan, %v1346
      %v1348 = vand.u32 2147483647, %v1190
      %vm1349 = vcmp.le.f32.partialorder %v1348, 0.7853982
      %vm1350 = vcmp.lt.s32.totalorder %v1190, 0
      %v1351 = vand.u32 %v1190, 2139095040
      %v1352 = vshrl.u32 %v1351, 23
      %v1353 = vsub.s32 %v1352, 127
      %v1354 = vand.u32 2147483647, %v1190
      %v1355 = vand.u32 %v1354, 8388607
      %v1356 = vor.u32 %v1355, 8388608
      %v1357 = vsub.s32 0, %v1356
      %v1358 = vadd.s32 %v1353, 1
      %vm1359 = vcmp.gt.s32.totalorder %v1358, 0
      %v1360 = vsel %vm1359, %v1358, 0
      %v1361 = vshrl.u32 %v1360, 5
      %v1362 = vand.u32 %v1360, 31
      %v1363 = vsub.s32 32, %v1362
      %v1364 = vshrl.u32 683565275, %v1363
      %v1365 = vshll.u32 683565275, %v1362
      %v1366 = vshrl.u32 2475754826, %v1363
      %v1367 = vor.u32 %v1365, %v1366
      %v1368 = vshll.u32 2475754826, %v1362
      %v1369 = vshrl.u32 2131351028, %v1363
      %v1370 = vor.u32 %v1368, %v1369
      %v1371 = vshll.u32 2131351028, %v1362
      %v1372 = vshrl.u32 2102212464, %v1363
      %v1373 = vor.u32 %v1371, %v1372
      %v1374 = vshll.u32 2102212464, %v1362
      %v1375 = vshrl.u32 920167782, %v1363
      %v1376 = vor.u32 %v1374, %v1375
      %v1377 = vshll.u32 920167782, %v1362
      %v1378 = vshrl.u32 1326507024, %v1363
      %v1379 = vor.u32 %v1377, %v1378
      %vm1380 = vcmp.lt.s32.totalorder %v1361, 1
      %vm1381 = vcmp.lt.s32.totalorder %v1361, 2
      %vm1382 = vcmp.lt.s32.totalorder %v1361, 3
      %vm1383 = vcmp.lt.s32.totalorder %v1361, 4
      %v1384 = vsel %vm1380, %v1364, %v1367
      %v1385 = vsel %vm1383, %v1373, 2102212464
      %v1386 = vsel %vm1382, %v1370, %v1385
      %v1387 = vsel %vm1381, %v1384, %v1386
      %v1388 = vsel %vm1380, %v1367, %v1370
      %v1389 = vsel %vm1383, %v1376, 920167782
      %v1390 = vsel %vm1382, %v1373, %v1389
      %v1391 = vsel %vm1381, %v1388, %v1390
      %v1392 = vsel %vm1380, %v1370, %v1373
      %v1393 = vsel %vm1383, %v1379, 1326507024
      %v1394 = vsel %vm1382, %v1376, %v1393
      %v1395 = vsel %vm1381, %v1392, %v1394
      %v1396 = vshll.u32 %v1356, 8
      %v1397 = vand.u32 %v1396, 65535
      %v1398 = vshrl.u32 %v1396, 16
      %v1399 = vand.u32 %v1395, 65535
      %v1400 = vshrl.u32 %v1395, 16
      %v1401 = vmul.u32 %v1397, %v1399
      %v1402 = vmul.u32 %v1397, %v1400
      %v1403 = vmul.u32 %v1398, %v1399
      %v1404 = vmul.u32 %v1398, %v1400
      %v1405 = vshll.u32 %v1402, 16
      %v1406 = vshrl.u32 %v1402, 16
      %v1407 = vshll.u32 %v1403, 16
      %v1408 = vshrl.u32 %v1403, 16
      %vm1409 = vc.u32 %v1401, %v1405
      %v1410 = vsel %vm1409, 1, 0
      %v1411 = vadd.s32 %v1401, %v1405
      %v1412 = vadd.s32 %v1404, %v1410
      %vm1413 = vc.u32 %v1411, %v1407
      %v1414 = vsel %vm1413, 1, 0
      %v1415 = vadd.s32 %v1411, %v1407
      %v1416 = vadd.s32 %v1412, %v1414
      %v1417 = vadd.s32 %v1416, %v1406
      %v1418 = vadd.s32 %v1417, %v1408
      %v1419 = vand.u32 %v1396, 65535
      %v1420 = vshrl.u32 %v1396, 16
      %v1421 = vand.u32 %v1391, 65535
      %v1422 = vshrl.u32 %v1391, 16
      %v1423 = vmul.u32 %v1419, %v1421
      %v1424 = vmul.u32 %v1419, %v1422
      %v1425 = vmul.u32 %v1420, %v1421
      %v1426 = vmul.u32 %v1420, %v1422
      %v1427 = vshll.u32 %v1424, 16
      %v1428 = vshrl.u32 %v1424, 16
      %v1429 = vshll.u32 %v1425, 16
      %v1430 = vshrl.u32 %v1425, 16
      %vm1431 = vc.u32 %v1423, %v1427
      %v1432 = vsel %vm1431, 1, 0
      %v1433 = vadd.s32 %v1423, %v1427
      %v1434 = vadd.s32 %v1426, %v1432
      %vm1435 = vc.u32 %v1433, %v1429
      %v1436 = vsel %vm1435, 1, 0
      %v1437 = vadd.s32 %v1433, %v1429
      %v1438 = vadd.s32 %v1434, %v1436
      %v1439 = vadd.s32 %v1438, %v1428
      %v1440 = vadd.s32 %v1439, %v1430
      %v1441 = vmul.u32 %v1396, %v1387
      %v1442 = vadd.s32 %v1418, %v1437
      %vm1443 = vc.u32 %v1418, %v1437
      %v1444 = vadd.s32 %v1440, 1
      %v1445 = vsel %vm1443, %v1444, %v1440
      %v1446 = vadd.s32 %v1441, %v1445
      %v1447 = vadd.s32 %v1446, 536870912
      %v1448 = vshrl.u32 %v1447, 30
      %v1449 = vshll.u32 %v1448, 30
      %v1450 = vsub.s32 %v1446, %v1449
      %vm1451 = vcmp.lt.s32.totalorder %v1450, 0
      %v1452 = vsub.s32 0, %v1450
      %v1453 = vsel %vm1451, %v1452, %v1450
      %v1454 = vclz %v1453
      %v1455 = vsub.s32 %v1454, 2
      %vm1456 = vcmp.gt.s32.totalorder 0, %v1455
      %v1457 = vsel %vm1456, 0, %v1455
      %v1458 = vsub.s32 32, %v1457
      %v1459 = vshll.u32 %v1450, %v1457
      %v1460 = vshrl.u32 %v1442, %v1458
      %v1461 = vor.u32 %v1459, %v1460
      %v1462 = vsub.s32 4294967266, %v1457
      %v1463 = vadd.s32 %v1462, 127
      %v1464 = vshll.u32 %v1463, 23
      %v1465 = vor.u32 4788187, %v1464
      %v1466 = vand.u32 2147483647, %v1465
      %v1468 = vcvt.s32.f32 %v1461
      %v1469 = vmul.f32 %v1468, %v1466
      %v1470 = vxor.u32 %v1469, 2147483648
      %v1471 = vsel %vm1350, %v1470, %v1469
      %v1472 = vsub.s32 4, %v1448
      %v1473 = vsel %vm1350, %v1472, %v1448
      %v1474 = vsel %vm1349, %v1190, %v1471
      %v1475 = vsel %vm1349, 0, %v1473
      %v1476 = vmul.f32 %v1474, %v1474
      %v1477 = vmul.f32 %v1476, -0.001358992
      %v1478 = vadd.f32 %v1477, 0.041655596
      %v1479 = vmul.f32 %v1476, %v1478
      %v1480 = vadd.f32 %v1479, -0.4999988
      %v1481 = vmul.f32 %v1476, %v1480
      %v1482 = vadd.f32 1.0, %v1481
      %v1483 = vmul.f32 %v1474, %v1474
      %v1484 = vmul.f32 %v1483, -0.00019511016
      %v1485 = vadd.f32 %v1484, 0.008332121
      %v1486 = vmul.f32 %v1483, %v1485
      %v1487 = vadd.f32 %v1486, -0.16666654
      %v1488 = vmul.f32 %v1483, %v1487
      %v1489 = vadd.f32 %v1488, 1.0
      %v1490 = vmul.f32 %v1489, %v1474
      %vm1491 = vweird.f32 %v1190
      %v1492 = vadd.s32 %v1475, 3
      %v1493 = vand.u32 %v1492, 3
      %vm1494 = vcmp.lt.s32.totalorder %v1493, 2
      %vm1495 = vcmp.eq.s32.totalorder %v1493, 0
      %v1496 = vxor.u32 %v1490, 2147483648
      %v1497 = vsel %vm1495, %v1482, %v1496
      %vm1498 = vcmp.eq.s32.totalorder %v1493, 2
      %v1499 = vxor.u32 %v1482, 2147483648
      %v1500 = vsel %vm1498, %v1499, %v1490
      %v1501 = vsel %vm1494, %v1497, %v1500
      %v1502 = vsel %vm1491, nan, %v1501
      %v1503 = vand.u32 2147483647, %v1191
      %vm1504 = vcmp.le.f32.partialorder %v1503, 0.7853982
      %vm1505 = vcmp.lt.s32.totalorder %v1191, 0
      %v1506 = vand.u32 %v1191, 2139095040
      %v1507 = vshrl.u32 %v1506, 23
      %v1508 = vsub.s32 %v1507, 127
      %v1509 = vand.u32 2147483647, %v1191
      %v1510 = vand.u32 %v1509, 8388607
      %v1511 = vor.u32 %v1510, 8388608
      %v1512 = vsub.s32 0, %v1511
      %v1513 = vadd.s32 %v1508, 1
      %vm1514 = vcmp.gt.s32.totalorder %v1513, 0
      %v1515 = vsel %vm1514, %v1513, 0
      %v1516 = vshrl.u32 %v1515, 5
      %v1517 = vand.u32 %v1515, 31
      %v1518 = vsub.s32 32, %v1517
      %v1519 = vshrl.u32 683565275, %v1518
      %v1520 = vshll.u32 683565275, %v1517
      %v1521 = vshrl.u32 2475754826, %v1518
      %v1522 = vor.u32 %v1520, %v1521
      %v1523 = vshll.u32 2475754826, %v1517
      %v1524 = vshrl.u32 2131351028, %v1518
      %v1525 = vor.u32 %v1523, %v1524
      %v1526 = vshll.u32 2131351028, %v1517
      %v1527 = vshrl.u32 2102212464, %v1518
      %v1528 = vor.u32 %v1526, %v1527
      %v1529 = vshll.u32 2102212464, %v1517
      %v1530 = vshrl.u32 920167782, %v1518
      %v1531 = vor.u32 %v1529, %v1530
      %v1532 = vshll.u32 920167782, %v1517
      %v1533 = vshrl.u32 1326507024, %v1518
      %v1534 = vor.u32 %v1532, %v1533
      %vm1535 = vcmp.lt.s32.totalorder %v1516, 1
      %vm1536 = vcmp.lt.s32.totalorder %v1516, 2
      %vm1537 = vcmp.lt.s32.totalorder %v1516, 3
      %vm1538 = vcmp.lt.s32.totalorder %v1516, 4
      %v1539 = vsel %vm1535, %v1519, %v1522
      %v1540 = vsel %vm1538, %v1528, 2102212464
      %v1541 = vsel %vm1537, %v1525, %v1540
      %v1542 = vsel %vm1536, %v1539, %v1541
      %v1543 = vsel %vm1535, %v1522, %v1525
      %v1544 = vsel %vm1538, %v1531, 920167782
      %v1545 = vsel %vm1537, %v1528, %v1544
      %v1546 = vsel %vm1536, %v1543, %v1545
      %v1547 = vsel %vm1535, %v1525, %v1528
      %v1548 = vsel %vm1538, %v1534, 1326507024
      %v1549 = vsel %vm1537, %v1531, %v1548
      %v1550 = vsel %vm1536, %v1547, %v1549
      %v1551 = vshll.u32 %v1511, 8
      %v1552 = vand.u32 %v1551, 65535
      %v1553 = vshrl.u32 %v1551, 16
      %v1554 = vand.u32 %v1550, 65535
      %v1555 = vshrl.u32 %v1550, 16
      %v1556 = vmul.u32 %v1552, %v1554
      %v1557 = vmul.u32 %v1552, %v1555
      %v1558 = vmul.u32 %v1553, %v1554
      %v1559 = vmul.u32 %v1553, %v1555
      %v1560 = vshll.u32 %v1557, 16
      %v1561 = vshrl.u32 %v1557, 16
      %v1562 = vshll.u32 %v1558, 16
      %v1563 = vshrl.u32 %v1558, 16
      %vm1564 = vc.u32 %v1556, %v1560
      %v1565 = vsel %vm1564, 1, 0
      %v1566 = vadd.s32 %v1556, %v1560
      %v1567 = vadd.s32 %v1559, %v1565
      %vm1568 = vc.u32 %v1566, %v1562
      %v1569 = vsel %vm1568, 1, 0
      %v1570 = vadd.s32 %v1566, %v1562
      %v1571 = vadd.s32 %v1567, %v1569
      %v1572 = vadd.s32 %v1571, %v1561
      %v1573 = vadd.s32 %v1572, %v1563
      %v1574 = vand.u32 %v1551, 65535
      %v1575 = vshrl.u32 %v1551, 16
      %v1576 = vand.u32 %v1546, 65535
      %v1577 = vshrl.u32 %v1546, 16
      %v1578 = vmul.u32 %v1574, %v1576
      %v1579 = vmul.u32 %v1574, %v1577
      %v1580 = vmul.u32 %v1575, %v1576
      %v1581 = vmul.u32 %v1575, %v1577
      %v1582 = vshll.u32 %v1579, 16
      %v1583 = vshrl.u32 %v1579, 16
      %v1584 = vshll.u32 %v1580, 16
      %v1585 = vshrl.u32 %v1580, 16
      %vm1586 = vc.u32 %v1578, %v1582
      %v1587 = vsel %vm1586, 1, 0
      %v1588 = vadd.s32 %v1578, %v1582
      %v1589 = vadd.s32 %v1581, %v1587
      %vm1590 = vc.u32 %v1588, %v1584
      %v1591 = vsel %vm1590, 1, 0
      %v1592 = vadd.s32 %v1588, %v1584
      %v1593 = vadd.s32 %v1589, %v1591
      %v1594 = vadd.s32 %v1593, %v1583
      %v1595 = vadd.s32 %v1594, %v1585
      %v1596 = vmul.u32 %v1551, %v1542
      %v1597 = vadd.s32 %v1573, %v1592
      %vm1598 = vc.u32 %v1573, %v1592
      %v1599 = vadd.s32 %v1595, 1
      %v1600 = vsel %vm1598, %v1599, %v1595
      %v1601 = vadd.s32 %v1596, %v1600
      %v1602 = vadd.s32 %v1601, 536870912
      %v1603 = vshrl.u32 %v1602, 30
      %v1604 = vshll.u32 %v1603, 30
      %v1605 = vsub.s32 %v1601, %v1604
      %vm1606 = vcmp.lt.s32.totalorder %v1605, 0
      %v1607 = vsub.s32 0, %v1605
      %v1608 = vsel %vm1606, %v1607, %v1605
      %v1609 = vclz %v1608
      %v1610 = vsub.s32 %v1609, 2
      %vm1611 = vcmp.gt.s32.totalorder 0, %v1610
      %v1612 = vsel %vm1611, 0, %v1610
      %v1613 = vsub.s32 32, %v1612
      %v1614 = vshll.u32 %v1605, %v1612
      %v1615 = vshrl.u32 %v1597, %v1613
      %v1616 = vor.u32 %v1614, %v1615
      %v1617 = vsub.s32 4294967266, %v1612
      %v1618 = vadd.s32 %v1617, 127
      %v1619 = vshll.u32 %v1618, 23
      %v1620 = vor.u32 4788187, %v1619
      %v1621 = vand.u32 2147483647, %v1620
      %v1623 = vcvt.s32.f32 %v1616
      %v1624 = vmul.f32 %v1623, %v1621
      %v1625 = vxor.u32 %v1624, 2147483648
      %v1626 = vsel %vm1505, %v1625, %v1624
      %v1627 = vsub.s32 4, %v1603
      %v1628 = vsel %vm1505, %v1627, %v1603
      %v1629 = vsel %vm1504, %v1191, %v1626
      %v1630 = vsel %vm1504, 0, %v1628
      %v1631 = vmul.f32 %v1629, %v1629
      %v1632 = vmul.f32 %v1631, -0.001358992
      %v1633 = vadd.f32 %v1632, 0.041655596
      %v1634 = vmul.f32 %v1631, %v1633
      %v1635 = vadd.f32 %v1634, -0.4999988
      %v1636 = vmul.f32 %v1631, %v1635
      %v1637 = vadd.f32 1.0, %v1636
      %v1638 = vmul.f32 %v1629, %v1629
      %v1639 = vmul.f32 %v1638, -0.00019511016
      %v1640 = vadd.f32 %v1639, 0.008332121
      %v1641 = vmul.f32 %v1638, %v1640
      %v1642 = vadd.f32 %v1641, -0.16666654
      %v1643 = vmul.f32 %v1638, %v1642
      %v1644 = vadd.f32 %v1643, 1.0
      %v1645 = vmul.f32 %v1644, %v1629
      %vm1646 = vweird.f32 %v1191
      %v1647 = vadd.s32 %v1630, 3
      %v1648 = vand.u32 %v1647, 3
      %vm1649 = vcmp.lt.s32.totalorder %v1648, 2
      %vm1650 = vcmp.eq.s32.totalorder %v1648, 0
      %v1651 = vxor.u32 %v1645, 2147483648
      %v1652 = vsel %vm1650, %v1637, %v1651
      %vm1653 = vcmp.eq.s32.totalorder %v1648, 2
      %v1654 = vxor.u32 %v1637, 2147483648
      %v1655 = vsel %vm1653, %v1654, %v1645
      %v1656 = vsel %vm1649, %v1652, %v1655
      %v1657 = vsel %vm1646, nan, %v1656
      %v1658 = vand.u32 2147483647, %v1192
      %vm1659 = vcmp.le.f32.partialorder %v1658, 0.7853982
      %vm1660 = vcmp.lt.s32.totalorder %v1192, 0
      %v1661 = vand.u32 %v1192, 2139095040
      %v1662 = vshrl.u32 %v1661, 23
      %v1663 = vsub.s32 %v1662, 127
      %v1664 = vand.u32 2147483647, %v1192
      %v1665 = vand.u32 %v1664, 8388607
      %v1666 = vor.u32 %v1665, 8388608
      %v1667 = vsub.s32 0, %v1666
      %v1668 = vadd.s32 %v1663, 1
      %vm1669 = vcmp.gt.s32.totalorder %v1668, 0
      %v1670 = vsel %vm1669, %v1668, 0
      %v1671 = vshrl.u32 %v1670, 5
      %v1672 = vand.u32 %v1670, 31
      %v1673 = vsub.s32 32, %v1672
      %v1674 = vshrl.u32 683565275, %v1673
      %v1675 = vshll.u32 683565275, %v1672
      %v1676 = vshrl.u32 2475754826, %v1673
      %v1677 = vor.u32 %v1675, %v1676
      %v1678 = vshll.u32 2475754826, %v1672
      %v1679 = vshrl.u32 2131351028, %v1673
      %v1680 = vor.u32 %v1678, %v1679
      %v1681 = vshll.u32 2131351028, %v1672
      %v1682 = vshrl.u32 2102212464, %v1673
      %v1683 = vor.u32 %v1681, %v1682
      %v1684 = vshll.u32 2102212464, %v1672
      %v1685 = vshrl.u32 920167782, %v1673
      %v1686 = vor.u32 %v1684, %v1685
      %v1687 = vshll.u32 920167782, %v1672
      %v1688 = vshrl.u32 1326507024, %v1673
      %v1689 = vor.u32 %v1687, %v1688
      %vm1690 = vcmp.lt.s32.totalorder %v1671, 1
      %vm1691 = vcmp.lt.s32.totalorder %v1671, 2
      %vm1692 = vcmp.lt.s32.totalorder %v1671, 3
      %vm1693 = vcmp.lt.s32.totalorder %v1671, 4
      %v1694 = vsel %vm1690, %v1674, %v1677
      %v1695 = vsel %vm1693, %v1683, 2102212464
      %v1696 = vsel %vm1692, %v1680, %v1695
      %v1697 = vsel %vm1691, %v1694, %v1696
      %v1698 = vsel %vm1690, %v1677, %v1680
      %v1699 = vsel %vm1693, %v1686, 920167782
      %v1700 = vsel %vm1692, %v1683, %v1699
      %v1701 = vsel %vm1691, %v1698, %v1700
      %v1702 = vsel %vm1690, %v1680, %v1683
      %v1703 = vsel %vm1693, %v1689, 1326507024
      %v1704 = vsel %vm1692, %v1686, %v1703
      %v1705 = vsel %vm1691, %v1702, %v1704
      %v1706 = vshll.u32 %v1666, 8
      %v1707 = vand.u32 %v1706, 65535
      %v1708 = vshrl.u32 %v1706, 16
      %v1709 = vand.u32 %v1705, 65535
      %v1710 = vshrl.u32 %v1705, 16
      %v1711 = vmul.u32 %v1707, %v1709
      %v1712 = vmul.u32 %v1707, %v1710
      %v1713 = vmul.u32 %v1708, %v1709
      %v1714 = vmul.u32 %v1708, %v1710
      %v1715 = vshll.u32 %v1712, 16
      %v1716 = vshrl.u32 %v1712, 16
      %v1717 = vshll.u32 %v1713, 16
      %v1718 = vshrl.u32 %v1713, 16
      %vm1719 = vc.u32 %v1711, %v1715
      %v1720 = vsel %vm1719, 1, 0
      %v1721 = vadd.s32 %v1711, %v1715
      %v1722 = vadd.s32 %v1714, %v1720
      %vm1723 = vc.u32 %v1721, %v1717
      %v1724 = vsel %vm1723, 1, 0
      %v1725 = vadd.s32 %v1721, %v1717
      %v1726 = vadd.s32 %v1722, %v1724
      %v1727 = vadd.s32 %v1726, %v1716
      %v1728 = vadd.s32 %v1727, %v1718
      %v1729 = vand.u32 %v1706, 65535
      %v1730 = vshrl.u32 %v1706, 16
      %v1731 = vand.u32 %v1701, 65535
      %v1732 = vshrl.u32 %v1701, 16
      %v1733 = vmul.u32 %v1729, %v1731
      %v1734 = vmul.u32 %v1729, %v1732
      %v1735 = vmul.u32 %v1730, %v1731
      %v1736 = vmul.u32 %v1730, %v1732
      %v1737 = vshll.u32 %v1734, 16
      %v1738 = vshrl.u32 %v1734, 16
      %v1739 = vshll.u32 %v1735, 16
      %v1740 = vshrl.u32 %v1735, 16
      %vm1741 = vc.u32 %v1733, %v1737
      %v1742 = vsel %vm1741, 1, 0
      %v1743 = vadd.s32 %v1733, %v1737
      %v1744 = vadd.s32 %v1736, %v1742
      %vm1745 = vc.u32 %v1743, %v1739
      %v1746 = vsel %vm1745, 1, 0
      %v1747 = vadd.s32 %v1743, %v1739
      %v1748 = vadd.s32 %v1744, %v1746
      %v1749 = vadd.s32 %v1748, %v1738
      %v1750 = vadd.s32 %v1749, %v1740
      %v1751 = vmul.u32 %v1706, %v1697
      %v1752 = vadd.s32 %v1728, %v1747
      %vm1753 = vc.u32 %v1728, %v1747
      %v1754 = vadd.s32 %v1750, 1
      %v1755 = vsel %vm1753, %v1754, %v1750
      %v1756 = vadd.s32 %v1751, %v1755
      %v1757 = vadd.s32 %v1756, 536870912
      %v1758 = vshrl.u32 %v1757, 30
      %v1759 = vshll.u32 %v1758, 30
      %v1760 = vsub.s32 %v1756, %v1759
      %vm1761 = vcmp.lt.s32.totalorder %v1760, 0
      %v1762 = vsub.s32 0, %v1760
      %v1763 = vsel %vm1761, %v1762, %v1760
      %v1764 = vclz %v1763
      %v1765 = vsub.s32 %v1764, 2
      %vm1766 = vcmp.gt.s32.totalorder 0, %v1765
      %v1767 = vsel %vm1766, 0, %v1765
      %v1768 = vsub.s32 32, %v1767
      %v1769 = vshll.u32 %v1760, %v1767
      %v1770 = vshrl.u32 %v1752, %v1768
      %v1771 = vor.u32 %v1769, %v1770
      %v1772 = vsub.s32 4294967266, %v1767
      %v1773 = vadd.s32 %v1772, 127
      %v1774 = vshll.u32 %v1773, 23
      %v1775 = vor.u32 4788187, %v1774
      %v1776 = vand.u32 2147483647, %v1775
      %v1778 = vcvt.s32.f32 %v1771
      %v1779 = vmul.f32 %v1778, %v1776
      %v1780 = vxor.u32 %v1779, 2147483648
      %v1781 = vsel %vm1660, %v1780, %v1779
      %v1782 = vsub.s32 4, %v1758
      %v1783 = vsel %vm1660, %v1782, %v1758
      %v1784 = vsel %vm1659, %v1192, %v1781
      %v1785 = vsel %vm1659, 0, %v1783
      %v1786 = vmul.f32 %v1784, %v1784
      %v1787 = vmul.f32 %v1786, -0.001358992
      %v1788 = vadd.f32 %v1787, 0.041655596
      %v1789 = vmul.f32 %v1786, %v1788
      %v1790 = vadd.f32 %v1789, -0.4999988
      %v1791 = vmul.f32 %v1786, %v1790
      %v1792 = vadd.f32 1.0, %v1791
      %v1793 = vmul.f32 %v1784, %v1784
      %v1794 = vmul.f32 %v1793, -0.00019511016
      %v1795 = vadd.f32 %v1794, 0.008332121
      %v1796 = vmul.f32 %v1793, %v1795
      %v1797 = vadd.f32 %v1796, -0.16666654
      %v1798 = vmul.f32 %v1793, %v1797
      %v1799 = vadd.f32 %v1798, 1.0
      %v1800 = vmul.f32 %v1799, %v1784
      %vm1801 = vweird.f32 %v1192
      %v1802 = vadd.s32 %v1785, 3
      %v1803 = vand.u32 %v1802, 3
      %vm1804 = vcmp.lt.s32.totalorder %v1803, 2
      %vm1805 = vcmp.eq.s32.totalorder %v1803, 0
      %v1806 = vxor.u32 %v1800, 2147483648
      %v1807 = vsel %vm1805, %v1792, %v1806
      %vm1808 = vcmp.eq.s32.totalorder %v1803, 2
      %v1809 = vxor.u32 %v1792, 2147483648
      %v1810 = vsel %vm1808, %v1809, %v1800
      %v1811 = vsel %vm1804, %v1807, %v1810
      %v1812 = vsel %vm1801, nan, %v1811
      %v1813 = vmul.f32 %v1347, %v1347
      %v1814 = vmul.f32 %v1502, %v1502
      %v1815 = vmul.f32 %v1657, %v1657
      %v1816 = vmul.f32 %v1812, %v1812
      %v1817 = vmul.f32 %v1164, %v1813
      %v1818 = vmul.f32 %v1169, %v1814
      %v1819 = vmul.f32 %v1174, %v1815
      %v1820 = vmul.f32 %v1179, %v1816
      %v1821 = vadd.f32 %v501, %v1817
      %v1822 = vadd.f32 %v502, %v1818
      %v1823 = vadd.f32 %v503, %v1819
      %v1824 = vadd.f32 %v504, %v1820
      %s1825 = smul.u32 %s21, 16
      %v1826 = vlaneseq
      %v1827 = vand.u32 %v1826, 127
      %v1828 = vstv %s1825
      %v1829 = vadd.s32 %v1828, %v1827
      %v1830 = vld [vmem:[%s271] sm:$0xff]
      %v1831 = vld [vmem:[%s271 + $0x8] sm:$0xff]
      %v1832 = vld [vmem:[%s271 + $0x10] sm:$0xff]
      %v1833 = vld [vmem:[%s271 + $0x18] sm:$0xff]
      %v1834 = vld [vmem:[%s276] sm:$0xff]
      %v1835 = vld [vmem:[%s276 + $0x8] sm:$0xff]
      %v1836 = vld [vmem:[%s276 + $0x10] sm:$0xff]
      %v1837 = vld [vmem:[%s276 + $0x18] sm:$0xff]
      %vm1838 = vcmp.lt.s32.totalorder %v1829, 2
      %vm1839 = vcmp.ge.s32.totalorder %v1829, 18
      %1841 = vset.pattern.permute.xlu0 0
      %1842 = vperm.xlu0 %1841, %v1834
      %v1843 = vpop.permute.xlu0 %1842
      %1846 = vset.pattern.permute.xlu0 0
      %1847 = vperm.xlu0 %1846, %v1835
      %v1848 = vpop.permute.xlu0 %1847
      %1851 = vset.pattern.permute.xlu0 0
      %1852 = vperm.xlu0 %1851, %v1836
      %v1853 = vpop.permute.xlu0 %1852
      %1856 = vset.pattern.permute.xlu0 0
      %1857 = vperm.xlu0 %1856, %v1837
      %v1858 = vpop.permute.xlu0 %1857
      %v1860 = vsel %vm1839, %v1843, %v1185
      %v1861 = vsel %vm1839, %v1848, %v1186
      %v1862 = vsel %vm1839, %v1853, %v1187
      %v1863 = vsel %vm1839, %v1858, %v1188
      %1865 = vset.pattern.permute.xlu0 0
      %1866 = vperm.xlu0 %1865, %v1830
      %v1867 = vpop.permute.xlu0 %1866
      %1870 = vset.pattern.permute.xlu0 0
      %1871 = vperm.xlu0 %1870, %v1831
      %v1872 = vpop.permute.xlu0 %1871
      %1875 = vset.pattern.permute.xlu0 0
      %1876 = vperm.xlu0 %1875, %v1832
      %v1877 = vpop.permute.xlu0 %1876
      %1880 = vset.pattern.permute.xlu0 0
      %1881 = vperm.xlu0 %1880, %v1833
      %v1882 = vpop.permute.xlu0 %1881
      %v1884 = vsel %vm1838, %v1867, %v1860
      %v1885 = vsel %vm1838, %v1872, %v1861
      %v1886 = vsel %vm1838, %v1877, %v1862
      %v1887 = vsel %vm1838, %v1882, %v1863
      %vm1888 = vcmp.lt.s32.totalorder %v1829, 3
      %vm1889 = vcmp.ge.s32.totalorder %v1829, 19
      %v1890 = vsel %vm1889, %v1843, %v1821
      %v1891 = vsel %vm1889, %v1848, %v1822
      %v1892 = vsel %vm1889, %v1853, %v1823
      %v1893 = vsel %vm1889, %v1858, %v1824
      %v1894 = vsel %vm1888, %v1867, %v1890
      %v1895 = vsel %vm1888, %v1872, %v1891
      %v1896 = vsel %vm1888, %v1877, %v1892
      %v1897 = vsel %vm1888, %v1882, %v1893
      %v1898 = vmul.f32 %v1884, 0.009389464
      %v1899 = vmul.f32 %v1885, 0.009389464
      %v1900 = vmul.f32 %v1886, 0.009389464
      %v1901 = vmul.f32 %v1887, 0.009389464
      %v1902 = vadd.f32 %v1898, 0.0
      %v1903 = vadd.f32 %v1899, 0.0
      %v1904 = vadd.f32 %v1900, 0.0
      %v1905 = vadd.f32 %v1901, 0.0
      %v1906 = vmul.f32 %v1894, 0.0020289666
      %v1907 = vmul.f32 %v1895, 0.0020289666
      %v1908 = vmul.f32 %v1896, 0.0020289666
      %v1909 = vmul.f32 %v1897, 0.0020289666
      %v1910 = vadd.f32 %v1902, %v1906
      %v1911 = vadd.f32 %v1903, %v1907
      %v1912 = vadd.f32 %v1904, %v1908
      %v1913 = vadd.f32 %v1905, %v1909
      %v1914 = vmul.f32 %v1884, -0.057657376
      %v1915 = vmul.f32 %v1885, -0.057657376
      %v1916 = vmul.f32 %v1886, -0.057657376
      %v1917 = vmul.f32 %v1887, -0.057657376
      %1922 = vrot.lane.b32.xlu0 %v1914, 127
      %v1923 = vpop.permute.xlu0 %1922
      %1924 = vrot.lane.b32.xlu0 %v1915, 127
      %v1925 = vpop.permute.xlu0 %1924
      %1926 = vrot.lane.b32.xlu0 %v1916, 127
      %v1927 = vpop.permute.xlu0 %1926
      %1928 = vrot.lane.b32.xlu0 %v1917, 127
      %v1929 = vpop.permute.xlu0 %1928
      %v1934 = vadd.f32 %v1910, %v1923
      %v1935 = vadd.f32 %v1911, %v1925
      %v1936 = vadd.f32 %v1912, %v1927
      %v1937 = vadd.f32 %v1913, %v1929
      %v1938 = vmul.f32 %v1894, -0.025543464
      %v1939 = vmul.f32 %v1895, -0.025543464
      %v1940 = vmul.f32 %v1896, -0.025543464
      %v1941 = vmul.f32 %v1897, -0.025543464
      %1946 = vrot.lane.b32.xlu0 %v1938, 127
      %v1947 = vpop.permute.xlu0 %1946
      %1948 = vrot.lane.b32.xlu0 %v1939, 127
      %v1949 = vpop.permute.xlu0 %1948
      %1950 = vrot.lane.b32.xlu0 %v1940, 127
      %v1951 = vpop.permute.xlu0 %1950
      %1952 = vrot.lane.b32.xlu0 %v1941, 127
      %v1953 = vpop.permute.xlu0 %1952
      %v1958 = vadd.f32 %v1934, %v1947
      %v1959 = vadd.f32 %v1935, %v1949
      %v1960 = vadd.f32 %v1936, %v1951
      %v1961 = vadd.f32 %v1937, %v1953
      %v1962 = vmul.f32 %v1884, 0.4432098
      %v1963 = vmul.f32 %v1885, 0.4432098
      %v1964 = vmul.f32 %v1886, 0.4432098
      %v1965 = vmul.f32 %v1887, 0.4432098
      %1970 = vrot.lane.b32.xlu0 %v1962, 126
      %v1971 = vpop.permute.xlu0 %1970
      %1972 = vrot.lane.b32.xlu0 %v1963, 126
      %v1973 = vpop.permute.xlu0 %1972
      %1974 = vrot.lane.b32.xlu0 %v1964, 126
      %v1975 = vpop.permute.xlu0 %1974
      %1976 = vrot.lane.b32.xlu0 %v1965, 126
      %v1977 = vpop.permute.xlu0 %1976
      %v1982 = vadd.f32 %v1958, %v1971
      %v1983 = vadd.f32 %v1959, %v1973
      %v1984 = vadd.f32 %v1960, %v1975
      %v1985 = vadd.f32 %v1961, %v1977
      %v1986 = vmul.f32 %v1894, 0.12857261
      %v1987 = vmul.f32 %v1895, 0.12857261
      %v1988 = vmul.f32 %v1896, 0.12857261
      %v1989 = vmul.f32 %v1897, 0.12857261
      %1994 = vrot.lane.b32.xlu0 %v1986, 126
      %v1995 = vpop.permute.xlu0 %1994
      %1996 = vrot.lane.b32.xlu0 %v1987, 126
      %v1997 = vpop.permute.xlu0 %1996
      %1998 = vrot.lane.b32.xlu0 %v1988, 126
      %v1999 = vpop.permute.xlu0 %1998
      %2000 = vrot.lane.b32.xlu0 %v1989, 126
      %v2001 = vpop.permute.xlu0 %2000
      %v2006 = vadd.f32 %v1982, %v1995
      %v2007 = vadd.f32 %v1983, %v1997
      %v2008 = vadd.f32 %v1984, %v1999
      %v2009 = vadd.f32 %v1985, %v2001
      %v2010 = vmul.f32 %v1884, 0.12857261
      %v2011 = vmul.f32 %v1885, 0.12857261
      %v2012 = vmul.f32 %v1886, 0.12857261
      %v2013 = vmul.f32 %v1887, 0.12857261
      %2018 = vrot.lane.b32.xlu0 %v2010, 125
      %v2019 = vpop.permute.xlu0 %2018
      %2020 = vrot.lane.b32.xlu0 %v2011, 125
      %v2021 = vpop.permute.xlu0 %2020
      %2022 = vrot.lane.b32.xlu0 %v2012, 125
      %v2023 = vpop.permute.xlu0 %2022
      %2024 = vrot.lane.b32.xlu0 %v2013, 125
      %v2025 = vpop.permute.xlu0 %2024
      %v2030 = vadd.f32 %v2006, %v2019
      %v2031 = vadd.f32 %v2007, %v2021
      %v2032 = vadd.f32 %v2008, %v2023
      %v2033 = vadd.f32 %v2009, %v2025
      %v2034 = vmul.f32 %v1894, 0.4432098
      %v2035 = vmul.f32 %v1895, 0.4432098
      %v2036 = vmul.f32 %v1896, 0.4432098
      %v2037 = vmul.f32 %v1897, 0.4432098
      %2042 = vrot.lane.b32.xlu0 %v2034, 125
      %v2043 = vpop.permute.xlu0 %2042
      %2044 = vrot.lane.b32.xlu0 %v2035, 125
      %v2045 = vpop.permute.xlu0 %2044
      %2046 = vrot.lane.b32.xlu0 %v2036, 125
      %v2047 = vpop.permute.xlu0 %2046
      %2048 = vrot.lane.b32.xlu0 %v2037, 125
      %v2049 = vpop.permute.xlu0 %2048
      %v2054 = vadd.f32 %v2030, %v2043
      %v2055 = vadd.f32 %v2031, %v2045
      %v2056 = vadd.f32 %v2032, %v2047
      %v2057 = vadd.f32 %v2033, %v2049
      %v2058 = vmul.f32 %v1884, -0.025543464
      %v2059 = vmul.f32 %v1885, -0.025543464
      %v2060 = vmul.f32 %v1886, -0.025543464
      %v2061 = vmul.f32 %v1887, -0.025543464
      %2066 = vrot.lane.b32.xlu0 %v2058, 124
      %v2067 = vpop.permute.xlu0 %2066
      %2068 = vrot.lane.b32.xlu0 %v2059, 124
      %v2069 = vpop.permute.xlu0 %2068
      %2070 = vrot.lane.b32.xlu0 %v2060, 124
      %v2071 = vpop.permute.xlu0 %2070
      %2072 = vrot.lane.b32.xlu0 %v2061, 124
      %v2073 = vpop.permute.xlu0 %2072
      %v2078 = vadd.f32 %v2054, %v2067
      %v2079 = vadd.f32 %v2055, %v2069
      %v2080 = vadd.f32 %v2056, %v2071
      %v2081 = vadd.f32 %v2057, %v2073
      %v2082 = vmul.f32 %v1894, -0.057657376
      %v2083 = vmul.f32 %v1895, -0.057657376
      %v2084 = vmul.f32 %v1896, -0.057657376
      %v2085 = vmul.f32 %v1897, -0.057657376
      %2090 = vrot.lane.b32.xlu0 %v2082, 124
      %v2091 = vpop.permute.xlu0 %2090
      %2092 = vrot.lane.b32.xlu0 %v2083, 124
      %v2093 = vpop.permute.xlu0 %2092
      %2094 = vrot.lane.b32.xlu0 %v2084, 124
      %v2095 = vpop.permute.xlu0 %2094
      %2096 = vrot.lane.b32.xlu0 %v2085, 124
      %v2097 = vpop.permute.xlu0 %2096
      %v2102 = vadd.f32 %v2078, %v2091
      %v2103 = vadd.f32 %v2079, %v2093
      %v2104 = vadd.f32 %v2080, %v2095
      %v2105 = vadd.f32 %v2081, %v2097
      %v2106 = vmul.f32 %v1884, 0.0020289666
      %v2107 = vmul.f32 %v1885, 0.0020289666
      %v2108 = vmul.f32 %v1886, 0.0020289666
      %v2109 = vmul.f32 %v1887, 0.0020289666
      %2114 = vrot.lane.b32.xlu0 %v2106, 123
      %v2115 = vpop.permute.xlu0 %2114
      %2116 = vrot.lane.b32.xlu0 %v2107, 123
      %v2117 = vpop.permute.xlu0 %2116
      %2118 = vrot.lane.b32.xlu0 %v2108, 123
      %v2119 = vpop.permute.xlu0 %2118
      %2120 = vrot.lane.b32.xlu0 %v2109, 123
      %v2121 = vpop.permute.xlu0 %2120
      %v2126 = vadd.f32 %v2102, %v2115
      %v2127 = vadd.f32 %v2103, %v2117
      %v2128 = vadd.f32 %v2104, %v2119
      %v2129 = vadd.f32 %v2105, %v2121
      %v2130 = vmul.f32 %v1894, 0.009389464
      %v2131 = vmul.f32 %v1895, 0.009389464
      %v2132 = vmul.f32 %v1896, 0.009389464
      %v2133 = vmul.f32 %v1897, 0.009389464
      %2138 = vrot.lane.b32.xlu0 %v2130, 123
      %v2139 = vpop.permute.xlu0 %2138
      %2140 = vrot.lane.b32.xlu0 %v2131, 123
      %v2141 = vpop.permute.xlu0 %2140
      %2142 = vrot.lane.b32.xlu0 %v2132, 123
      %v2143 = vpop.permute.xlu0 %2142
      %2144 = vrot.lane.b32.xlu0 %v2133, 123
      %v2145 = vpop.permute.xlu0 %2144
      %v2150 = vadd.f32 %v2126, %v2139
      %v2151 = vadd.f32 %v2127, %v2141
      %v2152 = vadd.f32 %v2128, %v2143
      %v2153 = vadd.f32 %v2129, %v2145
      %vm2154 = vcmask 130048
      %2155 = vst.msk [vmem:[%s284] sm:$0xff] %vm2154, %v2150
      %2156 = vst.msk [vmem:[%s284 + $0x8] sm:$0xff] %vm2154, %v2151
      %2157 = vst.msk [vmem:[%s284 + $0x10] sm:$0xff] %vm2154, %v2152
      %2158 = vst.msk [vmem:[%s284 + $0x18] sm:$0xff] %vm2154, %v2153
      %p2159 = scmp.lt.s32.totalorder %s20, 1
      %s2160 = scalar_select %p2159, %s20, 1
      %p2161 = scmp.lt.s32.totalorder %s21, 0
      %s2162 = scalar_select %p2161, %s21, 0
      %s2163 = smul.addr %s2160, 4
      %s2164 = sadd.s32 %s2162, %s2163
      %s2165 = smul.addr %s2164, 8
      %s2166 = scalar_lea.vmem %s5, %s2165
      // Predicated region
      $region41: #{forward.26} parent=39 // pred_check
        %p2167 = pneg %p168
      $region42: #{forward.26} parent=39 // pred_check_branch
        %2169 = sbr.rel (%p2167) target = $region44
      $region43: #{forward.26} parent=39 // pred_region
        _
      $region44: #{forward.26} parent=39 // pred_fallthru
        _
    $region40: #{forward.26} parent=5 // pred_fallthru
      _
    %p2170 = scmp.le.s32.totalorder 2, %s11
    // Predicated region
    $region45: #{forward.26} parent=5 // pred_check
      %p2171 = pneg %p2170
    $region46: #{forward.26} parent=5 // pred_check_branch
      %2173 = sbr.rel (%p2171) target = $region48
    $region47: #{forward.26} parent=5 // pred_region
      %s2174 = ssub.s32 %s11, 2
      // Predicated region
      $region49: #{forward.26} parent=47 // pred_check
        %p2175 = pneg %p174
      $region50: #{forward.26} parent=47 // pred_check_branch
        %2177 = sbr.rel (%p2175) target = $region52
      $region51: #{forward.26} parent=47 // pred_region
        %p2178 = scmp.lt.s32.totalorder %s22, 1
        %s2179 = scalar_select %p2178, %s22, 1
        %p2180 = scmp.lt.s32.totalorder %s23, 0
        %s2181 = scalar_select %p2180, %s23, 0
        %s2182 = smul.addr %s2179, 4
        %s2183 = sadd.s32 %s2181, %s2182
        %s2184 = smul.addr %s2183, 8
        %s2185 = scalar_lea.vmem %s5, %s2184
      $region52: #{forward.26} parent=47 // pred_fallthru
        _
    $region48: #{forward.26} parent=5 // pred_fallthru
      _
  $region6: #{forward.26} parent=0 // loop_footer
    %s15 = sadd.s32 1, %s11
  $region7: #{forward.26} parent=0 // loop_footer_branch
    %10 = sbr.rel target = $region3
  $region8: #{forward.26} parent=0 // loop_exit
    _

// kernel: forward.31
$region0: #{forward.31}
  #allocation0 [shape = 'u32[]', space=smem, size = 0x4, offset = 0x4, fixed_abs, tag = 'smem constant byte address 0x4 - core index']
  #allocation1 [shape = 'u32[72,128]{1,0:T(1,128)}', space=vmem, size = 0x9000, scoped, tag = 'internal scratch']
  %s0 = inlined_call_operand.vmem [shape: f32[2,32,22], index: 0, kind: input, shape index: {}]
  %s1 = inlined_call_operand.vmem [shape: f32[32,96], index: 1, kind: input, shape index: {}]
  %s2 = inlined_call_operand.vmem [shape: f32[32,1], index: 2, kind: input, shape index: {}]
  %s3 = inlined_call_operand.vmem [shape: f32[2,32,16], index: 3, kind: output, shape index: {}]
  %s4 = sld [smem:[#allocation0]]
  $region45: #{forward.31} parent=0
    _
  %s6 = ssub.s32 1, %s4
  %s7 = scalar_select 0, %s6, %s4
  loop: start=0, step=1, limit=4
  $region2: #{forward.31} parent=0 // loop_pre_header
    _
  $region3: #{forward.31} parent=0 // loop_header
    %s9 = sphi 0, %s13
    %p10 = scmp.ge.s32.totalorder %s9, 4
    %s16 = sphi 0, %s28
    %s17 = sphi 0, %s24
    %s18 = sphi 0, %s16
    %s19 = sphi 0, %s17
    %s20 = sphi 0, %s18
    %s21 = sphi 0, %s19
    %s31 = sphi 0, %s33
    %s34 = sphi 0, %s31
    %s35 = sphi 0, %s34
    %s51 = sphi 0, %s35
    %s55 = sphi 0, %s55
    %s57 = sphi 0, %s55
    %s58 = sphi 0, %s57
    %s72 = sphi 0, %s58
    %s76 = sphi 0, %s76
    %s78 = sphi 0, %s76
    %s79 = sphi 0, %s78
    %s93 = sphi 0, %s79
    %s101 = sphi 0, %s103
    %s104 = sphi 0, %s101
    %s105 = sphi 0, %s104
    %s121 = sphi 0, %s105
  $region4: #{forward.31} parent=0 // loop_header_branch
    %12 = sbr.rel (%p10) target = $region8
  $region5: #{forward.31} parent=0 // loop_body
    %s14 = ssub.s32 %s9, 1
    %s15 = ssub.s32 %s9, 2
    %s22 = sadd.s32 1, %s17
    %p23 = scmp.ge.s32.totalorder %s22, 1
    %s24 = scalar_select %p23, 0, %s22
    %s25 = sadd.s32 1, %s16
    %s26 = scalar_select %p23, %s25, %s16
    %p27 = scmp.ge.s32.totalorder %s26, 2
    %s28 = scalar_select %p27, 0, %s26
    %s29 = ssub.s32 %s16, %s28
    %p30 = scmp.eq.s32.totalorder %s29, 0
    %s32 = sadd.s32 %s31, 1
    %s33 = scalar_select %p30, %s31, %s32
    %p36 = pneg %p30
    %p37 = scmp.eq.s32.totalorder %s9, 1
    %p38 = por %p36, %p37
    %p39 = scmp.ne.s32.totalorder %s31, %s34
    %p40 = scmp.eq.s32.totalorder %s9, 0
    %p41 = por %p39, %p40
    %p42 = scmp.ne.s32.totalorder %s31, %s34
    %p43 = scmp.eq.s32.totalorder %s14, 1
    %p44 = por %p42, %p43
    %p45 = scmp.ne.s32.totalorder %s34, %s35
    %p46 = scmp.eq.s32.totalorder %s14, 0
    %p47 = por %p45, %p46
    %p48 = scmp.ne.s32.totalorder %s34, %s35
    %p49 = scmp.eq.s32.totalorder %s15, 1
    %p50 = por %p48, %p49
    %p52 = scmp.ne.s32.totalorder %s35, %s51
    %p53 = scmp.eq.s32.totalorder %s15, 0
    %p54 = por %p52, %p53
    %s56 = sadd.s32 %s55, 1
    %p59 = scmp.eq.s32.totalorder %s9, 1
    %p60 = scmp.ne.s32.totalorder %s55, %s57
    %p61 = scmp.eq.s32.totalorder %s9, 0
    %p62 = por %p60, %p61
    %p63 = scmp.ne.s32.totalorder %s55, %s57
    %p64 = scmp.eq.s32.totalorder %s14, 1
    %p65 = por %p63, %p64
    %p66 = scmp.ne.s32.totalorder %s57, %s58
    %p67 = scmp.eq.s32.totalorder %s14, 0
    %p68 = por %p66, %p67
    %p69 = scmp.ne.s32.totalorder %s57, %s58
    %p70 = scmp.eq.s32.totalorder %s15, 1
    %p71 = por %p69, %p70
    %p73 = scmp.ne.s32.totalorder %s58, %s72
    %p74 = scmp.eq.s32.totalorder %s15, 0
    %p75 = por %p73, %p74
    %s77 = sadd.s32 %s76, 1
    %p80 = scmp.eq.s32.totalorder %s9, 1
    %p81 = scmp.ne.s32.totalorder %s76, %s78
    %p82 = scmp.eq.s32.totalorder %s9, 0
    %p83 = por %p81, %p82
    %p84 = scmp.ne.s32.totalorder %s76, %s78
    %p85 = scmp.eq.s32.totalorder %s14, 1
    %p86 = por %p84, %p85
    %p87 = scmp.ne.s32.totalorder %s78, %s79
    %p88 = scmp.eq.s32.totalorder %s14, 0
    %p89 = por %p87, %p88
    %p90 = scmp.ne.s32.totalorder %s78, %s79
    %p91 = scmp.eq.s32.totalorder %s15, 1
    %p92 = por %p90, %p91
    %p94 = scmp.ne.s32.totalorder %s79, %s93
    %p95 = scmp.eq.s32.totalorder %s15, 0
    %p96 = por %p94, %p95
    %s97 = ssub.s32 %s16, %s28
    %s98 = ssub.s32 %s17, %s24
    %s99 = sor.u32 %s97, %s98
    %p100 = scmp.eq.s32.totalorder %s99, 0
    %s102 = sadd.s32 %s101, 1
    %s103 = scalar_select %p100, %s101, %s102
    %p106 = pneg %p100
    %p107 = scmp.eq.s32.totalorder %s9, 1
    %p108 = por %p106, %p107
    %p109 = scmp.ne.s32.totalorder %s101, %s104
    %p110 = scmp.eq.s32.totalorder %s9, 0
    %p111 = por %p109, %p110
    %p112 = scmp.ne.s32.totalorder %s101, %s104
    %p113 = scmp.eq.s32.totalorder %s14, 1
    %p114 = por %p112, %p113
    %p115 = scmp.ne.s32.totalorder %s104, %s105
    %p116 = scmp.eq.s32.totalorder %s14, 0
    %p117 = por %p115, %p116
    %p118 = scmp.ne.s32.totalorder %s104, %s105
    %p119 = scmp.eq.s32.totalorder %s15, 1
    %p120 = por %p118, %p119
    %p122 = scmp.ne.s32.totalorder %s105, %s121
    %p123 = scmp.eq.s32.totalorder %s15, 0
    %p124 = por %p122, %p123
    %p125 = scmp.le.s32.totalorder 1, %s9
    %p126 = scmp.lt.s32.totalorder %s9, 3
    %p127 = pnand %p125, %p126
    %p128 = pneg %p127
    // Predicated region
    $region9: #{forward.31} parent=5 // pred_check
      _
    $region10: #{forward.31} parent=5 // pred_check_branch
      %130 = sbr.rel (%p127) target = $region12
    $region11: #{forward.31} parent=5 // pred_region
      %s131 = ssub.s32 %s9, 1
      // Predicated region
      $region13: #{forward.31} parent=11 // pred_check
        %p132 = pneg %p68
      $region14: #{forward.31} parent=11 // pred_check_branch
        %134 = sbr.rel (%p132) target = $region16
      $region15: #{forward.31} parent=11 // pred_region
        _
      $region16: #{forward.31} parent=11 // pred_fallthru
        _
      // Predicated region
      $region17: #{forward.31} parent=11 // pred_check
        %p135 = pneg %p89
      $region18: #{forward.31} parent=11 // pred_check_branch
        %137 = sbr.rel (%p135) target = $region20
      $region19: #{forward.31} parent=11 // pred_region
        _
      $region20: #{forward.31} parent=11 // pred_fallthru
        _
    $region12: #{forward.31} parent=5 // pred_fallthru
      _
    %p138 = scmp.lt.s32.totalorder %s9, 2
    // Predicated region
    $region21: #{forward.31} parent=5 // pred_check
      %p139 = pneg %p138
    $region22: #{forward.31} parent=5 // pred_check_branch
      %141 = sbr.rel (%p139) target = $region24
    $region23: #{forward.31} parent=5 // pred_region
      // Predicated region
      $region25: #{forward.31} parent=23 // pred_check
        %p142 = pneg %p41
      $region26: #{forward.31} parent=23 // pred_check_branch
        %144 = sbr.rel (%p142) target = $region28
      $region27: #{forward.31} parent=23 // pred_region
        %p145 = scmp.lt.s32.totalorder %s16, 1
        %s146 = scalar_select %p145, %s16, 1
        %s147 = smul.addr %s146, 4
        %s148 = smul.addr %s147, 8
        %s149 = scalar_lea.vmem %s0, %s148
      $region28: #{forward.31} parent=23 // pred_fallthru
        _
    $region24: #{forward.31} parent=5 // pred_fallthru
      _
    %p150 = scmp.le.s32.totalorder 1, %s9
    %p151 = scmp.lt.s32.totalorder %s9, 3
    %p152 = pnand %p150, %p151
    %p153 = pneg %p152
    // Predicated region
    $region29: #{forward.31} parent=5 // pred_check
      _
    $region30: #{forward.31} parent=5 // pred_check_branch
      %155 = sbr.rel (%p152) target = $region32
    $region31: #{forward.31} parent=5 // pred_region
      %s156 = ssub.s32 %s9, 1
      %p157 = scmp.lt.s32.totalorder %s18, 1
      %s158 = scalar_select %p157, %s18, 1
      %s159 = smul.addr %s158, 4
      %s160 = smul.addr %s159, 8
      %s161 = scalar_lea.vmem %s0, %s160
      %p162 = pneg %p47
      %p163 = pneg %p44
      %p164 = pneg %p68
      %p165 = pneg %p65
      %p166 = pneg %p89
      %p167 = pneg %p86
      %p168 = pneg %p117
      %p169 = pneg %p114
      %p170 = scmp.lt.s32.totalorder %s18, 1
      %s171 = scalar_select %p170, %s18, 1
      %p172 = scmp.lt.s32.totalorder %s19, 0
      %s173 = scalar_select %p172, %s19, 0
      %s174 = smul.addr %s171, 4
      %s175 = sadd.s32 %s173, %s174
      %s176 = smul.addr %s175, 8
      %s177 = scalar_lea.vmem %s3, %s176
      %p178 = scmp.lt.s32.totalorder %s18, 1
      %s179 = scalar_select %p178, %s18, 1
      %s180 = smul.addr %s179, 4
      %s181 = smul.addr %s180, 8
      %s182 = scalar_lea.vmem %s0, %s181
      %p183 = scmp.lt.s32.totalorder %s18, 1
      %s184 = scalar_select %p183, %s18, 1
      %p185 = scmp.lt.s32.totalorder %s19, 0
      %s186 = scalar_select %p185, %s19, 0
      %s187 = smul.addr %s184, 4
      %s188 = sadd.s32 %s186, %s187
      %s189 = smul.addr %s188, 8
      %s190 = scalar_lea.vmem %s3, %s189
      %v191 = vld [vmem:[%s182] sm:$0xff]
      %v192 = vld [vmem:[%s182 + $0x8] sm:$0xff]
      %v193 = vld [vmem:[%s182 + $0x10] sm:$0xff]
      %v194 = vld [vmem:[%s182 + $0x18] sm:$0xff]
      %199 = vrot.lane.b32.xlu0 %v191, 125
      %v200 = vpop.permute.xlu0 %199
      %201 = vrot.lane.b32.xlu0 %v192, 125
      %v202 = vpop.permute.xlu0 %201
      %203 = vrot.lane.b32.xlu0 %v193, 125
      %v204 = vpop.permute.xlu0 %203
      %205 = vrot.lane.b32.xlu0 %v194, 125
      %v206 = vpop.permute.xlu0 %205
      %211 = vrot.lane.b32.xlu0 %v191, 122
      %v212 = vpop.permute.xlu0 %211
      %213 = vrot.lane.b32.xlu0 %v192, 122
      %v214 = vpop.permute.xlu0 %213
      %215 = vrot.lane.b32.xlu0 %v193, 122
      %v216 = vpop.permute.xlu0 %215
      %217 = vrot.lane.b32.xlu0 %v194, 122
      %v218 = vpop.permute.xlu0 %217
      %v223 = vld [vmem:[%s1] sm:$0xff]
      %v224 = vld [vmem:[%s1 + $0x8] sm:$0xff]
      %v225 = vld [vmem:[%s1 + $0x10] sm:$0xff]
      %v226 = vld [vmem:[%s1 + $0x18] sm:$0xff]
      %v227 = vld [vmem:[%s2] sm:$0xff]
      %v228 = vld [vmem:[%s2 + $0x8] sm:$0xff]
      %v229 = vld [vmem:[%s2 + $0x10] sm:$0xff]
      %v230 = vld [vmem:[%s2 + $0x18] sm:$0xff]
      %232 = vset.pattern.permute.xlu0 0
      %233 = vperm.xlu0 %232, %v227
      %v234 = vpop.permute.xlu0 %233
      %237 = vset.pattern.permute.xlu0 0
      %238 = vperm.xlu0 %237, %v228
      %v239 = vpop.permute.xlu0 %238
      %242 = vset.pattern.permute.xlu0 0
      %243 = vperm.xlu0 %242, %v229
      %v244 = vpop.permute.xlu0 %243
      %247 = vset.pattern.permute.xlu0 0
      %248 = vperm.xlu0 %247, %v230
      %v249 = vpop.permute.xlu0 %248
      %vm251 = vcmask 785408
      %v253 = vsel %vm251, %v223, 0
      %v256 = vsel %vm251, %v224, 0
      %v259 = vsel %vm251, %v225, 0
      %v262 = vsel %vm251, %v226, 0
      %264 = vmatpush.msra.mxu0 0.0
      %265 = vmatpush.msra.mxu0 0.0
      %266 = vmatpush.msra.mxu0 0.0
      %267 = vmatpush.msra.mxu0 0.0
      %268 = vmatpush.msra.mxu0 %v218
      %269 = vmatpush.msra.mxu0 %v216
      %270 = vmatpush.msra.mxu0 %v214
      %271 = vmatpush.msra.mxu0 %v212
      %272 = vmatpush.msra.mxu0 %v206
      %273 = vmatpush.msra.mxu0 %v204
      %274 = vmatpush.msra.mxu0 %v202
      %275 = vmatpush.msra.mxu0 %v200
      %276 = vmatpush.msra.mxu0 %v194
      %277 = vmatpush.msra.mxu0 %v193
      %278 = vmatpush.msra.mxu0 %v192
      %279 = vmatpush.msra.mxu0 %v191
      %280 = vmatmul.f32.gmra.mxu0 %v253
      %v281 = vpop.f32.mrf.mxu0
      %v282 = vadd.f32 %v234, %v281
      %283 = vmatmul.f32.gmra.mxu0 %v256
      %v284 = vpop.f32.mrf.mxu0
      %v285 = vadd.f32 %v239, %v284
      %286 = vmatmul.f32.gmra.mxu0 %v259
      %v287 = vpop.f32.mrf.mxu0
      %v288 = vadd.f32 %v244, %v287
      %289 = vmatmul.f32.gmra.mxu0 %v262
      %v290 = vpop.f32.mrf.mxu0
      %v291 = vadd.f32 %v249, %v290
      %292 = vdwg.mxu0
      %vm293 = vcmask 130048
      %294 = vst.msk [vmem:[%s190] sm:$0xff] %vm293, %v282
      %295 = vst.msk [vmem:[%s190 + $0x8] sm:$0xff] %vm293, %v285
      %296 = vst.msk [vmem:[%s190 + $0x10] sm:$0xff] %vm293, %v288
      %297 = vst.msk [vmem:[%s190 + $0x18] sm:$0xff] %vm293, %v291
      %p298 = scmp.lt.s32.totalorder %s18, 1
      %s299 = scalar_select %p298, %s18, 1
      %p300 = scmp.lt.s32.totalorder %s19, 0
      %s301 = scalar_select %p300, %s19, 0
      %s302 = smul.addr %s299, 4
      %s303 = sadd.s32 %s301, %s302
      %s304 = smul.addr %s303, 8
      %s305 = scalar_lea.vmem %s3, %s304
      // Predicated region
      $region33: #{forward.31} parent=31 // pred_check
        %p306 = pneg %p114
      $region34: #{forward.31} parent=31 // pred_check_branch
        %308 = sbr.rel (%p306) target = $region36
      $region35: #{forward.31} parent=31 // pred_region
        _
      $region36: #{forward.31} parent=31 // pred_fallthru
        _
    $region32: #{forward.31} parent=5 // pred_fallthru
      _
    %p309 = scmp.le.s32.totalorder 2, %s9
    // Predicated region
    $region37: #{forward.31} parent=5 // pred_check
      %p310 = pneg %p309
    $region38: #{forward.31} parent=5 // pred_check_branch
      %312 = sbr.rel (%p310) target = $region40
    $region39: #{forward.31} parent=5 // pred_region
      %s313 = ssub.s32 %s9, 2
      // Predicated region
      $region41: #{forward.31} parent=39 // pred_check
        %p314 = pneg %p120
      $region42: #{forward.31} parent=39 // pred_check_branch
        %316 = sbr.rel (%p314) target = $region44
      $region43: #{forward.31} parent=39 // pred_region
        %p317 = scmp.lt.s32.totalorder %s20, 1
        %s318 = scalar_select %p317, %s20, 1
        %p319 = scmp.lt.s32.totalorder %s21, 0
        %s320 = scalar_select %p319, %s21, 0
        %s321 = smul.addr %s318, 4
        %s322 = sadd.s32 %s320, %s321
        %s323 = smul.addr %s322, 8
        %s324 = scalar_lea.vmem %s3, %s323
      $region44: #{forward.31} parent=39 // pred_fallthru
        _
    $region40: #{forward.31} parent=5 // pred_fallthru
      _
  $region6: #{forward.31} parent=0 // loop_footer
    %s13 = sadd.s32 1, %s9
  $region7: #{forward.31} parent=0 // loop_footer_branch
    %8 = sbr.rel target = $region3
  $region8: #{forward.31} parent=0 // loop_exit
    _

// kernel: forward.29
$region0: #{forward.29}
  #allocation0 [shape = 'u32[]', space=smem, size = 0x4, offset = 0x4, fixed_abs, tag = 'smem constant byte address 0x4 - core index']
  #allocation1 [shape = 'u32[72,128]{1,0:T(1,128)}', space=vmem, size = 0x9000, scoped, tag = 'internal scratch']
  %s0 = inlined_call_operand.vmem [shape: f32[2,32,18], index: 0, kind: input, shape index: {}]
  %s1 = inlined_call_operand.vmem [shape: f32[32,96], index: 1, kind: input, shape index: {}]
  %s2 = inlined_call_operand.vmem [shape: f32[32,1], index: 2, kind: input, shape index: {}]
  %s3 = inlined_call_operand.vmem [shape: f32[2,32,16], index: 3, kind: input, shape index: {}]
  %s4 = inlined_call_operand.vmem [shape: f32[2,32,16], index: 4, kind: output, shape index: {}]
  %s5 = sld [smem:[#allocation0]]
  $region49: #{forward.29} parent=0
    _
  %s7 = ssub.s32 1, %s5
  %s8 = scalar_select 0, %s7, %s5
  loop: start=0, step=1, limit=4
  $region2: #{forward.29} parent=0 // loop_pre_header
    _
  $region3: #{forward.29} parent=0 // loop_header
    %s10 = sphi 0, %s14
    %p11 = scmp.ge.s32.totalorder %s10, 4
    %s17 = sphi 0, %s29
    %s18 = sphi 0, %s25
    %s19 = sphi 0, %s17
    %s20 = sphi 0, %s18
    %s21 = sphi 0, %s19
    %s22 = sphi 0, %s20
    %s32 = sphi 0, %s34
    %s35 = sphi 0, %s32
    %s36 = sphi 0, %s35
    %s52 = sphi 0, %s36
    %s56 = sphi 0, %s56
    %s58 = sphi 0, %s56
    %s59 = sphi 0, %s58
    %s73 = sphi 0, %s59
    %s77 = sphi 0, %s77
    %s79 = sphi 0, %s77
    %s80 = sphi 0, %s79
    %s94 = sphi 0, %s80
    %s102 = sphi 0, %s104
    %s105 = sphi 0, %s102
    %s106 = sphi 0, %s105
    %s122 = sphi 0, %s106
    %s130 = sphi 0, %s132
    %s133 = sphi 0, %s130
    %s134 = sphi 0, %s133
    %s150 = sphi 0, %s134
  $region4: #{forward.29} parent=0 // loop_header_branch
    %13 = sbr.rel (%p11) target = $region8
  $region5: #{forward.29} parent=0 // loop_body
    %s15 = ssub.s32 %s10, 1
    %s16 = ssub.s32 %s10, 2
    %s23 = sadd.s32 1, %s18
    %p24 = scmp.ge.s32.totalorder %s23, 1
    %s25 = scalar_select %p24, 0, %s23
    %s26 = sadd.s32 1, %s17
    %s27 = scalar_select %p24, %s26, %s17
    %p28 = scmp.ge.s32.totalorder %s27, 2
    %s29 = scalar_select %p28, 0, %s27
    %s30 = ssub.s32 %s17, %s29
    %p31 = scmp.eq.s32.totalorder %s30, 0
    %s33 = sadd.s32 %s32, 1
    %s34 = scalar_select %p31, %s32, %s33
    %p37 = pneg %p31
    %p38 = scmp.eq.s32.totalorder %s10, 1
    %p39 = por %p37, %p38
    %p40 = scmp.ne.s32.totalorder %s32, %s35
    %p41 = scmp.eq.s32.totalorder %s10, 0
    %p42 = por %p40, %p41
    %p43 = scmp.ne.s32.totalorder %s32, %s35
    %p44 = scmp.eq.s32.totalorder %s15, 1
    %p45 = por %p43, %p44
    %p46 = scmp.ne.s32.totalorder %s35, %s36
    %p47 = scmp.eq.s32.totalorder %s15, 0
    %p48 = por %p46, %p47
    %p49 = scmp.ne.s32.totalorder %s35, %s36
    %p50 = scmp.eq.s32.totalorder %s16, 1
    %p51 = por %p49, %p50
    %p53 = scmp.ne.s32.totalorder %s36, %s52
    %p54 = scmp.eq.s32.totalorder %s16, 0
    %p55 = por %p53, %p54
    %s57 = sadd.s32 %s56, 1
    %p60 = scmp.eq.s32.totalorder %s10, 1
    %p61 = scmp.ne.s32.totalorder %s56, %s58
    %p62 = scmp.eq.s32.totalorder %s10, 0
    %p63 = por %p61, %p62
    %p64 = scmp.ne.s32.totalorder %s56, %s58
    %p65 = scmp.eq.s32.totalorder %s15, 1
    %p66 = por %p64, %p65
    %p67 = scmp.ne.s32.totalorder %s58, %s59
    %p68 = scmp.eq.s32.totalorder %s15, 0
    %p69 = por %p67, %p68
    %p70 = scmp.ne.s32.totalorder %s58, %s59
    %p71 = scmp.eq.s32.totalorder %s16, 1
    %p72 = por %p70, %p71
    %p74 = scmp.ne.s32.totalorder %s59, %s73
    %p75 = scmp.eq.s32.totalorder %s16, 0
    %p76 = por %p74, %p75
    %s78 = sadd.s32 %s77, 1
    %p81 = scmp.eq.s32.totalorder %s10, 1
    %p82 = scmp.ne.s32.totalorder %s77, %s79
    %p83 = scmp.eq.s32.totalorder %s10, 0
    %p84 = por %p82, %p83
    %p85 = scmp.ne.s32.totalorder %s77, %s79
    %p86 = scmp.eq.s32.totalorder %s15, 1
    %p87 = por %p85, %p86
    %p88 = scmp.ne.s32.totalorder %s79, %s80
    %p89 = scmp.eq.s32.totalorder %s15, 0
    %p90 = por %p88, %p89
    %p91 = scmp.ne.s32.totalorder %s79, %s80
    %p92 = scmp.eq.s32.totalorder %s16, 1
    %p93 = por %p91, %p92
    %p95 = scmp.ne.s32.totalorder %s80, %s94
    %p96 = scmp.eq.s32.totalorder %s16, 0
    %p97 = por %p95, %p96
    %s98 = ssub.s32 %s17, %s29
    %s99 = ssub.s32 %s18, %s25
    %s100 = sor.u32 %s98, %s99
    %p101 = scmp.eq.s32.totalorder %s100, 0
    %s103 = sadd.s32 %s102, 1
    %s104 = scalar_select %p101, %s102, %s103
    %p107 = pneg %p101
    %p108 = scmp.eq.s32.totalorder %s10, 1
    %p109 = por %p107, %p108
    %p110 = scmp.ne.s32.totalorder %s102, %s105
    %p111 = scmp.eq.s32.totalorder %s10, 0
    %p112 = por %p110, %p111
    %p113 = scmp.ne.s32.totalorder %s102, %s105
    %p114 = scmp.eq.s32.totalorder %s15, 1
    %p115 = por %p113, %p114
    %p116 = scmp.ne.s32.totalorder %s105, %s106
    %p117 = scmp.eq.s32.totalorder %s15, 0
    %p118 = por %p116, %p117
    %p119 = scmp.ne.s32.totalorder %s105, %s106
    %p120 = scmp.eq.s32.totalorder %s16, 1
    %p121 = por %p119, %p120
    %p123 = scmp.ne.s32.totalorder %s106, %s122
    %p124 = scmp.eq.s32.totalorder %s16, 0
    %p125 = por %p123, %p124
    %s126 = ssub.s32 %s17, %s29
    %s127 = ssub.s32 %s18, %s25
    %s128 = sor.u32 %s126, %s127
    %p129 = scmp.eq.s32.totalorder %s128, 0
    %s131 = sadd.s32 %s130, 1
    %s132 = scalar_select %p129, %s130, %s131
    %p135 = pneg %p129
    %p136 = scmp.eq.s32.totalorder %s10, 1
    %p137 = por %p135, %p136
    %p138 = scmp.ne.s32.totalorder %s130, %s133
    %p139 = scmp.eq.s32.totalorder %s10, 0
    %p140 = por %p138, %p139
    %p141 = scmp.ne.s32.totalorder %s130, %s133
    %p142 = scmp.eq.s32.totalorder %s15, 1
    %p143 = por %p141, %p142
    %p144 = scmp.ne.s32.totalorder %s133, %s134
    %p145 = scmp.eq.s32.totalorder %s15, 0
    %p146 = por %p144, %p145
    %p147 = scmp.ne.s32.totalorder %s133, %s134
    %p148 = scmp.eq.s32.totalorder %s16, 1
    %p149 = por %p147, %p148
    %p151 = scmp.ne.s32.totalorder %s134, %s150
    %p152 = scmp.eq.s32.totalorder %s16, 0
    %p153 = por %p151, %p152
    %p154 = scmp.le.s32.totalorder 1, %s10
    %p155 = scmp.lt.s32.totalorder %s10, 3
    %p156 = pnand %p154, %p155
    %p157 = pneg %p156
    // Predicated region
    $region9: #{forward.29} parent=5 // pred_check
      _
    $region10: #{forward.29} parent=5 // pred_check_branch
      %159 = sbr.rel (%p156) target = $region12
    $region11: #{forward.29} parent=5 // pred_region
      %s160 = ssub.s32 %s10, 1
      // Predicated region
      $region13: #{forward.29} parent=11 // pred_check
        %p161 = pneg %p69
      $region14: #{forward.29} parent=11 // pred_check_branch
        %163 = sbr.rel (%p161) target = $region16
      $region15: #{forward.29} parent=11 // pred_region
        _
      $region16: #{forward.29} parent=11 // pred_fallthru
        _
      // Predicated region
      $region17: #{forward.29} parent=11 // pred_check
        %p164 = pneg %p90
      $region18: #{forward.29} parent=11 // pred_check_branch
        %166 = sbr.rel (%p164) target = $region20
      $region19: #{forward.29} parent=11 // pred_region
        _
      $region20: #{forward.29} parent=11 // pred_fallthru
        _
    $region12: #{forward.29} parent=5 // pred_fallthru
      _
    %p167 = scmp.lt.s32.totalorder %s10, 2
    // Predicated region
    $region21: #{forward.29} parent=5 // pred_check
      %p168 = pneg %p167
    $region22: #{forward.29} parent=5 // pred_check_branch
      %170 = sbr.rel (%p168) target = $region24
    $region23: #{forward.29} parent=5 // pred_region
      // Predicated region
      $region25: #{forward.29} parent=23 // pred_check
        %p171 = pneg %p42
      $region26: #{forward.29} parent=23 // pred_check_branch
        %173 = sbr.rel (%p171) target = $region28
      $region27: #{forward.29} parent=23 // pred_region
        %p174 = scmp.lt.s32.totalorder %s17, 1
        %s175 = scalar_select %p174, %s17, 1
        %s176 = smul.addr %s175, 4
        %s177 = smul.addr %s176, 8
        %s178 = scalar_lea.vmem %s0, %s177
      $region28: #{forward.29} parent=23 // pred_fallthru
        _
      // Predicated region
      $region29: #{forward.29} parent=23 // pred_check
        %p179 = pneg %p112
      $region30: #{forward.29} parent=23 // pred_check_branch
        %181 = sbr.rel (%p179) target = $region32
      $region31: #{forward.29} parent=23 // pred_region
        %p182 = scmp.lt.s32.totalorder %s17, 1
        %s183 = scalar_select %p182, %s17, 1
        %p184 = scmp.lt.s32.totalorder %s18, 0
        %s185 = scalar_select %p184, %s18, 0
        %s186 = smul.addr %s183, 4
        %s187 = sadd.s32 %s185, %s186
        %s188 = smul.addr %s187, 8
        %s189 = scalar_lea.vmem %s3, %s188
      $region32: #{forward.29} parent=23 // pred_fallthru
        _
    $region24: #{forward.29} parent=5 // pred_fallthru
      _
    %p190 = scmp.le.s32.totalorder 1, %s10
    %p191 = scmp.lt.s32.totalorder %s10, 3
    %p192 = pnand %p190, %p191
    %p193 = pneg %p192
    // Predicated region
    $region33: #{forward.29} parent=5 // pred_check
      _
    $region34: #{forward.29} parent=5 // pred_check_branch
      %195 = sbr.rel (%p192) target = $region36
    $region35: #{forward.29} parent=5 // pred_region
      %s196 = ssub.s32 %s10, 1
      %p197 = scmp.lt.s32.totalorder %s19, 1
      %s198 = scalar_select %p197, %s19, 1
      %s199 = smul.addr %s198, 4
      %s200 = smul.addr %s199, 8
      %s201 = scalar_lea.vmem %s0, %s200
      %p202 = pneg %p48
      %p203 = pneg %p45
      %p204 = pneg %p69
      %p205 = pneg %p66
      %p206 = pneg %p90
      %p207 = pneg %p87
      %p208 = scmp.lt.s32.totalorder %s19, 1
      %s209 = scalar_select %p208, %s19, 1
      %p210 = scmp.lt.s32.totalorder %s20, 0
      %s211 = scalar_select %p210, %s20, 0
      %s212 = smul.addr %s209, 4
      %s213 = sadd.s32 %s211, %s212
      %s214 = smul.addr %s213, 8
      %s215 = scalar_lea.vmem %s3, %s214
      %p216 = pneg %p118
      %p217 = pneg %p115
      %p218 = pneg %p146
      %p219 = pneg %p143
      %p220 = scmp.lt.s32.totalorder %s19, 1
      %s221 = scalar_select %p220, %s19, 1
      %p222 = scmp.lt.s32.totalorder %s20, 0
      %s223 = scalar_select %p222, %s20, 0
      %s224 = smul.addr %s221, 4
      %s225 = sadd.s32 %s223, %s224
      %s226 = smul.addr %s225, 8
      %s227 = scalar_lea.vmem %s4, %s226
      %p228 = scmp.lt.s32.totalorder %s19, 1
      %s229 = scalar_select %p228, %s19, 1
      %s230 = smul.addr %s229, 4
      %s231 = smul.addr %s230, 8
      %s232 = scalar_lea.vmem %s0, %s231
      %p233 = scmp.lt.s32.totalorder %s19, 1
      %s234 = scalar_select %p233, %s19, 1
      %p235 = scmp.lt.s32.totalorder %s20, 0
      %s236 = scalar_select %p235, %s20, 0
      %s237 = smul.addr %s234, 4
      %s238 = sadd.s32 %s236, %s237
      %s239 = smul.addr %s238, 8
      %s240 = scalar_lea.vmem %s3, %s239
      %p241 = scmp.lt.s32.totalorder %s19, 1
      %s242 = scalar_select %p241, %s19, 1
      %p243 = scmp.lt.s32.totalorder %s20, 0
      %s244 = scalar_select %p243, %s20, 0
      %s245 = smul.addr %s242, 4
      %s246 = sadd.s32 %s244, %s245
      %s247 = smul.addr %s246, 8
      %s248 = scalar_lea.vmem %s4, %s247
      %v249 = vld [vmem:[%s232] sm:$0xff]
      %v250 = vld [vmem:[%s232 + $0x8] sm:$0xff]
      %v251 = vld [vmem:[%s232 + $0x10] sm:$0xff]
      %v252 = vld [vmem:[%s232 + $0x18] sm:$0xff]
      %257 = vrot.lane.b32.xlu0 %v249, 127
      %v258 = vpop.permute.xlu0 %257
      %259 = vrot.lane.b32.xlu0 %v250, 127
      %v260 = vpop.permute.xlu0 %259
      %261 = vrot.lane.b32.xlu0 %v251, 127
      %v262 = vpop.permute.xlu0 %261
      %263 = vrot.lane.b32.xlu0 %v252, 127
      %v264 = vpop.permute.xlu0 %263
      %269 = vrot.lane.b32.xlu0 %v249, 126
      %v270 = vpop.permute.xlu0 %269
      %271 = vrot.lane.b32.xlu0 %v250, 126
      %v272 = vpop.permute.xlu0 %271
      %273 = vrot.lane.b32.xlu0 %v251, 126
      %v274 = vpop.permute.xlu0 %273
      %275 = vrot.lane.b32.xlu0 %v252, 126
      %v276 = vpop.permute.xlu0 %275
      %v281 = vld [vmem:[%s1] sm:$0xff]
      %v282 = vld [vmem:[%s1 + $0x8] sm:$0xff]
      %v283 = vld [vmem:[%s1 + $0x10] sm:$0xff]
      %v284 = vld [vmem:[%s1 + $0x18] sm:$0xff]
      %v285 = vld [vmem:[%s2] sm:$0xff]
      %v286 = vld [vmem:[%s2 + $0x8] sm:$0xff]
      %v287 = vld [vmem:[%s2 + $0x10] sm:$0xff]
      %v288 = vld [vmem:[%s2 + $0x18] sm:$0xff]
      %290 = vset.pattern.permute.xlu0 0
      %291 = vperm.xlu0 %290, %v285
      %v292 = vpop.permute.xlu0 %291
      %295 = vset.pattern.permute.xlu0 0
      %296 = vperm.xlu0 %295, %v286
      %v297 = vpop.permute.xlu0 %296
      %300 = vset.pattern.permute.xlu0 0
      %301 = vperm.xlu0 %300, %v287
      %v302 = vpop.permute.xlu0 %301
      %305 = vset.pattern.permute.xlu0 0
      %306 = vperm.xlu0 %305, %v288
      %v307 = vpop.permute.xlu0 %306
      %vm309 = vcmask 785408
      %v311 = vsel %vm309, %v281, 0
      %v314 = vsel %vm309, %v282, 0
      %v317 = vsel %vm309, %v283, 0
      %v320 = vsel %vm309, %v284, 0
      %322 = vmatpush.msra.mxu0 0.0
      %323 = vmatpush.msra.mxu0 0.0
      %324 = vmatpush.msra.mxu0 0.0
      %325 = vmatpush.msra.mxu0 0.0
      %326 = vmatpush.msra.mxu0 %v276
      %327 = vmatpush.msra.mxu0 %v274
      %328 = vmatpush.msra.mxu0 %v272
      %329 = vmatpush.msra.mxu0 %v270
      %330 = vmatpush.msra.mxu0 %v264
      %331 = vmatpush.msra.mxu0 %v262
      %332 = vmatpush.msra.mxu0 %v260
      %333 = vmatpush.msra.mxu0 %v258
      %334 = vmatpush.msra.mxu0 %v252
      %335 = vmatpush.msra.mxu0 %v251
      %336 = vmatpush.msra.mxu0 %v250
      %337 = vmatpush.msra.mxu0 %v249
      %338 = vmatmul.f32.gmra.mxu0 %v311
      %v339 = vpop.f32.mrf.mxu0
      %v340 = vadd.f32 %v292, %v339
      %341 = vmatmul.f32.gmra.mxu0 %v314
      %v342 = vpop.f32.mrf.mxu0
      %v343 = vadd.f32 %v297, %v342
      %344 = vmatmul.f32.gmra.mxu0 %v317
      %v345 = vpop.f32.mrf.mxu0
      %v346 = vadd.f32 %v302, %v345
      %347 = vmatmul.f32.gmra.mxu0 %v320
      %v348 = vpop.f32.mrf.mxu0
      %v349 = vadd.f32 %v307, %v348
      %350 = vdwg.mxu0
      %v351 = vld [vmem:[%s240] sm:$0xff]
      %v352 = vld [vmem:[%s240 + $0x8] sm:$0xff]
      %v353 = vld [vmem:[%s240 + $0x10] sm:$0xff]
      %v354 = vld [vmem:[%s240 + $0x18] sm:$0xff]
      %v355 = vadd.f32 %v340, %v351
      %v356 = vadd.f32 %v343, %v352
      %v357 = vadd.f32 %v346, %v353
      %v358 = vadd.f32 %v349, %v354
      %vm359 = vcmask 130048
      %360 = vst.msk [vmem:[%s248] sm:$0xff] %vm359, %v355
      %361 = vst.msk [vmem:[%s248 + $0x8] sm:$0xff] %vm359, %v356
      %362 = vst.msk [vmem:[%s248 + $0x10] sm:$0xff] %vm359, %v357
      %363 = vst.msk [vmem:[%s248 + $0x18] sm:$0xff] %vm359, %v358
      %p364 = scmp.lt.s32.totalorder %s19, 1
      %s365 = scalar_select %p364, %s19, 1
      %p366 = scmp.lt.s32.totalorder %s20, 0
      %s367 = scalar_select %p366, %s20, 0
      %s368 = smul.addr %s365, 4
      %s369 = sadd.s32 %s367, %s368
      %s370 = smul.addr %s369, 8
      %s371 = scalar_lea.vmem %s4, %s370
      // Predicated region
      $region37: #{forward.29} parent=35 // pred_check
        %p372 = pneg %p143
      $region38: #{forward.29} parent=35 // pred_check_branch
        %374 = sbr.rel (%p372) target = $region40
      $region39: #{forward.29} parent=35 // pred_region
        _
      $region40: #{forward.29} parent=35 // pred_fallthru
        _
    $region36: #{forward.29} parent=5 // pred_fallthru
      _
    %p375 = scmp.le.s32.totalorder 2, %s10
    // Predicated region
    $region41: #{forward.29} parent=5 // pred_check
      %p376 = pneg %p375
    $region42: #{forward.29} parent=5 // pred_check_branch
      %378 = sbr.rel (%p376) target = $region44
    $region43: #{forward.29} parent=5 // pred_region
      %s379 = ssub.s32 %s10, 2
      // Predicated region
      $region45: #{forward.29} parent=43 // pred_check
        %p380 = pneg %p149
      $region46: #{forward.29} parent=43 // pred_check_branch
        %382 = sbr.rel (%p380) target = $region48
      $region47: #{forward.29} parent=43 // pred_region
        %p383 = scmp.lt.s32.totalorder %s21, 1
        %s384 = scalar_select %p383, %s21, 1
        %p385 = scmp.lt.s32.totalorder %s22, 0
        %s386 = scalar_select %p385, %s22, 0
        %s387 = smul.addr %s384, 4
        %s388 = sadd.s32 %s386, %s387
        %s389 = smul.addr %s388, 8
        %s390 = scalar_lea.vmem %s4, %s389
      $region48: #{forward.29} parent=43 // pred_fallthru
        _
    $region44: #{forward.29} parent=5 // pred_fallthru
      _
  $region6: #{forward.29} parent=0 // loop_footer
    %s14 = sadd.s32 1, %s10
  $region7: #{forward.29} parent=0 // loop_footer_branch
    %9 = sbr.rel target = $region3
  $region8: #{forward.29} parent=0 // loop_exit
    _

// kernel: forward.35
$region0: #{forward.35}
  #allocation0 [shape = 'u32[]', space=smem, size = 0x4, offset = 0x4, fixed_abs, tag = 'smem constant byte address 0x4 - core index']
  #allocation1 [shape = 'u32[72,128]{1,0:T(1,128)}', space=vmem, size = 0x9000, scoped, tag = 'internal scratch']
  %s0 = inlined_call_operand.vmem [shape: f32[2,32,17], index: 0, kind: input, shape index: {}]
  %s1 = inlined_call_operand.vmem [shape: f32[16,64], index: 1, kind: input, shape index: {}]
  %s2 = inlined_call_operand.vmem [shape: f32[16,1], index: 2, kind: input, shape index: {}]
  %s3 = inlined_call_operand.vmem [shape: f32[2,16,16], index: 3, kind: output, shape index: {}]
  %s4 = sld [smem:[#allocation0]]
  $region45: #{forward.35} parent=0
    _
  %s6 = ssub.s32 1, %s4
  %s7 = scalar_select 0, %s6, %s4
  loop: start=0, step=1, limit=4
  $region2: #{forward.35} parent=0 // loop_pre_header
    _
  $region3: #{forward.35} parent=0 // loop_header
    %s9 = sphi 0, %s13
    %p10 = scmp.ge.s32.totalorder %s9, 4
    %s16 = sphi 0, %s28
    %s17 = sphi 0, %s24
    %s18 = sphi 0, %s16
    %s19 = sphi 0, %s17
    %s20 = sphi 0, %s18
    %s21 = sphi 0, %s19
    %s31 = sphi 0, %s33
    %s34 = sphi 0, %s31
    %s35 = sphi 0, %s34
    %s51 = sphi 0, %s35
    %s55 = sphi 0, %s55
    %s57 = sphi 0, %s55
    %s58 = sphi 0, %s57
    %s72 = sphi 0, %s58
    %s76 = sphi 0, %s76
    %s78 = sphi 0, %s76
    %s79 = sphi 0, %s78
    %s93 = sphi 0, %s79
    %s101 = sphi 0, %s103
    %s104 = sphi 0, %s101
    %s105 = sphi 0, %s104
    %s121 = sphi 0, %s105
  $region4: #{forward.35} parent=0 // loop_header_branch
    %12 = sbr.rel (%p10) target = $region8
  $region5: #{forward.35} parent=0 // loop_body
    %s14 = ssub.s32 %s9, 1
    %s15 = ssub.s32 %s9, 2
    %s22 = sadd.s32 1, %s17
    %p23 = scmp.ge.s32.totalorder %s22, 1
    %s24 = scalar_select %p23, 0, %s22
    %s25 = sadd.s32 1, %s16
    %s26 = scalar_select %p23, %s25, %s16
    %p27 = scmp.ge.s32.totalorder %s26, 2
    %s28 = scalar_select %p27, 0, %s26
    %s29 = ssub.s32 %s16, %s28
    %p30 = scmp.eq.s32.totalorder %s29, 0
    %s32 = sadd.s32 %s31, 1
    %s33 = scalar_select %p30, %s31, %s32
    %p36 = pneg %p30
    %p37 = scmp.eq.s32.totalorder %s9, 1
    %p38 = por %p36, %p37
    %p39 = scmp.ne.s32.totalorder %s31, %s34
    %p40 = scmp.eq.s32.totalorder %s9, 0
    %p41 = por %p39, %p40
    %p42 = scmp.ne.s32.totalorder %s31, %s34
    %p43 = scmp.eq.s32.totalorder %s14, 1
    %p44 = por %p42, %p43
    %p45 = scmp.ne.s32.totalorder %s34, %s35
    %p46 = scmp.eq.s32.totalorder %s14, 0
    %p47 = por %p45, %p46
    %p48 = scmp.ne.s32.totalorder %s34, %s35
    %p49 = scmp.eq.s32.totalorder %s15, 1
    %p50 = por %p48, %p49
    %p52 = scmp.ne.s32.totalorder %s35, %s51
    %p53 = scmp.eq.s32.totalorder %s15, 0
    %p54 = por %p52, %p53
    %s56 = sadd.s32 %s55, 1
    %p59 = scmp.eq.s32.totalorder %s9, 1
    %p60 = scmp.ne.s32.totalorder %s55, %s57
    %p61 = scmp.eq.s32.totalorder %s9, 0
    %p62 = por %p60, %p61
    %p63 = scmp.ne.s32.totalorder %s55, %s57
    %p64 = scmp.eq.s32.totalorder %s14, 1
    %p65 = por %p63, %p64
    %p66 = scmp.ne.s32.totalorder %s57, %s58
    %p67 = scmp.eq.s32.totalorder %s14, 0
    %p68 = por %p66, %p67
    %p69 = scmp.ne.s32.totalorder %s57, %s58
    %p70 = scmp.eq.s32.totalorder %s15, 1
    %p71 = por %p69, %p70
    %p73 = scmp.ne.s32.totalorder %s58, %s72
    %p74 = scmp.eq.s32.totalorder %s15, 0
    %p75 = por %p73, %p74
    %s77 = sadd.s32 %s76, 1
    %p80 = scmp.eq.s32.totalorder %s9, 1
    %p81 = scmp.ne.s32.totalorder %s76, %s78
    %p82 = scmp.eq.s32.totalorder %s9, 0
    %p83 = por %p81, %p82
    %p84 = scmp.ne.s32.totalorder %s76, %s78
    %p85 = scmp.eq.s32.totalorder %s14, 1
    %p86 = por %p84, %p85
    %p87 = scmp.ne.s32.totalorder %s78, %s79
    %p88 = scmp.eq.s32.totalorder %s14, 0
    %p89 = por %p87, %p88
    %p90 = scmp.ne.s32.totalorder %s78, %s79
    %p91 = scmp.eq.s32.totalorder %s15, 1
    %p92 = por %p90, %p91
    %p94 = scmp.ne.s32.totalorder %s79, %s93
    %p95 = scmp.eq.s32.totalorder %s15, 0
    %p96 = por %p94, %p95
    %s97 = ssub.s32 %s16, %s28
    %s98 = ssub.s32 %s17, %s24
    %s99 = sor.u32 %s97, %s98
    %p100 = scmp.eq.s32.totalorder %s99, 0
    %s102 = sadd.s32 %s101, 1
    %s103 = scalar_select %p100, %s101, %s102
    %p106 = pneg %p100
    %p107 = scmp.eq.s32.totalorder %s9, 1
    %p108 = por %p106, %p107
    %p109 = scmp.ne.s32.totalorder %s101, %s104
    %p110 = scmp.eq.s32.totalorder %s9, 0
    %p111 = por %p109, %p110
    %p112 = scmp.ne.s32.totalorder %s101, %s104
    %p113 = scmp.eq.s32.totalorder %s14, 1
    %p114 = por %p112, %p113
    %p115 = scmp.ne.s32.totalorder %s104, %s105
    %p116 = scmp.eq.s32.totalorder %s14, 0
    %p117 = por %p115, %p116
    %p118 = scmp.ne.s32.totalorder %s104, %s105
    %p119 = scmp.eq.s32.totalorder %s15, 1
    %p120 = por %p118, %p119
    %p122 = scmp.ne.s32.totalorder %s105, %s121
    %p123 = scmp.eq.s32.totalorder %s15, 0
    %p124 = por %p122, %p123
    %p125 = scmp.le.s32.totalorder 1, %s9
    %p126 = scmp.lt.s32.totalorder %s9, 3
    %p127 = pnand %p125, %p126
    %p128 = pneg %p127
    // Predicated region
    $region9: #{forward.35} parent=5 // pred_check
      _
    $region10: #{forward.35} parent=5 // pred_check_branch
      %130 = sbr.rel (%p127) target = $region12
    $region11: #{forward.35} parent=5 // pred_region
      %s131 = ssub.s32 %s9, 1
      // Predicated region
      $region13: #{forward.35} parent=11 // pred_check
        %p132 = pneg %p68
      $region14: #{forward.35} parent=11 // pred_check_branch
        %134 = sbr.rel (%p132) target = $region16
      $region15: #{forward.35} parent=11 // pred_region
        _
      $region16: #{forward.35} parent=11 // pred_fallthru
        _
      // Predicated region
      $region17: #{forward.35} parent=11 // pred_check
        %p135 = pneg %p89
      $region18: #{forward.35} parent=11 // pred_check_branch
        %137 = sbr.rel (%p135) target = $region20
      $region19: #{forward.35} parent=11 // pred_region
        _
      $region20: #{forward.35} parent=11 // pred_fallthru
        _
    $region12: #{forward.35} parent=5 // pred_fallthru
      _
    %p138 = scmp.lt.s32.totalorder %s9, 2
    // Predicated region
    $region21: #{forward.35} parent=5 // pred_check
      %p139 = pneg %p138
    $region22: #{forward.35} parent=5 // pred_check_branch
      %141 = sbr.rel (%p139) target = $region24
    $region23: #{forward.35} parent=5 // pred_region
      // Predicated region
      $region25: #{forward.35} parent=23 // pred_check
        %p142 = pneg %p41
      $region26: #{forward.35} parent=23 // pred_check_branch
        %144 = sbr.rel (%p142) target = $region28
      $region27: #{forward.35} parent=23 // pred_region
        %p145 = scmp.lt.s32.totalorder %s16, 1
        %s146 = scalar_select %p145, %s16, 1
        %s147 = smul.addr %s146, 4
        %s148 = smul.addr %s147, 8
        %s149 = scalar_lea.vmem %s0, %s148
      $region28: #{forward.35} parent=23 // pred_fallthru
        _
    $region24: #{forward.35} parent=5 // pred_fallthru
      _
    %p150 = scmp.le.s32.totalorder 1, %s9
    %p151 = scmp.lt.s32.totalorder %s9, 3
    %p152 = pnand %p150, %p151
    %p153 = pneg %p152
    // Predicated region
    $region29: #{forward.35} parent=5 // pred_check
      _
    $region30: #{forward.35} parent=5 // pred_check_branch
      %155 = sbr.rel (%p152) target = $region32
    $region31: #{forward.35} parent=5 // pred_region
      %s156 = ssub.s32 %s9, 1
      %p157 = scmp.lt.s32.totalorder %s18, 1
      %s158 = scalar_select %p157, %s18, 1
      %s159 = smul.addr %s158, 4
      %s160 = smul.addr %s159, 8
      %s161 = scalar_lea.vmem %s0, %s160
      %p162 = pneg %p47
      %p163 = pneg %p44
      %p164 = pneg %p68
      %p165 = pneg %p65
      %p166 = pneg %p89
      %p167 = pneg %p86
      %p168 = pneg %p117
      %p169 = pneg %p114
      %p170 = scmp.lt.s32.totalorder %s18, 1
      %s171 = scalar_select %p170, %s18, 1
      %p172 = scmp.lt.s32.totalorder %s19, 0
      %s173 = scalar_select %p172, %s19, 0
      %s174 = smul.addr %s171, 2
      %s175 = sadd.s32 %s173, %s174
      %s176 = smul.addr %s175, 8
      %s177 = scalar_lea.vmem %s3, %s176
      %p178 = scmp.lt.s32.totalorder %s18, 1
      %s179 = scalar_select %p178, %s18, 1
      %s180 = smul.addr %s179, 4
      %s181 = smul.addr %s180, 8
      %s182 = scalar_lea.vmem %s0, %s181
      %p183 = scmp.lt.s32.totalorder %s18, 1
      %s184 = scalar_select %p183, %s18, 1
      %p185 = scmp.lt.s32.totalorder %s19, 0
      %s186 = scalar_select %p185, %s19, 0
      %s187 = smul.addr %s184, 2
      %s188 = sadd.s32 %s186, %s187
      %s189 = smul.addr %s188, 8
      %s190 = scalar_lea.vmem %s3, %s189
      %v191 = vld [vmem:[%s182] sm:$0xff]
      %v192 = vld [vmem:[%s182 + $0x8] sm:$0xff]
      %v193 = vld [vmem:[%s182 + $0x10] sm:$0xff]
      %v194 = vld [vmem:[%s182 + $0x18] sm:$0xff]
      %199 = vrot.lane.b32.xlu0 %v191, 127
      %v200 = vpop.permute.xlu0 %199
      %201 = vrot.lane.b32.xlu0 %v192, 127
      %v202 = vpop.permute.xlu0 %201
      %203 = vrot.lane.b32.xlu0 %v193, 127
      %v204 = vpop.permute.xlu0 %203
      %205 = vrot.lane.b32.xlu0 %v194, 127
      %v206 = vpop.permute.xlu0 %205
      %v211 = vld [vmem:[%s1] sm:$0xff]
      %v212 = vld [vmem:[%s1 + $0x8] sm:$0xff]
      %v213 = vld [vmem:[%s2] sm:$0xff]
      %v214 = vld [vmem:[%s2 + $0x8] sm:$0xff]
      %216 = vset.pattern.permute.xlu0 0
      %217 = vperm.xlu0 %216, %v213
      %v218 = vpop.permute.xlu0 %217
      %221 = vset.pattern.permute.xlu0 0
      %222 = vperm.xlu0 %221, %v214
      %v223 = vpop.permute.xlu0 %222
      %vm225 = vcmask 523264
      %v227 = vsel %vm225, %v211, 0
      %v230 = vsel %vm225, %v212, 0
      %232 = vmatpush.msra.mxu0 0.0
      %233 = vmatpush.msra.mxu0 0.0
      %234 = vmatpush.msra.mxu0 0.0
      %235 = vmatpush.msra.mxu0 0.0
      %236 = vmatpush.msra.mxu0 0.0
      %237 = vmatpush.msra.mxu0 0.0
      %238 = vmatpush.msra.mxu0 0.0
      %239 = vmatpush.msra.mxu0 0.0
      %240 = vmatpush.msra.mxu0 %v206
      %241 = vmatpush.msra.mxu0 %v204
      %242 = vmatpush.msra.mxu0 %v202
      %243 = vmatpush.msra.mxu0 %v200
      %244 = vmatpush.msra.mxu0 %v194
      %245 = vmatpush.msra.mxu0 %v193
      %246 = vmatpush.msra.mxu0 %v192
      %247 = vmatpush.msra.mxu0 %v191
      %248 = vmatmul.f32.gmra.mxu0 %v227
      %v249 = vpop.f32.mrf.mxu0
      %v250 = vadd.f32 %v218, %v249
      %251 = vmatmul.f32.gmra.mxu0 %v230
      %v252 = vpop.f32.mrf.mxu0
      %v253 = vadd.f32 %v223, %v252
      %254 = vdwg.mxu0
      %vm255 = vcmask 130048
      %256 = vst.msk [vmem:[%s190] sm:$0xff] %vm255, %v250
      %257 = vst.msk [vmem:[%s190 + $0x8] sm:$0xff] %vm255, %v253
      %p258 = scmp.lt.s32.totalorder %s18, 1
      %s259 = scalar_select %p258, %s18, 1
      %p260 = scmp.lt.s32.totalorder %s19, 0
      %s261 = scalar_select %p260, %s19, 0
      %s262 = smul.addr %s259, 2
      %s263 = sadd.s32 %s261, %s262
      %s264 = smul.addr %s263, 8
      %s265 = scalar_lea.vmem %s3, %s264
      // Predicated region
      $region33: #{forward.35} parent=31 // pred_check
        %p266 = pneg %p114
      $region34: #{forward.35} parent=31 // pred_check_branch
        %268 = sbr.rel (%p266) target = $region36
      $region35: #{forward.35} parent=31 // pred_region
        _
      $region36: #{forward.35} parent=31 // pred_fallthru
        _
    $region32: #{forward.35} parent=5 // pred_fallthru
      _
    %p269 = scmp.le.s32.totalorder 2, %s9
    // Predicated region
    $region37: #{forward.35} parent=5 // pred_check
      %p270 = pneg %p269
    $region38: #{forward.35} parent=5 // pred_check_branch
      %272 = sbr.rel (%p270) target = $region40
    $region39: #{forward.35} parent=5 // pred_region
      %s273 = ssub.s32 %s9, 2
      // Predicated region
      $region41: #{forward.35} parent=39 // pred_check
        %p274 = pneg %p120
      $region42: #{forward.35} parent=39 // pred_check_branch
        %276 = sbr.rel (%p274) target = $region44
      $region43: #{forward.35} parent=39 // pred_region
        %p277 = scmp.lt.s32.totalorder %s20, 1
        %s278 = scalar_select %p277, %s20, 1
        %p279 = scmp.lt.s32.totalorder %s21, 0
        %s280 = scalar_select %p279, %s21, 0
        %s281 = smul.addr %s278, 2
        %s282 = sadd.s32 %s280, %s281
        %s283 = smul.addr %s282, 8
        %s284 = scalar_lea.vmem %s3, %s283
      $region44: #{forward.35} parent=39 // pred_fallthru
        _
    $region40: #{forward.35} parent=5 // pred_fallthru
      _
  $region6: #{forward.35} parent=0 // loop_footer
    %s13 = sadd.s32 1, %s9
  $region7: #{forward.35} parent=0 // loop_footer_branch
    %8 = sbr.rel target = $region3
  $region8: #{forward.35} parent=0 // loop_exit
    _

// kernel: forward.36
$region0: #{forward.36}
  #allocation0 [shape = 'u32[]', space=smem, size = 0x4, offset = 0x4, fixed_abs, tag = 'smem constant byte address 0x4 - core index']
  #allocation1 [shape = 'u32[72,128]{1,0:T(1,128)}', space=vmem, size = 0x9000, scoped, tag = 'internal scratch']
  %s0 = inlined_call_operand.vmem [shape: f32[2,16,42], index: 0, kind: input, shape index: {}]
  %s1 = inlined_call_operand.vmem [shape: f32[16,1], index: 1, kind: input, shape index: {}]
  %s2 = inlined_call_operand.vmem [shape: f32[16,1], index: 2, kind: input, shape index: {}]
  %s3 = inlined_call_operand.vmem [shape: f32[2,16,1], index: 3, kind: input, shape index: {}]
  %s4 = inlined_call_operand.vmem [shape: f32[2,16,1], index: 4, kind: input, shape index: {}]
  %s5 = inlined_call_operand.vmem [shape: f32[2,16,32], index: 5, kind: output, shape index: {}]
  %s6 = sld [smem:[#allocation0]]
  $region53: #{forward.36} parent=0
    _
  %s8 = ssub.s32 1, %s6
  %s9 = scalar_select 0, %s8, %s6
  loop: start=0, step=1, limit=4
  $region2: #{forward.36} parent=0 // loop_pre_header
    _
  $region3: #{forward.36} parent=0 // loop_header
    %s11 = sphi 0, %s15
    %p12 = scmp.ge.s32.totalorder %s11, 4
    %s18 = sphi 0, %s30
    %s19 = sphi 0, %s26
    %s20 = sphi 0, %s18
    %s21 = sphi 0, %s19
    %s22 = sphi 0, %s20
    %s23 = sphi 0, %s21
    %s33 = sphi 0, %s35
    %s36 = sphi 0, %s33
    %s37 = sphi 0, %s36
    %s53 = sphi 0, %s37
    %s57 = sphi 0, %s57
    %s59 = sphi 0, %s57
    %s60 = sphi 0, %s59
    %s74 = sphi 0, %s60
    %s78 = sphi 0, %s78
    %s80 = sphi 0, %s78
    %s81 = sphi 0, %s80
    %s95 = sphi 0, %s81
    %s101 = sphi 0, %s103
    %s104 = sphi 0, %s101
    %s105 = sphi 0, %s104
    %s121 = sphi 0, %s105
    %s127 = sphi 0, %s129
    %s130 = sphi 0, %s127
    %s131 = sphi 0, %s130
    %s147 = sphi 0, %s131
    %s155 = sphi 0, %s157
    %s158 = sphi 0, %s155
    %s159 = sphi 0, %s158
    %s175 = sphi 0, %s159
  $region4: #{forward.36} parent=0 // loop_header_branch
    %14 = sbr.rel (%p12) target = $region8
  $region5: #{forward.36} parent=0 // loop_body
    %s16 = ssub.s32 %s11, 1
    %s17 = ssub.s32 %s11, 2
    %s24 = sadd.s32 1, %s19
    %p25 = scmp.ge.s32.totalorder %s24, 1
    %s26 = scalar_select %p25, 0, %s24
    %s27 = sadd.s32 1, %s18
    %s28 = scalar_select %p25, %s27, %s18
    %p29 = scmp.ge.s32.totalorder %s28, 2
    %s30 = scalar_select %p29, 0, %s28
    %s31 = ssub.s32 %s18, %s30
    %p32 = scmp.eq.s32.totalorder %s31, 0
    %s34 = sadd.s32 %s33, 1
    %s35 = scalar_select %p32, %s33, %s34
    %p38 = pneg %p32
    %p39 = scmp.eq.s32.totalorder %s11, 1
    %p40 = por %p38, %p39
    %p41 = scmp.ne.s32.totalorder %s33, %s36
    %p42 = scmp.eq.s32.totalorder %s11, 0
    %p43 = por %p41, %p42
    %p44 = scmp.ne.s32.totalorder %s33, %s36
    %p45 = scmp.eq.s32.totalorder %s16, 1
    %p46 = por %p44, %p45
    %p47 = scmp.ne.s32.totalorder %s36, %s37
    %p48 = scmp.eq.s32.totalorder %s16, 0
    %p49 = por %p47, %p48
    %p50 = scmp.ne.s32.totalorder %s36, %s37
    %p51 = scmp.eq.s32.totalorder %s17, 1
    %p52 = por %p50, %p51
    %p54 = scmp.ne.s32.totalorder %s37, %s53
    %p55 = scmp.eq.s32.totalorder %s17, 0
    %p56 = por %p54, %p55
    %s58 = sadd.s32 %s57, 1
    %p61 = scmp.eq.s32.totalorder %s11, 1
    %p62 = scmp.ne.s32.totalorder %s57, %s59
    %p63 = scmp.eq.s32.totalorder %s11, 0
    %p64 = por %p62, %p63
    %p65 = scmp.ne.s32.totalorder %s57, %s59
    %p66 = scmp.eq.s32.totalorder %s16, 1
    %p67 = por %p65, %p66
    %p68 = scmp.ne.s32.totalorder %s59, %s60
    %p69 = scmp.eq.s32.totalorder %s16, 0
    %p70 = por %p68, %p69
    %p71 = scmp.ne.s32.totalorder %s59, %s60
    %p72 = scmp.eq.s32.totalorder %s17, 1
    %p73 = por %p71, %p72
    %p75 = scmp.ne.s32.totalorder %s60, %s74
    %p76 = scmp.eq.s32.totalorder %s17, 0
    %p77 = por %p75, %p76
    %s79 = sadd.s32 %s78, 1
    %p82 = scmp.eq.s32.totalorder %s11, 1
    %p83 = scmp.ne.s32.totalorder %s78, %s80
    %p84 = scmp.eq.s32.totalorder %s11, 0
    %p85 = por %p83, %p84
    %p86 = scmp.ne.s32.totalorder %s78, %s80
    %p87 = scmp.eq.s32.totalorder %s16, 1
    %p88 = por %p86, %p87
    %p89 = scmp.ne.s32.totalorder %s80, %s81
    %p90 = scmp.eq.s32.totalorder %s16, 0
    %p91 = por %p89, %p90
    %p92 = scmp.ne.s32.totalorder %s80, %s81
    %p93 = scmp.eq.s32.totalorder %s17, 1
    %p94 = por %p92, %p93
    %p96 = scmp.ne.s32.totalorder %s81, %s95
    %p97 = scmp.eq.s32.totalorder %s17, 0
    %p98 = por %p96, %p97
    %s99 = ssub.s32 %s18, %s30
    %p100 = scmp.eq.s32.totalorder %s99, 0
    %s102 = sadd.s32 %s101, 1
    %s103 = scalar_select %p100, %s101, %s102
    %p106 = pneg %p100
    %p107 = scmp.eq.s32.totalorder %s11, 1
    %p108 = por %p106, %p107
    %p109 = scmp.ne.s32.totalorder %s101, %s104
    %p110 = scmp.eq.s32.totalorder %s11, 0
    %p111 = por %p109, %p110
    %p112 = scmp.ne.s32.totalorder %s101, %s104
    %p113 = scmp.eq.s32.totalorder %s16, 1
    %p114 = por %p112, %p113
    %p115 = scmp.ne.s32.totalorder %s104, %s105
    %p116 = scmp.eq.s32.totalorder %s16, 0
    %p117 = por %p115, %p116
    %p118 = scmp.ne.s32.totalorder %s104, %s105
    %p119 = scmp.eq.s32.totalorder %s17, 1
    %p120 = por %p118, %p119
    %p122 = scmp.ne.s32.totalorder %s105, %s121
    %p123 = scmp.eq.s32.totalorder %s17, 0
    %p124 = por %p122, %p123
    %s125 = ssub.s32 %s18, %s30
    %p126 = scmp.eq.s32.totalorder %s125, 0
    %s128 = sadd.s32 %s127, 1
    %s129 = scalar_select %p126, %s127, %s128
    %p132 = pneg %p126
    %p133 = scmp.eq.s32.totalorder %s11, 1
    %p134 = por %p132, %p133
    %p135 = scmp.ne.s32.totalorder %s127, %s130
    %p136 = scmp.eq.s32.totalorder %s11, 0
    %p137 = por %p135, %p136
    %p138 = scmp.ne.s32.totalorder %s127, %s130
    %p139 = scmp.eq.s32.totalorder %s16, 1
    %p140 = por %p138, %p139
    %p141 = scmp.ne.s32.totalorder %s130, %s131
    %p142 = scmp.eq.s32.totalorder %s16, 0
    %p143 = por %p141, %p142
    %p144 = scmp.ne.s32.totalorder %s130, %s131
    %p145 = scmp.eq.s32.totalorder %s17, 1
    %p146 = por %p144, %p145
    %p148 = scmp.ne.s32.totalorder %s131, %s147
    %p149 = scmp.eq.s32.totalorder %s17, 0
    %p150 = por %p148, %p149
    %s151 = ssub.s32 %s18, %s30
    %s152 = ssub.s32 %s19, %s26
    %s153 = sor.u32 %s151, %s152
    %p154 = scmp.eq.s32.totalorder %s153, 0
    %s156 = sadd.s32 %s155, 1
    %s157 = scalar_select %p154, %s155, %s156
    %p160 = pneg %p154
    %p161 = scmp.eq.s32.totalorder %s11, 1
    %p162 = por %p160, %p161
    %p163 = scmp.ne.s32.totalorder %s155, %s158
    %p164 = scmp.eq.s32.totalorder %s11, 0
    %p165 = por %p163, %p164
    %p166 = scmp.ne.s32.totalorder %s155, %s158
    %p167 = scmp.eq.s32.totalorder %s16, 1
    %p168 = por %p166, %p167
    %p169 = scmp.ne.s32.totalorder %s158, %s159
    %p170 = scmp.eq.s32.totalorder %s16, 0
    %p171 = por %p169, %p170
    %p172 = scmp.ne.s32.totalorder %s158, %s159
    %p173 = scmp.eq.s32.totalorder %s17, 1
    %p174 = por %p172, %p173
    %p176 = scmp.ne.s32.totalorder %s159, %s175
    %p177 = scmp.eq.s32.totalorder %s17, 0
    %p178 = por %p176, %p177
    %p179 = scmp.le.s32.totalorder 1, %s11
    %p180 = scmp.lt.s32.totalorder %s11, 3
    %p181 = pnand %p179, %p180
    %p182 = pneg %p181
    // Predicated region
    $region9: #{forward.36} parent=5 // pred_check
      _
    $region10: #{forward.36} parent=5 // pred_check_branch
      %184 = sbr.rel (%p181) target = $region12
    $region11: #{forward.36} parent=5 // pred_region
      %s185 = ssub.s32 %s11, 1
      // Predicated region
      $region13: #{forward.36} parent=11 // pred_check
        %p186 = pneg %p70
      $region14: #{forward.36} parent=11 // pred_check_branch
        %188 = sbr.rel (%p186) target = $region16
      $region15: #{forward.36} parent=11 // pred_region
        _
      $region16: #{forward.36} parent=11 // pred_fallthru
        _
      // Predicated region
      $region17: #{forward.36} parent=11 // pred_check
        %p189 = pneg %p91
      $region18: #{forward.36} parent=11 // pred_check_branch
        %191 = sbr.rel (%p189) target = $region20
      $region19: #{forward.36} parent=11 // pred_region
        _
      $region20: #{forward.36} parent=11 // pred_fallthru
        _
    $region12: #{forward.36} parent=5 // pred_fallthru
      _
    %p192 = scmp.lt.s32.totalorder %s11, 2
    // Predicated region
    $region21: #{forward.36} parent=5 // pred_check
      %p193 = pneg %p192
    $region22: #{forward.36} parent=5 // pred_check_branch
      %195 = sbr.rel (%p193) target = $region24
    $region23: #{forward.36} parent=5 // pred_region
      // Predicated region
      $region25: #{forward.36} parent=23 // pred_check
        %p196 = pneg %p43
      $region26: #{forward.36} parent=23 // pred_check_branch
        %198 = sbr.rel (%p196) target = $region28
      $region27: #{forward.36} parent=23 // pred_region
        %p199 = scmp.lt.s32.totalorder %s18, 1
        %s200 = scalar_select %p199, %s18, 1
        %s201 = smul.addr %s200, 2
        %s202 = smul.addr %s201, 8
        %s203 = scalar_lea.vmem %s0, %s202
      $region28: #{forward.36} parent=23 // pred_fallthru
        _
      // Predicated region
      $region29: #{forward.36} parent=23 // pred_check
        %p204 = pneg %p111
      $region30: #{forward.36} parent=23 // pred_check_branch
        %206 = sbr.rel (%p204) target = $region32
      $region31: #{forward.36} parent=23 // pred_region
        %p207 = scmp.lt.s32.totalorder %s18, 1
        %s208 = scalar_select %p207, %s18, 1
        %s209 = smul.addr %s208, 2
        %s210 = smul.addr %s209, 8
        %s211 = scalar_lea.vmem %s3, %s210
      $region32: #{forward.36} parent=23 // pred_fallthru
        _
      // Predicated region
      $region33: #{forward.36} parent=23 // pred_check
        %p212 = pneg %p137
      $region34: #{forward.36} parent=23 // pred_check_branch
        %214 = sbr.rel (%p212) target = $region36
      $region35: #{forward.36} parent=23 // pred_region
        %p215 = scmp.lt.s32.totalorder %s18, 1
        %s216 = scalar_select %p215, %s18, 1
        %s217 = smul.addr %s216, 2
        %s218 = smul.addr %s217, 8
        %s219 = scalar_lea.vmem %s4, %s218
      $region36: #{forward.36} parent=23 // pred_fallthru
        _
    $region24: #{forward.36} parent=5 // pred_fallthru
      _
    %p220 = scmp.le.s32.totalorder 1, %s11
    %p221 = scmp.lt.s32.totalorder %s11, 3
    %p222 = pnand %p220, %p221
    %p223 = pneg %p222
    // Predicated region
    $region37: #{forward.36} parent=5 // pred_check
      _
    $region38: #{forward.36} parent=5 // pred_check_branch
      %225 = sbr.rel (%p222) target = $region40
    $region39: #{forward.36} parent=5 // pred_region
      %s226 = ssub.s32 %s11, 1
      %p227 = scmp.lt.s32.totalorder %s20, 1
      %s228 = scalar_select %p227, %s20, 1
      %s229 = smul.addr %s228, 2
      %s230 = smul.addr %s229, 8
      %s231 = scalar_lea.vmem %s0, %s230
      %p232 = pneg %p49
      %p233 = pneg %p46
      %p234 = pneg %p70
      %p235 = pneg %p67
      %p236 = pneg %p91
      %p237 = pneg %p88
      %p238 = scmp.lt.s32.totalorder %s20, 1
      %s239 = scalar_select %p238, %s20, 1
      %s240 = smul.addr %s239, 2
      %s241 = smul.addr %s240, 8
      %s242 = scalar_lea.vmem %s3, %s241
      %p243 = pneg %p117
      %p244 = pneg %p114
      %p245 = scmp.lt.s32.totalorder %s20, 1
      %s246 = scalar_select %p245, %s20, 1
      %s247 = smul.addr %s246, 2
      %s248 = smul.addr %s247, 8
      %s249 = scalar_lea.vmem %s4, %s248
      %p250 = pneg %p143
      %p251 = pneg %p140
      %p252 = pneg %p171
      %p253 = pneg %p168
      %p254 = scmp.lt.s32.totalorder %s20, 1
      %s255 = scalar_select %p254, %s20, 1
      %p256 = scmp.lt.s32.totalorder %s21, 0
      %s257 = scalar_select %p256, %s21, 0
      %s258 = smul.addr %s255, 2
      %s259 = sadd.s32 %s257, %s258
      %s260 = smul.addr %s259, 8
      %s261 = scalar_lea.vmem %s5, %s260
      %p262 = scmp.lt.s32.totalorder %s20, 1
      %s263 = scalar_select %p262, %s20, 1
      %s264 = smul.addr %s263, 2
      %s265 = smul.addr %s264, 8
      %s266 = scalar_lea.vmem %s0, %s265
      %p267 = scmp.lt.s32.totalorder %s20, 1
      %s268 = scalar_select %p267, %s20, 1
      %s269 = smul.addr %s268, 2
      %s270 = smul.addr %s269, 8
      %s271 = scalar_lea.vmem %s3, %s270
      %p272 = scmp.lt.s32.totalorder %s20, 1
      %s273 = scalar_select %p272, %s20, 1
      %s274 = smul.addr %s273, 2
      %s275 = smul.addr %s274, 8
      %s276 = scalar_lea.vmem %s4, %s275
      %p277 = scmp.lt.s32.totalorder %s20, 1
      %s278 = scalar_select %p277, %s20, 1
      %p279 = scmp.lt.s32.totalorder %s21, 0
      %s280 = scalar_select %p279, %s21, 0
      %s281 = smul.addr %s278, 2
      %s282 = sadd.s32 %s280, %s281
      %s283 = smul.addr %s282, 8
      %s284 = scalar_lea.vmem %s5, %s283
      %v285 = vld [vmem:[%s266] sm:$0xff]
      %v286 = vld [vmem:[%s266 + $0x8] sm:$0xff]
      %v287 = vmul.f32 %v285, 0.004057933
      %v288 = vmul.f32 %v286, 0.004057933
      %v289 = vadd.f32 %v287, 0.0
      %v290 = vadd.f32 %v288, 0.0
      %v291 = vmul.f32 %v285, 0.018778928
      %v292 = vmul.f32 %v286, 0.018778928
      %v293 = vadd.f32 %v291, 0.0
      %v294 = vadd.f32 %v292, 0.0
      %v295 = vmul.f32 %v285, -0.05108693
      %v296 = vmul.f32 %v286, -0.05108693
      %299 = vrot.lane.b32.xlu0 %v295, 127
      %v300 = vpop.permute.xlu0 %299
      %301 = vrot.lane.b32.xlu0 %v296, 127
      %v302 = vpop.permute.xlu0 %301
      %v305 = vadd.f32 %v289, %v300
      %v306 = vadd.f32 %v290, %v302
      %v307 = vmul.f32 %v285, -0.11531475
      %v308 = vmul.f32 %v286, -0.11531475
      %311 = vrot.lane.b32.xlu0 %v307, 127
      %v312 = vpop.permute.xlu0 %311
      %313 = vrot.lane.b32.xlu0 %v308, 127
      %v314 = vpop.permute.xlu0 %313
      %v317 = vadd.f32 %v293, %v312
      %v318 = vadd.f32 %v294, %v314
      %v319 = vmul.f32 %v285, 0.25714523
      %v320 = vmul.f32 %v286, 0.25714523
      %323 = vrot.lane.b32.xlu0 %v319, 126
      %v324 = vpop.permute.xlu0 %323
      %325 = vrot.lane.b32.xlu0 %v320, 126
      %v326 = vpop.permute.xlu0 %325
      %v329 = vadd.f32 %v305, %v324
      %v330 = vadd.f32 %v306, %v326
      %v331 = vmul.f32 %v285, 0.8864196
      %v332 = vmul.f32 %v286, 0.8864196
      %335 = vrot.lane.b32.xlu0 %v331, 126
      %v336 = vpop.permute.xlu0 %335
      %337 = vrot.lane.b32.xlu0 %v332, 126
      %v338 = vpop.permute.xlu0 %337
      %v341 = vadd.f32 %v317, %v336
      %v342 = vadd.f32 %v318, %v338
      %343 = vrot.lane.b32.xlu0 %v331, 125
      %v344 = vpop.permute.xlu0 %343
      %345 = vrot.lane.b32.xlu0 %v332, 125
      %v346 = vpop.permute.xlu0 %345
      %v349 = vadd.f32 %v329, %v344
      %v350 = vadd.f32 %v330, %v346
      %351 = vrot.lane.b32.xlu0 %v319, 125
      %v352 = vpop.permute.xlu0 %351
      %353 = vrot.lane.b32.xlu0 %v320, 125
      %v354 = vpop.permute.xlu0 %353
      %v357 = vadd.f32 %v341, %v352
      %v358 = vadd.f32 %v342, %v354
      %359 = vrot.lane.b32.xlu0 %v307, 124
      %v360 = vpop.permute.xlu0 %359
      %361 = vrot.lane.b32.xlu0 %v308, 124
      %v362 = vpop.permute.xlu0 %361
      %v365 = vadd.f32 %v349, %v360
      %v366 = vadd.f32 %v350, %v362
      %367 = vrot.lane.b32.xlu0 %v295, 124
      %v368 = vpop.permute.xlu0 %367
      %369 = vrot.lane.b32.xlu0 %v296, 124
      %v370 = vpop.permute.xlu0 %369
      %v373 = vadd.f32 %v357, %v368
      %v374 = vadd.f32 %v358, %v370
      %377 = vrot.lane.b32.xlu0 %v291, 123
      %v378 = vpop.permute.xlu0 %377
      %379 = vrot.lane.b32.xlu0 %v292, 123
      %v380 = vpop.permute.xlu0 %379
      %v383 = vadd.f32 %v365, %v378
      %v384 = vadd.f32 %v366, %v380
      %387 = vrot.lane.b32.xlu0 %v287, 123
      %v388 = vpop.permute.xlu0 %387
      %389 = vrot.lane.b32.xlu0 %v288, 123
      %v390 = vpop.permute.xlu0 %389
      %v393 = vadd.f32 %v373, %v388
      %v394 = vadd.f32 %v374, %v390
      %v395 = vld [vmem:[%s1] sm:$0xff]
      %v396 = vld [vmem:[%s1 + $0x8] sm:$0xff]
      %v397 = vld [vmem:[%s2] sm:$0xff]
      %v398 = vld [vmem:[%s2 + $0x8] sm:$0xff]
      %400 = vset.pattern.permute.xlu0 0
      %401 = vperm.xlu0 %400, %v395
      %v402 = vpop.permute.xlu0 %401
      %405 = vset.pattern.permute.xlu0 0
      %406 = vperm.xlu0 %405, %v396
      %v407 = vpop.permute.xlu0 %406
      %v409 = vmul.f32 %v383, %v402
      %v410 = vmul.f32 %v384, %v407
      %v411 = vand.u32 2147483647, %v409
      %vm412 = vcmp.le.f32.partialorder %v411, 0.7853982
      %vm413 = vcmp.lt.s32.totalorder %v409, 0
      %v414 = vand.u32 %v409, 2139095040
      %v415 = vshrl.u32 %v414, 23
      %v416 = vsub.s32 %v415, 127
      %v417 = vand.u32 2147483647, %v409
      %v418 = vand.u32 %v417, 8388607
      %v419 = vor.u32 %v418, 8388608
      %v420 = vsub.s32 0, %v419
      %v421 = vadd.s32 %v416, 1
      %vm422 = vcmp.gt.s32.totalorder %v421, 0
      %v423 = vsel %vm422, %v421, 0
      %v424 = vshrl.u32 %v423, 5
      %v425 = vand.u32 %v423, 31
      %v426 = vsub.s32 32, %v425
      %v427 = vshrl.u32 683565275, %v426
      %v428 = vshll.u32 683565275, %v425
      %v429 = vshrl.u32 2475754826, %v426
      %v430 = vor.u32 %v428, %v429
      %v431 = vshll.u32 2475754826, %v425
      %v432 = vshrl.u32 2131351028, %v426
      %v433 = vor.u32 %v431, %v432
      %v434 = vshll.u32 2131351028, %v425
      %v435 = vshrl.u32 2102212464, %v426
      %v436 = vor.u32 %v434, %v435
      %v437 = vshll.u32 2102212464, %v425
      %v438 = vshrl.u32 920167782, %v426
      %v439 = vor.u32 %v437, %v438
      %v440 = vshll.u32 920167782, %v425
      %v441 = vshrl.u32 1326507024, %v426
      %v442 = vor.u32 %v440, %v441
      %vm443 = vcmp.lt.s32.totalorder %v424, 1
      %vm444 = vcmp.lt.s32.totalorder %v424, 2
      %vm445 = vcmp.lt.s32.totalorder %v424, 3
      %vm446 = vcmp.lt.s32.totalorder %v424, 4
      %v447 = vsel %vm443, %v427, %v430
      %v448 = vsel %vm446, %v436, 2102212464
      %v449 = vsel %vm445, %v433, %v448
      %v450 = vsel %vm444, %v447, %v449
      %v451 = vsel %vm443, %v430, %v433
      %v452 = vsel %vm446, %v439, 920167782
      %v453 = vsel %vm445, %v436, %v452
      %v454 = vsel %vm444, %v451, %v453
      %v455 = vsel %vm443, %v433, %v436
      %v456 = vsel %vm446, %v442, 1326507024
      %v457 = vsel %vm445, %v439, %v456
      %v458 = vsel %vm444, %v455, %v457
      %v459 = vshll.u32 %v419, 8
      %v460 = vand.u32 %v459, 65535
      %v461 = vshrl.u32 %v459, 16
      %v462 = vand.u32 %v458, 65535
      %v463 = vshrl.u32 %v458, 16
      %v464 = vmul.u32 %v460, %v462
      %v465 = vmul.u32 %v460, %v463
      %v466 = vmul.u32 %v461, %v462
      %v467 = vmul.u32 %v461, %v463
      %v468 = vshll.u32 %v465, 16
      %v469 = vshrl.u32 %v465, 16
      %v470 = vshll.u32 %v466, 16
      %v471 = vshrl.u32 %v466, 16
      %vm472 = vc.u32 %v464, %v468
      %v473 = vsel %vm472, 1, 0
      %v474 = vadd.s32 %v464, %v468
      %v475 = vadd.s32 %v467, %v473
      %vm476 = vc.u32 %v474, %v470
      %v477 = vsel %vm476, 1, 0
      %v478 = vadd.s32 %v474, %v470
      %v479 = vadd.s32 %v475, %v477
      %v480 = vadd.s32 %v479, %v469
      %v481 = vadd.s32 %v480, %v471
      %v482 = vand.u32 %v459, 65535
      %v483 = vshrl.u32 %v459, 16
      %v484 = vand.u32 %v454, 65535
      %v485 = vshrl.u32 %v454, 16
      %v486 = vmul.u32 %v482, %v484
      %v487 = vmul.u32 %v482, %v485
      %v488 = vmul.u32 %v483, %v484
      %v489 = vmul.u32 %v483, %v485
      %v490 = vshll.u32 %v487, 16
      %v491 = vshrl.u32 %v487, 16
      %v492 = vshll.u32 %v488, 16
      %v493 = vshrl.u32 %v488, 16
      %vm494 = vc.u32 %v486, %v490
      %v495 = vsel %vm494, 1, 0
      %v496 = vadd.s32 %v486, %v490
      %v497 = vadd.s32 %v489, %v495
      %vm498 = vc.u32 %v496, %v492
      %v499 = vsel %vm498, 1, 0
      %v500 = vadd.s32 %v496, %v492
      %v501 = vadd.s32 %v497, %v499
      %v502 = vadd.s32 %v501, %v491
      %v503 = vadd.s32 %v502, %v493
      %v504 = vmul.u32 %v459, %v450
      %v505 = vadd.s32 %v481, %v500
      %vm506 = vc.u32 %v481, %v500
      %v507 = vadd.s32 %v503, 1
      %v508 = vsel %vm506, %v507, %v503
      %v509 = vadd.s32 %v504, %v508
      %v510 = vadd.s32 %v509, 536870912
      %v511 = vshrl.u32 %v510, 30
      %v512 = vshll.u32 %v511, 30
      %v513 = vsub.s32 %v509, %v512
      %vm514 = vcmp.lt.s32.totalorder %v513, 0
      %v515 = vsub.s32 0, %v513
      %v516 = vsel %vm514, %v515, %v513
      %v517 = vclz %v516
      %v518 = vsub.s32 %v517, 2
      %vm519 = vcmp.gt.s32.totalorder 0, %v518
      %v520 = vsel %vm519, 0, %v518
      %v521 = vsub.s32 32, %v520
      %v522 = vshll.u32 %v513, %v520
      %v523 = vshrl.u32 %v505, %v521
      %v524 = vor.u32 %v522, %v523
      %v525 = vsub.s32 4294967266, %v520
      %v526 = vadd.s32 %v525, 127
      %v527 = vshll.u32 %v526, 23
      %v528 = vor.u32 4788187, %v527
      %v529 = vand.u32 2147483647, %v528
      %v531 = vcvt.s32.f32 %v524
      %v532 = vmul.f32 %v531, %v529
      %v533 = vxor.u32 %v532, 2147483648
      %v534 = vsel %vm413, %v533, %v532
      %v535 = vsub.s32 4, %v511
      %v536 = vsel %vm413, %v535, %v511
      %v537 = vsel %vm412, %v409, %v534
      %v538 = vsel %vm412, 0, %v536
      %v539 = vmul.f32 %v537, %v537
      %v540 = vmul.f32 %v539, -0.001358992
      %v541 = vadd.f32 %v540, 0.041655596
      %v542 = vmul.f32 %v539, %v541
      %v543 = vadd.f32 %v542, -0.4999988
      %v544 = vmul.f32 %v539, %v543
      %v545 = vadd.f32 1.0, %v544
      %v546 = vmul.f32 %v537, %v537
      %v547 = vmul.f32 %v546, -0.00019511016
      %v548 = vadd.f32 %v547, 0.008332121
      %v549 = vmul.f32 %v546, %v548
      %v550 = vadd.f32 %v549, -0.16666654
      %v551 = vmul.f32 %v546, %v550
      %v552 = vadd.f32 %v551, 1.0
      %v553 = vmul.f32 %v552, %v537
      %vm554 = vweird.f32 %v409
      %v555 = vadd.s32 %v538, 3
      %v556 = vand.u32 %v555, 3
      %vm557 = vcmp.lt.s32.totalorder %v556, 2
      %vm558 = vcmp.eq.s32.totalorder %v556, 0
      %v559 = vxor.u32 %v553, 2147483648
      %v560 = vsel %vm558, %v545, %v559
      %vm561 = vcmp.eq.s32.totalorder %v556, 2
      %v562 = vxor.u32 %v545, 2147483648
      %v563 = vsel %vm561, %v562, %v553
      %v564 = vsel %vm557, %v560, %v563
      %v565 = vsel %vm554, nan, %v564
      %v566 = vand.u32 2147483647, %v410
      %vm567 = vcmp.le.f32.partialorder %v566, 0.7853982
      %vm568 = vcmp.lt.s32.totalorder %v410, 0
      %v569 = vand.u32 %v410, 2139095040
      %v570 = vshrl.u32 %v569, 23
      %v571 = vsub.s32 %v570, 127
      %v572 = vand.u32 2147483647, %v410
      %v573 = vand.u32 %v572, 8388607
      %v574 = vor.u32 %v573, 8388608
      %v575 = vsub.s32 0, %v574
      %v576 = vadd.s32 %v571, 1
      %vm577 = vcmp.gt.s32.totalorder %v576, 0
      %v578 = vsel %vm577, %v576, 0
      %v579 = vshrl.u32 %v578, 5
      %v580 = vand.u32 %v578, 31
      %v581 = vsub.s32 32, %v580
      %v582 = vshrl.u32 683565275, %v581
      %v583 = vshll.u32 683565275, %v580
      %v584 = vshrl.u32 2475754826, %v581
      %v585 = vor.u32 %v583, %v584
      %v586 = vshll.u32 2475754826, %v580
      %v587 = vshrl.u32 2131351028, %v581
      %v588 = vor.u32 %v586, %v587
      %v589 = vshll.u32 2131351028, %v580
      %v590 = vshrl.u32 2102212464, %v581
      %v591 = vor.u32 %v589, %v590
      %v592 = vshll.u32 2102212464, %v580
      %v593 = vshrl.u32 920167782, %v581
      %v594 = vor.u32 %v592, %v593
      %v595 = vshll.u32 920167782, %v580
      %v596 = vshrl.u32 1326507024, %v581
      %v597 = vor.u32 %v595, %v596
      %vm598 = vcmp.lt.s32.totalorder %v579, 1
      %vm599 = vcmp.lt.s32.totalorder %v579, 2
      %vm600 = vcmp.lt.s32.totalorder %v579, 3
      %vm601 = vcmp.lt.s32.totalorder %v579, 4
      %v602 = vsel %vm598, %v582, %v585
      %v603 = vsel %vm601, %v591, 2102212464
      %v604 = vsel %vm600, %v588, %v603
      %v605 = vsel %vm599, %v602, %v604
      %v606 = vsel %vm598, %v585, %v588
      %v607 = vsel %vm601, %v594, 920167782
      %v608 = vsel %vm600, %v591, %v607
      %v609 = vsel %vm599, %v606, %v608
      %v610 = vsel %vm598, %v588, %v591
      %v611 = vsel %vm601, %v597, 1326507024
      %v612 = vsel %vm600, %v594, %v611
      %v613 = vsel %vm599, %v610, %v612
      %v614 = vshll.u32 %v574, 8
      %v615 = vand.u32 %v614, 65535
      %v616 = vshrl.u32 %v614, 16
      %v617 = vand.u32 %v613, 65535
      %v618 = vshrl.u32 %v613, 16
      %v619 = vmul.u32 %v615, %v617
      %v620 = vmul.u32 %v615, %v618
      %v621 = vmul.u32 %v616, %v617
      %v622 = vmul.u32 %v616, %v618
      %v623 = vshll.u32 %v620, 16
      %v624 = vshrl.u32 %v620, 16
      %v625 = vshll.u32 %v621, 16
      %v626 = vshrl.u32 %v621, 16
      %vm627 = vc.u32 %v619, %v623
      %v628 = vsel %vm627, 1, 0
      %v629 = vadd.s32 %v619, %v623
      %v630 = vadd.s32 %v622, %v628
      %vm631 = vc.u32 %v629, %v625
      %v632 = vsel %vm631, 1, 0
      %v633 = vadd.s32 %v629, %v625
      %v634 = vadd.s32 %v630, %v632
      %v635 = vadd.s32 %v634, %v624
      %v636 = vadd.s32 %v635, %v626
      %v637 = vand.u32 %v614, 65535
      %v638 = vshrl.u32 %v614, 16
      %v639 = vand.u32 %v609, 65535
      %v640 = vshrl.u32 %v609, 16
      %v641 = vmul.u32 %v637, %v639
      %v642 = vmul.u32 %v637, %v640
      %v643 = vmul.u32 %v638, %v639
      %v644 = vmul.u32 %v638, %v640
      %v645 = vshll.u32 %v642, 16
      %v646 = vshrl.u32 %v642, 16
      %v647 = vshll.u32 %v643, 16
      %v648 = vshrl.u32 %v643, 16
      %vm649 = vc.u32 %v641, %v645
      %v650 = vsel %vm649, 1, 0
      %v651 = vadd.s32 %v641, %v645
      %v652 = vadd.s32 %v644, %v650
      %vm653 = vc.u32 %v651, %v647
      %v654 = vsel %vm653, 1, 0
      %v655 = vadd.s32 %v651, %v647
      %v656 = vadd.s32 %v652, %v654
      %v657 = vadd.s32 %v656, %v646
      %v658 = vadd.s32 %v657, %v648
      %v659 = vmul.u32 %v614, %v605
      %v660 = vadd.s32 %v636, %v655
      %vm661 = vc.u32 %v636, %v655
      %v662 = vadd.s32 %v658, 1
      %v663 = vsel %vm661, %v662, %v658
      %v664 = vadd.s32 %v659, %v663
      %v665 = vadd.s32 %v664, 536870912
      %v666 = vshrl.u32 %v665, 30
      %v667 = vshll.u32 %v666, 30
      %v668 = vsub.s32 %v664, %v667
      %vm669 = vcmp.lt.s32.totalorder %v668, 0
      %v670 = vsub.s32 0, %v668
      %v671 = vsel %vm669, %v670, %v668
      %v672 = vclz %v671
      %v673 = vsub.s32 %v672, 2
      %vm674 = vcmp.gt.s32.totalorder 0, %v673
      %v675 = vsel %vm674, 0, %v673
      %v676 = vsub.s32 32, %v675
      %v677 = vshll.u32 %v668, %v675
      %v678 = vshrl.u32 %v660, %v676
      %v679 = vor.u32 %v677, %v678
      %v680 = vsub.s32 4294967266, %v675
      %v681 = vadd.s32 %v680, 127
      %v682 = vshll.u32 %v681, 23
      %v683 = vor.u32 4788187, %v682
      %v684 = vand.u32 2147483647, %v683
      %v686 = vcvt.s32.f32 %v679
      %v687 = vmul.f32 %v686, %v684
      %v688 = vxor.u32 %v687, 2147483648
      %v689 = vsel %vm568, %v688, %v687
      %v690 = vsub.s32 4, %v666
      %v691 = vsel %vm568, %v690, %v666
      %v692 = vsel %vm567, %v410, %v689
      %v693 = vsel %vm567, 0, %v691
      %v694 = vmul.f32 %v692, %v692
      %v695 = vmul.f32 %v694, -0.001358992
      %v696 = vadd.f32 %v695, 0.041655596
      %v697 = vmul.f32 %v694, %v696
      %v698 = vadd.f32 %v697, -0.4999988
      %v699 = vmul.f32 %v694, %v698
      %v700 = vadd.f32 1.0, %v699
      %v701 = vmul.f32 %v692, %v692
      %v702 = vmul.f32 %v701, -0.00019511016
      %v703 = vadd.f32 %v702, 0.008332121
      %v704 = vmul.f32 %v701, %v703
      %v705 = vadd.f32 %v704, -0.16666654
      %v706 = vmul.f32 %v701, %v705
      %v707 = vadd.f32 %v706, 1.0
      %v708 = vmul.f32 %v707, %v692
      %vm709 = vweird.f32 %v410
      %v710 = vadd.s32 %v693, 3
      %v711 = vand.u32 %v710, 3
      %vm712 = vcmp.lt.s32.totalorder %v711, 2
      %vm713 = vcmp.eq.s32.totalorder %v711, 0
      %v714 = vxor.u32 %v708, 2147483648
      %v715 = vsel %vm713, %v700, %v714
      %vm716 = vcmp.eq.s32.totalorder %v711, 2
      %v717 = vxor.u32 %v700, 2147483648
      %v718 = vsel %vm716, %v717, %v708
      %v719 = vsel %vm712, %v715, %v718
      %v720 = vsel %vm709, nan, %v719
      %v721 = vmul.f32 %v565, %v565
      %v722 = vmul.f32 %v720, %v720
      %724 = vset.pattern.permute.xlu0 0
      %725 = vperm.xlu0 %724, %v397
      %v726 = vpop.permute.xlu0 %725
      %729 = vset.pattern.permute.xlu0 0
      %730 = vperm.xlu0 %729, %v398
      %v731 = vpop.permute.xlu0 %730
      %v733 = vmul.f32 %v726, %v721
      %v734 = vmul.f32 %v731, %v722
      %v735 = vadd.f32 %v383, %v733
      %v736 = vadd.f32 %v384, %v734
      %v737 = vmul.f32 %v393, %v402
      %v738 = vmul.f32 %v394, %v407
      %v739 = vand.u32 2147483647, %v737
      %vm740 = vcmp.le.f32.partialorder %v739, 0.7853982
      %vm741 = vcmp.lt.s32.totalorder %v737, 0
      %v742 = vand.u32 %v737, 2139095040
      %v743 = vshrl.u32 %v742, 23
      %v744 = vsub.s32 %v743, 127
      %v745 = vand.u32 2147483647, %v737
      %v746 = vand.u32 %v745, 8388607
      %v747 = vor.u32 %v746, 8388608
      %v748 = vsub.s32 0, %v747
      %v749 = vadd.s32 %v744, 1
      %vm750 = vcmp.gt.s32.totalorder %v749, 0
      %v751 = vsel %vm750, %v749, 0
      %v752 = vshrl.u32 %v751, 5
      %v753 = vand.u32 %v751, 31
      %v754 = vsub.s32 32, %v753
      %v755 = vshrl.u32 683565275, %v754
      %v756 = vshll.u32 683565275, %v753
      %v757 = vshrl.u32 2475754826, %v754
      %v758 = vor.u32 %v756, %v757
      %v759 = vshll.u32 2475754826, %v753
      %v760 = vshrl.u32 2131351028, %v754
      %v761 = vor.u32 %v759, %v760
      %v762 = vshll.u32 2131351028, %v753
      %v763 = vshrl.u32 2102212464, %v754
      %v764 = vor.u32 %v762, %v763
      %v765 = vshll.u32 2102212464, %v753
      %v766 = vshrl.u32 920167782, %v754
      %v767 = vor.u32 %v765, %v766
      %v768 = vshll.u32 920167782, %v753
      %v769 = vshrl.u32 1326507024, %v754
      %v770 = vor.u32 %v768, %v769
      %vm771 = vcmp.lt.s32.totalorder %v752, 1
      %vm772 = vcmp.lt.s32.totalorder %v752, 2
      %vm773 = vcmp.lt.s32.totalorder %v752, 3
      %vm774 = vcmp.lt.s32.totalorder %v752, 4
      %v775 = vsel %vm771, %v755, %v758
      %v776 = vsel %vm774, %v764, 2102212464
      %v777 = vsel %vm773, %v761, %v776
      %v778 = vsel %vm772, %v775, %v777
      %v779 = vsel %vm771, %v758, %v761
      %v780 = vsel %vm774, %v767, 920167782
      %v781 = vsel %vm773, %v764, %v780
      %v782 = vsel %vm772, %v779, %v781
      %v783 = vsel %vm771, %v761, %v764
      %v784 = vsel %vm774, %v770, 1326507024
      %v785 = vsel %vm773, %v767, %v784
      %v786 = vsel %vm772, %v783, %v785
      %v787 = vshll.u32 %v747, 8
      %v788 = vand.u32 %v787, 65535
      %v789 = vshrl.u32 %v787, 16
      %v790 = vand.u32 %v786, 65535
      %v791 = vshrl.u32 %v786, 16
      %v792 = vmul.u32 %v788, %v790
      %v793 = vmul.u32 %v788, %v791
      %v794 = vmul.u32 %v789, %v790
      %v795 = vmul.u32 %v789, %v791
      %v796 = vshll.u32 %v793, 16
      %v797 = vshrl.u32 %v793, 16
      %v798 = vshll.u32 %v794, 16
      %v799 = vshrl.u32 %v794, 16
      %vm800 = vc.u32 %v792, %v796
      %v801 = vsel %vm800, 1, 0
      %v802 = vadd.s32 %v792, %v796
      %v803 = vadd.s32 %v795, %v801
      %vm804 = vc.u32 %v802, %v798
      %v805 = vsel %vm804, 1, 0
      %v806 = vadd.s32 %v802, %v798
      %v807 = vadd.s32 %v803, %v805
      %v808 = vadd.s32 %v807, %v797
      %v809 = vadd.s32 %v808, %v799
      %v810 = vand.u32 %v787, 65535
      %v811 = vshrl.u32 %v787, 16
      %v812 = vand.u32 %v782, 65535
      %v813 = vshrl.u32 %v782, 16
      %v814 = vmul.u32 %v810, %v812
      %v815 = vmul.u32 %v810, %v813
      %v816 = vmul.u32 %v811, %v812
      %v817 = vmul.u32 %v811, %v813
      %v818 = vshll.u32 %v815, 16
      %v819 = vshrl.u32 %v815, 16
      %v820 = vshll.u32 %v816, 16
      %v821 = vshrl.u32 %v816, 16
      %vm822 = vc.u32 %v814, %v818
      %v823 = vsel %vm822, 1, 0
      %v824 = vadd.s32 %v814, %v818
      %v825 = vadd.s32 %v817, %v823
      %vm826 = vc.u32 %v824, %v820
      %v827 = vsel %vm826, 1, 0
      %v828 = vadd.s32 %v824, %v820
      %v829 = vadd.s32 %v825, %v827
      %v830 = vadd.s32 %v829, %v819
      %v831 = vadd.s32 %v830, %v821
      %v832 = vmul.u32 %v787, %v778
      %v833 = vadd.s32 %v809, %v828
      %vm834 = vc.u32 %v809, %v828
      %v835 = vadd.s32 %v831, 1
      %v836 = vsel %vm834, %v835, %v831
      %v837 = vadd.s32 %v832, %v836
      %v838 = vadd.s32 %v837, 536870912
      %v839 = vshrl.u32 %v838, 30
      %v840 = vshll.u32 %v839, 30
      %v841 = vsub.s32 %v837, %v840
      %vm842 = vcmp.lt.s32.totalorder %v841, 0
      %v843 = vsub.s32 0, %v841
      %v844 = vsel %vm842, %v843, %v841
      %v845 = vclz %v844
      %v846 = vsub.s32 %v845, 2
      %vm847 = vcmp.gt.s32.totalorder 0, %v846
      %v848 = vsel %vm847, 0, %v846
      %v849 = vsub.s32 32, %v848
      %v850 = vshll.u32 %v841, %v848
      %v851 = vshrl.u32 %v833, %v849
      %v852 = vor.u32 %v850, %v851
      %v853 = vsub.s32 4294967266, %v848
      %v854 = vadd.s32 %v853, 127
      %v855 = vshll.u32 %v854, 23
      %v856 = vor.u32 4788187, %v855
      %v857 = vand.u32 2147483647, %v856
      %v859 = vcvt.s32.f32 %v852
      %v860 = vmul.f32 %v859, %v857
      %v861 = vxor.u32 %v860, 2147483648
      %v862 = vsel %vm741, %v861, %v860
      %v863 = vsub.s32 4, %v839
      %v864 = vsel %vm741, %v863, %v839
      %v865 = vsel %vm740, %v737, %v862
      %v866 = vsel %vm740, 0, %v864
      %v867 = vmul.f32 %v865, %v865
      %v868 = vmul.f32 %v867, -0.001358992
      %v869 = vadd.f32 %v868, 0.041655596
      %v870 = vmul.f32 %v867, %v869
      %v871 = vadd.f32 %v870, -0.4999988
      %v872 = vmul.f32 %v867, %v871
      %v873 = vadd.f32 1.0, %v872
      %v874 = vmul.f32 %v865, %v865
      %v875 = vmul.f32 %v874, -0.00019511016
      %v876 = vadd.f32 %v875, 0.008332121
      %v877 = vmul.f32 %v874, %v876
      %v878 = vadd.f32 %v877, -0.16666654
      %v879 = vmul.f32 %v874, %v878
      %v880 = vadd.f32 %v879, 1.0
      %v881 = vmul.f32 %v880, %v865
      %vm882 = vweird.f32 %v737
      %v883 = vadd.s32 %v866, 3
      %v884 = vand.u32 %v883, 3
      %vm885 = vcmp.lt.s32.totalorder %v884, 2
      %vm886 = vcmp.eq.s32.totalorder %v884, 0
      %v887 = vxor.u32 %v881, 2147483648
      %v888 = vsel %vm886, %v873, %v887
      %vm889 = vcmp.eq.s32.totalorder %v884, 2
      %v890 = vxor.u32 %v873, 2147483648
      %v891 = vsel %vm889, %v890, %v881
      %v892 = vsel %vm885, %v888, %v891
      %v893 = vsel %vm882, nan, %v892
      %v894 = vand.u32 2147483647, %v738
      %vm895 = vcmp.le.f32.partialorder %v894, 0.7853982
      %vm896 = vcmp.lt.s32.totalorder %v738, 0
      %v897 = vand.u32 %v738, 2139095040
      %v898 = vshrl.u32 %v897, 23
      %v899 = vsub.s32 %v898, 127
      %v900 = vand.u32 2147483647, %v738
      %v901 = vand.u32 %v900, 8388607
      %v902 = vor.u32 %v901, 8388608
      %v903 = vsub.s32 0, %v902
      %v904 = vadd.s32 %v899, 1
      %vm905 = vcmp.gt.s32.totalorder %v904, 0
      %v906 = vsel %vm905, %v904, 0
      %v907 = vshrl.u32 %v906, 5
      %v908 = vand.u32 %v906, 31
      %v909 = vsub.s32 32, %v908
      %v910 = vshrl.u32 683565275, %v909
      %v911 = vshll.u32 683565275, %v908
      %v912 = vshrl.u32 2475754826, %v909
      %v913 = vor.u32 %v911, %v912
      %v914 = vshll.u32 2475754826, %v908
      %v915 = vshrl.u32 2131351028, %v909
      %v916 = vor.u32 %v914, %v915
      %v917 = vshll.u32 2131351028, %v908
      %v918 = vshrl.u32 2102212464, %v909
      %v919 = vor.u32 %v917, %v918
      %v920 = vshll.u32 2102212464, %v908
      %v921 = vshrl.u32 920167782, %v909
      %v922 = vor.u32 %v920, %v921
      %v923 = vshll.u32 920167782, %v908
      %v924 = vshrl.u32 1326507024, %v909
      %v925 = vor.u32 %v923, %v924
      %vm926 = vcmp.lt.s32.totalorder %v907, 1
      %vm927 = vcmp.lt.s32.totalorder %v907, 2
      %vm928 = vcmp.lt.s32.totalorder %v907, 3
      %vm929 = vcmp.lt.s32.totalorder %v907, 4
      %v930 = vsel %vm926, %v910, %v913
      %v931 = vsel %vm929, %v919, 2102212464
      %v932 = vsel %vm928, %v916, %v931
      %v933 = vsel %vm927, %v930, %v932
      %v934 = vsel %vm926, %v913, %v916
      %v935 = vsel %vm929, %v922, 920167782
      %v936 = vsel %vm928, %v919, %v935
      %v937 = vsel %vm927, %v934, %v936
      %v938 = vsel %vm926, %v916, %v919
      %v939 = vsel %vm929, %v925, 1326507024
      %v940 = vsel %vm928, %v922, %v939
      %v941 = vsel %vm927, %v938, %v940
      %v942 = vshll.u32 %v902, 8
      %v943 = vand.u32 %v942, 65535
      %v944 = vshrl.u32 %v942, 16
      %v945 = vand.u32 %v941, 65535
      %v946 = vshrl.u32 %v941, 16
      %v947 = vmul.u32 %v943, %v945
      %v948 = vmul.u32 %v943, %v946
      %v949 = vmul.u32 %v944, %v945
      %v950 = vmul.u32 %v944, %v946
      %v951 = vshll.u32 %v948, 16
      %v952 = vshrl.u32 %v948, 16
      %v953 = vshll.u32 %v949, 16
      %v954 = vshrl.u32 %v949, 16
      %vm955 = vc.u32 %v947, %v951
      %v956 = vsel %vm955, 1, 0
      %v957 = vadd.s32 %v947, %v951
      %v958 = vadd.s32 %v950, %v956
      %vm959 = vc.u32 %v957, %v953
      %v960 = vsel %vm959, 1, 0
      %v961 = vadd.s32 %v957, %v953
      %v962 = vadd.s32 %v958, %v960
      %v963 = vadd.s32 %v962, %v952
      %v964 = vadd.s32 %v963, %v954
      %v965 = vand.u32 %v942, 65535
      %v966 = vshrl.u32 %v942, 16
      %v967 = vand.u32 %v937, 65535
      %v968 = vshrl.u32 %v937, 16
      %v969 = vmul.u32 %v965, %v967
      %v970 = vmul.u32 %v965, %v968
      %v971 = vmul.u32 %v966, %v967
      %v972 = vmul.u32 %v966, %v968
      %v973 = vshll.u32 %v970, 16
      %v974 = vshrl.u32 %v970, 16
      %v975 = vshll.u32 %v971, 16
      %v976 = vshrl.u32 %v971, 16
      %vm977 = vc.u32 %v969, %v973
      %v978 = vsel %vm977, 1, 0
      %v979 = vadd.s32 %v969, %v973
      %v980 = vadd.s32 %v972, %v978
      %vm981 = vc.u32 %v979, %v975
      %v982 = vsel %vm981, 1, 0
      %v983 = vadd.s32 %v979, %v975
      %v984 = vadd.s32 %v980, %v982
      %v985 = vadd.s32 %v984, %v974
      %v986 = vadd.s32 %v985, %v976
      %v987 = vmul.u32 %v942, %v933
      %v988 = vadd.s32 %v964, %v983
      %vm989 = vc.u32 %v964, %v983
      %v990 = vadd.s32 %v986, 1
      %v991 = vsel %vm989, %v990, %v986
      %v992 = vadd.s32 %v987, %v991
      %v993 = vadd.s32 %v992, 536870912
      %v994 = vshrl.u32 %v993, 30
      %v995 = vshll.u32 %v994, 30
      %v996 = vsub.s32 %v992, %v995
      %vm997 = vcmp.lt.s32.totalorder %v996, 0
      %v998 = vsub.s32 0, %v996
      %v999 = vsel %vm997, %v998, %v996
      %v1000 = vclz %v999
      %v1001 = vsub.s32 %v1000, 2
      %vm1002 = vcmp.gt.s32.totalorder 0, %v1001
      %v1003 = vsel %vm1002, 0, %v1001
      %v1004 = vsub.s32 32, %v1003
      %v1005 = vshll.u32 %v996, %v1003
      %v1006 = vshrl.u32 %v988, %v1004
      %v1007 = vor.u32 %v1005, %v1006
      %v1008 = vsub.s32 4294967266, %v1003
      %v1009 = vadd.s32 %v1008, 127
      %v1010 = vshll.u32 %v1009, 23
      %v1011 = vor.u32 4788187, %v1010
      %v1012 = vand.u32 2147483647, %v1011
      %v1014 = vcvt.s32.f32 %v1007
      %v1015 = vmul.f32 %v1014, %v1012
      %v1016 = vxor.u32 %v1015, 2147483648
      %v1017 = vsel %vm896, %v1016, %v1015
      %v1018 = vsub.s32 4, %v994
      %v1019 = vsel %vm896, %v1018, %v994
      %v1020 = vsel %vm895, %v738, %v1017
      %v1021 = vsel %vm895, 0, %v1019
      %v1022 = vmul.f32 %v1020, %v1020
      %v1023 = vmul.f32 %v1022, -0.001358992
      %v1024 = vadd.f32 %v1023, 0.041655596
      %v1025 = vmul.f32 %v1022, %v1024
      %v1026 = vadd.f32 %v1025, -0.4999988
      %v1027 = vmul.f32 %v1022, %v1026
      %v1028 = vadd.f32 1.0, %v1027
      %v1029 = vmul.f32 %v1020, %v1020
      %v1030 = vmul.f32 %v1029, -0.00019511016
      %v1031 = vadd.f32 %v1030, 0.008332121
      %v1032 = vmul.f32 %v1029, %v1031
      %v1033 = vadd.f32 %v1032, -0.16666654
      %v1034 = vmul.f32 %v1029, %v1033
      %v1035 = vadd.f32 %v1034, 1.0
      %v1036 = vmul.f32 %v1035, %v1020
      %vm1037 = vweird.f32 %v738
      %v1038 = vadd.s32 %v1021, 3
      %v1039 = vand.u32 %v1038, 3
      %vm1040 = vcmp.lt.s32.totalorder %v1039, 2
      %vm1041 = vcmp.eq.s32.totalorder %v1039, 0
      %v1042 = vxor.u32 %v1036, 2147483648
      %v1043 = vsel %vm1041, %v1028, %v1042
      %vm1044 = vcmp.eq.s32.totalorder %v1039, 2
      %v1045 = vxor.u32 %v1028, 2147483648
      %v1046 = vsel %vm1044, %v1045, %v1036
      %v1047 = vsel %vm1040, %v1043, %v1046
      %v1048 = vsel %vm1037, nan, %v1047
      %v1049 = vmul.f32 %v893, %v893
      %v1050 = vmul.f32 %v1048, %v1048
      %v1051 = vmul.f32 %v726, %v1049
      %v1052 = vmul.f32 %v731, %v1050
      %v1053 = vadd.f32 %v393, %v1051
      %v1054 = vadd.f32 %v394, %v1052
      %s1055 = smul.u32 %s21, 32
      %v1056 = vlaneseq
      %v1057 = vand.u32 %v1056, 127
      %v1058 = vstv %s1055
      %v1059 = vadd.s32 %v1058, %v1057
      %v1060 = vld [vmem:[%s271] sm:$0xff]
      %v1061 = vld [vmem:[%s271 + $0x8] sm:$0xff]
      %v1062 = vld [vmem:[%s276] sm:$0xff]
      %v1063 = vld [vmem:[%s276 + $0x8] sm:$0xff]
      %vm1064 = vcmp.lt.s32.totalorder %v1059, 2
      %vm1065 = vcmp.ge.s32.totalorder %v1059, 34
      %1067 = vset.pattern.permute.xlu0 0
      %1068 = vperm.xlu0 %1067, %v1062
      %v1069 = vpop.permute.xlu0 %1068
      %1072 = vset.pattern.permute.xlu0 0
      %1073 = vperm.xlu0 %1072, %v1063
      %v1074 = vpop.permute.xlu0 %1073
      %v1076 = vsel %vm1065, %v1069, %v735
      %v1077 = vsel %vm1065, %v1074, %v736
      %1079 = vset.pattern.permute.xlu0 0
      %1080 = vperm.xlu0 %1079, %v1060
      %v1081 = vpop.permute.xlu0 %1080
      %1084 = vset.pattern.permute.xlu0 0
      %1085 = vperm.xlu0 %1084, %v1061
      %v1086 = vpop.permute.xlu0 %1085
      %v1088 = vsel %vm1064, %v1081, %v1076
      %v1089 = vsel %vm1064, %v1086, %v1077
      %vm1090 = vcmp.lt.s32.totalorder %v1059, 3
      %vm1091 = vcmp.ge.s32.totalorder %v1059, 35
      %v1092 = vsel %vm1091, %v1069, %v1053
      %v1093 = vsel %vm1091, %v1074, %v1054
      %v1094 = vsel %vm1090, %v1081, %v1092
      %v1095 = vsel %vm1090, %v1086, %v1093
      %v1096 = vmul.f32 %v1088, 0.009389464
      %v1097 = vmul.f32 %v1089, 0.009389464
      %v1098 = vadd.f32 %v1096, 0.0
      %v1099 = vadd.f32 %v1097, 0.0
      %v1100 = vmul.f32 %v1094, 0.0020289666
      %v1101 = vmul.f32 %v1095, 0.0020289666
      %v1102 = vadd.f32 %v1098, %v1100
      %v1103 = vadd.f32 %v1099, %v1101
      %v1104 = vmul.f32 %v1088, -0.057657376
      %v1105 = vmul.f32 %v1089, -0.057657376
      %1108 = vrot.lane.b32.xlu0 %v1104, 127
      %v1109 = vpop.permute.xlu0 %1108
      %1110 = vrot.lane.b32.xlu0 %v1105, 127
      %v1111 = vpop.permute.xlu0 %1110
      %v1114 = vadd.f32 %v1102, %v1109
      %v1115 = vadd.f32 %v1103, %v1111
      %v1116 = vmul.f32 %v1094, -0.025543464
      %v1117 = vmul.f32 %v1095, -0.025543464
      %1120 = vrot.lane.b32.xlu0 %v1116, 127
      %v1121 = vpop.permute.xlu0 %1120
      %1122 = vrot.lane.b32.xlu0 %v1117, 127
      %v1123 = vpop.permute.xlu0 %1122
      %v1126 = vadd.f32 %v1114, %v1121
      %v1127 = vadd.f32 %v1115, %v1123
      %v1128 = vmul.f32 %v1088, 0.4432098
      %v1129 = vmul.f32 %v1089, 0.4432098
      %1132 = vrot.lane.b32.xlu0 %v1128, 126
      %v1133 = vpop.permute.xlu0 %1132
      %1134 = vrot.lane.b32.xlu0 %v1129, 126
      %v1135 = vpop.permute.xlu0 %1134
      %v1138 = vadd.f32 %v1126, %v1133
      %v1139 = vadd.f32 %v1127, %v1135
      %v1140 = vmul.f32 %v1094, 0.12857261
      %v1141 = vmul.f32 %v1095, 0.12857261
      %1144 = vrot.lane.b32.xlu0 %v1140, 126
      %v1145 = vpop.permute.xlu0 %1144
      %1146 = vrot.lane.b32.xlu0 %v1141, 126
      %v1147 = vpop.permute.xlu0 %1146
      %v1150 = vadd.f32 %v1138, %v1145
      %v1151 = vadd.f32 %v1139, %v1147
      %v1152 = vmul.f32 %v1088, 0.12857261
      %v1153 = vmul.f32 %v1089, 0.12857261
      %1156 = vrot.lane.b32.xlu0 %v1152, 125
      %v1157 = vpop.permute.xlu0 %1156
      %1158 = vrot.lane.b32.xlu0 %v1153, 125
      %v1159 = vpop.permute.xlu0 %1158
      %v1162 = vadd.f32 %v1150, %v1157
      %v1163 = vadd.f32 %v1151, %v1159
      %v1164 = vmul.f32 %v1094, 0.4432098
      %v1165 = vmul.f32 %v1095, 0.4432098
      %1168 = vrot.lane.b32.xlu0 %v1164, 125
      %v1169 = vpop.permute.xlu0 %1168
      %1170 = vrot.lane.b32.xlu0 %v1165, 125
      %v1171 = vpop.permute.xlu0 %1170
      %v1174 = vadd.f32 %v1162, %v1169
      %v1175 = vadd.f32 %v1163, %v1171
      %v1176 = vmul.f32 %v1088, -0.025543464
      %v1177 = vmul.f32 %v1089, -0.025543464
      %1180 = vrot.lane.b32.xlu0 %v1176, 124
      %v1181 = vpop.permute.xlu0 %1180
      %1182 = vrot.lane.b32.xlu0 %v1177, 124
      %v1183 = vpop.permute.xlu0 %1182
      %v1186 = vadd.f32 %v1174, %v1181
      %v1187 = vadd.f32 %v1175, %v1183
      %v1188 = vmul.f32 %v1094, -0.057657376
      %v1189 = vmul.f32 %v1095, -0.057657376
      %1192 = vrot.lane.b32.xlu0 %v1188, 124
      %v1193 = vpop.permute.xlu0 %1192
      %1194 = vrot.lane.b32.xlu0 %v1189, 124
      %v1195 = vpop.permute.xlu0 %1194
      %v1198 = vadd.f32 %v1186, %v1193
      %v1199 = vadd.f32 %v1187, %v1195
      %v1200 = vmul.f32 %v1088, 0.0020289666
      %v1201 = vmul.f32 %v1089, 0.0020289666
      %1204 = vrot.lane.b32.xlu0 %v1200, 123
      %v1205 = vpop.permute.xlu0 %1204
      %1206 = vrot.lane.b32.xlu0 %v1201, 123
      %v1207 = vpop.permute.xlu0 %1206
      %v1210 = vadd.f32 %v1198, %v1205
      %v1211 = vadd.f32 %v1199, %v1207
      %v1212 = vmul.f32 %v1094, 0.009389464
      %v1213 = vmul.f32 %v1095, 0.009389464
      %1216 = vrot.lane.b32.xlu0 %v1212, 123
      %v1217 = vpop.permute.xlu0 %1216
      %1218 = vrot.lane.b32.xlu0 %v1213, 123
      %v1219 = vpop.permute.xlu0 %1218
      %v1222 = vadd.f32 %v1210, %v1217
      %v1223 = vadd.f32 %v1211, %v1219
      %vm1224 = vcmask 261120
      %1225 = vst.msk [vmem:[%s284] sm:$0xff] %vm1224, %v1222
      %1226 = vst.msk [vmem:[%s284 + $0x8] sm:$0xff] %vm1224, %v1223
      %p1227 = scmp.lt.s32.totalorder %s20, 1
      %s1228 = scalar_select %p1227, %s20, 1
      %p1229 = scmp.lt.s32.totalorder %s21, 0
      %s1230 = scalar_select %p1229, %s21, 0
      %s1231 = smul.addr %s1228, 2
      %s1232 = sadd.s32 %s1230, %s1231
      %s1233 = smul.addr %s1232, 8
      %s1234 = scalar_lea.vmem %s5, %s1233
      // Predicated region
      $region41: #{forward.36} parent=39 // pred_check
        %p1235 = pneg %p168
      $region42: #{forward.36} parent=39 // pred_check_branch
        %1237 = sbr.rel (%p1235) target = $region44
      $region43: #{forward.36} parent=39 // pred_region
        _
      $region44: #{forward.36} parent=39 // pred_fallthru
        _
    $region40: #{forward.36} parent=5 // pred_fallthru
      _
    %p1238 = scmp.le.s32.totalorder 2, %s11
    // Predicated region
    $region45: #{forward.36} parent=5 // pred_check
      %p1239 = pneg %p1238
    $region46: #{forward.36} parent=5 // pred_check_branch
      %1241 = sbr.rel (%p1239) target = $region48
    $region47: #{forward.36} parent=5 // pred_region
      %s1242 = ssub.s32 %s11, 2
      // Predicated region
      $region49: #{forward.36} parent=47 // pred_check
        %p1243 = pneg %p174
      $region50: #{forward.36} parent=47 // pred_check_branch
        %1245 = sbr.rel (%p1243) target = $region52
      $region51: #{forward.36} parent=47 // pred_region
        %p1246 = scmp.lt.s32.totalorder %s22, 1
        %s1247 = scalar_select %p1246, %s22, 1
        %p1248 = scmp.lt.s32.totalorder %s23, 0
        %s1249 = scalar_select %p1248, %s23, 0
        %s1250 = smul.addr %s1247, 2
        %s1251 = sadd.s32 %s1249, %s1250
        %s1252 = smul.addr %s1251, 8
        %s1253 = scalar_lea.vmem %s5, %s1252
      $region52: #{forward.36} parent=47 // pred_fallthru
        _
    $region48: #{forward.36} parent=5 // pred_fallthru
      _
  $region6: #{forward.36} parent=0 // loop_footer
    %s15 = sadd.s32 1, %s11
  $region7: #{forward.36} parent=0 // loop_footer_branch
    %10 = sbr.rel target = $region3
  $region8: #{forward.36} parent=0 // loop_exit
    _

// kernel: forward.37
$region0: #{forward.37}
  #allocation0 [shape = 'u32[]', space=smem, size = 0x4, offset = 0x4, fixed_abs, tag = 'smem constant byte address 0x4 - core index']
  #allocation1 [shape = 'u32[72,128]{1,0:T(1,128)}', space=vmem, size = 0x9000, scoped, tag = 'internal scratch']
  %s0 = inlined_call_operand.vmem [shape: f32[2,16,34], index: 0, kind: input, shape index: {}]
  %s1 = inlined_call_operand.vmem [shape: f32[16,48], index: 1, kind: input, shape index: {}]
  %s2 = inlined_call_operand.vmem [shape: f32[16,1], index: 2, kind: input, shape index: {}]
  %s3 = inlined_call_operand.vmem [shape: f32[2,16,32], index: 3, kind: output, shape index: {}]
  %s4 = sld [smem:[#allocation0]]
  $region45: #{forward.37} parent=0
    _
  %s6 = ssub.s32 1, %s4
  %s7 = scalar_select 0, %s6, %s4
  loop: start=0, step=1, limit=4
  $region2: #{forward.37} parent=0 // loop_pre_header
    _
  $region3: #{forward.37} parent=0 // loop_header
    %s9 = sphi 0, %s13
    %p10 = scmp.ge.s32.totalorder %s9, 4
    %s16 = sphi 0, %s28
    %s17 = sphi 0, %s24
    %s18 = sphi 0, %s16
    %s19 = sphi 0, %s17
    %s20 = sphi 0, %s18
    %s21 = sphi 0, %s19
    %s31 = sphi 0, %s33
    %s34 = sphi 0, %s31
    %s35 = sphi 0, %s34
    %s51 = sphi 0, %s35
    %s55 = sphi 0, %s55
    %s57 = sphi 0, %s55
    %s58 = sphi 0, %s57
    %s72 = sphi 0, %s58
    %s76 = sphi 0, %s76
    %s78 = sphi 0, %s76
    %s79 = sphi 0, %s78
    %s93 = sphi 0, %s79
    %s101 = sphi 0, %s103
    %s104 = sphi 0, %s101
    %s105 = sphi 0, %s104
    %s121 = sphi 0, %s105
  $region4: #{forward.37} parent=0 // loop_header_branch
    %12 = sbr.rel (%p10) target = $region8
  $region5: #{forward.37} parent=0 // loop_body
    %s14 = ssub.s32 %s9, 1
    %s15 = ssub.s32 %s9, 2
    %s22 = sadd.s32 1, %s17
    %p23 = scmp.ge.s32.totalorder %s22, 1
    %s24 = scalar_select %p23, 0, %s22
    %s25 = sadd.s32 1, %s16
    %s26 = scalar_select %p23, %s25, %s16
    %p27 = scmp.ge.s32.totalorder %s26, 2
    %s28 = scalar_select %p27, 0, %s26
    %s29 = ssub.s32 %s16, %s28
    %p30 = scmp.eq.s32.totalorder %s29, 0
    %s32 = sadd.s32 %s31, 1
    %s33 = scalar_select %p30, %s31, %s32
    %p36 = pneg %p30
    %p37 = scmp.eq.s32.totalorder %s9, 1
    %p38 = por %p36, %p37
    %p39 = scmp.ne.s32.totalorder %s31, %s34
    %p40 = scmp.eq.s32.totalorder %s9, 0
    %p41 = por %p39, %p40
    %p42 = scmp.ne.s32.totalorder %s31, %s34
    %p43 = scmp.eq.s32.totalorder %s14, 1
    %p44 = por %p42, %p43
    %p45 = scmp.ne.s32.totalorder %s34, %s35
    %p46 = scmp.eq.s32.totalorder %s14, 0
    %p47 = por %p45, %p46
    %p48 = scmp.ne.s32.totalorder %s34, %s35
    %p49 = scmp.eq.s32.totalorder %s15, 1
    %p50 = por %p48, %p49
    %p52 = scmp.ne.s32.totalorder %s35, %s51
    %p53 = scmp.eq.s32.totalorder %s15, 0
    %p54 = por %p52, %p53
    %s56 = sadd.s32 %s55, 1
    %p59 = scmp.eq.s32.totalorder %s9, 1
    %p60 = scmp.ne.s32.totalorder %s55, %s57
    %p61 = scmp.eq.s32.totalorder %s9, 0
    %p62 = por %p60, %p61
    %p63 = scmp.ne.s32.totalorder %s55, %s57
    %p64 = scmp.eq.s32.totalorder %s14, 1
    %p65 = por %p63, %p64
    %p66 = scmp.ne.s32.totalorder %s57, %s58
    %p67 = scmp.eq.s32.totalorder %s14, 0
    %p68 = por %p66, %p67
    %p69 = scmp.ne.s32.totalorder %s57, %s58
    %p70 = scmp.eq.s32.totalorder %s15, 1
    %p71 = por %p69, %p70
    %p73 = scmp.ne.s32.totalorder %s58, %s72
    %p74 = scmp.eq.s32.totalorder %s15, 0
    %p75 = por %p73, %p74
    %s77 = sadd.s32 %s76, 1
    %p80 = scmp.eq.s32.totalorder %s9, 1
    %p81 = scmp.ne.s32.totalorder %s76, %s78
    %p82 = scmp.eq.s32.totalorder %s9, 0
    %p83 = por %p81, %p82
    %p84 = scmp.ne.s32.totalorder %s76, %s78
    %p85 = scmp.eq.s32.totalorder %s14, 1
    %p86 = por %p84, %p85
    %p87 = scmp.ne.s32.totalorder %s78, %s79
    %p88 = scmp.eq.s32.totalorder %s14, 0
    %p89 = por %p87, %p88
    %p90 = scmp.ne.s32.totalorder %s78, %s79
    %p91 = scmp.eq.s32.totalorder %s15, 1
    %p92 = por %p90, %p91
    %p94 = scmp.ne.s32.totalorder %s79, %s93
    %p95 = scmp.eq.s32.totalorder %s15, 0
    %p96 = por %p94, %p95
    %s97 = ssub.s32 %s16, %s28
    %s98 = ssub.s32 %s17, %s24
    %s99 = sor.u32 %s97, %s98
    %p100 = scmp.eq.s32.totalorder %s99, 0
    %s102 = sadd.s32 %s101, 1
    %s103 = scalar_select %p100, %s101, %s102
    %p106 = pneg %p100
    %p107 = scmp.eq.s32.totalorder %s9, 1
    %p108 = por %p106, %p107
    %p109 = scmp.ne.s32.totalorder %s101, %s104
    %p110 = scmp.eq.s32.totalorder %s9, 0
    %p111 = por %p109, %p110
    %p112 = scmp.ne.s32.totalorder %s101, %s104
    %p113 = scmp.eq.s32.totalorder %s14, 1
    %p114 = por %p112, %p113
    %p115 = scmp.ne.s32.totalorder %s104, %s105
    %p116 = scmp.eq.s32.totalorder %s14, 0
    %p117 = por %p115, %p116
    %p118 = scmp.ne.s32.totalorder %s104, %s105
    %p119 = scmp.eq.s32.totalorder %s15, 1
    %p120 = por %p118, %p119
    %p122 = scmp.ne.s32.totalorder %s105, %s121
    %p123 = scmp.eq.s32.totalorder %s15, 0
    %p124 = por %p122, %p123
    %p125 = scmp.le.s32.totalorder 1, %s9
    %p126 = scmp.lt.s32.totalorder %s9, 3
    %p127 = pnand %p125, %p126
    %p128 = pneg %p127
    // Predicated region
    $region9: #{forward.37} parent=5 // pred_check
      _
    $region10: #{forward.37} parent=5 // pred_check_branch
      %130 = sbr.rel (%p127) target = $region12
    $region11: #{forward.37} parent=5 // pred_region
      %s131 = ssub.s32 %s9, 1
      // Predicated region
      $region13: #{forward.37} parent=11 // pred_check
        %p132 = pneg %p68
      $region14: #{forward.37} parent=11 // pred_check_branch
        %134 = sbr.rel (%p132) target = $region16
      $region15: #{forward.37} parent=11 // pred_region
        _
      $region16: #{forward.37} parent=11 // pred_fallthru
        _
      // Predicated region
      $region17: #{forward.37} parent=11 // pred_check
        %p135 = pneg %p89
      $region18: #{forward.37} parent=11 // pred_check_branch
        %137 = sbr.rel (%p135) target = $region20
      $region19: #{forward.37} parent=11 // pred_region
        _
      $region20: #{forward.37} parent=11 // pred_fallthru
        _
    $region12: #{forward.37} parent=5 // pred_fallthru
      _
    %p138 = scmp.lt.s32.totalorder %s9, 2
    // Predicated region
    $region21: #{forward.37} parent=5 // pred_check
      %p139 = pneg %p138
    $region22: #{forward.37} parent=5 // pred_check_branch
      %141 = sbr.rel (%p139) target = $region24
    $region23: #{forward.37} parent=5 // pred_region
      // Predicated region
      $region25: #{forward.37} parent=23 // pred_check
        %p142 = pneg %p41
      $region26: #{forward.37} parent=23 // pred_check_branch
        %144 = sbr.rel (%p142) target = $region28
      $region27: #{forward.37} parent=23 // pred_region
        %p145 = scmp.lt.s32.totalorder %s16, 1
        %s146 = scalar_select %p145, %s16, 1
        %s147 = smul.addr %s146, 2
        %s148 = smul.addr %s147, 8
        %s149 = scalar_lea.vmem %s0, %s148
      $region28: #{forward.37} parent=23 // pred_fallthru
        _
    $region24: #{forward.37} parent=5 // pred_fallthru
      _
    %p150 = scmp.le.s32.totalorder 1, %s9
    %p151 = scmp.lt.s32.totalorder %s9, 3
    %p152 = pnand %p150, %p151
    %p153 = pneg %p152
    // Predicated region
    $region29: #{forward.37} parent=5 // pred_check
      _
    $region30: #{forward.37} parent=5 // pred_check_branch
      %155 = sbr.rel (%p152) target = $region32
    $region31: #{forward.37} parent=5 // pred_region
      %s156 = ssub.s32 %s9, 1
      %p157 = scmp.lt.s32.totalorder %s18, 1
      %s158 = scalar_select %p157, %s18, 1
      %s159 = smul.addr %s158, 2
      %s160 = smul.addr %s159, 8
      %s161 = scalar_lea.vmem %s0, %s160
      %p162 = pneg %p47
      %p163 = pneg %p44
      %p164 = pneg %p68
      %p165 = pneg %p65
      %p166 = pneg %p89
      %p167 = pneg %p86
      %p168 = pneg %p117
      %p169 = pneg %p114
      %p170 = scmp.lt.s32.totalorder %s18, 1
      %s171 = scalar_select %p170, %s18, 1
      %p172 = scmp.lt.s32.totalorder %s19, 0
      %s173 = scalar_select %p172, %s19, 0
      %s174 = smul.addr %s171, 2
      %s175 = sadd.s32 %s173, %s174
      %s176 = smul.addr %s175, 8
      %s177 = scalar_lea.vmem %s3, %s176
      %p178 = scmp.lt.s32.totalorder %s18, 1
      %s179 = scalar_select %p178, %s18, 1
      %s180 = smul.addr %s179, 2
      %s181 = smul.addr %s180, 8
      %s182 = scalar_lea.vmem %s0, %s181
      %p183 = scmp.lt.s32.totalorder %s18, 1
      %s184 = scalar_select %p183, %s18, 1
      %p185 = scmp.lt.s32.totalorder %s19, 0
      %s186 = scalar_select %p185, %s19, 0
      %s187 = smul.addr %s184, 2
      %s188 = sadd.s32 %s186, %s187
      %s189 = smul.addr %s188, 8
      %s190 = scalar_lea.vmem %s3, %s189
      %v191 = vld [vmem:[%s182] sm:$0xff]
      %v192 = vld [vmem:[%s182 + $0x8] sm:$0xff]
      %195 = vrot.lane.b32.xlu0 %v191, 127
      %v196 = vpop.permute.xlu0 %195
      %197 = vrot.lane.b32.xlu0 %v192, 127
      %v198 = vpop.permute.xlu0 %197
      %201 = vrot.lane.b32.xlu0 %v191, 126
      %v202 = vpop.permute.xlu0 %201
      %203 = vrot.lane.b32.xlu0 %v192, 126
      %v204 = vpop.permute.xlu0 %203
      %v207 = vld [vmem:[%s1] sm:$0xff]
      %v208 = vld [vmem:[%s1 + $0x8] sm:$0xff]
      %v209 = vld [vmem:[%s2] sm:$0xff]
      %v210 = vld [vmem:[%s2 + $0x8] sm:$0xff]
      %212 = vset.pattern.permute.xlu0 0
      %213 = vperm.xlu0 %212, %v209
      %v214 = vpop.permute.xlu0 %213
      %217 = vset.pattern.permute.xlu0 0
      %218 = vperm.xlu0 %217, %v210
      %v219 = vpop.permute.xlu0 %218
      %vm221 = vcmask 392192
      %v223 = vsel %vm221, %v207, 0
      %v226 = vsel %vm221, %v208, 0
      %228 = vmatpush.msra.mxu0 0.0
      %229 = vmatpush.msra.mxu0 0.0
      %230 = vmatpush.msra.mxu0 0.0
      %231 = vmatpush.msra.mxu0 0.0
      %232 = vmatpush.msra.mxu0 0.0
      %233 = vmatpush.msra.mxu0 0.0
      %234 = vmatpush.msra.mxu0 0.0
      %235 = vmatpush.msra.mxu0 0.0
      %236 = vmatpush.msra.mxu0 0.0
      %237 = vmatpush.msra.mxu0 0.0
      %238 = vmatpush.msra.mxu0 %v204
      %239 = vmatpush.msra.mxu0 %v202
      %240 = vmatpush.msra.mxu0 %v198
      %241 = vmatpush.msra.mxu0 %v196
      %242 = vmatpush.msra.mxu0 %v192
      %243 = vmatpush.msra.mxu0 %v191
      %244 = vmatmul.f32.gmra.mxu0 %v223
      %v245 = vpop.f32.mrf.mxu0
      %v246 = vadd.f32 %v214, %v245
      %247 = vmatmul.f32.gmra.mxu0 %v226
      %v248 = vpop.f32.mrf.mxu0
      %v249 = vadd.f32 %v219, %v248
      %250 = vdwg.mxu0
      %vm251 = vcmask 261120
      %252 = vst.msk [vmem:[%s190] sm:$0xff] %vm251, %v246
      %253 = vst.msk [vmem:[%s190 + $0x8] sm:$0xff] %vm251, %v249
      %p254 = scmp.lt.s32.totalorder %s18, 1
      %s255 = scalar_select %p254, %s18, 1
      %p256 = scmp.lt.s32.totalorder %s19, 0
      %s257 = scalar_select %p256, %s19, 0
      %s258 = smul.addr %s255, 2
      %s259 = sadd.s32 %s257, %s258
      %s260 = smul.addr %s259, 8
      %s261 = scalar_lea.vmem %s3, %s260
      // Predicated region
      $region33: #{forward.37} parent=31 // pred_check
        %p262 = pneg %p114
      $region34: #{forward.37} parent=31 // pred_check_branch
        %264 = sbr.rel (%p262) target = $region36
      $region35: #{forward.37} parent=31 // pred_region
        _
      $region36: #{forward.37} parent=31 // pred_fallthru
        _
    $region32: #{forward.37} parent=5 // pred_fallthru
      _
    %p265 = scmp.le.s32.totalorder 2, %s9
    // Predicated region
    $region37: #{forward.37} parent=5 // pred_check
      %p266 = pneg %p265
    $region38: #{forward.37} parent=5 // pred_check_branch
      %268 = sbr.rel (%p266) target = $region40
    $region39: #{forward.37} parent=5 // pred_region
      %s269 = ssub.s32 %s9, 2
      // Predicated region
      $region41: #{forward.37} parent=39 // pred_check
        %p270 = pneg %p120
      $region42: #{forward.37} parent=39 // pred_check_branch
        %272 = sbr.rel (%p270) target = $region44
      $region43: #{forward.37} parent=39 // pred_region
        %p273 = scmp.lt.s32.totalorder %s20, 1
        %s274 = scalar_select %p273, %s20, 1
        %p275 = scmp.lt.s32.totalorder %s21, 0
        %s276 = scalar_select %p275, %s21, 0
        %s277 = smul.addr %s274, 2
        %s278 = sadd.s32 %s276, %s277
        %s279 = smul.addr %s278, 8
        %s280 = scalar_lea.vmem %s3, %s279
      $region44: #{forward.37} parent=39 // pred_fallthru
        _
    $region40: #{forward.37} parent=5 // pred_fallthru
      _
  $region6: #{forward.37} parent=0 // loop_footer
    %s13 = sadd.s32 1, %s9
  $region7: #{forward.37} parent=0 // loop_footer_branch
    %8 = sbr.rel target = $region3
  $region8: #{forward.37} parent=0 // loop_exit
    _

// kernel: forward.39
$region0: #{forward.39}
  #allocation0 [shape = 'u32[]', space=smem, size = 0x4, offset = 0x4, fixed_abs, tag = 'smem constant byte address 0x4 - core index']
  #allocation1 [shape = 'u32[72,128]{1,0:T(1,128)}', space=vmem, size = 0x9000, scoped, tag = 'internal scratch']
  %s0 = inlined_call_operand.vmem [shape: f32[2,16,34], index: 0, kind: input, shape index: {}]
  %s1 = inlined_call_operand.vmem [shape: f32[16,48], index: 1, kind: input, shape index: {}]
  %s2 = inlined_call_operand.vmem [shape: f32[16,1], index: 2, kind: input, shape index: {}]
  %s3 = inlined_call_operand.vmem [shape: f32[2,16,32], index: 3, kind: input, shape index: {}]
  %s4 = inlined_call_operand.vmem [shape: f32[2,16,32], index: 4, kind: output, shape index: {}]
  %s5 = sld [smem:[#allocation0]]
  $region49: #{forward.39} parent=0
    _
  %s7 = ssub.s32 1, %s5
  %s8 = scalar_select 0, %s7, %s5
  loop: start=0, step=1, limit=4
  $region2: #{forward.39} parent=0 // loop_pre_header
    _
  $region3: #{forward.39} parent=0 // loop_header
    %s10 = sphi 0, %s14
    %p11 = scmp.ge.s32.totalorder %s10, 4
    %s17 = sphi 0, %s29
    %s18 = sphi 0, %s25
    %s19 = sphi 0, %s17
    %s20 = sphi 0, %s18
    %s21 = sphi 0, %s19
    %s22 = sphi 0, %s20
    %s32 = sphi 0, %s34
    %s35 = sphi 0, %s32
    %s36 = sphi 0, %s35
    %s52 = sphi 0, %s36
    %s56 = sphi 0, %s56
    %s58 = sphi 0, %s56
    %s59 = sphi 0, %s58
    %s73 = sphi 0, %s59
    %s77 = sphi 0, %s77
    %s79 = sphi 0, %s77
    %s80 = sphi 0, %s79
    %s94 = sphi 0, %s80
    %s102 = sphi 0, %s104
    %s105 = sphi 0, %s102
    %s106 = sphi 0, %s105
    %s122 = sphi 0, %s106
    %s130 = sphi 0, %s132
    %s133 = sphi 0, %s130
    %s134 = sphi 0, %s133
    %s150 = sphi 0, %s134
  $region4: #{forward.39} parent=0 // loop_header_branch
    %13 = sbr.rel (%p11) target = $region8
  $region5: #{forward.39} parent=0 // loop_body
    %s15 = ssub.s32 %s10, 1
    %s16 = ssub.s32 %s10, 2
    %s23 = sadd.s32 1, %s18
    %p24 = scmp.ge.s32.totalorder %s23, 1
    %s25 = scalar_select %p24, 0, %s23
    %s26 = sadd.s32 1, %s17
    %s27 = scalar_select %p24, %s26, %s17
    %p28 = scmp.ge.s32.totalorder %s27, 2
    %s29 = scalar_select %p28, 0, %s27
    %s30 = ssub.s32 %s17, %s29
    %p31 = scmp.eq.s32.totalorder %s30, 0
    %s33 = sadd.s32 %s32, 1
    %s34 = scalar_select %p31, %s32, %s33
    %p37 = pneg %p31
    %p38 = scmp.eq.s32.totalorder %s10, 1
    %p39 = por %p37, %p38
    %p40 = scmp.ne.s32.totalorder %s32, %s35
    %p41 = scmp.eq.s32.totalorder %s10, 0
    %p42 = por %p40, %p41
    %p43 = scmp.ne.s32.totalorder %s32, %s35
    %p44 = scmp.eq.s32.totalorder %s15, 1
    %p45 = por %p43, %p44
    %p46 = scmp.ne.s32.totalorder %s35, %s36
    %p47 = scmp.eq.s32.totalorder %s15, 0
    %p48 = por %p46, %p47
    %p49 = scmp.ne.s32.totalorder %s35, %s36
    %p50 = scmp.eq.s32.totalorder %s16, 1
    %p51 = por %p49, %p50
    %p53 = scmp.ne.s32.totalorder %s36, %s52
    %p54 = scmp.eq.s32.totalorder %s16, 0
    %p55 = por %p53, %p54
    %s57 = sadd.s32 %s56, 1
    %p60 = scmp.eq.s32.totalorder %s10, 1
    %p61 = scmp.ne.s32.totalorder %s56, %s58
    %p62 = scmp.eq.s32.totalorder %s10, 0
    %p63 = por %p61, %p62
    %p64 = scmp.ne.s32.totalorder %s56, %s58
    %p65 = scmp.eq.s32.totalorder %s15, 1
    %p66 = por %p64, %p65
    %p67 = scmp.ne.s32.totalorder %s58, %s59
    %p68 = scmp.eq.s32.totalorder %s15, 0
    %p69 = por %p67, %p68
    %p70 = scmp.ne.s32.totalorder %s58, %s59
    %p71 = scmp.eq.s32.totalorder %s16, 1
    %p72 = por %p70, %p71
    %p74 = scmp.ne.s32.totalorder %s59, %s73
    %p75 = scmp.eq.s32.totalorder %s16, 0
    %p76 = por %p74, %p75
    %s78 = sadd.s32 %s77, 1
    %p81 = scmp.eq.s32.totalorder %s10, 1
    %p82 = scmp.ne.s32.totalorder %s77, %s79
    %p83 = scmp.eq.s32.totalorder %s10, 0
    %p84 = por %p82, %p83
    %p85 = scmp.ne.s32.totalorder %s77, %s79
    %p86 = scmp.eq.s32.totalorder %s15, 1
    %p87 = por %p85, %p86
    %p88 = scmp.ne.s32.totalorder %s79, %s80
    %p89 = scmp.eq.s32.totalorder %s15, 0
    %p90 = por %p88, %p89
    %p91 = scmp.ne.s32.totalorder %s79, %s80
    %p92 = scmp.eq.s32.totalorder %s16, 1
    %p93 = por %p91, %p92
    %p95 = scmp.ne.s32.totalorder %s80, %s94
    %p96 = scmp.eq.s32.totalorder %s16, 0
    %p97 = por %p95, %p96
    %s98 = ssub.s32 %s17, %s29
    %s99 = ssub.s32 %s18, %s25
    %s100 = sor.u32 %s98, %s99
    %p101 = scmp.eq.s32.totalorder %s100, 0
    %s103 = sadd.s32 %s102, 1
    %s104 = scalar_select %p101, %s102, %s103
    %p107 = pneg %p101
    %p108 = scmp.eq.s32.totalorder %s10, 1
    %p109 = por %p107, %p108
    %p110 = scmp.ne.s32.totalorder %s102, %s105
    %p111 = scmp.eq.s32.totalorder %s10, 0
    %p112 = por %p110, %p111
    %p113 = scmp.ne.s32.totalorder %s102, %s105
    %p114 = scmp.eq.s32.totalorder %s15, 1
    %p115 = por %p113, %p114
    %p116 = scmp.ne.s32.totalorder %s105, %s106
    %p117 = scmp.eq.s32.totalorder %s15, 0
    %p118 = por %p116, %p117
    %p119 = scmp.ne.s32.totalorder %s105, %s106
    %p120 = scmp.eq.s32.totalorder %s16, 1
    %p121 = por %p119, %p120
    %p123 = scmp.ne.s32.totalorder %s106, %s122
    %p124 = scmp.eq.s32.totalorder %s16, 0
    %p125 = por %p123, %p124
    %s126 = ssub.s32 %s17, %s29
    %s127 = ssub.s32 %s18, %s25
    %s128 = sor.u32 %s126, %s127
    %p129 = scmp.eq.s32.totalorder %s128, 0
    %s131 = sadd.s32 %s130, 1
    %s132 = scalar_select %p129, %s130, %s131
    %p135 = pneg %p129
    %p136 = scmp.eq.s32.totalorder %s10, 1
    %p137 = por %p135, %p136
    %p138 = scmp.ne.s32.totalorder %s130, %s133
    %p139 = scmp.eq.s32.totalorder %s10, 0
    %p140 = por %p138, %p139
    %p141 = scmp.ne.s32.totalorder %s130, %s133
    %p142 = scmp.eq.s32.totalorder %s15, 1
    %p143 = por %p141, %p142
    %p144 = scmp.ne.s32.totalorder %s133, %s134
    %p145 = scmp.eq.s32.totalorder %s15, 0
    %p146 = por %p144, %p145
    %p147 = scmp.ne.s32.totalorder %s133, %s134
    %p148 = scmp.eq.s32.totalorder %s16, 1
    %p149 = por %p147, %p148
    %p151 = scmp.ne.s32.totalorder %s134, %s150
    %p152 = scmp.eq.s32.totalorder %s16, 0
    %p153 = por %p151, %p152
    %p154 = scmp.le.s32.totalorder 1, %s10
    %p155 = scmp.lt.s32.totalorder %s10, 3
    %p156 = pnand %p154, %p155
    %p157 = pneg %p156
    // Predicated region
    $region9: #{forward.39} parent=5 // pred_check
      _
    $region10: #{forward.39} parent=5 // pred_check_branch
      %159 = sbr.rel (%p156) target = $region12
    $region11: #{forward.39} parent=5 // pred_region
      %s160 = ssub.s32 %s10, 1
      // Predicated region
      $region13: #{forward.39} parent=11 // pred_check
        %p161 = pneg %p69
      $region14: #{forward.39} parent=11 // pred_check_branch
        %163 = sbr.rel (%p161) target = $region16
      $region15: #{forward.39} parent=11 // pred_region
        _
      $region16: #{forward.39} parent=11 // pred_fallthru
        _
      // Predicated region
      $region17: #{forward.39} parent=11 // pred_check
        %p164 = pneg %p90
      $region18: #{forward.39} parent=11 // pred_check_branch
        %166 = sbr.rel (%p164) target = $region20
      $region19: #{forward.39} parent=11 // pred_region
        _
      $region20: #{forward.39} parent=11 // pred_fallthru
        _
    $region12: #{forward.39} parent=5 // pred_fallthru
      _
    %p167 = scmp.lt.s32.totalorder %s10, 2
    // Predicated region
    $region21: #{forward.39} parent=5 // pred_check
      %p168 = pneg %p167
    $region22: #{forward.39} parent=5 // pred_check_branch
      %170 = sbr.rel (%p168) target = $region24
    $region23: #{forward.39} parent=5 // pred_region
      // Predicated region
      $region25: #{forward.39} parent=23 // pred_check
        %p171 = pneg %p42
      $region26: #{forward.39} parent=23 // pred_check_branch
        %173 = sbr.rel (%p171) target = $region28
      $region27: #{forward.39} parent=23 // pred_region
        %p174 = scmp.lt.s32.totalorder %s17, 1
        %s175 = scalar_select %p174, %s17, 1
        %s176 = smul.addr %s175, 2
        %s177 = smul.addr %s176, 8
        %s178 = scalar_lea.vmem %s0, %s177
      $region28: #{forward.39} parent=23 // pred_fallthru
        _
      // Predicated region
      $region29: #{forward.39} parent=23 // pred_check
        %p179 = pneg %p112
      $region30: #{forward.39} parent=23 // pred_check_branch
        %181 = sbr.rel (%p179) target = $region32
      $region31: #{forward.39} parent=23 // pred_region
        %p182 = scmp.lt.s32.totalorder %s17, 1
        %s183 = scalar_select %p182, %s17, 1
        %p184 = scmp.lt.s32.totalorder %s18, 0
        %s185 = scalar_select %p184, %s18, 0
        %s186 = smul.addr %s183, 2
        %s187 = sadd.s32 %s185, %s186
        %s188 = smul.addr %s187, 8
        %s189 = scalar_lea.vmem %s3, %s188
      $region32: #{forward.39} parent=23 // pred_fallthru
        _
    $region24: #{forward.39} parent=5 // pred_fallthru
      _
    %p190 = scmp.le.s32.totalorder 1, %s10
    %p191 = scmp.lt.s32.totalorder %s10, 3
    %p192 = pnand %p190, %p191
    %p193 = pneg %p192
    // Predicated region
    $region33: #{forward.39} parent=5 // pred_check
      _
    $region34: #{forward.39} parent=5 // pred_check_branch
      %195 = sbr.rel (%p192) target = $region36
    $region35: #{forward.39} parent=5 // pred_region
      %s196 = ssub.s32 %s10, 1
      %p197 = scmp.lt.s32.totalorder %s19, 1
      %s198 = scalar_select %p197, %s19, 1
      %s199 = smul.addr %s198, 2
      %s200 = smul.addr %s199, 8
      %s201 = scalar_lea.vmem %s0, %s200
      %p202 = pneg %p48
      %p203 = pneg %p45
      %p204 = pneg %p69
      %p205 = pneg %p66
      %p206 = pneg %p90
      %p207 = pneg %p87
      %p208 = scmp.lt.s32.totalorder %s19, 1
      %s209 = scalar_select %p208, %s19, 1
      %p210 = scmp.lt.s32.totalorder %s20, 0
      %s211 = scalar_select %p210, %s20, 0
      %s212 = smul.addr %s209, 2
      %s213 = sadd.s32 %s211, %s212
      %s214 = smul.addr %s213, 8
      %s215 = scalar_lea.vmem %s3, %s214
      %p216 = pneg %p118
      %p217 = pneg %p115
      %p218 = pneg %p146
      %p219 = pneg %p143
      %p220 = scmp.lt.s32.totalorder %s19, 1
      %s221 = scalar_select %p220, %s19, 1
      %p222 = scmp.lt.s32.totalorder %s20, 0
      %s223 = scalar_select %p222, %s20, 0
      %s224 = smul.addr %s221, 2
      %s225 = sadd.s32 %s223, %s224
      %s226 = smul.addr %s225, 8
      %s227 = scalar_lea.vmem %s4, %s226
      %p228 = scmp.lt.s32.totalorder %s19, 1
      %s229 = scalar_select %p228, %s19, 1
      %s230 = smul.addr %s229, 2
      %s231 = smul.addr %s230, 8
      %s232 = scalar_lea.vmem %s0, %s231
      %p233 = scmp.lt.s32.totalorder %s19, 1
      %s234 = scalar_select %p233, %s19, 1
      %p235 = scmp.lt.s32.totalorder %s20, 0
      %s236 = scalar_select %p235, %s20, 0
      %s237 = smul.addr %s234, 2
      %s238 = sadd.s32 %s236, %s237
      %s239 = smul.addr %s238, 8
      %s240 = scalar_lea.vmem %s3, %s239
      %p241 = scmp.lt.s32.totalorder %s19, 1
      %s242 = scalar_select %p241, %s19, 1
      %p243 = scmp.lt.s32.totalorder %s20, 0
      %s244 = scalar_select %p243, %s20, 0
      %s245 = smul.addr %s242, 2
      %s246 = sadd.s32 %s244, %s245
      %s247 = smul.addr %s246, 8
      %s248 = scalar_lea.vmem %s4, %s247
      %v249 = vld [vmem:[%s232] sm:$0xff]
      %v250 = vld [vmem:[%s232 + $0x8] sm:$0xff]
      %253 = vrot.lane.b32.xlu0 %v249, 127
      %v254 = vpop.permute.xlu0 %253
      %255 = vrot.lane.b32.xlu0 %v250, 127
      %v256 = vpop.permute.xlu0 %255
      %259 = vrot.lane.b32.xlu0 %v249, 126
      %v260 = vpop.permute.xlu0 %259
      %261 = vrot.lane.b32.xlu0 %v250, 126
      %v262 = vpop.permute.xlu0 %261
      %v265 = vld [vmem:[%s1] sm:$0xff]
      %v266 = vld [vmem:[%s1 + $0x8] sm:$0xff]
      %v267 = vld [vmem:[%s2] sm:$0xff]
      %v268 = vld [vmem:[%s2 + $0x8] sm:$0xff]
      %270 = vset.pattern.permute.xlu0 0
      %271 = vperm.xlu0 %270, %v267
      %v272 = vpop.permute.xlu0 %271
      %275 = vset.pattern.permute.xlu0 0
      %276 = vperm.xlu0 %275, %v268
      %v277 = vpop.permute.xlu0 %276
      %vm279 = vcmask 392192
      %v281 = vsel %vm279, %v265, 0
      %v284 = vsel %vm279, %v266, 0
      %286 = vmatpush.msra.mxu0 0.0
      %287 = vmatpush.msra.mxu0 0.0
      %288 = vmatpush.msra.mxu0 0.0
      %289 = vmatpush.msra.mxu0 0.0
      %290 = vmatpush.msra.mxu0 0.0
      %291 = vmatpush.msra.mxu0 0.0
      %292 = vmatpush.msra.mxu0 0.0
      %293 = vmatpush.msra.mxu0 0.0
      %294 = vmatpush.msra.mxu0 0.0
      %295 = vmatpush.msra.mxu0 0.0
      %296 = vmatpush.msra.mxu0 %v262
      %297 = vmatpush.msra.mxu0 %v260
      %298 = vmatpush.msra.mxu0 %v256
      %299 = vmatpush.msra.mxu0 %v254
      %300 = vmatpush.msra.mxu0 %v250
      %301 = vmatpush.msra.mxu0 %v249
      %302 = vmatmul.f32.gmra.mxu0 %v281
      %v303 = vpop.f32.mrf.mxu0
      %v304 = vadd.f32 %v272, %v303
      %305 = vmatmul.f32.gmra.mxu0 %v284
      %v306 = vpop.f32.mrf.mxu0
      %v307 = vadd.f32 %v277, %v306
      %308 = vdwg.mxu0
      %v309 = vld [vmem:[%s240] sm:$0xff]
      %v310 = vld [vmem:[%s240 + $0x8] sm:$0xff]
      %v311 = vadd.f32 %v304, %v309
      %v312 = vadd.f32 %v307, %v310
      %vm313 = vcmask 261120
      %314 = vst.msk [vmem:[%s248] sm:$0xff] %vm313, %v311
      %315 = vst.msk [vmem:[%s248 + $0x8] sm:$0xff] %vm313, %v312
      %p316 = scmp.lt.s32.totalorder %s19, 1
      %s317 = scalar_select %p316, %s19, 1
      %p318 = scmp.lt.s32.totalorder %s20, 0
      %s319 = scalar_select %p318, %s20, 0
      %s320 = smul.addr %s317, 2
      %s321 = sadd.s32 %s319, %s320
      %s322 = smul.addr %s321, 8
      %s323 = scalar_lea.vmem %s4, %s322
      // Predicated region
      $region37: #{forward.39} parent=35 // pred_check
        %p324 = pneg %p143
      $region38: #{forward.39} parent=35 // pred_check_branch
        %326 = sbr.rel (%p324) target = $region40
      $region39: #{forward.39} parent=35 // pred_region
        _
      $region40: #{forward.39} parent=35 // pred_fallthru
        _
    $region36: #{forward.39} parent=5 // pred_fallthru
      _
    %p327 = scmp.le.s32.totalorder 2, %s10
    // Predicated region
    $region41: #{forward.39} parent=5 // pred_check
      %p328 = pneg %p327
    $region42: #{forward.39} parent=5 // pred_check_branch
      %330 = sbr.rel (%p328) target = $region44
    $region43: #{forward.39} parent=5 // pred_region
      %s331 = ssub.s32 %s10, 2
      // Predicated region
      $region45: #{forward.39} parent=43 // pred_check
        %p332 = pneg %p149
      $region46: #{forward.39} parent=43 // pred_check_branch
        %334 = sbr.rel (%p332) target = $region48
      $region47: #{forward.39} parent=43 // pred_region
        %p335 = scmp.lt.s32.totalorder %s21, 1
        %s336 = scalar_select %p335, %s21, 1
        %p337 = scmp.lt.s32.totalorder %s22, 0
        %s338 = scalar_select %p337, %s22, 0
        %s339 = smul.addr %s336, 2
        %s340 = sadd.s32 %s338, %s339
        %s341 = smul.addr %s340, 8
        %s342 = scalar_lea.vmem %s4, %s341
      $region48: #{forward.39} parent=43 // pred_fallthru
        _
    $region44: #{forward.39} parent=5 // pred_fallthru
      _
  $region6: #{forward.39} parent=0 // loop_footer
    %s14 = sadd.s32 1, %s10
  $region7: #{forward.39} parent=0 // loop_footer_branch
    %9 = sbr.rel target = $region3
  $region8: #{forward.39} parent=0 // loop_exit
    _

// kernel: forward.41
$region0: #{forward.41}
  #allocation0 [shape = 'u32[]', space=smem, size = 0x4, offset = 0x4, fixed_abs, tag = 'smem constant byte address 0x4 - core index']
  #allocation1 [shape = 'u32[72,128]{1,0:T(1,128)}', space=vmem, size = 0x9000, scoped, tag = 'internal scratch']
  %s0 = inlined_call_operand.vmem [shape: f32[2,16,38], index: 0, kind: input, shape index: {}]
  %s1 = inlined_call_operand.vmem [shape: f32[16,48], index: 1, kind: input, shape index: {}]
  %s2 = inlined_call_operand.vmem [shape: f32[16,1], index: 2, kind: input, shape index: {}]
  %s3 = inlined_call_operand.vmem [shape: f32[2,16,32], index: 3, kind: output, shape index: {}]
  %s4 = sld [smem:[#allocation0]]
  $region45: #{forward.41} parent=0
    _
  %s6 = ssub.s32 1, %s4
  %s7 = scalar_select 0, %s6, %s4
  loop: start=0, step=1, limit=4
  $region2: #{forward.41} parent=0 // loop_pre_header
    _
  $region3: #{forward.41} parent=0 // loop_header
    %s9 = sphi 0, %s13
    %p10 = scmp.ge.s32.totalorder %s9, 4
    %s16 = sphi 0, %s28
    %s17 = sphi 0, %s24
    %s18 = sphi 0, %s16
    %s19 = sphi 0, %s17
    %s20 = sphi 0, %s18
    %s21 = sphi 0, %s19
    %s31 = sphi 0, %s33
    %s34 = sphi 0, %s31
    %s35 = sphi 0, %s34
    %s51 = sphi 0, %s35
    %s55 = sphi 0, %s55
    %s57 = sphi 0, %s55
    %s58 = sphi 0, %s57
    %s72 = sphi 0, %s58
    %s76 = sphi 0, %s76
    %s78 = sphi 0, %s76
    %s79 = sphi 0, %s78
    %s93 = sphi 0, %s79
    %s101 = sphi 0, %s103
    %s104 = sphi 0, %s101
    %s105 = sphi 0, %s104
    %s121 = sphi 0, %s105
  $region4: #{forward.41} parent=0 // loop_header_branch
    %12 = sbr.rel (%p10) target = $region8
  $region5: #{forward.41} parent=0 // loop_body
    %s14 = ssub.s32 %s9, 1
    %s15 = ssub.s32 %s9, 2
    %s22 = sadd.s32 1, %s17
    %p23 = scmp.ge.s32.totalorder %s22, 1
    %s24 = scalar_select %p23, 0, %s22
    %s25 = sadd.s32 1, %s16
    %s26 = scalar_select %p23, %s25, %s16
    %p27 = scmp.ge.s32.totalorder %s26, 2
    %s28 = scalar_select %p27, 0, %s26
    %s29 = ssub.s32 %s16, %s28
    %p30 = scmp.eq.s32.totalorder %s29, 0
    %s32 = sadd.s32 %s31, 1
    %s33 = scalar_select %p30, %s31, %s32
    %p36 = pneg %p30
    %p37 = scmp.eq.s32.totalorder %s9, 1
    %p38 = por %p36, %p37
    %p39 = scmp.ne.s32.totalorder %s31, %s34
    %p40 = scmp.eq.s32.totalorder %s9, 0
    %p41 = por %p39, %p40
    %p42 = scmp.ne.s32.totalorder %s31, %s34
    %p43 = scmp.eq.s32.totalorder %s14, 1
    %p44 = por %p42, %p43
    %p45 = scmp.ne.s32.totalorder %s34, %s35
    %p46 = scmp.eq.s32.totalorder %s14, 0
    %p47 = por %p45, %p46
    %p48 = scmp.ne.s32.totalorder %s34, %s35
    %p49 = scmp.eq.s32.totalorder %s15, 1
    %p50 = por %p48, %p49
    %p52 = scmp.ne.s32.totalorder %s35, %s51
    %p53 = scmp.eq.s32.totalorder %s15, 0
    %p54 = por %p52, %p53
    %s56 = sadd.s32 %s55, 1
    %p59 = scmp.eq.s32.totalorder %s9, 1
    %p60 = scmp.ne.s32.totalorder %s55, %s57
    %p61 = scmp.eq.s32.totalorder %s9, 0
    %p62 = por %p60, %p61
    %p63 = scmp.ne.s32.totalorder %s55, %s57
    %p64 = scmp.eq.s32.totalorder %s14, 1
    %p65 = por %p63, %p64
    %p66 = scmp.ne.s32.totalorder %s57, %s58
    %p67 = scmp.eq.s32.totalorder %s14, 0
    %p68 = por %p66, %p67
    %p69 = scmp.ne.s32.totalorder %s57, %s58
    %p70 = scmp.eq.s32.totalorder %s15, 1
    %p71 = por %p69, %p70
    %p73 = scmp.ne.s32.totalorder %s58, %s72
    %p74 = scmp.eq.s32.totalorder %s15, 0
    %p75 = por %p73, %p74
    %s77 = sadd.s32 %s76, 1
    %p80 = scmp.eq.s32.totalorder %s9, 1
    %p81 = scmp.ne.s32.totalorder %s76, %s78
    %p82 = scmp.eq.s32.totalorder %s9, 0
    %p83 = por %p81, %p82
    %p84 = scmp.ne.s32.totalorder %s76, %s78
    %p85 = scmp.eq.s32.totalorder %s14, 1
    %p86 = por %p84, %p85
    %p87 = scmp.ne.s32.totalorder %s78, %s79
    %p88 = scmp.eq.s32.totalorder %s14, 0
    %p89 = por %p87, %p88
    %p90 = scmp.ne.s32.totalorder %s78, %s79
    %p91 = scmp.eq.s32.totalorder %s15, 1
    %p92 = por %p90, %p91
    %p94 = scmp.ne.s32.totalorder %s79, %s93
    %p95 = scmp.eq.s32.totalorder %s15, 0
    %p96 = por %p94, %p95
    %s97 = ssub.s32 %s16, %s28
    %s98 = ssub.s32 %s17, %s24
    %s99 = sor.u32 %s97, %s98
    %p100 = scmp.eq.s32.totalorder %s99, 0
    %s102 = sadd.s32 %s101, 1
    %s103 = scalar_select %p100, %s101, %s102
    %p106 = pneg %p100
    %p107 = scmp.eq.s32.totalorder %s9, 1
    %p108 = por %p106, %p107
    %p109 = scmp.ne.s32.totalorder %s101, %s104
    %p110 = scmp.eq.s32.totalorder %s9, 0
    %p111 = por %p109, %p110
    %p112 = scmp.ne.s32.totalorder %s101, %s104
    %p113 = scmp.eq.s32.totalorder %s14, 1
    %p114 = por %p112, %p113
    %p115 = scmp.ne.s32.totalorder %s104, %s105
    %p116 = scmp.eq.s32.totalorder %s14, 0
    %p117 = por %p115, %p116
    %p118 = scmp.ne.s32.totalorder %s104, %s105
    %p119 = scmp.eq.s32.totalorder %s15, 1
    %p120 = por %p118, %p119
    %p122 = scmp.ne.s32.totalorder %s105, %s121
    %p123 = scmp.eq.s32.totalorder %s15, 0
    %p124 = por %p122, %p123
    %p125 = scmp.le.s32.totalorder 1, %s9
    %p126 = scmp.lt.s32.totalorder %s9, 3
    %p127 = pnand %p125, %p126
    %p128 = pneg %p127
    // Predicated region
    $region9: #{forward.41} parent=5 // pred_check
      _
    $region10: #{forward.41} parent=5 // pred_check_branch
      %130 = sbr.rel (%p127) target = $region12
    $region11: #{forward.41} parent=5 // pred_region
      %s131 = ssub.s32 %s9, 1
      // Predicated region
      $region13: #{forward.41} parent=11 // pred_check
        %p132 = pneg %p68
      $region14: #{forward.41} parent=11 // pred_check_branch
        %134 = sbr.rel (%p132) target = $region16
      $region15: #{forward.41} parent=11 // pred_region
        _
      $region16: #{forward.41} parent=11 // pred_fallthru
        _
      // Predicated region
      $region17: #{forward.41} parent=11 // pred_check
        %p135 = pneg %p89
      $region18: #{forward.41} parent=11 // pred_check_branch
        %137 = sbr.rel (%p135) target = $region20
      $region19: #{forward.41} parent=11 // pred_region
        _
      $region20: #{forward.41} parent=11 // pred_fallthru
        _
    $region12: #{forward.41} parent=5 // pred_fallthru
      _
    %p138 = scmp.lt.s32.totalorder %s9, 2
    // Predicated region
    $region21: #{forward.41} parent=5 // pred_check
      %p139 = pneg %p138
    $region22: #{forward.41} parent=5 // pred_check_branch
      %141 = sbr.rel (%p139) target = $region24
    $region23: #{forward.41} parent=5 // pred_region
      // Predicated region
      $region25: #{forward.41} parent=23 // pred_check
        %p142 = pneg %p41
      $region26: #{forward.41} parent=23 // pred_check_branch
        %144 = sbr.rel (%p142) target = $region28
      $region27: #{forward.41} parent=23 // pred_region
        %p145 = scmp.lt.s32.totalorder %s16, 1
        %s146 = scalar_select %p145, %s16, 1
        %s147 = smul.addr %s146, 2
        %s148 = smul.addr %s147, 8
        %s149 = scalar_lea.vmem %s0, %s148
      $region28: #{forward.41} parent=23 // pred_fallthru
        _
    $region24: #{forward.41} parent=5 // pred_fallthru
      _
    %p150 = scmp.le.s32.totalorder 1, %s9
    %p151 = scmp.lt.s32.totalorder %s9, 3
    %p152 = pnand %p150, %p151
    %p153 = pneg %p152
    // Predicated region
    $region29: #{forward.41} parent=5 // pred_check
      _
    $region30: #{forward.41} parent=5 // pred_check_branch
      %155 = sbr.rel (%p152) target = $region32
    $region31: #{forward.41} parent=5 // pred_region
      %s156 = ssub.s32 %s9, 1
      %p157 = scmp.lt.s32.totalorder %s18, 1
      %s158 = scalar_select %p157, %s18, 1
      %s159 = smul.addr %s158, 2
      %s160 = smul.addr %s159, 8
      %s161 = scalar_lea.vmem %s0, %s160
      %p162 = pneg %p47
      %p163 = pneg %p44
      %p164 = pneg %p68
      %p165 = pneg %p65
      %p166 = pneg %p89
      %p167 = pneg %p86
      %p168 = pneg %p117
      %p169 = pneg %p114
      %p170 = scmp.lt.s32.totalorder %s18, 1
      %s171 = scalar_select %p170, %s18, 1
      %p172 = scmp.lt.s32.totalorder %s19, 0
      %s173 = scalar_select %p172, %s19, 0
      %s174 = smul.addr %s171, 2
      %s175 = sadd.s32 %s173, %s174
      %s176 = smul.addr %s175, 8
      %s177 = scalar_lea.vmem %s3, %s176
      %p178 = scmp.lt.s32.totalorder %s18, 1
      %s179 = scalar_select %p178, %s18, 1
      %s180 = smul.addr %s179, 2
      %s181 = smul.addr %s180, 8
      %s182 = scalar_lea.vmem %s0, %s181
      %p183 = scmp.lt.s32.totalorder %s18, 1
      %s184 = scalar_select %p183, %s18, 1
      %p185 = scmp.lt.s32.totalorder %s19, 0
      %s186 = scalar_select %p185, %s19, 0
      %s187 = smul.addr %s184, 2
      %s188 = sadd.s32 %s186, %s187
      %s189 = smul.addr %s188, 8
      %s190 = scalar_lea.vmem %s3, %s189
      %v191 = vld [vmem:[%s182] sm:$0xff]
      %v192 = vld [vmem:[%s182 + $0x8] sm:$0xff]
      %195 = vrot.lane.b32.xlu0 %v191, 125
      %v196 = vpop.permute.xlu0 %195
      %197 = vrot.lane.b32.xlu0 %v192, 125
      %v198 = vpop.permute.xlu0 %197
      %201 = vrot.lane.b32.xlu0 %v191, 122
      %v202 = vpop.permute.xlu0 %201
      %203 = vrot.lane.b32.xlu0 %v192, 122
      %v204 = vpop.permute.xlu0 %203
      %v207 = vld [vmem:[%s1] sm:$0xff]
      %v208 = vld [vmem:[%s1 + $0x8] sm:$0xff]
      %v209 = vld [vmem:[%s2] sm:$0xff]
      %v210 = vld [vmem:[%s2 + $0x8] sm:$0xff]
      %212 = vset.pattern.permute.xlu0 0
      %213 = vperm.xlu0 %212, %v209
      %v214 = vpop.permute.xlu0 %213
      %217 = vset.pattern.permute.xlu0 0
      %218 = vperm.xlu0 %217, %v210
      %v219 = vpop.permute.xlu0 %218
      %vm221 = vcmask 392192
      %v223 = vsel %vm221, %v207, 0
      %v226 = vsel %vm221, %v208, 0
      %228 = vmatpush.msra.mxu0 0.0
      %229 = vmatpush.msra.mxu0 0.0
      %230 = vmatpush.msra.mxu0 0.0
      %231 = vmatpush.msra.mxu0 0.0
      %232 = vmatpush.msra.mxu0 0.0
      %233 = vmatpush.msra.mxu0 0.0
      %234 = vmatpush.msra.mxu0 0.0
      %235 = vmatpush.msra.mxu0 0.0
      %236 = vmatpush.msra.mxu0 0.0
      %237 = vmatpush.msra.mxu0 0.0
      %238 = vmatpush.msra.mxu0 %v204
      %239 = vmatpush.msra.mxu0 %v202
      %240 = vmatpush.msra.mxu0 %v198
      %241 = vmatpush.msra.mxu0 %v196
      %242 = vmatpush.msra.mxu0 %v192
      %243 = vmatpush.msra.mxu0 %v191
      %244 = vmatmul.f32.gmra.mxu0 %v223
      %v245 = vpop.f32.mrf.mxu0
      %v246 = vadd.f32 %v214, %v245
      %247 = vmatmul.f32.gmra.mxu0 %v226
      %v248 = vpop.f32.mrf.mxu0
      %v249 = vadd.f32 %v219, %v248
      %250 = vdwg.mxu0
      %vm251 = vcmask 261120
      %252 = vst.msk [vmem:[%s190] sm:$0xff] %vm251, %v246
      %253 = vst.msk [vmem:[%s190 + $0x8] sm:$0xff] %vm251, %v249
      %p254 = scmp.lt.s32.totalorder %s18, 1
      %s255 = scalar_select %p254, %s18, 1
      %p256 = scmp.lt.s32.totalorder %s19, 0
      %s257 = scalar_select %p256, %s19, 0
      %s258 = smul.addr %s255, 2
      %s259 = sadd.s32 %s257, %s258
      %s260 = smul.addr %s259, 8
      %s261 = scalar_lea.vmem %s3, %s260
      // Predicated region
      $region33: #{forward.41} parent=31 // pred_check
        %p262 = pneg %p114
      $region34: #{forward.41} parent=31 // pred_check_branch
        %264 = sbr.rel (%p262) target = $region36
      $region35: #{forward.41} parent=31 // pred_region
        _
      $region36: #{forward.41} parent=31 // pred_fallthru
        _
    $region32: #{forward.41} parent=5 // pred_fallthru
      _
    %p265 = scmp.le.s32.totalorder 2, %s9
    // Predicated region
    $region37: #{forward.41} parent=5 // pred_check
      %p266 = pneg %p265
    $region38: #{forward.41} parent=5 // pred_check_branch
      %268 = sbr.rel (%p266) target = $region40
    $region39: #{forward.41} parent=5 // pred_region
      %s269 = ssub.s32 %s9, 2
      // Predicated region
      $region41: #{forward.41} parent=39 // pred_check
        %p270 = pneg %p120
      $region42: #{forward.41} parent=39 // pred_check_branch
        %272 = sbr.rel (%p270) target = $region44
      $region43: #{forward.41} parent=39 // pred_region
        %p273 = scmp.lt.s32.totalorder %s20, 1
        %s274 = scalar_select %p273, %s20, 1
        %p275 = scmp.lt.s32.totalorder %s21, 0
        %s276 = scalar_select %p275, %s21, 0
        %s277 = smul.addr %s274, 2
        %s278 = sadd.s32 %s276, %s277
        %s279 = smul.addr %s278, 8
        %s280 = scalar_lea.vmem %s3, %s279
      $region44: #{forward.41} parent=39 // pred_fallthru
        _
    $region40: #{forward.41} parent=5 // pred_fallthru
      _
  $region6: #{forward.41} parent=0 // loop_footer
    %s13 = sadd.s32 1, %s9
  $region7: #{forward.41} parent=0 // loop_footer_branch
    %8 = sbr.rel target = $region3
  $region8: #{forward.41} parent=0 // loop_exit
    _

// kernel: forward.45
$region0: #{forward.45}
  #allocation0 [shape = 'u32[]', space=smem, size = 0x4, offset = 0x4, fixed_abs, tag = 'smem constant byte address 0x4 - core index']
  #allocation1 [shape = 'u32[72,128]{1,0:T(1,128)}', space=vmem, size = 0x9000, scoped, tag = 'internal scratch']
  #allocation2 [shape = 'f32[1,1]{1,0:T(1,128)S(1)}', space=vmem, size = 0x200, scoped, tag = 'scoped memory for forward.45']
  %s0 = inlined_call_operand.vmem [shape: f32[2,16,38], index: 0, kind: input, shape index: {}]
  %s1 = inlined_call_operand.vmem [shape: f32[1,112], index: 1, kind: input, shape index: {}]
  %s2 = inlined_call_operand.<no memory space> [shape: f32[1,1], index: 2, kind: input, shape index: {}]
  %s3 = inlined_call_operand.hbm [shape: f32[2,1,32], index: 3, kind: output, shape index: {}]
  %s4 = sld [smem:[#allocation0]]
  $region45: #{forward.45} parent=0
    _
  %s6 = ssub.s32 1, %s4
  %s7 = scalar_select 0, %s6, %s4
  %v8 = vstv %s2
  %9 = vst [vmem:[#allocation2] sm:$0x1] %v8
  $region1: #{forward.45} parent=0
    #allocation3 [shape = 'u8[1024]{0}', space=vmem, size = 0x400, scoped, tag = 'output window, operand 0']
    #allocation4 [shape = 's32[2]{0}', space=sflag, size = 0x8, scoped, tag = 'scoped memory for forward.45']
    %10 = vsyncpa [#allocation4], 0
    %s11 = scalar_lea.sflag [#allocation4], 1
    %12 = vsyncpa %s11, 0
    loop: start=0, step=1, limit=4
    $region2: #{forward.45} parent=1 // loop_pre_header
      _
    $region3: #{forward.45} parent=1 // loop_header
      %s14 = sphi 0, %s18
      %p15 = scmp.ge.s32.totalorder %s14, 4
      %s21 = sphi 0, %s33
      %s22 = sphi 0, %s29
      %s23 = sphi 0, %s21
      %s24 = sphi 0, %s22
      %s25 = sphi 0, %s23
      %s26 = sphi 0, %s24
      %s36 = sphi 0, %s38
      %s39 = sphi 0, %s36
      %s40 = sphi 0, %s39
      %s56 = sphi 0, %s40
      %s60 = sphi 0, %s60
      %s62 = sphi 0, %s60
      %s63 = sphi 0, %s62
      %s77 = sphi 0, %s63
      %s81 = sphi 0, %s81
      %s83 = sphi 0, %s81
      %s84 = sphi 0, %s83
      %s98 = sphi 0, %s84
      %s106 = sphi 0, %s108
      %s109 = sphi 0, %s106
      %s110 = sphi 0, %s109
      %s126 = sphi 0, %s110
    $region4: #{forward.45} parent=1 // loop_header_branch
      %17 = sbr.rel (%p15) target = $region8
    $region5: #{forward.45} parent=1 // loop_body
      %s19 = ssub.s32 %s14, 1
      %s20 = ssub.s32 %s14, 2
      %s27 = sadd.s32 1, %s22
      %p28 = scmp.ge.s32.totalorder %s27, 1
      %s29 = scalar_select %p28, 0, %s27
      %s30 = sadd.s32 1, %s21
      %s31 = scalar_select %p28, %s30, %s21
      %p32 = scmp.ge.s32.totalorder %s31, 2
      %s33 = scalar_select %p32, 0, %s31
      %s34 = ssub.s32 %s21, %s33
      %p35 = scmp.eq.s32.totalorder %s34, 0
      %s37 = sadd.s32 %s36, 1
      %s38 = scalar_select %p35, %s36, %s37
      %p41 = pneg %p35
      %p42 = scmp.eq.s32.totalorder %s14, 1
      %p43 = por %p41, %p42
      %p44 = scmp.ne.s32.totalorder %s36, %s39
      %p45 = scmp.eq.s32.totalorder %s14, 0
      %p46 = por %p44, %p45
      %p47 = scmp.ne.s32.totalorder %s36, %s39
      %p48 = scmp.eq.s32.totalorder %s19, 1
      %p49 = por %p47, %p48
      %p50 = scmp.ne.s32.totalorder %s39, %s40
      %p51 = scmp.eq.s32.totalorder %s19, 0
      %p52 = por %p50, %p51
      %p53 = scmp.ne.s32.totalorder %s39, %s40
      %p54 = scmp.eq.s32.totalorder %s20, 1
      %p55 = por %p53, %p54
      %p57 = scmp.ne.s32.totalorder %s40, %s56
      %p58 = scmp.eq.s32.totalorder %s20, 0
      %p59 = por %p57, %p58
      %s61 = sadd.s32 %s60, 1
      %p64 = scmp.eq.s32.totalorder %s14, 1
      %p65 = scmp.ne.s32.totalorder %s60, %s62
      %p66 = scmp.eq.s32.totalorder %s14, 0
      %p67 = por %p65, %p66
      %p68 = scmp.ne.s32.totalorder %s60, %s62
      %p69 = scmp.eq.s32.totalorder %s19, 1
      %p70 = por %p68, %p69
      %p71 = scmp.ne.s32.totalorder %s62, %s63
      %p72 = scmp.eq.s32.totalorder %s19, 0
      %p73 = por %p71, %p72
      %p74 = scmp.ne.s32.totalorder %s62, %s63
      %p75 = scmp.eq.s32.totalorder %s20, 1
      %p76 = por %p74, %p75
      %p78 = scmp.ne.s32.totalorder %s63, %s77
      %p79 = scmp.eq.s32.totalorder %s20, 0
      %p80 = por %p78, %p79
      %s82 = sadd.s32 %s81, 1
      %p85 = scmp.eq.s32.totalorder %s14, 1
      %p86 = scmp.ne.s32.totalorder %s81, %s83
      %p87 = scmp.eq.s32.totalorder %s14, 0
      %p88 = por %p86, %p87
      %p89 = scmp.ne.s32.totalorder %s81, %s83
      %p90 = scmp.eq.s32.totalorder %s19, 1
      %p91 = por %p89, %p90
      %p92 = scmp.ne.s32.totalorder %s83, %s84
      %p93 = scmp.eq.s32.totalorder %s19, 0
      %p94 = por %p92, %p93
      %p95 = scmp.ne.s32.totalorder %s83, %s84
      %p96 = scmp.eq.s32.totalorder %s20, 1
      %p97 = por %p95, %p96
      %p99 = scmp.ne.s32.totalorder %s84, %s98
      %p100 = scmp.eq.s32.totalorder %s20, 0
      %p101 = por %p99, %p100
      %s102 = ssub.s32 %s21, %s33
      %s103 = ssub.s32 %s22, %s29
      %s104 = sor.u32 %s102, %s103
      %p105 = scmp.eq.s32.totalorder %s104, 0
      %s107 = sadd.s32 %s106, 1
      %s108 = scalar_select %p105, %s106, %s107
      %p111 = pneg %p105
      %p112 = scmp.eq.s32.totalorder %s14, 1
      %p113 = por %p111, %p112
      %p114 = scmp.ne.s32.totalorder %s106, %s109
      %p115 = scmp.eq.s32.totalorder %s14, 0
      %p116 = por %p114, %p115
      %p117 = scmp.ne.s32.totalorder %s106, %s109
      %p118 = scmp.eq.s32.totalorder %s19, 1
      %p119 = por %p117, %p118
      %p120 = scmp.ne.s32.totalorder %s109, %s110
      %p121 = scmp.eq.s32.totalorder %s19, 0
      %p122 = por %p120, %p121
      %p123 = scmp.ne.s32.totalorder %s109, %s110
      %p124 = scmp.eq.s32.totalorder %s20, 1
      %p125 = por %p123, %p124
      %p127 = scmp.ne.s32.totalorder %s110, %s126
      %p128 = scmp.eq.s32.totalorder %s20, 0
      %p129 = por %p127, %p128
      %p130 = scmp.le.s32.totalorder 1, %s14
      %p131 = scmp.lt.s32.totalorder %s14, 3
      %p132 = pnand %p130, %p131
      %p133 = pneg %p132
      // Predicated region
      $region9: #{forward.45} parent=5 // pred_check
        _
      $region10: #{forward.45} parent=5 // pred_check_branch
        %135 = sbr.rel (%p132) target = $region12
      $region11: #{forward.45} parent=5 // pred_region
        %s136 = ssub.s32 %s14, 1
        // Predicated region
        $region13: #{forward.45} parent=11 // pred_check
          %p137 = pneg %p73
        $region14: #{forward.45} parent=11 // pred_check_branch
          %139 = sbr.rel (%p137) target = $region16
        $region15: #{forward.45} parent=11 // pred_region
          _
        $region16: #{forward.45} parent=11 // pred_fallthru
          _
        // Predicated region
        $region17: #{forward.45} parent=11 // pred_check
          %p140 = pneg %p94
        $region18: #{forward.45} parent=11 // pred_check_branch
          %142 = sbr.rel (%p140) target = $region20
        $region19: #{forward.45} parent=11 // pred_region
          _
        $region20: #{forward.45} parent=11 // pred_fallthru
          _
      $region12: #{forward.45} parent=5 // pred_fallthru
        _
      %p143 = scmp.lt.s32.totalorder %s14, 2
      // Predicated region
      $region21: #{forward.45} parent=5 // pred_check
        %p144 = pneg %p143
      $region22: #{forward.45} parent=5 // pred_check_branch
        %146 = sbr.rel (%p144) target = $region24
      $region23: #{forward.45} parent=5 // pred_region
        // Predicated region
        $region25: #{forward.45} parent=23 // pred_check
          %p147 = pneg %p46
        $region26: #{forward.45} parent=23 // pred_check_branch
          %149 = sbr.rel (%p147) target = $region28
        $region27: #{forward.45} parent=23 // pred_region
          %p150 = scmp.lt.s32.totalorder %s21, 1
          %s151 = scalar_select %p150, %s21, 1
          %s152 = smul.addr %s151, 2
          %s153 = smul.addr %s152, 8
          %s154 = scalar_lea.vmem %s0, %s153
        $region28: #{forward.45} parent=23 // pred_fallthru
          _
      $region24: #{forward.45} parent=5 // pred_fallthru
        _
      %p155 = scmp.le.s32.totalorder 1, %s14
      %p156 = scmp.lt.s32.totalorder %s14, 3
      %p157 = pnand %p155, %p156
      %p158 = pneg %p157
      // Predicated region
      $region29: #{forward.45} parent=5 // pred_check
        _
      $region30: #{forward.45} parent=5 // pred_check_branch
        %160 = sbr.rel (%p157) target = $region32
      $region31: #{forward.45} parent=5 // pred_region
        %s161 = ssub.s32 %s14, 1
        %p162 = scmp.lt.s32.totalorder %s23, 1
        %s163 = scalar_select %p162, %s23, 1
        %s164 = smul.addr %s163, 2
        %s165 = smul.addr %s164, 8
        %s166 = scalar_lea.vmem %s0, %s165
        %p167 = pneg %p52
        %p168 = pneg %p49
        %p169 = pneg %p73
        %p170 = pneg %p70
        %p171 = pneg %p94
        %p172 = pneg %p91
        %p173 = pneg %p122
        %p174 = pneg %p119
        %s175 = sand.u32 %s109, 1
        %s176 = scalar_lea.sflag [#allocation4], %s175
        %s177 = sand.u32 %s109, 1
        %s178 = scalar_lea.vmem [#allocation3], %s177
        %p179 = scmp.lt.s32.totalorder %s23, 1
        %s180 = scalar_select %p179, %s23, 1
        %s181 = smul.addr %s180, 2
        %s182 = smul.addr %s181, 8
        %s183 = scalar_lea.vmem %s0, %s182
        %v184 = vld [vmem:[%s183] sm:$0xff]
        %v185 = vld [vmem:[%s183 + $0x8] sm:$0xff]
        %188 = vrot.lane.b32.xlu0 %v184, 127
        %v189 = vpop.permute.xlu0 %188
        %190 = vrot.lane.b32.xlu0 %v185, 127
        %v191 = vpop.permute.xlu0 %190
        %194 = vrot.lane.b32.xlu0 %v184, 126
        %v195 = vpop.permute.xlu0 %194
        %196 = vrot.lane.b32.xlu0 %v185, 126
        %v197 = vpop.permute.xlu0 %196
        %200 = vrot.lane.b32.xlu0 %v184, 125
        %v201 = vpop.permute.xlu0 %200
        %202 = vrot.lane.b32.xlu0 %v185, 125
        %v203 = vpop.permute.xlu0 %202
        %206 = vrot.lane.b32.xlu0 %v184, 124
        %v207 = vpop.permute.xlu0 %206
        %208 = vrot.lane.b32.xlu0 %v185, 124
        %v209 = vpop.permute.xlu0 %208
        %212 = vrot.lane.b32.xlu0 %v184, 123
        %v213 = vpop.permute.xlu0 %212
        %214 = vrot.lane.b32.xlu0 %v185, 123
        %v215 = vpop.permute.xlu0 %214
        %218 = vrot.lane.b32.xlu0 %v184, 122
        %v219 = vpop.permute.xlu0 %218
        %220 = vrot.lane.b32.xlu0 %v185, 122
        %v221 = vpop.permute.xlu0 %220
        %v224 = vld [vmem:[%s1] sm:$0x1]
        %v225 = vld [vmem:[#allocation2] sm:$0x1]
        %227 = vset.pattern.permute.xlu0 0
        %228 = vperm.xlu0 %227, %v225
        %v229 = vpop.permute.xlu0 %228
        %v231 = vperm.slane %v229, 0
        %vm232 = vcmask 916480
        %v234 = vsel %vm232, %v224, 0
        %236 = vmatpush.msra.mxu0 0.0
        %237 = vmatpush.msra.mxu0 0.0
        %238 = vmatpush.msra.mxu0 %v221
        %239 = vmatpush.msra.mxu0 %v219
        %240 = vmatpush.msra.mxu0 %v215
        %241 = vmatpush.msra.mxu0 %v213
        %242 = vmatpush.msra.mxu0 %v209
        %243 = vmatpush.msra.mxu0 %v207
        %244 = vmatpush.msra.mxu0 %v203
        %245 = vmatpush.msra.mxu0 %v201
        %246 = vmatpush.msra.mxu0 %v197
        %247 = vmatpush.msra.mxu0 %v195
        %248 = vmatpush.msra.mxu0 %v191
        %249 = vmatpush.msra.mxu0 %v189
        %250 = vmatpush.msra.mxu0 %v185
        %251 = vmatpush.msra.mxu0 %v184
        %252 = vmatmul.f32.gmra.mxu0 %v234
        %v253 = vpop.f32.mrf.mxu0
        %v254 = vadd.f32 %v231, %v253
        %255 = vdwg.mxu0
        %v256 = vtanh.pop %v254
        %vm257 = vcmask 253952
        %258 = vst.msk [vmem:[%s178] sm:$0x1] %vm257, %v256
        %s259 = sand.u32 %s109, 1
        %s260 = scalar_lea.sflag [#allocation4], %s259
        %s261 = sand.u32 %s109, 1
        %s262 = scalar_lea.vmem [#allocation3], %s261
        // Predicated region
        $region33: #{forward.45} parent=31 // pred_check
          %p263 = pneg %p119
        $region34: #{forward.45} parent=31 // pred_check_branch
          %265 = sbr.rel (%p263) target = $region36
        $region35: #{forward.45} parent=31 // pred_region
          %267 = vsyncadd %s260, 0
          %s268 = sadd.s32 %s24, %s23
          %s269 = scalar_lea.hbm %s3, %s268
          %s271 = sshll.u32 %s262, 4
          %s272 = int_to_ptr.vmem [resolvable:$true] %s271
          %s273 = sshll.u32 %s269, 4
          %s274 = int_to_ptr.hbm [resolvable:$true] %s273
          %276 = dma.vmem_to_hbm [thread:$0]  %s272, 16, %s274, %s260
        $region36: #{forward.45} parent=31 // pred_fallthru
          _
      $region32: #{forward.45} parent=5 // pred_fallthru
        _
      %p277 = scmp.le.s32.totalorder 2, %s14
      // Predicated region
      $region37: #{forward.45} parent=5 // pred_check
        %p278 = pneg %p277
      $region38: #{forward.45} parent=5 // pred_check_branch
        %280 = sbr.rel (%p278) target = $region40
      $region39: #{forward.45} parent=5 // pred_region
        %s281 = ssub.s32 %s14, 2
        // Predicated region
        $region41: #{forward.45} parent=39 // pred_check
          %p282 = pneg %p125
        $region42: #{forward.45} parent=39 // pred_check_branch
          %284 = sbr.rel (%p282) target = $region44
        $region43: #{forward.45} parent=39 // pred_region
          %s285 = sand.u32 %s110, 1
          %s286 = scalar_lea.sflag [#allocation4], %s285
          %s287 = sand.u32 %s110, 1
          %s288 = scalar_lea.vmem [#allocation3], %s287
          %290 = dma.done %s286, 16
        $region44: #{forward.45} parent=39 // pred_fallthru
          _
      $region40: #{forward.45} parent=5 // pred_fallthru
        _
    $region6: #{forward.45} parent=1 // loop_footer
      %s18 = sadd.s32 1, %s14
    $region7: #{forward.45} parent=1 // loop_footer_branch
      %13 = sbr.rel target = $region3
    $region8: #{forward.45} parent=1 // loop_exit
      _
    %291 = vsyncpa [#allocation4], 1
    %s292 = scalar_lea.sflag [#allocation4], 1
    %293 = vsyncpa %s292, 1

</llo_original>
